<compile_context>
chip_gen: v5e
topology: v5e:2x2
jax: 0.10.0
libtpu: 0.0.40
codegen_flags: <defaults>
</compile_context>

<pallas_src>
import math

import jax
import jax.numpy as jnp
from jax import lax
from jax.experimental import pallas as pl
from jax.experimental.pallas import tpu as pltpu

LANES = 128


def _round_up(x, m):
    return (x + m - 1) // m * m


# ----------------------------------------------------------------------------
# Pallas kernels: fused (A @ B) + bias (+ activation / + residual)
# ----------------------------------------------------------------------------
def _mm_bias_leaky_kernel(a_ref, b_ref, bias_ref, o_ref):
    acc = jnp.dot(a_ref[...], b_ref[...], preferred_element_type=jnp.float32)
    acc = acc + bias_ref[...]
    o_ref[...] = jnp.maximum(acc, 0.2 * acc)          # LeakyReLU(0.2)


def _mm_bias_residual_kernel(a_ref, b_ref, bias_ref, res_ref, o_ref):
    acc = jnp.dot(a_ref[...], b_ref[...], preferred_element_type=jnp.float32)
    o_ref[...] = acc + bias_ref[...] + res_ref[...]   # fused residual add


def _pick_tm(m):
    # Largest row tile that divides m while still giving >= 2 grid steps
    # (so v7x's two TensorCores both get work); fall back to a single step.
    for tm in (512, 256, 128, 64, 32, 16, 8):
        if m % tm == 0 and m // tm >= 2:
            return tm
    return m


def _fused_matmul(kernel_fn, a_bf16, b_bf16, bias, residual=None):
    """a: (M, K) bf16, b: (Kp, 128) bf16, bias: (1, 128) f32,
    residual: optional (M, 128) f32.  Returns (M, 128) f32."""
    m, k = a_bf16.shape
    kp, n_pad = b_bf16.shape
    assert n_pad == LANES

    if k != kp:                                        # pad contraction to match B
        a_bf16 = jnp.pad(a_bf16, ((0, 0), (0, kp - k)))

    mp = _round_up(m, 8)
    if mp != m:
        a_bf16 = jnp.pad(a_bf16, ((0, mp - m), (0, 0)))
        if residual is not None:
            residual = jnp.pad(residual, ((0, mp - m), (0, 0)))

    tm = _pick_tm(mp)
    in_specs = [
        pl.BlockSpec((tm, kp), lambda i: (i, 0)),
        pl.BlockSpec((kp, n_pad), lambda i: (0, 0)),
        pl.BlockSpec((1, n_pad), lambda i: (0, 0)),
    ]
    args = [a_bf16, b_bf16, bias]
    if residual is not None:
        in_specs.append(pl.BlockSpec((tm, n_pad), lambda i: (i, 0)))
        args.append(residual)

    out = pl.pallas_call(
        kernel_fn,
        out_shape=jax.ShapeDtypeStruct((mp, n_pad), jnp.float32),
        grid=(mp // tm,),
        in_specs=in_specs,
        out_specs=pl.BlockSpec((tm, n_pad), lambda i: (i, 0)),
        compiler_params=pltpu.CompilerParams(dimension_semantics=("parallel",)),
    )(*args)
    return out[:m] if mp != m else out


# ----------------------------------------------------------------------------
# im2col for a 3x3x3 / padding (1,1,1) conv, channel-last, bf16
# ----------------------------------------------------------------------------
def _im2col3d_cl(x_cl_bf16):
    n, d, h, w, c = x_cl_bf16.shape
    xp = jnp.pad(x_cl_bf16, ((0, 0), (1, 1), (1, 1), (1, 1), (0, 0)))
    taps = []
    for a in range(3):
        for i in range(3):
            for j in range(3):
                taps.append(xp[:, a:a + d, i:i + h, j:j + w, :])
    cols = jnp.stack(taps, axis=4)                     # (N, D, H, W, 27, C)
    return cols.reshape(n * d * h * w, 27 * c)


# ----------------------------------------------------------------------------
# Parameters (matches ResBlock_1._initialize_weights)
# ----------------------------------------------------------------------------
def init_resblock_params(key, an2, kernel_size=(3, 3, 3), i=1):
    kd, kh, kw = kernel_size
    if i == 0:
        sigma = math.sqrt(2.0 / (1 * an2 * kd * kh * kw))
    else:
        sigma = math.sqrt(2.0 / (an2 * an2 * kd * kh * kw))
    k1, k2 = jax.random.split(key)
    return {
        "w1": sigma * jax.random.normal(k1, (an2, an2, kd, kh, kw), jnp.float32),
        "b1": jnp.zeros((an2,), jnp.float32),
        "w2": sigma * jax.random.normal(k2, (an2, an2, kd, kh, kw), jnp.float32),
        "b2": jnp.zeros((an2,), jnp.float32),
    }


def prep_resblock_params(params):
    """Hoisted once: (Cout,Cin,kd,kh,kw) -> (K, Cout) matmul weight, K padded to
    x128, Cout padded to 128 lanes, cast to bf16 (f32 accumulation in-kernel)."""
    def prep(w, b):
        cout, cin, kd, kh, kw = w.shape
        k = kd * kh * kw * cin
        kp = _round_up(k, LANES)
        bm = jnp.transpose(w, (2, 3, 4, 1, 0)).reshape(k, cout)       # (K, Cout)
        bm = jnp.pad(bm, ((0, kp - k), (0, LANES - cout))).astype(jnp.bfloat16)
        bias = jnp.pad(b, (0, LANES - cout)).astype(jnp.float32).reshape(1, LANES)
        return bm, bias

    b1, bias1 = prep(params["w1"], params["b1"])
    b2, bias2 = prep(params["w2"], params["b2"])
    return {"B1": b1, "bias1": bias1, "B2": b2, "bias2": bias2}


# ----------------------------------------------------------------------------
# Forward pass (ResBlock_1.forward)
# ----------------------------------------------------------------------------
@jax.jit
def resblock1_forward(prepped, x):
    """x: (N, an2, D, H, W) f32 (NCDHW, as in PyTorch).  Returns same shape."""
    n, c, d, h, w = x.shape
    m = n * d * h * w

    x_cl = jnp.transpose(x, (0, 2, 3, 4, 1))                   # channel-last
    x_res = jnp.pad(x_cl.reshape(m, c), ((0, 0), (0, LANES - c)))  # f32 residual

    # conv1 + bias + LeakyReLU(0.2) fused
    a1 = _im2col3d_cl(x_cl.astype(jnp.bfloat16))
    y1 = _fused_matmul(_mm_bias_leaky_kernel, a1, prepped["B1"], prepped["bias1"])

    # conv2 + bias + residual-add fused
    y1_cl = y1[:, :c].reshape(n, d, h, w, c)
    a2 = _im2col3d_cl(y1_cl.astype(jnp.bfloat16))
    y2 = _fused_matmul(_mm_bias_residual_kernel, a2, prepped["B2"],
                       prepped["bias2"], residual=x_res)

    out_cl = y2[:, :c].reshape(n, d, h, w, c)
    return jnp.transpose(out_cl, (0, 4, 1, 2, 3))


# ----------------------------------------------------------------------------
# Plain-JAX reference (f32) for a correctness check
# ----------------------------------------------------------------------------
def resblock1_reference(params, x):
    dn = lax.conv_dimension_numbers(x.shape, params["w1"].shape,
                                    ("NCDHW", "OIDHW", "NCDHW"))

    def conv(inp, w, b):
        y = lax.conv_general_dilated(inp, w, (1, 1, 1), [(1, 1)] * 3,
                                     dimension_numbers=dn,
                                     precision=lax.Precision.HIGHEST)
        return y + b.reshape(1, -1, 1, 1, 1)

    y = conv(x, params["w1"], params["b1"])
    y = jnp.where(y >= 0.0, y, 0.2 * y)
    y = conv(y, params["w2"], params["b2"])
    return x + y


# ----------------------------------------------------------------------------
if __name__ == "__main__":
    an2 = 49                      # 7x7 angular views, as used in the parent Net
    n, d, h, w = 1, 4, 16, 16     # small shapes consistent with the module

    key = jax.random.PRNGKey(0)
    kx, kparam = jax.random.split(key)
    x = jax.random.normal(kx, (n, an2, d, h, w), jnp.float32)

    params = init_resblock_params(kparam, an2, kernel_size=(3, 3, 3), i=1)
    prepped = prep_resblock_params(params)

    out = jax.block_until_ready(resblock1_forward(prepped, x))
    assert out.shape == (n, an2, d, h, w)

    ref = jax.block_until_ready(resblock1_reference(params, x))
    max_err = float(jnp.max(jnp.abs(out - ref)))
    assert max_err < 5e-2, f"max abs err vs reference: {max_err}"

    print("KERNEL_OK")
</pallas_src>

<mosaic_0001>
module attributes {stable_mosaic.version = 11 : i64} {
  func.func @_mm_bias_leaky_kernel(%arg0: i32, %arg1: memref<512x1408xbf16, #tpu.memory_space<vmem>>, %arg2: memref<1408x128xbf16, #tpu.memory_space<vmem>>, %arg3: memref<1x128xf32, #tpu.memory_space<vmem>>, %arg4: memref<512x128xf32, #tpu.memory_space<vmem>>) attributes {dimension_semantics = [#tpu.dimension_semantics<parallel>], iteration_bounds = array<i64: 2>, scalar_prefetch = 0 : i64, scratch_operands = 0 : i64, tpu.core_type = #tpu.core_type<tc>, window_params = [{transform_indices = @transform_0, window_bounds = array<i64: 512, 1408>}, {pipeline_mode = #tpu.pipeline_mode<synchronous>, transform_indices = @transform_1, window_bounds = array<i64: 1408, 128>}, {pipeline_mode = #tpu.pipeline_mode<synchronous>, transform_indices = @transform_2, window_bounds = array<i64: 1, 128>}, {transform_indices = @transform_3, window_bounds = array<i64: 512, 128>}]} {
    %c0 = arith.constant 0 : index
    %c0_0 = arith.constant 0 : index
    %0 = vector.load %arg1[%c0, %c0_0] : memref<512x1408xbf16, #tpu.memory_space<vmem>>, vector<512x1408xbf16>
    %c0_1 = arith.constant 0 : index
    %c0_2 = arith.constant 0 : index
    %1 = vector.load %arg2[%c0_1, %c0_2] : memref<1408x128xbf16, #tpu.memory_space<vmem>>, vector<1408x128xbf16>
    %cst = arith.constant dense<0.000000e+00> : vector<512x128xf32>
    %2 = tpu.matmul %0, %1, %cst {dimension_numbers = #tpu.dot_dimension_numbers<[1], [0], [0], [1], [0, 0, 1, 1], [], []>} : vector<512x1408xbf16>, vector<1408x128xbf16>, vector<512x128xf32> -> vector<512x128xf32>
    %c0_3 = arith.constant 0 : index
    %c0_4 = arith.constant 0 : index
    %3 = vector.load %arg3[%c0_3, %c0_4] : memref<1x128xf32, #tpu.memory_space<vmem>>, vector<1x128xf32>
    %4 = vector.broadcast %3 : vector<1x128xf32> to vector<512x128xf32>
    %5 = arith.addf %2, %4 : vector<512x128xf32>
    %cst_5 = arith.constant 2.000000e-01 : f32
    %6 = vector.broadcast %cst_5 : f32 to vector<512x128xf32>
    %7 = arith.mulf %6, %5 : vector<512x128xf32>
    %8 = arith.maximumf %5, %7 : vector<512x128xf32>
    %c0_6 = arith.constant 0 : index
    %c0_7 = arith.constant 0 : index
    %9 = vector.load %arg4[%c0_6, %c0_7] : memref<512x128xf32, #tpu.memory_space<vmem>>, vector<512x128xf32>
    tpu.vector_store %arg4[%c0_6, %c0_7], %8 {strides = array<i32>} : memref<512x128xf32, #tpu.memory_space<vmem>>, vector<512x128xf32>,
    return
  }
  func.func @transform_0(%arg0: i32) -> (i32, i32) {
    %c0_i32 = arith.constant 0 : i32
    %c0_i32_0 = arith.constant 0 : i32
    return %arg0, %c0_i32 : i32, i32
  }
  func.func @transform_1(%arg0: i32) -> (i32, i32) {
    %c0_i32 = arith.constant 0 : i32
    %c0_i32_0 = arith.constant 0 : i32
    %c0_i32_1 = arith.constant 0 : i32
    return %c0_i32, %c0_i32_0 : i32, i32
  }
  func.func @transform_2(%arg0: i32) -> (i32, i32) {
    %c0_i32 = arith.constant 0 : i32
    %c0_i32_0 = arith.constant 0 : i32
    %c0_i32_1 = arith.constant 0 : i32
    return %c0_i32, %c0_i32_0 : i32, i32
  }
  func.func @transform_3(%arg0: i32) -> (i32, i32) {
    %c0_i32 = arith.constant 0 : i32
    %c0_i32_0 = arith.constant 0 : i32
    return %arg0, %c0_i32 : i32, i32
  }
}

module attributes {stable_mosaic.version = 11 : i64} {
  func.func @_mm_bias_residual_kernel(%arg0: i32, %arg1: memref<512x1408xbf16, #tpu.memory_space<vmem>>, %arg2: memref<1408x128xbf16, #tpu.memory_space<vmem>>, %arg3: memref<1x128xf32, #tpu.memory_space<vmem>>, %arg4: memref<512x128xf32, #tpu.memory_space<vmem>>, %arg5: memref<512x128xf32, #tpu.memory_space<vmem>>) attributes {dimension_semantics = [#tpu.dimension_semantics<parallel>], iteration_bounds = array<i64: 2>, scalar_prefetch = 0 : i64, scratch_operands = 0 : i64, tpu.core_type = #tpu.core_type<tc>, window_params = [{transform_indices = @transform_0, window_bounds = array<i64: 512, 1408>}, {pipeline_mode = #tpu.pipeline_mode<synchronous>, transform_indices = @transform_1, window_bounds = array<i64: 1408, 128>}, {pipeline_mode = #tpu.pipeline_mode<synchronous>, transform_indices = @transform_2, window_bounds = array<i64: 1, 128>}, {transform_indices = @transform_3, window_bounds = array<i64: 512, 128>}, {transform_indices = @transform_4, window_bounds = array<i64: 512, 128>}]} {
    %c0 = arith.constant 0 : index
    %c0_0 = arith.constant 0 : index
    %0 = vector.load %arg1[%c0, %c0_0] : memref<512x1408xbf16, #tpu.memory_space<vmem>>, vector<512x1408xbf16>
    %c0_1 = arith.constant 0 : index
    %c0_2 = arith.constant 0 : index
    %1 = vector.load %arg2[%c0_1, %c0_2] : memref<1408x128xbf16, #tpu.memory_space<vmem>>, vector<1408x128xbf16>
    %cst = arith.constant dense<0.000000e+00> : vector<512x128xf32>
    %2 = tpu.matmul %0, %1, %cst {dimension_numbers = #tpu.dot_dimension_numbers<[1], [0], [0], [1], [0, 0, 1, 1], [], []>} : vector<512x1408xbf16>, vector<1408x128xbf16>, vector<512x128xf32> -> vector<512x128xf32>
    %c0_3 = arith.constant 0 : index
    %c0_4 = arith.constant 0 : index
    %3 = vector.load %arg3[%c0_3, %c0_4] : memref<1x128xf32, #tpu.memory_space<vmem>>, vector<1x128xf32>
    %4 = vector.broadcast %3 : vector<1x128xf32> to vector<512x128xf32>
    %5 = arith.addf %2, %4 : vector<512x128xf32>
    %c0_5 = arith.constant 0 : index
    %c0_6 = arith.constant 0 : index
    %6 = vector.load %arg4[%c0_5, %c0_6] : memref<512x128xf32, #tpu.memory_space<vmem>>, vector<512x128xf32>
    %7 = arith.addf %5, %6 : vector<512x128xf32>
    %c0_7 = arith.constant 0 : index
    %c0_8 = arith.constant 0 : index
    %8 = vector.load %arg5[%c0_7, %c0_8] : memref<512x128xf32, #tpu.memory_space<vmem>>, vector<512x128xf32>
    tpu.vector_store %arg5[%c0_7, %c0_8], %7 {strides = array<i32>} : memref<512x128xf32, #tpu.memory_space<vmem>>, vector<512x128xf32>,
    return
  }
  func.func @transform_0(%arg0: i32) -> (i32, i32) {
    %c0_i32 = arith.constant 0 : i32
    %c0_i32_0 = arith.constant 0 : i32
    return %arg0, %c0_i32 : i32, i32
  }
  func.func @transform_1(%arg0: i32) -> (i32, i32) {
    %c0_i32 = arith.constant 0 : i32
    %c0_i32_0 = arith.constant 0 : i32
    %c0_i32_1 = arith.constant 0 : i32
    return %c0_i32, %c0_i32_0 : i32, i32
  }
  func.func @transform_2(%arg0: i32) -> (i32, i32) {
    %c0_i32 = arith.constant 0 : i32
    %c0_i32_0 = arith.constant 0 : i32
    %c0_i32_1 = arith.constant 0 : i32
    return %c0_i32, %c0_i32_0 : i32, i32
  }
  func.func @transform_3(%arg0: i32) -> (i32, i32) {
    %c0_i32 = arith.constant 0 : i32
    %c0_i32_0 = arith.constant 0 : i32
    return %arg0, %c0_i32 : i32, i32
  }
  func.func @transform_4(%arg0: i32) -> (i32, i32) {
    %c0_i32 = arith.constant 0 : i32
    %c0_i32_0 = arith.constant 0 : i32
    return %arg0, %c0_i32 : i32, i32
  }
}

</mosaic_0001>

<llo_original>
// kernel: resblock1_forward.2
$region0: #{resblock1_forward.2}
  #allocation0 [shape = 'u32[]', space=smem, size = 0x4, offset = 0x4, fixed_abs, tag = 'smem constant byte address 0x4 - core index']
  #allocation1 [shape = 'u32[72,128]{1,0:T(1,128)}', space=vmem, size = 0x9000, scoped, tag = 'internal scratch']
  %s0 = inlined_call_operand.vmem [shape: bf16[1024,1408], index: 0, kind: input, shape index: {}]
  %s1 = inlined_call_operand.vmem [shape: bf16[1408,128], index: 1, kind: input, shape index: {}]
  %s2 = inlined_call_operand.vmem [shape: f32[1,128], index: 2, kind: input, shape index: {}]
  %s3 = inlined_call_operand.vmem [shape: f32[1024,128], index: 3, kind: output, shape index: {}]
  %s4 = sld [smem:[#allocation0]]
  $region45: #{resblock1_forward.2} parent=0
    _
  %s6 = ssub.s32 1, %s4
  %s7 = scalar_select 0, %s6, %s4
  loop: start=0, step=1, limit=4
  $region2: #{resblock1_forward.2} parent=0 // loop_pre_header
    _
  $region3: #{resblock1_forward.2} parent=0 // loop_header
    %s9 = sphi 0, %s13
    %p10 = scmp.ge.s32.totalorder %s9, 4
    %s19 = sphi 0, %s21
    %s22 = sphi 0, %s19
    %s23 = sphi 0, %s22
    %s39 = sphi 0, %s23
    %s43 = sphi 0, %s43
    %s45 = sphi 0, %s43
    %s46 = sphi 0, %s45
    %s60 = sphi 0, %s46
    %s64 = sphi 0, %s64
    %s66 = sphi 0, %s64
    %s67 = sphi 0, %s66
    %s81 = sphi 0, %s67
    %s87 = sphi 0, %s89
    %s90 = sphi 0, %s87
    %s91 = sphi 0, %s90
    %s107 = sphi 0, %s91
  $region4: #{resblock1_forward.2} parent=0 // loop_header_branch
    %12 = sbr.rel (%p10) target = $region8
  $region5: #{resblock1_forward.2} parent=0 // loop_body
    %s14 = ssub.s32 %s9, 1
    %s15 = ssub.s32 %s9, 2
    %s16 = sadd.s32 %s9, 1
    %s17 = ssub.s32 %s9, %s16
    %p18 = scmp.eq.s32.totalorder %s17, 0
    %s20 = sadd.s32 %s19, 1
    %s21 = scalar_select %p18, %s19, %s20
    %p24 = pneg %p18
    %p25 = scmp.eq.s32.totalorder %s9, 1
    %p26 = por %p24, %p25
    %p27 = scmp.ne.s32.totalorder %s19, %s22
    %p28 = scmp.eq.s32.totalorder %s9, 0
    %p29 = por %p27, %p28
    %p30 = scmp.ne.s32.totalorder %s19, %s22
    %p31 = scmp.eq.s32.totalorder %s14, 1
    %p32 = por %p30, %p31
    %p33 = scmp.ne.s32.totalorder %s22, %s23
    %p34 = scmp.eq.s32.totalorder %s14, 0
    %p35 = por %p33, %p34
    %p36 = scmp.ne.s32.totalorder %s22, %s23
    %p37 = scmp.eq.s32.totalorder %s15, 1
    %p38 = por %p36, %p37
    %p40 = scmp.ne.s32.totalorder %s23, %s39
    %p41 = scmp.eq.s32.totalorder %s15, 0
    %p42 = por %p40, %p41
    %s44 = sadd.s32 %s43, 1
    %p47 = scmp.eq.s32.totalorder %s9, 1
    %p48 = scmp.ne.s32.totalorder %s43, %s45
    %p49 = scmp.eq.s32.totalorder %s9, 0
    %p50 = por %p48, %p49
    %p51 = scmp.ne.s32.totalorder %s43, %s45
    %p52 = scmp.eq.s32.totalorder %s14, 1
    %p53 = por %p51, %p52
    %p54 = scmp.ne.s32.totalorder %s45, %s46
    %p55 = scmp.eq.s32.totalorder %s14, 0
    %p56 = por %p54, %p55
    %p57 = scmp.ne.s32.totalorder %s45, %s46
    %p58 = scmp.eq.s32.totalorder %s15, 1
    %p59 = por %p57, %p58
    %p61 = scmp.ne.s32.totalorder %s46, %s60
    %p62 = scmp.eq.s32.totalorder %s15, 0
    %p63 = por %p61, %p62
    %s65 = sadd.s32 %s64, 1
    %p68 = scmp.eq.s32.totalorder %s9, 1
    %p69 = scmp.ne.s32.totalorder %s64, %s66
    %p70 = scmp.eq.s32.totalorder %s9, 0
    %p71 = por %p69, %p70
    %p72 = scmp.ne.s32.totalorder %s64, %s66
    %p73 = scmp.eq.s32.totalorder %s14, 1
    %p74 = por %p72, %p73
    %p75 = scmp.ne.s32.totalorder %s66, %s67
    %p76 = scmp.eq.s32.totalorder %s14, 0
    %p77 = por %p75, %p76
    %p78 = scmp.ne.s32.totalorder %s66, %s67
    %p79 = scmp.eq.s32.totalorder %s15, 1
    %p80 = por %p78, %p79
    %p82 = scmp.ne.s32.totalorder %s67, %s81
    %p83 = scmp.eq.s32.totalorder %s15, 0
    %p84 = por %p82, %p83
    %s85 = ssub.s32 %s9, %s16
    %p86 = scmp.eq.s32.totalorder %s85, 0
    %s88 = sadd.s32 %s87, 1
    %s89 = scalar_select %p86, %s87, %s88
    %p92 = pneg %p86
    %p93 = scmp.eq.s32.totalorder %s9, 1
    %p94 = por %p92, %p93
    %p95 = scmp.ne.s32.totalorder %s87, %s90
    %p96 = scmp.eq.s32.totalorder %s9, 0
    %p97 = por %p95, %p96
    %p98 = scmp.ne.s32.totalorder %s87, %s90
    %p99 = scmp.eq.s32.totalorder %s14, 1
    %p100 = por %p98, %p99
    %p101 = scmp.ne.s32.totalorder %s90, %s91
    %p102 = scmp.eq.s32.totalorder %s14, 0
    %p103 = por %p101, %p102
    %p104 = scmp.ne.s32.totalorder %s90, %s91
    %p105 = scmp.eq.s32.totalorder %s15, 1
    %p106 = por %p104, %p105
    %p108 = scmp.ne.s32.totalorder %s91, %s107
    %p109 = scmp.eq.s32.totalorder %s15, 0
    %p110 = por %p108, %p109
    %p111 = scmp.le.s32.totalorder 1, %s9
    %p112 = scmp.lt.s32.totalorder %s9, 3
    %p113 = pnand %p111, %p112
    %p114 = pneg %p113
    // Predicated region
    $region9: #{resblock1_forward.2} parent=5 // pred_check
      _
    $region10: #{resblock1_forward.2} parent=5 // pred_check_branch
      %116 = sbr.rel (%p113) target = $region12
    $region11: #{resblock1_forward.2} parent=5 // pred_region
      %s117 = ssub.s32 %s9, 1
      // Predicated region
      $region13: #{resblock1_forward.2} parent=11 // pred_check
        %p118 = pneg %p56
      $region14: #{resblock1_forward.2} parent=11 // pred_check_branch
        %120 = sbr.rel (%p118) target = $region16
      $region15: #{resblock1_forward.2} parent=11 // pred_region
        _
      $region16: #{resblock1_forward.2} parent=11 // pred_fallthru
        _
      // Predicated region
      $region17: #{resblock1_forward.2} parent=11 // pred_check
        %p121 = pneg %p77
      $region18: #{resblock1_forward.2} parent=11 // pred_check_branch
        %123 = sbr.rel (%p121) target = $region20
      $region19: #{resblock1_forward.2} parent=11 // pred_region
        _
      $region20: #{resblock1_forward.2} parent=11 // pred_fallthru
        _
    $region12: #{resblock1_forward.2} parent=5 // pred_fallthru
      _
    %p124 = scmp.lt.s32.totalorder %s9, 2
    // Predicated region
    $region21: #{resblock1_forward.2} parent=5 // pred_check
      %p125 = pneg %p124
    $region22: #{resblock1_forward.2} parent=5 // pred_check_branch
      %127 = sbr.rel (%p125) target = $region24
    $region23: #{resblock1_forward.2} parent=5 // pred_region
      // Predicated region
      $region25: #{resblock1_forward.2} parent=23 // pred_check
        %p128 = pneg %p29
      $region26: #{resblock1_forward.2} parent=23 // pred_check_branch
        %130 = sbr.rel (%p128) target = $region28
      $region27: #{resblock1_forward.2} parent=23 // pred_region
        %s131 = smul.u32 64, %s9
        %p132 = scmp.lt.s32.totalorder %s131, 127
        %s133 = scalar_select %p132, %s131, 127
        %s134 = smul.addr %s133, 11
        %s135 = smul.addr %s134, 4
        %s136 = scalar_lea.vmem %s0, %s135
        %s137 = smul.u32 64, %s9
      $region28: #{resblock1_forward.2} parent=23 // pred_fallthru
        _
    $region24: #{resblock1_forward.2} parent=5 // pred_fallthru
      _
    %p138 = scmp.le.s32.totalorder 1, %s9
    %p139 = scmp.lt.s32.totalorder %s9, 3
    %p140 = pnand %p138, %p139
    %p141 = pneg %p140
    // Predicated region
    $region29: #{resblock1_forward.2} parent=5 // pred_check
      _
    $region30: #{resblock1_forward.2} parent=5 // pred_check_branch
      %143 = sbr.rel (%p140) target = $region32
    $region31: #{resblock1_forward.2} parent=5 // pred_region
      %s144 = ssub.s32 %s9, 1
      %s145 = smul.u32 64, %s14
      %p146 = scmp.lt.s32.totalorder %s145, 127
      %s147 = scalar_select %p146, %s145, 127
      %s148 = smul.addr %s147, 11
      %s149 = smul.addr %s148, 4
      %s150 = scalar_lea.vmem %s0, %s149
      %p151 = pneg %p35
      %p152 = pneg %p32
      %p153 = pneg %p56
      %p154 = pneg %p53
      %p155 = pneg %p77
      %p156 = pneg %p74
      %p157 = pneg %p103
      %p158 = pneg %p100
      %s159 = smul.u32 64, %s14
      %p160 = scmp.lt.s32.totalorder %s159, 127
      %s161 = scalar_select %p160, %s159, 127
      %s162 = smul.addr %s161, 8
      %s163 = scalar_lea.vmem %s3, %s162
      %s164 = smul.u32 64, %s14
      %p165 = scmp.lt.s32.totalorder %s164, 127
      %s166 = scalar_select %p165, %s164, 127
      %s167 = smul.addr %s166, 11
      %s168 = smul.addr %s167, 4
      %s169 = scalar_lea.vmem %s0, %s168
      %s170 = smul.u32 64, %s14
      %s171 = smul.u32 64, %s14
      %p172 = scmp.lt.s32.totalorder %s171, 127
      %s173 = scalar_select %p172, %s171, 127
      %s174 = smul.addr %s173, 8
      %s175 = scalar_lea.vmem %s3, %s174
      %s176 = smul.u32 64, %s14
      %v177 = vld [vmem:[%s169] sm:$0xff]
      %v178 = vld [vmem:[%s169 + $0x8] sm:$0xff]
      %v179 = vld [vmem:[%s169 + $0x10] sm:$0xff]
      %v180 = vld [vmem:[%s169 + $0x18] sm:$0xff]
      %v181 = vld [vmem:[%s169 + $0x20] sm:$0xff]
      %v182 = vld [vmem:[%s169 + $0x28] sm:$0xf]
      %v183 = vld [vmem:[%s169 + $0x2c] sm:$0xff]
      %v184 = vld [vmem:[%s169 + $0x34] sm:$0xff]
      %v185 = vld [vmem:[%s169 + $0x3c] sm:$0xff]
      %v186 = vld [vmem:[%s169 + $0x44] sm:$0xff]
      %v187 = vld [vmem:[%s169 + $0x4c] sm:$0xff]
      %v188 = vld [vmem:[%s169 + $0x54] sm:$0xf]
      %v189 = vld [vmem:[%s169 + $0x58] sm:$0xff]
      %v190 = vld [vmem:[%s169 + $0x60] sm:$0xff]
      %v191 = vld [vmem:[%s169 + $0x68] sm:$0xff]
      %v192 = vld [vmem:[%s169 + $0x70] sm:$0xff]
      %v193 = vld [vmem:[%s169 + $0x78] sm:$0xff]
      %v194 = vld [vmem:[%s169 + $0x80] sm:$0xf]
      %v195 = vld [vmem:[%s169 + $0x84] sm:$0xff]
      %v196 = vld [vmem:[%s169 + $0x8c] sm:$0xff]
      %v197 = vld [vmem:[%s169 + $0x94] sm:$0xff]
      %v198 = vld [vmem:[%s169 + $0x9c] sm:$0xff]
      %v199 = vld [vmem:[%s169 + $0xa4] sm:$0xff]
      %v200 = vld [vmem:[%s169 + $0xac] sm:$0xf]
      %v201 = vld [vmem:[%s169 + $0xb0] sm:$0xff]
      %v202 = vld [vmem:[%s169 + $0xb8] sm:$0xff]
      %v203 = vld [vmem:[%s169 + $0xc0] sm:$0xff]
      %v204 = vld [vmem:[%s169 + $0xc8] sm:$0xff]
      %v205 = vld [vmem:[%s169 + $0xd0] sm:$0xff]
      %v206 = vld [vmem:[%s169 + $0xd8] sm:$0xf]
      %v207 = vld [vmem:[%s169 + $0xdc] sm:$0xff]
      %v208 = vld [vmem:[%s169 + $0xe4] sm:$0xff]
      %v209 = vld [vmem:[%s169 + $0xec] sm:$0xff]
      %v210 = vld [vmem:[%s169 + $0xf4] sm:$0xff]
      %v211 = vld [vmem:[%s169 + $0xfc] sm:$0xff]
      %v212 = vld [vmem:[%s169 + $0x104] sm:$0xf]
      %v213 = vld [vmem:[%s169 + $0x108] sm:$0xff]
      %v214 = vld [vmem:[%s169 + $0x110] sm:$0xff]
      %v215 = vld [vmem:[%s169 + $0x118] sm:$0xff]
      %v216 = vld [vmem:[%s169 + $0x120] sm:$0xff]
      %v217 = vld [vmem:[%s169 + $0x128] sm:$0xff]
      %v218 = vld [vmem:[%s169 + $0x130] sm:$0xf]
      %v219 = vld [vmem:[%s169 + $0x134] sm:$0xff]
      %v220 = vld [vmem:[%s169 + $0x13c] sm:$0xff]
      %v221 = vld [vmem:[%s169 + $0x144] sm:$0xff]
      %v222 = vld [vmem:[%s169 + $0x14c] sm:$0xff]
      %v223 = vld [vmem:[%s169 + $0x154] sm:$0xff]
      %v224 = vld [vmem:[%s169 + $0x15c] sm:$0xf]
      %v225 = vld [vmem:[%s169 + $0x160] sm:$0xff]
      %v226 = vld [vmem:[%s169 + $0x168] sm:$0xff]
      %v227 = vld [vmem:[%s169 + $0x170] sm:$0xff]
      %v228 = vld [vmem:[%s169 + $0x178] sm:$0xff]
      %v229 = vld [vmem:[%s169 + $0x180] sm:$0xff]
      %v230 = vld [vmem:[%s169 + $0x188] sm:$0xf]
      %v231 = vld [vmem:[%s169 + $0x18c] sm:$0xff]
      %v232 = vld [vmem:[%s169 + $0x194] sm:$0xff]
      %v233 = vld [vmem:[%s169 + $0x19c] sm:$0xff]
      %v234 = vld [vmem:[%s169 + $0x1a4] sm:$0xff]
      %v235 = vld [vmem:[%s169 + $0x1ac] sm:$0xff]
      %v236 = vld [vmem:[%s169 + $0x1b4] sm:$0xf]
      %v237 = vld [vmem:[%s169 + $0x1b8] sm:$0xff]
      %v238 = vld [vmem:[%s169 + $0x1c0] sm:$0xff]
      %v239 = vld [vmem:[%s169 + $0x1c8] sm:$0xff]
      %v240 = vld [vmem:[%s169 + $0x1d0] sm:$0xff]
      %v241 = vld [vmem:[%s169 + $0x1d8] sm:$0xff]
      %v242 = vld [vmem:[%s169 + $0x1e0] sm:$0xf]
      %v243 = vld [vmem:[%s169 + $0x1e4] sm:$0xff]
      %v244 = vld [vmem:[%s169 + $0x1ec] sm:$0xff]
      %v245 = vld [vmem:[%s169 + $0x1f4] sm:$0xff]
      %v246 = vld [vmem:[%s169 + $0x1fc] sm:$0xff]
      %v247 = vld [vmem:[%s169 + $0x204] sm:$0xff]
      %v248 = vld [vmem:[%s169 + $0x20c] sm:$0xf]
      %v249 = vld [vmem:[%s169 + $0x210] sm:$0xff]
      %v250 = vld [vmem:[%s169 + $0x218] sm:$0xff]
      %v251 = vld [vmem:[%s169 + $0x220] sm:$0xff]
      %v252 = vld [vmem:[%s169 + $0x228] sm:$0xff]
      %v253 = vld [vmem:[%s169 + $0x230] sm:$0xff]
      %v254 = vld [vmem:[%s169 + $0x238] sm:$0xf]
      %v255 = vld [vmem:[%s169 + $0x23c] sm:$0xff]
      %v256 = vld [vmem:[%s169 + $0x244] sm:$0xff]
      %v257 = vld [vmem:[%s169 + $0x24c] sm:$0xff]
      %v258 = vld [vmem:[%s169 + $0x254] sm:$0xff]
      %v259 = vld [vmem:[%s169 + $0x25c] sm:$0xff]
      %v260 = vld [vmem:[%s169 + $0x264] sm:$0xf]
      %v261 = vld [vmem:[%s169 + $0x268] sm:$0xff]
      %v262 = vld [vmem:[%s169 + $0x270] sm:$0xff]
      %v263 = vld [vmem:[%s169 + $0x278] sm:$0xff]
      %v264 = vld [vmem:[%s169 + $0x280] sm:$0xff]
      %v265 = vld [vmem:[%s169 + $0x288] sm:$0xff]
      %v266 = vld [vmem:[%s169 + $0x290] sm:$0xf]
      %v267 = vld [vmem:[%s169 + $0x294] sm:$0xff]
      %v268 = vld [vmem:[%s169 + $0x29c] sm:$0xff]
      %v269 = vld [vmem:[%s169 + $0x2a4] sm:$0xff]
      %v270 = vld [vmem:[%s169 + $0x2ac] sm:$0xff]
      %v271 = vld [vmem:[%s169 + $0x2b4] sm:$0xff]
      %v272 = vld [vmem:[%s169 + $0x2bc] sm:$0xf]
      %v273 = vld [vmem:[%s169 + $0x2c0] sm:$0xff]
      %v274 = vld [vmem:[%s169 + $0x2c8] sm:$0xff]
      %v275 = vld [vmem:[%s169 + $0x2d0] sm:$0xff]
      %v276 = vld [vmem:[%s169 + $0x2d8] sm:$0xff]
      %v277 = vld [vmem:[%s169 + $0x2e0] sm:$0xff]
      %v278 = vld [vmem:[%s169 + $0x2e8] sm:$0xf]
      %v279 = vld [vmem:[%s169 + $0x2ec] sm:$0xff]
      %v280 = vld [vmem:[%s169 + $0x2f4] sm:$0xff]
      %v281 = vld [vmem:[%s169 + $0x2fc] sm:$0xff]
      %v282 = vld [vmem:[%s169 + $0x304] sm:$0xff]
      %v283 = vld [vmem:[%s169 + $0x30c] sm:$0xff]
      %v284 = vld [vmem:[%s169 + $0x314] sm:$0xf]
      %v285 = vld [vmem:[%s169 + $0x318] sm:$0xff]
      %v286 = vld [vmem:[%s169 + $0x320] sm:$0xff]
      %v287 = vld [vmem:[%s169 + $0x328] sm:$0xff]
      %v288 = vld [vmem:[%s169 + $0x330] sm:$0xff]
      %v289 = vld [vmem:[%s169 + $0x338] sm:$0xff]
      %v290 = vld [vmem:[%s169 + $0x340] sm:$0xf]
      %v291 = vld [vmem:[%s169 + $0x344] sm:$0xff]
      %v292 = vld [vmem:[%s169 + $0x34c] sm:$0xff]
      %v293 = vld [vmem:[%s169 + $0x354] sm:$0xff]
      %v294 = vld [vmem:[%s169 + $0x35c] sm:$0xff]
      %v295 = vld [vmem:[%s169 + $0x364] sm:$0xff]
      %v296 = vld [vmem:[%s169 + $0x36c] sm:$0xf]
      %v297 = vld [vmem:[%s169 + $0x370] sm:$0xff]
      %v298 = vld [vmem:[%s169 + $0x378] sm:$0xff]
      %v299 = vld [vmem:[%s169 + $0x380] sm:$0xff]
      %v300 = vld [vmem:[%s169 + $0x388] sm:$0xff]
      %v301 = vld [vmem:[%s169 + $0x390] sm:$0xff]
      %v302 = vld [vmem:[%s169 + $0x398] sm:$0xf]
      %v303 = vld [vmem:[%s169 + $0x39c] sm:$0xff]
      %v304 = vld [vmem:[%s169 + $0x3a4] sm:$0xff]
      %v305 = vld [vmem:[%s169 + $0x3ac] sm:$0xff]
      %v306 = vld [vmem:[%s169 + $0x3b4] sm:$0xff]
      %v307 = vld [vmem:[%s169 + $0x3bc] sm:$0xff]
      %v308 = vld [vmem:[%s169 + $0x3c4] sm:$0xf]
      %v309 = vld [vmem:[%s169 + $0x3c8] sm:$0xff]
      %v310 = vld [vmem:[%s169 + $0x3d0] sm:$0xff]
      %v311 = vld [vmem:[%s169 + $0x3d8] sm:$0xff]
      %v312 = vld [vmem:[%s169 + $0x3e0] sm:$0xff]
      %v313 = vld [vmem:[%s169 + $0x3e8] sm:$0xff]
      %v314 = vld [vmem:[%s169 + $0x3f0] sm:$0xf]
      %v315 = vld [vmem:[%s169 + $0x3f4] sm:$0xff]
      %v316 = vld [vmem:[%s169 + $0x3fc] sm:$0xff]
      %v317 = vld [vmem:[%s169 + $0x404] sm:$0xff]
      %v318 = vld [vmem:[%s169 + $0x40c] sm:$0xff]
      %v319 = vld [vmem:[%s169 + $0x414] sm:$0xff]
      %v320 = vld [vmem:[%s169 + $0x41c] sm:$0xf]
      %v321 = vld [vmem:[%s169 + $0x420] sm:$0xff]
      %v322 = vld [vmem:[%s169 + $0x428] sm:$0xff]
      %v323 = vld [vmem:[%s169 + $0x430] sm:$0xff]
      %v324 = vld [vmem:[%s169 + $0x438] sm:$0xff]
      %v325 = vld [vmem:[%s169 + $0x440] sm:$0xff]
      %v326 = vld [vmem:[%s169 + $0x448] sm:$0xf]
      %v327 = vld [vmem:[%s169 + $0x44c] sm:$0xff]
      %v328 = vld [vmem:[%s169 + $0x454] sm:$0xff]
      %v329 = vld [vmem:[%s169 + $0x45c] sm:$0xff]
      %v330 = vld [vmem:[%s169 + $0x464] sm:$0xff]
      %v331 = vld [vmem:[%s169 + $0x46c] sm:$0xff]
      %v332 = vld [vmem:[%s169 + $0x474] sm:$0xf]
      %v333 = vld [vmem:[%s169 + $0x478] sm:$0xff]
      %v334 = vld [vmem:[%s169 + $0x480] sm:$0xff]
      %v335 = vld [vmem:[%s169 + $0x488] sm:$0xff]
      %v336 = vld [vmem:[%s169 + $0x490] sm:$0xff]
      %v337 = vld [vmem:[%s169 + $0x498] sm:$0xff]
      %v338 = vld [vmem:[%s169 + $0x4a0] sm:$0xf]
      %v339 = vld [vmem:[%s169 + $0x4a4] sm:$0xff]
      %v340 = vld [vmem:[%s169 + $0x4ac] sm:$0xff]
      %v341 = vld [vmem:[%s169 + $0x4b4] sm:$0xff]
      %v342 = vld [vmem:[%s169 + $0x4bc] sm:$0xff]
      %v343 = vld [vmem:[%s169 + $0x4c4] sm:$0xff]
      %v344 = vld [vmem:[%s169 + $0x4cc] sm:$0xf]
      %v345 = vld [vmem:[%s169 + $0x4d0] sm:$0xff]
      %v346 = vld [vmem:[%s169 + $0x4d8] sm:$0xff]
      %v347 = vld [vmem:[%s169 + $0x4e0] sm:$0xff]
      %v348 = vld [vmem:[%s169 + $0x4e8] sm:$0xff]
      %v349 = vld [vmem:[%s169 + $0x4f0] sm:$0xff]
      %v350 = vld [vmem:[%s169 + $0x4f8] sm:$0xf]
      %v351 = vld [vmem:[%s169 + $0x4fc] sm:$0xff]
      %v352 = vld [vmem:[%s169 + $0x504] sm:$0xff]
      %v353 = vld [vmem:[%s169 + $0x50c] sm:$0xff]
      %v354 = vld [vmem:[%s169 + $0x514] sm:$0xff]
      %v355 = vld [vmem:[%s169 + $0x51c] sm:$0xff]
      %v356 = vld [vmem:[%s169 + $0x524] sm:$0xf]
      %v357 = vld [vmem:[%s169 + $0x528] sm:$0xff]
      %v358 = vld [vmem:[%s169 + $0x530] sm:$0xff]
      %v359 = vld [vmem:[%s169 + $0x538] sm:$0xff]
      %v360 = vld [vmem:[%s169 + $0x540] sm:$0xff]
      %v361 = vld [vmem:[%s169 + $0x548] sm:$0xff]
      %v362 = vld [vmem:[%s169 + $0x550] sm:$0xf]
      %v363 = vld [vmem:[%s169 + $0x554] sm:$0xff]
      %v364 = vld [vmem:[%s169 + $0x55c] sm:$0xff]
      %v365 = vld [vmem:[%s169 + $0x564] sm:$0xff]
      %v366 = vld [vmem:[%s169 + $0x56c] sm:$0xff]
      %v367 = vld [vmem:[%s169 + $0x574] sm:$0xff]
      %v368 = vld [vmem:[%s169 + $0x57c] sm:$0xf]
      %v369 = vld [vmem:[%s169 + $0x580] sm:$0xff]
      %v370 = vld [vmem:[%s169 + $0x588] sm:$0xff]
      %v371 = vld [vmem:[%s169 + $0x590] sm:$0xff]
      %v372 = vld [vmem:[%s169 + $0x598] sm:$0xff]
      %v373 = vld [vmem:[%s169 + $0x5a0] sm:$0xff]
      %v374 = vld [vmem:[%s169 + $0x5a8] sm:$0xf]
      %v375 = vld [vmem:[%s169 + $0x5ac] sm:$0xff]
      %v376 = vld [vmem:[%s169 + $0x5b4] sm:$0xff]
      %v377 = vld [vmem:[%s169 + $0x5bc] sm:$0xff]
      %v378 = vld [vmem:[%s169 + $0x5c4] sm:$0xff]
      %v379 = vld [vmem:[%s169 + $0x5cc] sm:$0xff]
      %v380 = vld [vmem:[%s169 + $0x5d4] sm:$0xf]
      %v381 = vld [vmem:[%s169 + $0x5d8] sm:$0xff]
      %v382 = vld [vmem:[%s169 + $0x5e0] sm:$0xff]
      %v383 = vld [vmem:[%s169 + $0x5e8] sm:$0xff]
      %v384 = vld [vmem:[%s169 + $0x5f0] sm:$0xff]
      %v385 = vld [vmem:[%s169 + $0x5f8] sm:$0xff]
      %v386 = vld [vmem:[%s169 + $0x600] sm:$0xf]
      %v387 = vld [vmem:[%s169 + $0x604] sm:$0xff]
      %v388 = vld [vmem:[%s169 + $0x60c] sm:$0xff]
      %v389 = vld [vmem:[%s169 + $0x614] sm:$0xff]
      %v390 = vld [vmem:[%s169 + $0x61c] sm:$0xff]
      %v391 = vld [vmem:[%s169 + $0x624] sm:$0xff]
      %v392 = vld [vmem:[%s169 + $0x62c] sm:$0xf]
      %v393 = vld [vmem:[%s169 + $0x630] sm:$0xff]
      %v394 = vld [vmem:[%s169 + $0x638] sm:$0xff]
      %v395 = vld [vmem:[%s169 + $0x640] sm:$0xff]
      %v396 = vld [vmem:[%s169 + $0x648] sm:$0xff]
      %v397 = vld [vmem:[%s169 + $0x650] sm:$0xff]
      %v398 = vld [vmem:[%s169 + $0x658] sm:$0xf]
      %v399 = vld [vmem:[%s169 + $0x65c] sm:$0xff]
      %v400 = vld [vmem:[%s169 + $0x664] sm:$0xff]
      %v401 = vld [vmem:[%s169 + $0x66c] sm:$0xff]
      %v402 = vld [vmem:[%s169 + $0x674] sm:$0xff]
      %v403 = vld [vmem:[%s169 + $0x67c] sm:$0xff]
      %v404 = vld [vmem:[%s169 + $0x684] sm:$0xf]
      %v405 = vld [vmem:[%s169 + $0x688] sm:$0xff]
      %v406 = vld [vmem:[%s169 + $0x690] sm:$0xff]
      %v407 = vld [vmem:[%s169 + $0x698] sm:$0xff]
      %v408 = vld [vmem:[%s169 + $0x6a0] sm:$0xff]
      %v409 = vld [vmem:[%s169 + $0x6a8] sm:$0xff]
      %v410 = vld [vmem:[%s169 + $0x6b0] sm:$0xf]
      %v411 = vld [vmem:[%s169 + $0x6b4] sm:$0xff]
      %v412 = vld [vmem:[%s169 + $0x6bc] sm:$0xff]
      %v413 = vld [vmem:[%s169 + $0x6c4] sm:$0xff]
      %v414 = vld [vmem:[%s169 + $0x6cc] sm:$0xff]
      %v415 = vld [vmem:[%s169 + $0x6d4] sm:$0xff]
      %v416 = vld [vmem:[%s169 + $0x6dc] sm:$0xf]
      %v417 = vld [vmem:[%s169 + $0x6e0] sm:$0xff]
      %v418 = vld [vmem:[%s169 + $0x6e8] sm:$0xff]
      %v419 = vld [vmem:[%s169 + $0x6f0] sm:$0xff]
      %v420 = vld [vmem:[%s169 + $0x6f8] sm:$0xff]
      %v421 = vld [vmem:[%s169 + $0x700] sm:$0xff]
      %v422 = vld [vmem:[%s169 + $0x708] sm:$0xf]
      %v423 = vld [vmem:[%s169 + $0x70c] sm:$0xff]
      %v424 = vld [vmem:[%s169 + $0x714] sm:$0xff]
      %v425 = vld [vmem:[%s169 + $0x71c] sm:$0xff]
      %v426 = vld [vmem:[%s169 + $0x724] sm:$0xff]
      %v427 = vld [vmem:[%s169 + $0x72c] sm:$0xff]
      %v428 = vld [vmem:[%s169 + $0x734] sm:$0xf]
      %v429 = vld [vmem:[%s169 + $0x738] sm:$0xff]
      %v430 = vld [vmem:[%s169 + $0x740] sm:$0xff]
      %v431 = vld [vmem:[%s169 + $0x748] sm:$0xff]
      %v432 = vld [vmem:[%s169 + $0x750] sm:$0xff]
      %v433 = vld [vmem:[%s169 + $0x758] sm:$0xff]
      %v434 = vld [vmem:[%s169 + $0x760] sm:$0xf]
      %v435 = vld [vmem:[%s169 + $0x764] sm:$0xff]
      %v436 = vld [vmem:[%s169 + $0x76c] sm:$0xff]
      %v437 = vld [vmem:[%s169 + $0x774] sm:$0xff]
      %v438 = vld [vmem:[%s169 + $0x77c] sm:$0xff]
      %v439 = vld [vmem:[%s169 + $0x784] sm:$0xff]
      %v440 = vld [vmem:[%s169 + $0x78c] sm:$0xf]
      %v441 = vld [vmem:[%s169 + $0x790] sm:$0xff]
      %v442 = vld [vmem:[%s169 + $0x798] sm:$0xff]
      %v443 = vld [vmem:[%s169 + $0x7a0] sm:$0xff]
      %v444 = vld [vmem:[%s169 + $0x7a8] sm:$0xff]
      %v445 = vld [vmem:[%s169 + $0x7b0] sm:$0xff]
      %v446 = vld [vmem:[%s169 + $0x7b8] sm:$0xf]
      %v447 = vld [vmem:[%s169 + $0x7bc] sm:$0xff]
      %v448 = vld [vmem:[%s169 + $0x7c4] sm:$0xff]
      %v449 = vld [vmem:[%s169 + $0x7cc] sm:$0xff]
      %v450 = vld [vmem:[%s169 + $0x7d4] sm:$0xff]
      %v451 = vld [vmem:[%s169 + $0x7dc] sm:$0xff]
      %v452 = vld [vmem:[%s169 + $0x7e4] sm:$0xf]
      %v453 = vld [vmem:[%s169 + $0x7e8] sm:$0xff]
      %v454 = vld [vmem:[%s169 + $0x7f0] sm:$0xff]
      %v455 = vld [vmem:[%s169 + $0x7f8] sm:$0xff]
      %v456 = vld [vmem:[%s169 + $0x800] sm:$0xff]
      %v457 = vld [vmem:[%s169 + $0x808] sm:$0xff]
      %v458 = vld [vmem:[%s169 + $0x810] sm:$0xf]
      %v459 = vld [vmem:[%s169 + $0x814] sm:$0xff]
      %v460 = vld [vmem:[%s169 + $0x81c] sm:$0xff]
      %v461 = vld [vmem:[%s169 + $0x824] sm:$0xff]
      %v462 = vld [vmem:[%s169 + $0x82c] sm:$0xff]
      %v463 = vld [vmem:[%s169 + $0x834] sm:$0xff]
      %v464 = vld [vmem:[%s169 + $0x83c] sm:$0xf]
      %v465 = vld [vmem:[%s169 + $0x840] sm:$0xff]
      %v466 = vld [vmem:[%s169 + $0x848] sm:$0xff]
      %v467 = vld [vmem:[%s169 + $0x850] sm:$0xff]
      %v468 = vld [vmem:[%s169 + $0x858] sm:$0xff]
      %v469 = vld [vmem:[%s169 + $0x860] sm:$0xff]
      %v470 = vld [vmem:[%s169 + $0x868] sm:$0xf]
      %v471 = vld [vmem:[%s169 + $0x86c] sm:$0xff]
      %v472 = vld [vmem:[%s169 + $0x874] sm:$0xff]
      %v473 = vld [vmem:[%s169 + $0x87c] sm:$0xff]
      %v474 = vld [vmem:[%s169 + $0x884] sm:$0xff]
      %v475 = vld [vmem:[%s169 + $0x88c] sm:$0xff]
      %v476 = vld [vmem:[%s169 + $0x894] sm:$0xf]
      %v477 = vld [vmem:[%s169 + $0x898] sm:$0xff]
      %v478 = vld [vmem:[%s169 + $0x8a0] sm:$0xff]
      %v479 = vld [vmem:[%s169 + $0x8a8] sm:$0xff]
      %v480 = vld [vmem:[%s169 + $0x8b0] sm:$0xff]
      %v481 = vld [vmem:[%s169 + $0x8b8] sm:$0xff]
      %v482 = vld [vmem:[%s169 + $0x8c0] sm:$0xf]
      %v483 = vld [vmem:[%s169 + $0x8c4] sm:$0xff]
      %v484 = vld [vmem:[%s169 + $0x8cc] sm:$0xff]
      %v485 = vld [vmem:[%s169 + $0x8d4] sm:$0xff]
      %v486 = vld [vmem:[%s169 + $0x8dc] sm:$0xff]
      %v487 = vld [vmem:[%s169 + $0x8e4] sm:$0xff]
      %v488 = vld [vmem:[%s169 + $0x8ec] sm:$0xf]
      %v489 = vld [vmem:[%s169 + $0x8f0] sm:$0xff]
      %v490 = vld [vmem:[%s169 + $0x8f8] sm:$0xff]
      %v491 = vld [vmem:[%s169 + $0x900] sm:$0xff]
      %v492 = vld [vmem:[%s169 + $0x908] sm:$0xff]
      %v493 = vld [vmem:[%s169 + $0x910] sm:$0xff]
      %v494 = vld [vmem:[%s169 + $0x918] sm:$0xf]
      %v495 = vld [vmem:[%s169 + $0x91c] sm:$0xff]
      %v496 = vld [vmem:[%s169 + $0x924] sm:$0xff]
      %v497 = vld [vmem:[%s169 + $0x92c] sm:$0xff]
      %v498 = vld [vmem:[%s169 + $0x934] sm:$0xff]
      %v499 = vld [vmem:[%s169 + $0x93c] sm:$0xff]
      %v500 = vld [vmem:[%s169 + $0x944] sm:$0xf]
      %v501 = vld [vmem:[%s169 + $0x948] sm:$0xff]
      %v502 = vld [vmem:[%s169 + $0x950] sm:$0xff]
      %v503 = vld [vmem:[%s169 + $0x958] sm:$0xff]
      %v504 = vld [vmem:[%s169 + $0x960] sm:$0xff]
      %v505 = vld [vmem:[%s169 + $0x968] sm:$0xff]
      %v506 = vld [vmem:[%s169 + $0x970] sm:$0xf]
      %v507 = vld [vmem:[%s169 + $0x974] sm:$0xff]
      %v508 = vld [vmem:[%s169 + $0x97c] sm:$0xff]
      %v509 = vld [vmem:[%s169 + $0x984] sm:$0xff]
      %v510 = vld [vmem:[%s169 + $0x98c] sm:$0xff]
      %v511 = vld [vmem:[%s169 + $0x994] sm:$0xff]
      %v512 = vld [vmem:[%s169 + $0x99c] sm:$0xf]
      %v513 = vld [vmem:[%s169 + $0x9a0] sm:$0xff]
      %v514 = vld [vmem:[%s169 + $0x9a8] sm:$0xff]
      %v515 = vld [vmem:[%s169 + $0x9b0] sm:$0xff]
      %v516 = vld [vmem:[%s169 + $0x9b8] sm:$0xff]
      %v517 = vld [vmem:[%s169 + $0x9c0] sm:$0xff]
      %v518 = vld [vmem:[%s169 + $0x9c8] sm:$0xf]
      %v519 = vld [vmem:[%s169 + $0x9cc] sm:$0xff]
      %v520 = vld [vmem:[%s169 + $0x9d4] sm:$0xff]
      %v521 = vld [vmem:[%s169 + $0x9dc] sm:$0xff]
      %v522 = vld [vmem:[%s169 + $0x9e4] sm:$0xff]
      %v523 = vld [vmem:[%s169 + $0x9ec] sm:$0xff]
      %v524 = vld [vmem:[%s169 + $0x9f4] sm:$0xf]
      %v525 = vld [vmem:[%s169 + $0x9f8] sm:$0xff]
      %v526 = vld [vmem:[%s169 + $0xa00] sm:$0xff]
      %v527 = vld [vmem:[%s169 + $0xa08] sm:$0xff]
      %v528 = vld [vmem:[%s169 + $0xa10] sm:$0xff]
      %v529 = vld [vmem:[%s169 + $0xa18] sm:$0xff]
      %v530 = vld [vmem:[%s169 + $0xa20] sm:$0xf]
      %v531 = vld [vmem:[%s169 + $0xa24] sm:$0xff]
      %v532 = vld [vmem:[%s169 + $0xa2c] sm:$0xff]
      %v533 = vld [vmem:[%s169 + $0xa34] sm:$0xff]
      %v534 = vld [vmem:[%s169 + $0xa3c] sm:$0xff]
      %v535 = vld [vmem:[%s169 + $0xa44] sm:$0xff]
      %v536 = vld [vmem:[%s169 + $0xa4c] sm:$0xf]
      %v537 = vld [vmem:[%s169 + $0xa50] sm:$0xff]
      %v538 = vld [vmem:[%s169 + $0xa58] sm:$0xff]
      %v539 = vld [vmem:[%s169 + $0xa60] sm:$0xff]
      %v540 = vld [vmem:[%s169 + $0xa68] sm:$0xff]
      %v541 = vld [vmem:[%s169 + $0xa70] sm:$0xff]
      %v542 = vld [vmem:[%s169 + $0xa78] sm:$0xf]
      %v543 = vld [vmem:[%s169 + $0xa7c] sm:$0xff]
      %v544 = vld [vmem:[%s169 + $0xa84] sm:$0xff]
      %v545 = vld [vmem:[%s169 + $0xa8c] sm:$0xff]
      %v546 = vld [vmem:[%s169 + $0xa94] sm:$0xff]
      %v547 = vld [vmem:[%s169 + $0xa9c] sm:$0xff]
      %v548 = vld [vmem:[%s169 + $0xaa4] sm:$0xf]
      %v549 = vld [vmem:[%s169 + $0xaa8] sm:$0xff]
      %v550 = vld [vmem:[%s169 + $0xab0] sm:$0xff]
      %v551 = vld [vmem:[%s169 + $0xab8] sm:$0xff]
      %v552 = vld [vmem:[%s169 + $0xac0] sm:$0xff]
      %v553 = vld [vmem:[%s169 + $0xac8] sm:$0xff]
      %v554 = vld [vmem:[%s169 + $0xad0] sm:$0xf]
      %v555 = vld [vmem:[%s169 + $0xad4] sm:$0xff]
      %v556 = vld [vmem:[%s169 + $0xadc] sm:$0xff]
      %v557 = vld [vmem:[%s169 + $0xae4] sm:$0xff]
      %v558 = vld [vmem:[%s169 + $0xaec] sm:$0xff]
      %v559 = vld [vmem:[%s169 + $0xaf4] sm:$0xff]
      %v560 = vld [vmem:[%s169 + $0xafc] sm:$0xf]
      %v561 = vld [vmem:[%s1] sm:$0xf]
      %v562 = vld [vmem:[%s1 + $0x4] sm:$0xf]
      %v563 = vld [vmem:[%s1 + $0x8] sm:$0xf]
      %v564 = vld [vmem:[%s1 + $0xc] sm:$0xf]
      %v565 = vld [vmem:[%s1 + $0x10] sm:$0xf]
      %v566 = vld [vmem:[%s1 + $0x14] sm:$0xf]
      %v567 = vld [vmem:[%s1 + $0x18] sm:$0xf]
      %v568 = vld [vmem:[%s1 + $0x1c] sm:$0xf]
      %v569 = vld [vmem:[%s1 + $0x20] sm:$0xf]
      %v570 = vld [vmem:[%s1 + $0x24] sm:$0xf]
      %v571 = vld [vmem:[%s1 + $0x28] sm:$0xf]
      %v572 = vld [vmem:[%s1 + $0x2c] sm:$0xf]
      %v573 = vld [vmem:[%s1 + $0x30] sm:$0xf]
      %v574 = vld [vmem:[%s1 + $0x34] sm:$0xf]
      %v575 = vld [vmem:[%s1 + $0x38] sm:$0xf]
      %v576 = vld [vmem:[%s1 + $0x3c] sm:$0xf]
      %v577 = vld [vmem:[%s1 + $0x40] sm:$0xf]
      %v578 = vld [vmem:[%s1 + $0x44] sm:$0xf]
      %v579 = vld [vmem:[%s1 + $0x48] sm:$0xf]
      %v580 = vld [vmem:[%s1 + $0x4c] sm:$0xf]
      %v581 = vld [vmem:[%s1 + $0x50] sm:$0xf]
      %v582 = vld [vmem:[%s1 + $0x54] sm:$0xf]
      %v583 = vld [vmem:[%s1 + $0x58] sm:$0xf]
      %v584 = vld [vmem:[%s1 + $0x5c] sm:$0xf]
      %v585 = vld [vmem:[%s1 + $0x60] sm:$0xf]
      %v586 = vld [vmem:[%s1 + $0x64] sm:$0xf]
      %v587 = vld [vmem:[%s1 + $0x68] sm:$0xf]
      %v588 = vld [vmem:[%s1 + $0x6c] sm:$0xf]
      %v589 = vld [vmem:[%s1 + $0x70] sm:$0xf]
      %v590 = vld [vmem:[%s1 + $0x74] sm:$0xf]
      %v591 = vld [vmem:[%s1 + $0x78] sm:$0xf]
      %v592 = vld [vmem:[%s1 + $0x7c] sm:$0xf]
      %v593 = vld [vmem:[%s1 + $0x80] sm:$0xf]
      %v594 = vld [vmem:[%s1 + $0x84] sm:$0xf]
      %v595 = vld [vmem:[%s1 + $0x88] sm:$0xf]
      %v596 = vld [vmem:[%s1 + $0x8c] sm:$0xf]
      %v597 = vld [vmem:[%s1 + $0x90] sm:$0xf]
      %v598 = vld [vmem:[%s1 + $0x94] sm:$0xf]
      %v599 = vld [vmem:[%s1 + $0x98] sm:$0xf]
      %v600 = vld [vmem:[%s1 + $0x9c] sm:$0xf]
      %v601 = vld [vmem:[%s1 + $0xa0] sm:$0xf]
      %v602 = vld [vmem:[%s1 + $0xa4] sm:$0xf]
      %v603 = vld [vmem:[%s1 + $0xa8] sm:$0xf]
      %v604 = vld [vmem:[%s1 + $0xac] sm:$0xf]
      %v605 = vld [vmem:[%s1 + $0xb0] sm:$0xf]
      %v606 = vld [vmem:[%s1 + $0xb4] sm:$0xf]
      %v607 = vld [vmem:[%s1 + $0xb8] sm:$0xf]
      %v608 = vld [vmem:[%s1 + $0xbc] sm:$0xf]
      %v609 = vld [vmem:[%s1 + $0xc0] sm:$0xf]
      %v610 = vld [vmem:[%s1 + $0xc4] sm:$0xf]
      %v611 = vld [vmem:[%s1 + $0xc8] sm:$0xf]
      %v612 = vld [vmem:[%s1 + $0xcc] sm:$0xf]
      %v613 = vld [vmem:[%s1 + $0xd0] sm:$0xf]
      %v614 = vld [vmem:[%s1 + $0xd4] sm:$0xf]
      %v615 = vld [vmem:[%s1 + $0xd8] sm:$0xf]
      %v616 = vld [vmem:[%s1 + $0xdc] sm:$0xf]
      %v617 = vld [vmem:[%s1 + $0xe0] sm:$0xf]
      %v618 = vld [vmem:[%s1 + $0xe4] sm:$0xf]
      %v619 = vld [vmem:[%s1 + $0xe8] sm:$0xf]
      %v620 = vld [vmem:[%s1 + $0xec] sm:$0xf]
      %v621 = vld [vmem:[%s1 + $0xf0] sm:$0xf]
      %v622 = vld [vmem:[%s1 + $0xf4] sm:$0xf]
      %v623 = vld [vmem:[%s1 + $0xf8] sm:$0xf]
      %v624 = vld [vmem:[%s1 + $0xfc] sm:$0xf]
      %v625 = vld [vmem:[%s1 + $0x100] sm:$0xf]
      %v626 = vld [vmem:[%s1 + $0x104] sm:$0xf]
      %v627 = vld [vmem:[%s1 + $0x108] sm:$0xf]
      %v628 = vld [vmem:[%s1 + $0x10c] sm:$0xf]
      %v629 = vld [vmem:[%s1 + $0x110] sm:$0xf]
      %v630 = vld [vmem:[%s1 + $0x114] sm:$0xf]
      %v631 = vld [vmem:[%s1 + $0x118] sm:$0xf]
      %v632 = vld [vmem:[%s1 + $0x11c] sm:$0xf]
      %v633 = vld [vmem:[%s1 + $0x120] sm:$0xf]
      %v634 = vld [vmem:[%s1 + $0x124] sm:$0xf]
      %v635 = vld [vmem:[%s1 + $0x128] sm:$0xf]
      %v636 = vld [vmem:[%s1 + $0x12c] sm:$0xf]
      %v637 = vld [vmem:[%s1 + $0x130] sm:$0xf]
      %v638 = vld [vmem:[%s1 + $0x134] sm:$0xf]
      %v639 = vld [vmem:[%s1 + $0x138] sm:$0xf]
      %v640 = vld [vmem:[%s1 + $0x13c] sm:$0xf]
      %v641 = vld [vmem:[%s1 + $0x140] sm:$0xf]
      %v642 = vld [vmem:[%s1 + $0x144] sm:$0xf]
      %v643 = vld [vmem:[%s1 + $0x148] sm:$0xf]
      %v644 = vld [vmem:[%s1 + $0x14c] sm:$0xf]
      %v645 = vld [vmem:[%s1 + $0x150] sm:$0xf]
      %v646 = vld [vmem:[%s1 + $0x154] sm:$0xf]
      %v647 = vld [vmem:[%s1 + $0x158] sm:$0xf]
      %v648 = vld [vmem:[%s1 + $0x15c] sm:$0xf]
      %v649 = vld [vmem:[%s1 + $0x160] sm:$0xf]
      %v650 = vld [vmem:[%s1 + $0x164] sm:$0xf]
      %v651 = vld [vmem:[%s1 + $0x168] sm:$0xf]
      %v652 = vld [vmem:[%s1 + $0x16c] sm:$0xf]
      %v653 = vld [vmem:[%s1 + $0x170] sm:$0xf]
      %v654 = vld [vmem:[%s1 + $0x174] sm:$0xf]
      %v655 = vld [vmem:[%s1 + $0x178] sm:$0xf]
      %v656 = vld [vmem:[%s1 + $0x17c] sm:$0xf]
      %v657 = vld [vmem:[%s1 + $0x180] sm:$0xf]
      %v658 = vld [vmem:[%s1 + $0x184] sm:$0xf]
      %v659 = vld [vmem:[%s1 + $0x188] sm:$0xf]
      %v660 = vld [vmem:[%s1 + $0x18c] sm:$0xf]
      %v661 = vld [vmem:[%s1 + $0x190] sm:$0xf]
      %v662 = vld [vmem:[%s1 + $0x194] sm:$0xf]
      %v663 = vld [vmem:[%s1 + $0x198] sm:$0xf]
      %v664 = vld [vmem:[%s1 + $0x19c] sm:$0xf]
      %v665 = vld [vmem:[%s1 + $0x1a0] sm:$0xf]
      %v666 = vld [vmem:[%s1 + $0x1a4] sm:$0xf]
      %v667 = vld [vmem:[%s1 + $0x1a8] sm:$0xf]
      %v668 = vld [vmem:[%s1 + $0x1ac] sm:$0xf]
      %v669 = vld [vmem:[%s1 + $0x1b0] sm:$0xf]
      %v670 = vld [vmem:[%s1 + $0x1b4] sm:$0xf]
      %v671 = vld [vmem:[%s1 + $0x1b8] sm:$0xf]
      %v672 = vld [vmem:[%s1 + $0x1bc] sm:$0xf]
      %v673 = vld [vmem:[%s1 + $0x1c0] sm:$0xf]
      %v674 = vld [vmem:[%s1 + $0x1c4] sm:$0xf]
      %v675 = vld [vmem:[%s1 + $0x1c8] sm:$0xf]
      %v676 = vld [vmem:[%s1 + $0x1cc] sm:$0xf]
      %v677 = vld [vmem:[%s1 + $0x1d0] sm:$0xf]
      %v678 = vld [vmem:[%s1 + $0x1d4] sm:$0xf]
      %v679 = vld [vmem:[%s1 + $0x1d8] sm:$0xf]
      %v680 = vld [vmem:[%s1 + $0x1dc] sm:$0xf]
      %v681 = vld [vmem:[%s1 + $0x1e0] sm:$0xf]
      %v682 = vld [vmem:[%s1 + $0x1e4] sm:$0xf]
      %v683 = vld [vmem:[%s1 + $0x1e8] sm:$0xf]
      %v684 = vld [vmem:[%s1 + $0x1ec] sm:$0xf]
      %v685 = vld [vmem:[%s1 + $0x1f0] sm:$0xf]
      %v686 = vld [vmem:[%s1 + $0x1f4] sm:$0xf]
      %v687 = vld [vmem:[%s1 + $0x1f8] sm:$0xf]
      %v688 = vld [vmem:[%s1 + $0x1fc] sm:$0xf]
      %v689 = vld [vmem:[%s1 + $0x200] sm:$0xf]
      %v690 = vld [vmem:[%s1 + $0x204] sm:$0xf]
      %v691 = vld [vmem:[%s1 + $0x208] sm:$0xf]
      %v692 = vld [vmem:[%s1 + $0x20c] sm:$0xf]
      %v693 = vld [vmem:[%s1 + $0x210] sm:$0xf]
      %v694 = vld [vmem:[%s1 + $0x214] sm:$0xf]
      %v695 = vld [vmem:[%s1 + $0x218] sm:$0xf]
      %v696 = vld [vmem:[%s1 + $0x21c] sm:$0xf]
      %v697 = vld [vmem:[%s1 + $0x220] sm:$0xf]
      %v698 = vld [vmem:[%s1 + $0x224] sm:$0xf]
      %v699 = vld [vmem:[%s1 + $0x228] sm:$0xf]
      %v700 = vld [vmem:[%s1 + $0x22c] sm:$0xf]
      %v701 = vld [vmem:[%s1 + $0x230] sm:$0xf]
      %v702 = vld [vmem:[%s1 + $0x234] sm:$0xf]
      %v703 = vld [vmem:[%s1 + $0x238] sm:$0xf]
      %v704 = vld [vmem:[%s1 + $0x23c] sm:$0xf]
      %v705 = vld [vmem:[%s1 + $0x240] sm:$0xf]
      %v706 = vld [vmem:[%s1 + $0x244] sm:$0xf]
      %v707 = vld [vmem:[%s1 + $0x248] sm:$0xf]
      %v708 = vld [vmem:[%s1 + $0x24c] sm:$0xf]
      %v709 = vld [vmem:[%s1 + $0x250] sm:$0xf]
      %v710 = vld [vmem:[%s1 + $0x254] sm:$0xf]
      %v711 = vld [vmem:[%s1 + $0x258] sm:$0xf]
      %v712 = vld [vmem:[%s1 + $0x25c] sm:$0xf]
      %v713 = vld [vmem:[%s1 + $0x260] sm:$0xf]
      %v714 = vld [vmem:[%s1 + $0x264] sm:$0xf]
      %v715 = vld [vmem:[%s1 + $0x268] sm:$0xf]
      %v716 = vld [vmem:[%s1 + $0x26c] sm:$0xf]
      %v717 = vld [vmem:[%s1 + $0x270] sm:$0xf]
      %v718 = vld [vmem:[%s1 + $0x274] sm:$0xf]
      %v719 = vld [vmem:[%s1 + $0x278] sm:$0xf]
      %v720 = vld [vmem:[%s1 + $0x27c] sm:$0xf]
      %v721 = vld [vmem:[%s1 + $0x280] sm:$0xf]
      %v722 = vld [vmem:[%s1 + $0x284] sm:$0xf]
      %v723 = vld [vmem:[%s1 + $0x288] sm:$0xf]
      %v724 = vld [vmem:[%s1 + $0x28c] sm:$0xf]
      %v725 = vld [vmem:[%s1 + $0x290] sm:$0xf]
      %v726 = vld [vmem:[%s1 + $0x294] sm:$0xf]
      %v727 = vld [vmem:[%s1 + $0x298] sm:$0xf]
      %v728 = vld [vmem:[%s1 + $0x29c] sm:$0xf]
      %v729 = vld [vmem:[%s1 + $0x2a0] sm:$0xf]
      %v730 = vld [vmem:[%s1 + $0x2a4] sm:$0xf]
      %v731 = vld [vmem:[%s1 + $0x2a8] sm:$0xf]
      %v732 = vld [vmem:[%s1 + $0x2ac] sm:$0xf]
      %v733 = vld [vmem:[%s1 + $0x2b0] sm:$0xf]
      %v734 = vld [vmem:[%s1 + $0x2b4] sm:$0xf]
      %v735 = vld [vmem:[%s1 + $0x2b8] sm:$0xf]
      %v736 = vld [vmem:[%s1 + $0x2bc] sm:$0xf]
      %v737 = vld [vmem:[%s2] sm:$0x1]
      %v739 = vperm.slane %v737, 0
      %v1125 = vunpack.c.l.b16 %v177
      %v1126 = vunpack.c.h.b16 %v177
      %v1127 = vunpack.c.l.b16 %v178
      %v1128 = vunpack.c.h.b16 %v178
      %v1129 = vunpack.c.l.b16 %v179
      %v1130 = vunpack.c.h.b16 %v179
      %v1131 = vunpack.c.l.b16 %v180
      %v1132 = vunpack.c.h.b16 %v180
      %v1133 = vunpack.c.l.b16 %v181
      %v1134 = vunpack.c.h.b16 %v181
      %v1135 = vunpack.c.l.b16 %v182
      %v1136 = vunpack.c.l.b16 %v183
      %v1137 = vunpack.c.h.b16 %v183
      %v1138 = vunpack.c.l.b16 %v184
      %v1139 = vunpack.c.h.b16 %v184
      %v1140 = vunpack.c.l.b16 %v185
      %v1141 = vunpack.c.h.b16 %v185
      %v1142 = vunpack.c.l.b16 %v186
      %v1143 = vunpack.c.h.b16 %v186
      %v1144 = vunpack.c.l.b16 %v187
      %v1145 = vunpack.c.h.b16 %v187
      %v1146 = vunpack.c.l.b16 %v188
      %v1147 = vunpack.c.l.b16 %v189
      %v1148 = vunpack.c.h.b16 %v189
      %v1149 = vunpack.c.l.b16 %v190
      %v1150 = vunpack.c.h.b16 %v190
      %v1151 = vunpack.c.l.b16 %v191
      %v1152 = vunpack.c.h.b16 %v191
      %v1153 = vunpack.c.l.b16 %v192
      %v1154 = vunpack.c.h.b16 %v192
      %v1155 = vunpack.c.l.b16 %v193
      %v1156 = vunpack.c.h.b16 %v193
      %v1157 = vunpack.c.l.b16 %v194
      %v1158 = vunpack.c.l.b16 %v195
      %v1159 = vunpack.c.h.b16 %v195
      %v1160 = vunpack.c.l.b16 %v196
      %v1161 = vunpack.c.h.b16 %v196
      %v1162 = vunpack.c.l.b16 %v197
      %v1163 = vunpack.c.h.b16 %v197
      %v1164 = vunpack.c.l.b16 %v198
      %v1165 = vunpack.c.h.b16 %v198
      %v1166 = vunpack.c.l.b16 %v199
      %v1167 = vunpack.c.h.b16 %v199
      %v1168 = vunpack.c.l.b16 %v200
      %v1169 = vunpack.c.l.b16 %v201
      %v1170 = vunpack.c.h.b16 %v201
      %v1171 = vunpack.c.l.b16 %v202
      %v1172 = vunpack.c.h.b16 %v202
      %v1173 = vunpack.c.l.b16 %v203
      %v1174 = vunpack.c.h.b16 %v203
      %v1175 = vunpack.c.l.b16 %v204
      %v1176 = vunpack.c.h.b16 %v204
      %v1177 = vunpack.c.l.b16 %v205
      %v1178 = vunpack.c.h.b16 %v205
      %v1179 = vunpack.c.l.b16 %v206
      %v1180 = vunpack.c.l.b16 %v207
      %v1181 = vunpack.c.h.b16 %v207
      %v1182 = vunpack.c.l.b16 %v208
      %v1183 = vunpack.c.h.b16 %v208
      %v1184 = vunpack.c.l.b16 %v209
      %v1185 = vunpack.c.h.b16 %v209
      %v1186 = vunpack.c.l.b16 %v210
      %v1187 = vunpack.c.h.b16 %v210
      %v1188 = vunpack.c.l.b16 %v211
      %v1189 = vunpack.c.h.b16 %v211
      %v1190 = vunpack.c.l.b16 %v212
      %v1191 = vunpack.c.l.b16 %v213
      %v1192 = vunpack.c.h.b16 %v213
      %v1193 = vunpack.c.l.b16 %v214
      %v1194 = vunpack.c.h.b16 %v214
      %v1195 = vunpack.c.l.b16 %v215
      %v1196 = vunpack.c.h.b16 %v215
      %v1197 = vunpack.c.l.b16 %v216
      %v1198 = vunpack.c.h.b16 %v216
      %v1199 = vunpack.c.l.b16 %v217
      %v1200 = vunpack.c.h.b16 %v217
      %v1201 = vunpack.c.l.b16 %v218
      %v1202 = vunpack.c.l.b16 %v219
      %v1203 = vunpack.c.h.b16 %v219
      %v1204 = vunpack.c.l.b16 %v220
      %v1205 = vunpack.c.h.b16 %v220
      %v1206 = vunpack.c.l.b16 %v221
      %v1207 = vunpack.c.h.b16 %v221
      %v1208 = vunpack.c.l.b16 %v222
      %v1209 = vunpack.c.h.b16 %v222
      %v1210 = vunpack.c.l.b16 %v223
      %v1211 = vunpack.c.h.b16 %v223
      %v1212 = vunpack.c.l.b16 %v224
      %v1213 = vunpack.c.l.b16 %v225
      %v1214 = vunpack.c.h.b16 %v225
      %v1215 = vunpack.c.l.b16 %v226
      %v1216 = vunpack.c.h.b16 %v226
      %v1217 = vunpack.c.l.b16 %v227
      %v1218 = vunpack.c.h.b16 %v227
      %v1219 = vunpack.c.l.b16 %v228
      %v1220 = vunpack.c.h.b16 %v228
      %v1221 = vunpack.c.l.b16 %v229
      %v1222 = vunpack.c.h.b16 %v229
      %v1223 = vunpack.c.l.b16 %v230
      %v1224 = vunpack.c.l.b16 %v231
      %v1225 = vunpack.c.h.b16 %v231
      %v1226 = vunpack.c.l.b16 %v232
      %v1227 = vunpack.c.h.b16 %v232
      %v1228 = vunpack.c.l.b16 %v233
      %v1229 = vunpack.c.h.b16 %v233
      %v1230 = vunpack.c.l.b16 %v234
      %v1231 = vunpack.c.h.b16 %v234
      %v1232 = vunpack.c.l.b16 %v235
      %v1233 = vunpack.c.h.b16 %v235
      %v1234 = vunpack.c.l.b16 %v236
      %v1235 = vunpack.c.l.b16 %v237
      %v1236 = vunpack.c.h.b16 %v237
      %v1237 = vunpack.c.l.b16 %v238
      %v1238 = vunpack.c.h.b16 %v238
      %v1239 = vunpack.c.l.b16 %v239
      %v1240 = vunpack.c.h.b16 %v239
      %v1241 = vunpack.c.l.b16 %v240
      %v1242 = vunpack.c.h.b16 %v240
      %v1243 = vunpack.c.l.b16 %v241
      %v1244 = vunpack.c.h.b16 %v241
      %v1245 = vunpack.c.l.b16 %v242
      %v1246 = vunpack.c.l.b16 %v243
      %v1247 = vunpack.c.h.b16 %v243
      %v1248 = vunpack.c.l.b16 %v244
      %v1249 = vunpack.c.h.b16 %v244
      %v1250 = vunpack.c.l.b16 %v245
      %v1251 = vunpack.c.h.b16 %v245
      %v1252 = vunpack.c.l.b16 %v246
      %v1253 = vunpack.c.h.b16 %v246
      %v1254 = vunpack.c.l.b16 %v247
      %v1255 = vunpack.c.h.b16 %v247
      %v1256 = vunpack.c.l.b16 %v248
      %v1257 = vunpack.c.l.b16 %v249
      %v1258 = vunpack.c.h.b16 %v249
      %v1259 = vunpack.c.l.b16 %v250
      %v1260 = vunpack.c.h.b16 %v250
      %v1261 = vunpack.c.l.b16 %v251
      %v1262 = vunpack.c.h.b16 %v251
      %v1263 = vunpack.c.l.b16 %v252
      %v1264 = vunpack.c.h.b16 %v252
      %v1265 = vunpack.c.l.b16 %v253
      %v1266 = vunpack.c.h.b16 %v253
      %v1267 = vunpack.c.l.b16 %v254
      %v1268 = vunpack.c.l.b16 %v255
      %v1269 = vunpack.c.h.b16 %v255
      %v1270 = vunpack.c.l.b16 %v256
      %v1271 = vunpack.c.h.b16 %v256
      %v1272 = vunpack.c.l.b16 %v257
      %v1273 = vunpack.c.h.b16 %v257
      %v1274 = vunpack.c.l.b16 %v258
      %v1275 = vunpack.c.h.b16 %v258
      %v1276 = vunpack.c.l.b16 %v259
      %v1277 = vunpack.c.h.b16 %v259
      %v1278 = vunpack.c.l.b16 %v260
      %v1279 = vunpack.c.l.b16 %v261
      %v1280 = vunpack.c.h.b16 %v261
      %v1281 = vunpack.c.l.b16 %v262
      %v1282 = vunpack.c.h.b16 %v262
      %v1283 = vunpack.c.l.b16 %v263
      %v1284 = vunpack.c.h.b16 %v263
      %v1285 = vunpack.c.l.b16 %v264
      %v1286 = vunpack.c.h.b16 %v264
      %v1287 = vunpack.c.l.b16 %v265
      %v1288 = vunpack.c.h.b16 %v265
      %v1289 = vunpack.c.l.b16 %v266
      %v1290 = vunpack.c.l.b16 %v267
      %v1291 = vunpack.c.h.b16 %v267
      %v1292 = vunpack.c.l.b16 %v268
      %v1293 = vunpack.c.h.b16 %v268
      %v1294 = vunpack.c.l.b16 %v269
      %v1295 = vunpack.c.h.b16 %v269
      %v1296 = vunpack.c.l.b16 %v270
      %v1297 = vunpack.c.h.b16 %v270
      %v1298 = vunpack.c.l.b16 %v271
      %v1299 = vunpack.c.h.b16 %v271
      %v1300 = vunpack.c.l.b16 %v272
      %v1301 = vunpack.c.l.b16 %v273
      %v1302 = vunpack.c.h.b16 %v273
      %v1303 = vunpack.c.l.b16 %v274
      %v1304 = vunpack.c.h.b16 %v274
      %v1305 = vunpack.c.l.b16 %v275
      %v1306 = vunpack.c.h.b16 %v275
      %v1307 = vunpack.c.l.b16 %v276
      %v1308 = vunpack.c.h.b16 %v276
      %v1309 = vunpack.c.l.b16 %v277
      %v1310 = vunpack.c.h.b16 %v277
      %v1311 = vunpack.c.l.b16 %v278
      %v1312 = vunpack.c.l.b16 %v279
      %v1313 = vunpack.c.h.b16 %v279
      %v1314 = vunpack.c.l.b16 %v280
      %v1315 = vunpack.c.h.b16 %v280
      %v1316 = vunpack.c.l.b16 %v281
      %v1317 = vunpack.c.h.b16 %v281
      %v1318 = vunpack.c.l.b16 %v282
      %v1319 = vunpack.c.h.b16 %v282
      %v1320 = vunpack.c.l.b16 %v283
      %v1321 = vunpack.c.h.b16 %v283
      %v1322 = vunpack.c.l.b16 %v284
      %v1323 = vunpack.c.l.b16 %v285
      %v1324 = vunpack.c.h.b16 %v285
      %v1325 = vunpack.c.l.b16 %v286
      %v1326 = vunpack.c.h.b16 %v286
      %v1327 = vunpack.c.l.b16 %v287
      %v1328 = vunpack.c.h.b16 %v287
      %v1329 = vunpack.c.l.b16 %v288
      %v1330 = vunpack.c.h.b16 %v288
      %v1331 = vunpack.c.l.b16 %v289
      %v1332 = vunpack.c.h.b16 %v289
      %v1333 = vunpack.c.l.b16 %v290
      %v1334 = vunpack.c.l.b16 %v291
      %v1335 = vunpack.c.h.b16 %v291
      %v1336 = vunpack.c.l.b16 %v292
      %v1337 = vunpack.c.h.b16 %v292
      %v1338 = vunpack.c.l.b16 %v293
      %v1339 = vunpack.c.h.b16 %v293
      %v1340 = vunpack.c.l.b16 %v294
      %v1341 = vunpack.c.h.b16 %v294
      %v1342 = vunpack.c.l.b16 %v295
      %v1343 = vunpack.c.h.b16 %v295
      %v1344 = vunpack.c.l.b16 %v296
      %v1345 = vunpack.c.l.b16 %v297
      %v1346 = vunpack.c.h.b16 %v297
      %v1347 = vunpack.c.l.b16 %v298
      %v1348 = vunpack.c.h.b16 %v298
      %v1349 = vunpack.c.l.b16 %v299
      %v1350 = vunpack.c.h.b16 %v299
      %v1351 = vunpack.c.l.b16 %v300
      %v1352 = vunpack.c.h.b16 %v300
      %v1353 = vunpack.c.l.b16 %v301
      %v1354 = vunpack.c.h.b16 %v301
      %v1355 = vunpack.c.l.b16 %v302
      %v1356 = vunpack.c.l.b16 %v303
      %v1357 = vunpack.c.h.b16 %v303
      %v1358 = vunpack.c.l.b16 %v304
      %v1359 = vunpack.c.h.b16 %v304
      %v1360 = vunpack.c.l.b16 %v305
      %v1361 = vunpack.c.h.b16 %v305
      %v1362 = vunpack.c.l.b16 %v306
      %v1363 = vunpack.c.h.b16 %v306
      %v1364 = vunpack.c.l.b16 %v307
      %v1365 = vunpack.c.h.b16 %v307
      %v1366 = vunpack.c.l.b16 %v308
      %v1367 = vunpack.c.l.b16 %v309
      %v1368 = vunpack.c.h.b16 %v309
      %v1369 = vunpack.c.l.b16 %v310
      %v1370 = vunpack.c.h.b16 %v310
      %v1371 = vunpack.c.l.b16 %v311
      %v1372 = vunpack.c.h.b16 %v311
      %v1373 = vunpack.c.l.b16 %v312
      %v1374 = vunpack.c.h.b16 %v312
      %v1375 = vunpack.c.l.b16 %v313
      %v1376 = vunpack.c.h.b16 %v313
      %v1377 = vunpack.c.l.b16 %v314
      %v1378 = vunpack.c.l.b16 %v315
      %v1379 = vunpack.c.h.b16 %v315
      %v1380 = vunpack.c.l.b16 %v316
      %v1381 = vunpack.c.h.b16 %v316
      %v1382 = vunpack.c.l.b16 %v317
      %v1383 = vunpack.c.h.b16 %v317
      %v1384 = vunpack.c.l.b16 %v318
      %v1385 = vunpack.c.h.b16 %v318
      %v1386 = vunpack.c.l.b16 %v319
      %v1387 = vunpack.c.h.b16 %v319
      %v1388 = vunpack.c.l.b16 %v320
      %v1389 = vunpack.c.l.b16 %v321
      %v1390 = vunpack.c.h.b16 %v321
      %v1391 = vunpack.c.l.b16 %v322
      %v1392 = vunpack.c.h.b16 %v322
      %v1393 = vunpack.c.l.b16 %v323
      %v1394 = vunpack.c.h.b16 %v323
      %v1395 = vunpack.c.l.b16 %v324
      %v1396 = vunpack.c.h.b16 %v324
      %v1397 = vunpack.c.l.b16 %v325
      %v1398 = vunpack.c.h.b16 %v325
      %v1399 = vunpack.c.l.b16 %v326
      %v1400 = vunpack.c.l.b16 %v327
      %v1401 = vunpack.c.h.b16 %v327
      %v1402 = vunpack.c.l.b16 %v328
      %v1403 = vunpack.c.h.b16 %v328
      %v1404 = vunpack.c.l.b16 %v329
      %v1405 = vunpack.c.h.b16 %v329
      %v1406 = vunpack.c.l.b16 %v330
      %v1407 = vunpack.c.h.b16 %v330
      %v1408 = vunpack.c.l.b16 %v331
      %v1409 = vunpack.c.h.b16 %v331
      %v1410 = vunpack.c.l.b16 %v332
      %v1411 = vunpack.c.l.b16 %v333
      %v1412 = vunpack.c.h.b16 %v333
      %v1413 = vunpack.c.l.b16 %v334
      %v1414 = vunpack.c.h.b16 %v334
      %v1415 = vunpack.c.l.b16 %v335
      %v1416 = vunpack.c.h.b16 %v335
      %v1417 = vunpack.c.l.b16 %v336
      %v1418 = vunpack.c.h.b16 %v336
      %v1419 = vunpack.c.l.b16 %v337
      %v1420 = vunpack.c.h.b16 %v337
      %v1421 = vunpack.c.l.b16 %v338
      %v1422 = vunpack.c.l.b16 %v339
      %v1423 = vunpack.c.h.b16 %v339
      %v1424 = vunpack.c.l.b16 %v340
      %v1425 = vunpack.c.h.b16 %v340
      %v1426 = vunpack.c.l.b16 %v341
      %v1427 = vunpack.c.h.b16 %v341
      %v1428 = vunpack.c.l.b16 %v342
      %v1429 = vunpack.c.h.b16 %v342
      %v1430 = vunpack.c.l.b16 %v343
      %v1431 = vunpack.c.h.b16 %v343
      %v1432 = vunpack.c.l.b16 %v344
      %v1433 = vunpack.c.l.b16 %v345
      %v1434 = vunpack.c.h.b16 %v345
      %v1435 = vunpack.c.l.b16 %v346
      %v1436 = vunpack.c.h.b16 %v346
      %v1437 = vunpack.c.l.b16 %v347
      %v1438 = vunpack.c.h.b16 %v347
      %v1439 = vunpack.c.l.b16 %v348
      %v1440 = vunpack.c.h.b16 %v348
      %v1441 = vunpack.c.l.b16 %v349
      %v1442 = vunpack.c.h.b16 %v349
      %v1443 = vunpack.c.l.b16 %v350
      %v1444 = vunpack.c.l.b16 %v351
      %v1445 = vunpack.c.h.b16 %v351
      %v1446 = vunpack.c.l.b16 %v352
      %v1447 = vunpack.c.h.b16 %v352
      %v1448 = vunpack.c.l.b16 %v353
      %v1449 = vunpack.c.h.b16 %v353
      %v1450 = vunpack.c.l.b16 %v354
      %v1451 = vunpack.c.h.b16 %v354
      %v1452 = vunpack.c.l.b16 %v355
      %v1453 = vunpack.c.h.b16 %v355
      %v1454 = vunpack.c.l.b16 %v356
      %v1455 = vunpack.c.l.b16 %v357
      %v1456 = vunpack.c.h.b16 %v357
      %v1457 = vunpack.c.l.b16 %v358
      %v1458 = vunpack.c.h.b16 %v358
      %v1459 = vunpack.c.l.b16 %v359
      %v1460 = vunpack.c.h.b16 %v359
      %v1461 = vunpack.c.l.b16 %v360
      %v1462 = vunpack.c.h.b16 %v360
      %v1463 = vunpack.c.l.b16 %v361
      %v1464 = vunpack.c.h.b16 %v361
      %v1465 = vunpack.c.l.b16 %v362
      %v1466 = vunpack.c.l.b16 %v363
      %v1467 = vunpack.c.h.b16 %v363
      %v1468 = vunpack.c.l.b16 %v364
      %v1469 = vunpack.c.h.b16 %v364
      %v1470 = vunpack.c.l.b16 %v365
      %v1471 = vunpack.c.h.b16 %v365
      %v1472 = vunpack.c.l.b16 %v366
      %v1473 = vunpack.c.h.b16 %v366
      %v1474 = vunpack.c.l.b16 %v367
      %v1475 = vunpack.c.h.b16 %v367
      %v1476 = vunpack.c.l.b16 %v368
      %v1477 = vunpack.c.l.b16 %v369
      %v1478 = vunpack.c.h.b16 %v369
      %v1479 = vunpack.c.l.b16 %v370
      %v1480 = vunpack.c.h.b16 %v370
      %v1481 = vunpack.c.l.b16 %v371
      %v1482 = vunpack.c.h.b16 %v371
      %v1483 = vunpack.c.l.b16 %v372
      %v1484 = vunpack.c.h.b16 %v372
      %v1485 = vunpack.c.l.b16 %v373
      %v1486 = vunpack.c.h.b16 %v373
      %v1487 = vunpack.c.l.b16 %v374
      %v1488 = vunpack.c.l.b16 %v375
      %v1489 = vunpack.c.h.b16 %v375
      %v1490 = vunpack.c.l.b16 %v376
      %v1491 = vunpack.c.h.b16 %v376
      %v1492 = vunpack.c.l.b16 %v377
      %v1493 = vunpack.c.h.b16 %v377
      %v1494 = vunpack.c.l.b16 %v378
      %v1495 = vunpack.c.h.b16 %v378
      %v1496 = vunpack.c.l.b16 %v379
      %v1497 = vunpack.c.h.b16 %v379
      %v1498 = vunpack.c.l.b16 %v380
      %v1499 = vunpack.c.l.b16 %v381
      %v1500 = vunpack.c.h.b16 %v381
      %v1501 = vunpack.c.l.b16 %v382
      %v1502 = vunpack.c.h.b16 %v382
      %v1503 = vunpack.c.l.b16 %v383
      %v1504 = vunpack.c.h.b16 %v383
      %v1505 = vunpack.c.l.b16 %v384
      %v1506 = vunpack.c.h.b16 %v384
      %v1507 = vunpack.c.l.b16 %v385
      %v1508 = vunpack.c.h.b16 %v385
      %v1509 = vunpack.c.l.b16 %v386
      %v1510 = vunpack.c.l.b16 %v387
      %v1511 = vunpack.c.h.b16 %v387
      %v1512 = vunpack.c.l.b16 %v388
      %v1513 = vunpack.c.h.b16 %v388
      %v1514 = vunpack.c.l.b16 %v389
      %v1515 = vunpack.c.h.b16 %v389
      %v1516 = vunpack.c.l.b16 %v390
      %v1517 = vunpack.c.h.b16 %v390
      %v1518 = vunpack.c.l.b16 %v391
      %v1519 = vunpack.c.h.b16 %v391
      %v1520 = vunpack.c.l.b16 %v392
      %v1521 = vunpack.c.l.b16 %v393
      %v1522 = vunpack.c.h.b16 %v393
      %v1523 = vunpack.c.l.b16 %v394
      %v1524 = vunpack.c.h.b16 %v394
      %v1525 = vunpack.c.l.b16 %v395
      %v1526 = vunpack.c.h.b16 %v395
      %v1527 = vunpack.c.l.b16 %v396
      %v1528 = vunpack.c.h.b16 %v396
      %v1529 = vunpack.c.l.b16 %v397
      %v1530 = vunpack.c.h.b16 %v397
      %v1531 = vunpack.c.l.b16 %v398
      %v1532 = vunpack.c.l.b16 %v399
      %v1533 = vunpack.c.h.b16 %v399
      %v1534 = vunpack.c.l.b16 %v400
      %v1535 = vunpack.c.h.b16 %v400
      %v1536 = vunpack.c.l.b16 %v401
      %v1537 = vunpack.c.h.b16 %v401
      %v1538 = vunpack.c.l.b16 %v402
      %v1539 = vunpack.c.h.b16 %v402
      %v1540 = vunpack.c.l.b16 %v403
      %v1541 = vunpack.c.h.b16 %v403
      %v1542 = vunpack.c.l.b16 %v404
      %v1543 = vunpack.c.l.b16 %v405
      %v1544 = vunpack.c.h.b16 %v405
      %v1545 = vunpack.c.l.b16 %v406
      %v1546 = vunpack.c.h.b16 %v406
      %v1547 = vunpack.c.l.b16 %v407
      %v1548 = vunpack.c.h.b16 %v407
      %v1549 = vunpack.c.l.b16 %v408
      %v1550 = vunpack.c.h.b16 %v408
      %v1551 = vunpack.c.l.b16 %v409
      %v1552 = vunpack.c.h.b16 %v409
      %v1553 = vunpack.c.l.b16 %v410
      %v1554 = vunpack.c.l.b16 %v411
      %v1555 = vunpack.c.h.b16 %v411
      %v1556 = vunpack.c.l.b16 %v412
      %v1557 = vunpack.c.h.b16 %v412
      %v1558 = vunpack.c.l.b16 %v413
      %v1559 = vunpack.c.h.b16 %v413
      %v1560 = vunpack.c.l.b16 %v414
      %v1561 = vunpack.c.h.b16 %v414
      %v1562 = vunpack.c.l.b16 %v415
      %v1563 = vunpack.c.h.b16 %v415
      %v1564 = vunpack.c.l.b16 %v416
      %v1565 = vunpack.c.l.b16 %v417
      %v1566 = vunpack.c.h.b16 %v417
      %v1567 = vunpack.c.l.b16 %v418
      %v1568 = vunpack.c.h.b16 %v418
      %v1569 = vunpack.c.l.b16 %v419
      %v1570 = vunpack.c.h.b16 %v419
      %v1571 = vunpack.c.l.b16 %v420
      %v1572 = vunpack.c.h.b16 %v420
      %v1573 = vunpack.c.l.b16 %v421
      %v1574 = vunpack.c.h.b16 %v421
      %v1575 = vunpack.c.l.b16 %v422
      %v1576 = vunpack.c.l.b16 %v423
      %v1577 = vunpack.c.h.b16 %v423
      %v1578 = vunpack.c.l.b16 %v424
      %v1579 = vunpack.c.h.b16 %v424
      %v1580 = vunpack.c.l.b16 %v425
      %v1581 = vunpack.c.h.b16 %v425
      %v1582 = vunpack.c.l.b16 %v426
      %v1583 = vunpack.c.h.b16 %v426
      %v1584 = vunpack.c.l.b16 %v427
      %v1585 = vunpack.c.h.b16 %v427
      %v1586 = vunpack.c.l.b16 %v428
      %v1587 = vunpack.c.l.b16 %v429
      %v1588 = vunpack.c.h.b16 %v429
      %v1589 = vunpack.c.l.b16 %v430
      %v1590 = vunpack.c.h.b16 %v430
      %v1591 = vunpack.c.l.b16 %v431
      %v1592 = vunpack.c.h.b16 %v431
      %v1593 = vunpack.c.l.b16 %v432
      %v1594 = vunpack.c.h.b16 %v432
      %v1595 = vunpack.c.l.b16 %v433
      %v1596 = vunpack.c.h.b16 %v433
      %v1597 = vunpack.c.l.b16 %v434
      %v1598 = vunpack.c.l.b16 %v435
      %v1599 = vunpack.c.h.b16 %v435
      %v1600 = vunpack.c.l.b16 %v436
      %v1601 = vunpack.c.h.b16 %v436
      %v1602 = vunpack.c.l.b16 %v437
      %v1603 = vunpack.c.h.b16 %v437
      %v1604 = vunpack.c.l.b16 %v438
      %v1605 = vunpack.c.h.b16 %v438
      %v1606 = vunpack.c.l.b16 %v439
      %v1607 = vunpack.c.h.b16 %v439
      %v1608 = vunpack.c.l.b16 %v440
      %v1609 = vunpack.c.l.b16 %v441
      %v1610 = vunpack.c.h.b16 %v441
      %v1611 = vunpack.c.l.b16 %v442
      %v1612 = vunpack.c.h.b16 %v442
      %v1613 = vunpack.c.l.b16 %v443
      %v1614 = vunpack.c.h.b16 %v443
      %v1615 = vunpack.c.l.b16 %v444
      %v1616 = vunpack.c.h.b16 %v444
      %v1617 = vunpack.c.l.b16 %v445
      %v1618 = vunpack.c.h.b16 %v445
      %v1619 = vunpack.c.l.b16 %v446
      %v1620 = vunpack.c.l.b16 %v447
      %v1621 = vunpack.c.h.b16 %v447
      %v1622 = vunpack.c.l.b16 %v448
      %v1623 = vunpack.c.h.b16 %v448
      %v1624 = vunpack.c.l.b16 %v449
      %v1625 = vunpack.c.h.b16 %v449
      %v1626 = vunpack.c.l.b16 %v450
      %v1627 = vunpack.c.h.b16 %v450
      %v1628 = vunpack.c.l.b16 %v451
      %v1629 = vunpack.c.h.b16 %v451
      %v1630 = vunpack.c.l.b16 %v452
      %v1631 = vunpack.c.l.b16 %v453
      %v1632 = vunpack.c.h.b16 %v453
      %v1633 = vunpack.c.l.b16 %v454
      %v1634 = vunpack.c.h.b16 %v454
      %v1635 = vunpack.c.l.b16 %v455
      %v1636 = vunpack.c.h.b16 %v455
      %v1637 = vunpack.c.l.b16 %v456
      %v1638 = vunpack.c.h.b16 %v456
      %v1639 = vunpack.c.l.b16 %v457
      %v1640 = vunpack.c.h.b16 %v457
      %v1641 = vunpack.c.l.b16 %v458
      %v1642 = vunpack.c.l.b16 %v459
      %v1643 = vunpack.c.h.b16 %v459
      %v1644 = vunpack.c.l.b16 %v460
      %v1645 = vunpack.c.h.b16 %v460
      %v1646 = vunpack.c.l.b16 %v461
      %v1647 = vunpack.c.h.b16 %v461
      %v1648 = vunpack.c.l.b16 %v462
      %v1649 = vunpack.c.h.b16 %v462
      %v1650 = vunpack.c.l.b16 %v463
      %v1651 = vunpack.c.h.b16 %v463
      %v1652 = vunpack.c.l.b16 %v464
      %v1653 = vunpack.c.l.b16 %v465
      %v1654 = vunpack.c.h.b16 %v465
      %v1655 = vunpack.c.l.b16 %v466
      %v1656 = vunpack.c.h.b16 %v466
      %v1657 = vunpack.c.l.b16 %v467
      %v1658 = vunpack.c.h.b16 %v467
      %v1659 = vunpack.c.l.b16 %v468
      %v1660 = vunpack.c.h.b16 %v468
      %v1661 = vunpack.c.l.b16 %v469
      %v1662 = vunpack.c.h.b16 %v469
      %v1663 = vunpack.c.l.b16 %v470
      %v1664 = vunpack.c.l.b16 %v471
      %v1665 = vunpack.c.h.b16 %v471
      %v1666 = vunpack.c.l.b16 %v472
      %v1667 = vunpack.c.h.b16 %v472
      %v1668 = vunpack.c.l.b16 %v473
      %v1669 = vunpack.c.h.b16 %v473
      %v1670 = vunpack.c.l.b16 %v474
      %v1671 = vunpack.c.h.b16 %v474
      %v1672 = vunpack.c.l.b16 %v475
      %v1673 = vunpack.c.h.b16 %v475
      %v1674 = vunpack.c.l.b16 %v476
      %v1675 = vunpack.c.l.b16 %v477
      %v1676 = vunpack.c.h.b16 %v477
      %v1677 = vunpack.c.l.b16 %v478
      %v1678 = vunpack.c.h.b16 %v478
      %v1679 = vunpack.c.l.b16 %v479
      %v1680 = vunpack.c.h.b16 %v479
      %v1681 = vunpack.c.l.b16 %v480
      %v1682 = vunpack.c.h.b16 %v480
      %v1683 = vunpack.c.l.b16 %v481
      %v1684 = vunpack.c.h.b16 %v481
      %v1685 = vunpack.c.l.b16 %v482
      %v1686 = vunpack.c.l.b16 %v483
      %v1687 = vunpack.c.h.b16 %v483
      %v1688 = vunpack.c.l.b16 %v484
      %v1689 = vunpack.c.h.b16 %v484
      %v1690 = vunpack.c.l.b16 %v485
      %v1691 = vunpack.c.h.b16 %v485
      %v1692 = vunpack.c.l.b16 %v486
      %v1693 = vunpack.c.h.b16 %v486
      %v1694 = vunpack.c.l.b16 %v487
      %v1695 = vunpack.c.h.b16 %v487
      %v1696 = vunpack.c.l.b16 %v488
      %v1697 = vunpack.c.l.b16 %v489
      %v1698 = vunpack.c.h.b16 %v489
      %v1699 = vunpack.c.l.b16 %v490
      %v1700 = vunpack.c.h.b16 %v490
      %v1701 = vunpack.c.l.b16 %v491
      %v1702 = vunpack.c.h.b16 %v491
      %v1703 = vunpack.c.l.b16 %v492
      %v1704 = vunpack.c.h.b16 %v492
      %v1705 = vunpack.c.l.b16 %v493
      %v1706 = vunpack.c.h.b16 %v493
      %v1707 = vunpack.c.l.b16 %v494
      %v1708 = vunpack.c.l.b16 %v495
      %v1709 = vunpack.c.h.b16 %v495
      %v1710 = vunpack.c.l.b16 %v496
      %v1711 = vunpack.c.h.b16 %v496
      %v1712 = vunpack.c.l.b16 %v497
      %v1713 = vunpack.c.h.b16 %v497
      %v1714 = vunpack.c.l.b16 %v498
      %v1715 = vunpack.c.h.b16 %v498
      %v1716 = vunpack.c.l.b16 %v499
      %v1717 = vunpack.c.h.b16 %v499
      %v1718 = vunpack.c.l.b16 %v500
      %v1719 = vunpack.c.l.b16 %v501
      %v1720 = vunpack.c.h.b16 %v501
      %v1721 = vunpack.c.l.b16 %v502
      %v1722 = vunpack.c.h.b16 %v502
      %v1723 = vunpack.c.l.b16 %v503
      %v1724 = vunpack.c.h.b16 %v503
      %v1725 = vunpack.c.l.b16 %v504
      %v1726 = vunpack.c.h.b16 %v504
      %v1727 = vunpack.c.l.b16 %v505
      %v1728 = vunpack.c.h.b16 %v505
      %v1729 = vunpack.c.l.b16 %v506
      %v1730 = vunpack.c.l.b16 %v507
      %v1731 = vunpack.c.h.b16 %v507
      %v1732 = vunpack.c.l.b16 %v508
      %v1733 = vunpack.c.h.b16 %v508
      %v1734 = vunpack.c.l.b16 %v509
      %v1735 = vunpack.c.h.b16 %v509
      %v1736 = vunpack.c.l.b16 %v510
      %v1737 = vunpack.c.h.b16 %v510
      %v1738 = vunpack.c.l.b16 %v511
      %v1739 = vunpack.c.h.b16 %v511
      %v1740 = vunpack.c.l.b16 %v512
      %v1741 = vunpack.c.l.b16 %v513
      %v1742 = vunpack.c.h.b16 %v513
      %v1743 = vunpack.c.l.b16 %v514
      %v1744 = vunpack.c.h.b16 %v514
      %v1745 = vunpack.c.l.b16 %v515
      %v1746 = vunpack.c.h.b16 %v515
      %v1747 = vunpack.c.l.b16 %v516
      %v1748 = vunpack.c.h.b16 %v516
      %v1749 = vunpack.c.l.b16 %v517
      %v1750 = vunpack.c.h.b16 %v517
      %v1751 = vunpack.c.l.b16 %v518
      %v1752 = vunpack.c.l.b16 %v519
      %v1753 = vunpack.c.h.b16 %v519
      %v1754 = vunpack.c.l.b16 %v520
      %v1755 = vunpack.c.h.b16 %v520
      %v1756 = vunpack.c.l.b16 %v521
      %v1757 = vunpack.c.h.b16 %v521
      %v1758 = vunpack.c.l.b16 %v522
      %v1759 = vunpack.c.h.b16 %v522
      %v1760 = vunpack.c.l.b16 %v523
      %v1761 = vunpack.c.h.b16 %v523
      %v1762 = vunpack.c.l.b16 %v524
      %v1763 = vunpack.c.l.b16 %v525
      %v1764 = vunpack.c.h.b16 %v525
      %v1765 = vunpack.c.l.b16 %v526
      %v1766 = vunpack.c.h.b16 %v526
      %v1767 = vunpack.c.l.b16 %v527
      %v1768 = vunpack.c.h.b16 %v527
      %v1769 = vunpack.c.l.b16 %v528
      %v1770 = vunpack.c.h.b16 %v528
      %v1771 = vunpack.c.l.b16 %v529
      %v1772 = vunpack.c.h.b16 %v529
      %v1773 = vunpack.c.l.b16 %v530
      %v1774 = vunpack.c.l.b16 %v531
      %v1775 = vunpack.c.h.b16 %v531
      %v1776 = vunpack.c.l.b16 %v532
      %v1777 = vunpack.c.h.b16 %v532
      %v1778 = vunpack.c.l.b16 %v533
      %v1779 = vunpack.c.h.b16 %v533
      %v1780 = vunpack.c.l.b16 %v534
      %v1781 = vunpack.c.h.b16 %v534
      %v1782 = vunpack.c.l.b16 %v535
      %v1783 = vunpack.c.h.b16 %v535
      %v1784 = vunpack.c.l.b16 %v536
      %v1785 = vunpack.c.l.b16 %v537
      %v1786 = vunpack.c.h.b16 %v537
      %v1787 = vunpack.c.l.b16 %v538
      %v1788 = vunpack.c.h.b16 %v538
      %v1789 = vunpack.c.l.b16 %v539
      %v1790 = vunpack.c.h.b16 %v539
      %v1791 = vunpack.c.l.b16 %v540
      %v1792 = vunpack.c.h.b16 %v540
      %v1793 = vunpack.c.l.b16 %v541
      %v1794 = vunpack.c.h.b16 %v541
      %v1795 = vunpack.c.l.b16 %v542
      %v1796 = vunpack.c.l.b16 %v543
      %v1797 = vunpack.c.h.b16 %v543
      %v1798 = vunpack.c.l.b16 %v544
      %v1799 = vunpack.c.h.b16 %v544
      %v1800 = vunpack.c.l.b16 %v545
      %v1801 = vunpack.c.h.b16 %v545
      %v1802 = vunpack.c.l.b16 %v546
      %v1803 = vunpack.c.h.b16 %v546
      %v1804 = vunpack.c.l.b16 %v547
      %v1805 = vunpack.c.h.b16 %v547
      %v1806 = vunpack.c.l.b16 %v548
      %v1807 = vunpack.c.l.b16 %v549
      %v1808 = vunpack.c.h.b16 %v549
      %v1809 = vunpack.c.l.b16 %v550
      %v1810 = vunpack.c.h.b16 %v550
      %v1811 = vunpack.c.l.b16 %v551
      %v1812 = vunpack.c.h.b16 %v551
      %v1813 = vunpack.c.l.b16 %v552
      %v1814 = vunpack.c.h.b16 %v552
      %v1815 = vunpack.c.l.b16 %v553
      %v1816 = vunpack.c.h.b16 %v553
      %v1817 = vunpack.c.l.b16 %v554
      %v1818 = vunpack.c.l.b16 %v555
      %v1819 = vunpack.c.h.b16 %v555
      %v1820 = vunpack.c.l.b16 %v556
      %v1821 = vunpack.c.h.b16 %v556
      %v1822 = vunpack.c.l.b16 %v557
      %v1823 = vunpack.c.h.b16 %v557
      %v1824 = vunpack.c.l.b16 %v558
      %v1825 = vunpack.c.h.b16 %v558
      %v1826 = vunpack.c.l.b16 %v559
      %v1827 = vunpack.c.h.b16 %v559
      %v1828 = vunpack.c.l.b16 %v560
      %v1829 = vpack.c.b16 %v1136, %v1125
      %v1830 = vpack.c.b16 %v1137, %v1126
      %v1831 = vpack.c.b16 %v1138, %v1127
      %v1832 = vpack.c.b16 %v1139, %v1128
      %v1833 = vpack.c.b16 %v1140, %v1129
      %v1834 = vpack.c.b16 %v1141, %v1130
      %v1835 = vpack.c.b16 %v1142, %v1131
      %v1836 = vpack.c.b16 %v1143, %v1132
      %v1837 = vpack.c.b16 %v1144, %v1133
      %v1838 = vpack.c.b16 %v1145, %v1134
      %v1839 = vpack.c.b16 %v1146, %v1135
      %v1840 = vpack.c.b16 %v1158, %v1147
      %v1841 = vpack.c.b16 %v1159, %v1148
      %v1842 = vpack.c.b16 %v1160, %v1149
      %v1843 = vpack.c.b16 %v1161, %v1150
      %v1844 = vpack.c.b16 %v1162, %v1151
      %v1845 = vpack.c.b16 %v1163, %v1152
      %v1846 = vpack.c.b16 %v1164, %v1153
      %v1847 = vpack.c.b16 %v1165, %v1154
      %v1848 = vpack.c.b16 %v1166, %v1155
      %v1849 = vpack.c.b16 %v1167, %v1156
      %v1850 = vpack.c.b16 %v1168, %v1157
      %v1851 = vpack.c.b16 %v1180, %v1169
      %v1852 = vpack.c.b16 %v1181, %v1170
      %v1853 = vpack.c.b16 %v1182, %v1171
      %v1854 = vpack.c.b16 %v1183, %v1172
      %v1855 = vpack.c.b16 %v1184, %v1173
      %v1856 = vpack.c.b16 %v1185, %v1174
      %v1857 = vpack.c.b16 %v1186, %v1175
      %v1858 = vpack.c.b16 %v1187, %v1176
      %v1859 = vpack.c.b16 %v1188, %v1177
      %v1860 = vpack.c.b16 %v1189, %v1178
      %v1861 = vpack.c.b16 %v1190, %v1179
      %v1862 = vpack.c.b16 %v1202, %v1191
      %v1863 = vpack.c.b16 %v1203, %v1192
      %v1864 = vpack.c.b16 %v1204, %v1193
      %v1865 = vpack.c.b16 %v1205, %v1194
      %v1866 = vpack.c.b16 %v1206, %v1195
      %v1867 = vpack.c.b16 %v1207, %v1196
      %v1868 = vpack.c.b16 %v1208, %v1197
      %v1869 = vpack.c.b16 %v1209, %v1198
      %v1870 = vpack.c.b16 %v1210, %v1199
      %v1871 = vpack.c.b16 %v1211, %v1200
      %v1872 = vpack.c.b16 %v1212, %v1201
      %v1873 = vpack.c.b16 %v1224, %v1213
      %v1874 = vpack.c.b16 %v1225, %v1214
      %v1875 = vpack.c.b16 %v1226, %v1215
      %v1876 = vpack.c.b16 %v1227, %v1216
      %v1877 = vpack.c.b16 %v1228, %v1217
      %v1878 = vpack.c.b16 %v1229, %v1218
      %v1879 = vpack.c.b16 %v1230, %v1219
      %v1880 = vpack.c.b16 %v1231, %v1220
      %v1881 = vpack.c.b16 %v1232, %v1221
      %v1882 = vpack.c.b16 %v1233, %v1222
      %v1883 = vpack.c.b16 %v1234, %v1223
      %v1884 = vpack.c.b16 %v1246, %v1235
      %v1885 = vpack.c.b16 %v1247, %v1236
      %v1886 = vpack.c.b16 %v1248, %v1237
      %v1887 = vpack.c.b16 %v1249, %v1238
      %v1888 = vpack.c.b16 %v1250, %v1239
      %v1889 = vpack.c.b16 %v1251, %v1240
      %v1890 = vpack.c.b16 %v1252, %v1241
      %v1891 = vpack.c.b16 %v1253, %v1242
      %v1892 = vpack.c.b16 %v1254, %v1243
      %v1893 = vpack.c.b16 %v1255, %v1244
      %v1894 = vpack.c.b16 %v1256, %v1245
      %v1895 = vpack.c.b16 %v1268, %v1257
      %v1896 = vpack.c.b16 %v1269, %v1258
      %v1897 = vpack.c.b16 %v1270, %v1259
      %v1898 = vpack.c.b16 %v1271, %v1260
      %v1899 = vpack.c.b16 %v1272, %v1261
      %v1900 = vpack.c.b16 %v1273, %v1262
      %v1901 = vpack.c.b16 %v1274, %v1263
      %v1902 = vpack.c.b16 %v1275, %v1264
      %v1903 = vpack.c.b16 %v1276, %v1265
      %v1904 = vpack.c.b16 %v1277, %v1266
      %v1905 = vpack.c.b16 %v1278, %v1267
      %v1906 = vpack.c.b16 %v1290, %v1279
      %v1907 = vpack.c.b16 %v1291, %v1280
      %v1908 = vpack.c.b16 %v1292, %v1281
      %v1909 = vpack.c.b16 %v1293, %v1282
      %v1910 = vpack.c.b16 %v1294, %v1283
      %v1911 = vpack.c.b16 %v1295, %v1284
      %v1912 = vpack.c.b16 %v1296, %v1285
      %v1913 = vpack.c.b16 %v1297, %v1286
      %v1914 = vpack.c.b16 %v1298, %v1287
      %v1915 = vpack.c.b16 %v1299, %v1288
      %v1916 = vpack.c.b16 %v1300, %v1289
      %v1917 = vpack.c.b16 %v1312, %v1301
      %v1918 = vpack.c.b16 %v1313, %v1302
      %v1919 = vpack.c.b16 %v1314, %v1303
      %v1920 = vpack.c.b16 %v1315, %v1304
      %v1921 = vpack.c.b16 %v1316, %v1305
      %v1922 = vpack.c.b16 %v1317, %v1306
      %v1923 = vpack.c.b16 %v1318, %v1307
      %v1924 = vpack.c.b16 %v1319, %v1308
      %v1925 = vpack.c.b16 %v1320, %v1309
      %v1926 = vpack.c.b16 %v1321, %v1310
      %v1927 = vpack.c.b16 %v1322, %v1311
      %v1928 = vpack.c.b16 %v1334, %v1323
      %v1929 = vpack.c.b16 %v1335, %v1324
      %v1930 = vpack.c.b16 %v1336, %v1325
      %v1931 = vpack.c.b16 %v1337, %v1326
      %v1932 = vpack.c.b16 %v1338, %v1327
      %v1933 = vpack.c.b16 %v1339, %v1328
      %v1934 = vpack.c.b16 %v1340, %v1329
      %v1935 = vpack.c.b16 %v1341, %v1330
      %v1936 = vpack.c.b16 %v1342, %v1331
      %v1937 = vpack.c.b16 %v1343, %v1332
      %v1938 = vpack.c.b16 %v1344, %v1333
      %v1939 = vpack.c.b16 %v1356, %v1345
      %v1940 = vpack.c.b16 %v1357, %v1346
      %v1941 = vpack.c.b16 %v1358, %v1347
      %v1942 = vpack.c.b16 %v1359, %v1348
      %v1943 = vpack.c.b16 %v1360, %v1349
      %v1944 = vpack.c.b16 %v1361, %v1350
      %v1945 = vpack.c.b16 %v1362, %v1351
      %v1946 = vpack.c.b16 %v1363, %v1352
      %v1947 = vpack.c.b16 %v1364, %v1353
      %v1948 = vpack.c.b16 %v1365, %v1354
      %v1949 = vpack.c.b16 %v1366, %v1355
      %v1950 = vpack.c.b16 %v1378, %v1367
      %v1951 = vpack.c.b16 %v1379, %v1368
      %v1952 = vpack.c.b16 %v1380, %v1369
      %v1953 = vpack.c.b16 %v1381, %v1370
      %v1954 = vpack.c.b16 %v1382, %v1371
      %v1955 = vpack.c.b16 %v1383, %v1372
      %v1956 = vpack.c.b16 %v1384, %v1373
      %v1957 = vpack.c.b16 %v1385, %v1374
      %v1958 = vpack.c.b16 %v1386, %v1375
      %v1959 = vpack.c.b16 %v1387, %v1376
      %v1960 = vpack.c.b16 %v1388, %v1377
      %v1961 = vpack.c.b16 %v1400, %v1389
      %v1962 = vpack.c.b16 %v1401, %v1390
      %v1963 = vpack.c.b16 %v1402, %v1391
      %v1964 = vpack.c.b16 %v1403, %v1392
      %v1965 = vpack.c.b16 %v1404, %v1393
      %v1966 = vpack.c.b16 %v1405, %v1394
      %v1967 = vpack.c.b16 %v1406, %v1395
      %v1968 = vpack.c.b16 %v1407, %v1396
      %v1969 = vpack.c.b16 %v1408, %v1397
      %v1970 = vpack.c.b16 %v1409, %v1398
      %v1971 = vpack.c.b16 %v1410, %v1399
      %v1972 = vpack.c.b16 %v1422, %v1411
      %v1973 = vpack.c.b16 %v1423, %v1412
      %v1974 = vpack.c.b16 %v1424, %v1413
      %v1975 = vpack.c.b16 %v1425, %v1414
      %v1976 = vpack.c.b16 %v1426, %v1415
      %v1977 = vpack.c.b16 %v1427, %v1416
      %v1978 = vpack.c.b16 %v1428, %v1417
      %v1979 = vpack.c.b16 %v1429, %v1418
      %v1980 = vpack.c.b16 %v1430, %v1419
      %v1981 = vpack.c.b16 %v1431, %v1420
      %v1982 = vpack.c.b16 %v1432, %v1421
      %v1983 = vpack.c.b16 %v1444, %v1433
      %v1984 = vpack.c.b16 %v1445, %v1434
      %v1985 = vpack.c.b16 %v1446, %v1435
      %v1986 = vpack.c.b16 %v1447, %v1436
      %v1987 = vpack.c.b16 %v1448, %v1437
      %v1988 = vpack.c.b16 %v1449, %v1438
      %v1989 = vpack.c.b16 %v1450, %v1439
      %v1990 = vpack.c.b16 %v1451, %v1440
      %v1991 = vpack.c.b16 %v1452, %v1441
      %v1992 = vpack.c.b16 %v1453, %v1442
      %v1993 = vpack.c.b16 %v1454, %v1443
      %v1994 = vpack.c.b16 %v1466, %v1455
      %v1995 = vpack.c.b16 %v1467, %v1456
      %v1996 = vpack.c.b16 %v1468, %v1457
      %v1997 = vpack.c.b16 %v1469, %v1458
      %v1998 = vpack.c.b16 %v1470, %v1459
      %v1999 = vpack.c.b16 %v1471, %v1460
      %v2000 = vpack.c.b16 %v1472, %v1461
      %v2001 = vpack.c.b16 %v1473, %v1462
      %v2002 = vpack.c.b16 %v1474, %v1463
      %v2003 = vpack.c.b16 %v1475, %v1464
      %v2004 = vpack.c.b16 %v1476, %v1465
      %v2005 = vpack.c.b16 %v1488, %v1477
      %v2006 = vpack.c.b16 %v1489, %v1478
      %v2007 = vpack.c.b16 %v1490, %v1479
      %v2008 = vpack.c.b16 %v1491, %v1480
      %v2009 = vpack.c.b16 %v1492, %v1481
      %v2010 = vpack.c.b16 %v1493, %v1482
      %v2011 = vpack.c.b16 %v1494, %v1483
      %v2012 = vpack.c.b16 %v1495, %v1484
      %v2013 = vpack.c.b16 %v1496, %v1485
      %v2014 = vpack.c.b16 %v1497, %v1486
      %v2015 = vpack.c.b16 %v1498, %v1487
      %v2016 = vpack.c.b16 %v1510, %v1499
      %v2017 = vpack.c.b16 %v1511, %v1500
      %v2018 = vpack.c.b16 %v1512, %v1501
      %v2019 = vpack.c.b16 %v1513, %v1502
      %v2020 = vpack.c.b16 %v1514, %v1503
      %v2021 = vpack.c.b16 %v1515, %v1504
      %v2022 = vpack.c.b16 %v1516, %v1505
      %v2023 = vpack.c.b16 %v1517, %v1506
      %v2024 = vpack.c.b16 %v1518, %v1507
      %v2025 = vpack.c.b16 %v1519, %v1508
      %v2026 = vpack.c.b16 %v1520, %v1509
      %v2027 = vpack.c.b16 %v1532, %v1521
      %v2028 = vpack.c.b16 %v1533, %v1522
      %v2029 = vpack.c.b16 %v1534, %v1523
      %v2030 = vpack.c.b16 %v1535, %v1524
      %v2031 = vpack.c.b16 %v1536, %v1525
      %v2032 = vpack.c.b16 %v1537, %v1526
      %v2033 = vpack.c.b16 %v1538, %v1527
      %v2034 = vpack.c.b16 %v1539, %v1528
      %v2035 = vpack.c.b16 %v1540, %v1529
      %v2036 = vpack.c.b16 %v1541, %v1530
      %v2037 = vpack.c.b16 %v1542, %v1531
      %v2038 = vpack.c.b16 %v1554, %v1543
      %v2039 = vpack.c.b16 %v1555, %v1544
      %v2040 = vpack.c.b16 %v1556, %v1545
      %v2041 = vpack.c.b16 %v1557, %v1546
      %v2042 = vpack.c.b16 %v1558, %v1547
      %v2043 = vpack.c.b16 %v1559, %v1548
      %v2044 = vpack.c.b16 %v1560, %v1549
      %v2045 = vpack.c.b16 %v1561, %v1550
      %v2046 = vpack.c.b16 %v1562, %v1551
      %v2047 = vpack.c.b16 %v1563, %v1552
      %v2048 = vpack.c.b16 %v1564, %v1553
      %v2049 = vpack.c.b16 %v1576, %v1565
      %v2050 = vpack.c.b16 %v1577, %v1566
      %v2051 = vpack.c.b16 %v1578, %v1567
      %v2052 = vpack.c.b16 %v1579, %v1568
      %v2053 = vpack.c.b16 %v1580, %v1569
      %v2054 = vpack.c.b16 %v1581, %v1570
      %v2055 = vpack.c.b16 %v1582, %v1571
      %v2056 = vpack.c.b16 %v1583, %v1572
      %v2057 = vpack.c.b16 %v1584, %v1573
      %v2058 = vpack.c.b16 %v1585, %v1574
      %v2059 = vpack.c.b16 %v1586, %v1575
      %v2060 = vpack.c.b16 %v1598, %v1587
      %v2061 = vpack.c.b16 %v1599, %v1588
      %v2062 = vpack.c.b16 %v1600, %v1589
      %v2063 = vpack.c.b16 %v1601, %v1590
      %v2064 = vpack.c.b16 %v1602, %v1591
      %v2065 = vpack.c.b16 %v1603, %v1592
      %v2066 = vpack.c.b16 %v1604, %v1593
      %v2067 = vpack.c.b16 %v1605, %v1594
      %v2068 = vpack.c.b16 %v1606, %v1595
      %v2069 = vpack.c.b16 %v1607, %v1596
      %v2070 = vpack.c.b16 %v1608, %v1597
      %v2071 = vpack.c.b16 %v1620, %v1609
      %v2072 = vpack.c.b16 %v1621, %v1610
      %v2073 = vpack.c.b16 %v1622, %v1611
      %v2074 = vpack.c.b16 %v1623, %v1612
      %v2075 = vpack.c.b16 %v1624, %v1613
      %v2076 = vpack.c.b16 %v1625, %v1614
      %v2077 = vpack.c.b16 %v1626, %v1615
      %v2078 = vpack.c.b16 %v1627, %v1616
      %v2079 = vpack.c.b16 %v1628, %v1617
      %v2080 = vpack.c.b16 %v1629, %v1618
      %v2081 = vpack.c.b16 %v1630, %v1619
      %v2082 = vpack.c.b16 %v1642, %v1631
      %v2083 = vpack.c.b16 %v1643, %v1632
      %v2084 = vpack.c.b16 %v1644, %v1633
      %v2085 = vpack.c.b16 %v1645, %v1634
      %v2086 = vpack.c.b16 %v1646, %v1635
      %v2087 = vpack.c.b16 %v1647, %v1636
      %v2088 = vpack.c.b16 %v1648, %v1637
      %v2089 = vpack.c.b16 %v1649, %v1638
      %v2090 = vpack.c.b16 %v1650, %v1639
      %v2091 = vpack.c.b16 %v1651, %v1640
      %v2092 = vpack.c.b16 %v1652, %v1641
      %v2093 = vpack.c.b16 %v1664, %v1653
      %v2094 = vpack.c.b16 %v1665, %v1654
      %v2095 = vpack.c.b16 %v1666, %v1655
      %v2096 = vpack.c.b16 %v1667, %v1656
      %v2097 = vpack.c.b16 %v1668, %v1657
      %v2098 = vpack.c.b16 %v1669, %v1658
      %v2099 = vpack.c.b16 %v1670, %v1659
      %v2100 = vpack.c.b16 %v1671, %v1660
      %v2101 = vpack.c.b16 %v1672, %v1661
      %v2102 = vpack.c.b16 %v1673, %v1662
      %v2103 = vpack.c.b16 %v1674, %v1663
      %v2104 = vpack.c.b16 %v1686, %v1675
      %v2105 = vpack.c.b16 %v1687, %v1676
      %v2106 = vpack.c.b16 %v1688, %v1677
      %v2107 = vpack.c.b16 %v1689, %v1678
      %v2108 = vpack.c.b16 %v1690, %v1679
      %v2109 = vpack.c.b16 %v1691, %v1680
      %v2110 = vpack.c.b16 %v1692, %v1681
      %v2111 = vpack.c.b16 %v1693, %v1682
      %v2112 = vpack.c.b16 %v1694, %v1683
      %v2113 = vpack.c.b16 %v1695, %v1684
      %v2114 = vpack.c.b16 %v1696, %v1685
      %v2115 = vpack.c.b16 %v1708, %v1697
      %v2116 = vpack.c.b16 %v1709, %v1698
      %v2117 = vpack.c.b16 %v1710, %v1699
      %v2118 = vpack.c.b16 %v1711, %v1700
      %v2119 = vpack.c.b16 %v1712, %v1701
      %v2120 = vpack.c.b16 %v1713, %v1702
      %v2121 = vpack.c.b16 %v1714, %v1703
      %v2122 = vpack.c.b16 %v1715, %v1704
      %v2123 = vpack.c.b16 %v1716, %v1705
      %v2124 = vpack.c.b16 %v1717, %v1706
      %v2125 = vpack.c.b16 %v1718, %v1707
      %v2126 = vpack.c.b16 %v1730, %v1719
      %v2127 = vpack.c.b16 %v1731, %v1720
      %v2128 = vpack.c.b16 %v1732, %v1721
      %v2129 = vpack.c.b16 %v1733, %v1722
      %v2130 = vpack.c.b16 %v1734, %v1723
      %v2131 = vpack.c.b16 %v1735, %v1724
      %v2132 = vpack.c.b16 %v1736, %v1725
      %v2133 = vpack.c.b16 %v1737, %v1726
      %v2134 = vpack.c.b16 %v1738, %v1727
      %v2135 = vpack.c.b16 %v1739, %v1728
      %v2136 = vpack.c.b16 %v1740, %v1729
      %v2137 = vpack.c.b16 %v1752, %v1741
      %v2138 = vpack.c.b16 %v1753, %v1742
      %v2139 = vpack.c.b16 %v1754, %v1743
      %v2140 = vpack.c.b16 %v1755, %v1744
      %v2141 = vpack.c.b16 %v1756, %v1745
      %v2142 = vpack.c.b16 %v1757, %v1746
      %v2143 = vpack.c.b16 %v1758, %v1747
      %v2144 = vpack.c.b16 %v1759, %v1748
      %v2145 = vpack.c.b16 %v1760, %v1749
      %v2146 = vpack.c.b16 %v1761, %v1750
      %v2147 = vpack.c.b16 %v1762, %v1751
      %v2148 = vpack.c.b16 %v1774, %v1763
      %v2149 = vpack.c.b16 %v1775, %v1764
      %v2150 = vpack.c.b16 %v1776, %v1765
      %v2151 = vpack.c.b16 %v1777, %v1766
      %v2152 = vpack.c.b16 %v1778, %v1767
      %v2153 = vpack.c.b16 %v1779, %v1768
      %v2154 = vpack.c.b16 %v1780, %v1769
      %v2155 = vpack.c.b16 %v1781, %v1770
      %v2156 = vpack.c.b16 %v1782, %v1771
      %v2157 = vpack.c.b16 %v1783, %v1772
      %v2158 = vpack.c.b16 %v1784, %v1773
      %v2159 = vpack.c.b16 %v1796, %v1785
      %v2160 = vpack.c.b16 %v1797, %v1786
      %v2161 = vpack.c.b16 %v1798, %v1787
      %v2162 = vpack.c.b16 %v1799, %v1788
      %v2163 = vpack.c.b16 %v1800, %v1789
      %v2164 = vpack.c.b16 %v1801, %v1790
      %v2165 = vpack.c.b16 %v1802, %v1791
      %v2166 = vpack.c.b16 %v1803, %v1792
      %v2167 = vpack.c.b16 %v1804, %v1793
      %v2168 = vpack.c.b16 %v1805, %v1794
      %v2169 = vpack.c.b16 %v1806, %v1795
      %v2170 = vpack.c.b16 %v1818, %v1807
      %v2171 = vpack.c.b16 %v1819, %v1808
      %v2172 = vpack.c.b16 %v1820, %v1809
      %v2173 = vpack.c.b16 %v1821, %v1810
      %v2174 = vpack.c.b16 %v1822, %v1811
      %v2175 = vpack.c.b16 %v1823, %v1812
      %v2176 = vpack.c.b16 %v1824, %v1813
      %v2177 = vpack.c.b16 %v1825, %v1814
      %v2178 = vpack.c.b16 %v1826, %v1815
      %v2179 = vpack.c.b16 %v1827, %v1816
      %v2180 = vpack.c.b16 %v1828, %v1817
      %v2709 = vunpack.c.l.b16 %v561
      %v2710 = vunpack.c.l.b16 %v562
      %v2711 = vunpack.c.l.b16 %v563
      %v2712 = vunpack.c.l.b16 %v564
      %v2713 = vunpack.c.l.b16 %v565
      %v2714 = vunpack.c.l.b16 %v566
      %v2715 = vunpack.c.l.b16 %v567
      %v2716 = vunpack.c.l.b16 %v568
      %v2717 = vunpack.c.l.b16 %v569
      %v2718 = vunpack.c.l.b16 %v570
      %v2719 = vunpack.c.l.b16 %v571
      %v2720 = vunpack.c.l.b16 %v572
      %v2721 = vunpack.c.l.b16 %v573
      %v2722 = vunpack.c.l.b16 %v574
      %v2723 = vunpack.c.l.b16 %v575
      %v2724 = vunpack.c.l.b16 %v576
      %v2725 = vunpack.c.l.b16 %v577
      %v2726 = vunpack.c.l.b16 %v578
      %v2727 = vunpack.c.l.b16 %v579
      %v2728 = vunpack.c.l.b16 %v580
      %v2729 = vunpack.c.l.b16 %v581
      %v2730 = vunpack.c.l.b16 %v582
      %v2731 = vunpack.c.l.b16 %v583
      %v2732 = vunpack.c.l.b16 %v584
      %v2733 = vunpack.c.l.b16 %v585
      %v2734 = vunpack.c.l.b16 %v586
      %v2735 = vunpack.c.l.b16 %v587
      %v2736 = vunpack.c.l.b16 %v588
      %v2737 = vunpack.c.l.b16 %v589
      %v2738 = vunpack.c.l.b16 %v590
      %v2739 = vunpack.c.l.b16 %v591
      %v2740 = vunpack.c.l.b16 %v592
      %v2741 = vunpack.c.l.b16 %v593
      %v2742 = vunpack.c.l.b16 %v594
      %v2743 = vunpack.c.l.b16 %v595
      %v2744 = vunpack.c.l.b16 %v596
      %v2745 = vunpack.c.l.b16 %v597
      %v2746 = vunpack.c.l.b16 %v598
      %v2747 = vunpack.c.l.b16 %v599
      %v2748 = vunpack.c.l.b16 %v600
      %v2749 = vunpack.c.l.b16 %v601
      %v2750 = vunpack.c.l.b16 %v602
      %v2751 = vunpack.c.l.b16 %v603
      %v2752 = vunpack.c.l.b16 %v604
      %v2753 = vunpack.c.l.b16 %v605
      %v2754 = vunpack.c.l.b16 %v606
      %v2755 = vunpack.c.l.b16 %v607
      %v2756 = vunpack.c.l.b16 %v608
      %v2757 = vunpack.c.l.b16 %v609
      %v2758 = vunpack.c.l.b16 %v610
      %v2759 = vunpack.c.l.b16 %v611
      %v2760 = vunpack.c.l.b16 %v612
      %v2761 = vunpack.c.l.b16 %v613
      %v2762 = vunpack.c.l.b16 %v614
      %v2763 = vunpack.c.l.b16 %v615
      %v2764 = vunpack.c.l.b16 %v616
      %v2765 = vunpack.c.l.b16 %v617
      %v2766 = vunpack.c.l.b16 %v618
      %v2767 = vunpack.c.l.b16 %v619
      %v2768 = vunpack.c.l.b16 %v620
      %v2769 = vunpack.c.l.b16 %v621
      %v2770 = vunpack.c.l.b16 %v622
      %v2771 = vunpack.c.l.b16 %v623
      %v2772 = vunpack.c.l.b16 %v624
      %v2773 = vunpack.c.l.b16 %v625
      %v2774 = vunpack.c.l.b16 %v626
      %v2775 = vunpack.c.l.b16 %v627
      %v2776 = vunpack.c.l.b16 %v628
      %v2777 = vunpack.c.l.b16 %v629
      %v2778 = vunpack.c.l.b16 %v630
      %v2779 = vunpack.c.l.b16 %v631
      %v2780 = vunpack.c.l.b16 %v632
      %v2781 = vunpack.c.l.b16 %v633
      %v2782 = vunpack.c.l.b16 %v634
      %v2783 = vunpack.c.l.b16 %v635
      %v2784 = vunpack.c.l.b16 %v636
      %v2785 = vunpack.c.l.b16 %v637
      %v2786 = vunpack.c.l.b16 %v638
      %v2787 = vunpack.c.l.b16 %v639
      %v2788 = vunpack.c.l.b16 %v640
      %v2789 = vunpack.c.l.b16 %v641
      %v2790 = vunpack.c.l.b16 %v642
      %v2791 = vunpack.c.l.b16 %v643
      %v2792 = vunpack.c.l.b16 %v644
      %v2793 = vunpack.c.l.b16 %v645
      %v2794 = vunpack.c.l.b16 %v646
      %v2795 = vunpack.c.l.b16 %v647
      %v2796 = vunpack.c.l.b16 %v648
      %v2797 = vunpack.c.l.b16 %v649
      %v2798 = vunpack.c.l.b16 %v650
      %v2799 = vunpack.c.l.b16 %v651
      %v2800 = vunpack.c.l.b16 %v652
      %v2801 = vunpack.c.l.b16 %v653
      %v2802 = vunpack.c.l.b16 %v654
      %v2803 = vunpack.c.l.b16 %v655
      %v2804 = vunpack.c.l.b16 %v656
      %v2805 = vunpack.c.l.b16 %v657
      %v2806 = vunpack.c.l.b16 %v658
      %v2807 = vunpack.c.l.b16 %v659
      %v2808 = vunpack.c.l.b16 %v660
      %v2809 = vunpack.c.l.b16 %v661
      %v2810 = vunpack.c.l.b16 %v662
      %v2811 = vunpack.c.l.b16 %v663
      %v2812 = vunpack.c.l.b16 %v664
      %v2813 = vunpack.c.l.b16 %v665
      %v2814 = vunpack.c.l.b16 %v666
      %v2815 = vunpack.c.l.b16 %v667
      %v2816 = vunpack.c.l.b16 %v668
      %v2817 = vunpack.c.l.b16 %v669
      %v2818 = vunpack.c.l.b16 %v670
      %v2819 = vunpack.c.l.b16 %v671
      %v2820 = vunpack.c.l.b16 %v672
      %v2821 = vunpack.c.l.b16 %v673
      %v2822 = vunpack.c.l.b16 %v674
      %v2823 = vunpack.c.l.b16 %v675
      %v2824 = vunpack.c.l.b16 %v676
      %v2825 = vunpack.c.l.b16 %v677
      %v2826 = vunpack.c.l.b16 %v678
      %v2827 = vunpack.c.l.b16 %v679
      %v2828 = vunpack.c.l.b16 %v680
      %v2829 = vunpack.c.l.b16 %v681
      %v2830 = vunpack.c.l.b16 %v682
      %v2831 = vunpack.c.l.b16 %v683
      %v2832 = vunpack.c.l.b16 %v684
      %v2833 = vunpack.c.l.b16 %v685
      %v2834 = vunpack.c.l.b16 %v686
      %v2835 = vunpack.c.l.b16 %v687
      %v2836 = vunpack.c.l.b16 %v688
      %v2837 = vunpack.c.l.b16 %v689
      %v2838 = vunpack.c.l.b16 %v690
      %v2839 = vunpack.c.l.b16 %v691
      %v2840 = vunpack.c.l.b16 %v692
      %v2841 = vunpack.c.l.b16 %v693
      %v2842 = vunpack.c.l.b16 %v694
      %v2843 = vunpack.c.l.b16 %v695
      %v2844 = vunpack.c.l.b16 %v696
      %v2845 = vunpack.c.l.b16 %v697
      %v2846 = vunpack.c.l.b16 %v698
      %v2847 = vunpack.c.l.b16 %v699
      %v2848 = vunpack.c.l.b16 %v700
      %v2849 = vunpack.c.l.b16 %v701
      %v2850 = vunpack.c.l.b16 %v702
      %v2851 = vunpack.c.l.b16 %v703
      %v2852 = vunpack.c.l.b16 %v704
      %v2853 = vunpack.c.l.b16 %v705
      %v2854 = vunpack.c.l.b16 %v706
      %v2855 = vunpack.c.l.b16 %v707
      %v2856 = vunpack.c.l.b16 %v708
      %v2857 = vunpack.c.l.b16 %v709
      %v2858 = vunpack.c.l.b16 %v710
      %v2859 = vunpack.c.l.b16 %v711
      %v2860 = vunpack.c.l.b16 %v712
      %v2861 = vunpack.c.l.b16 %v713
      %v2862 = vunpack.c.l.b16 %v714
      %v2863 = vunpack.c.l.b16 %v715
      %v2864 = vunpack.c.l.b16 %v716
      %v2865 = vunpack.c.l.b16 %v717
      %v2866 = vunpack.c.l.b16 %v718
      %v2867 = vunpack.c.l.b16 %v719
      %v2868 = vunpack.c.l.b16 %v720
      %v2869 = vunpack.c.l.b16 %v721
      %v2870 = vunpack.c.l.b16 %v722
      %v2871 = vunpack.c.l.b16 %v723
      %v2872 = vunpack.c.l.b16 %v724
      %v2873 = vunpack.c.l.b16 %v725
      %v2874 = vunpack.c.l.b16 %v726
      %v2875 = vunpack.c.l.b16 %v727
      %v2876 = vunpack.c.l.b16 %v728
      %v2877 = vunpack.c.l.b16 %v729
      %v2878 = vunpack.c.l.b16 %v730
      %v2879 = vunpack.c.l.b16 %v731
      %v2880 = vunpack.c.l.b16 %v732
      %v2881 = vunpack.c.l.b16 %v733
      %v2882 = vunpack.c.l.b16 %v734
      %v2883 = vunpack.c.l.b16 %v735
      %v2884 = vunpack.c.l.b16 %v736
      %v2885 = vpack.c.b16 %v2710, %v2709
      %v2886 = vpack.c.b16 %v2712, %v2711
      %v2887 = vpack.c.b16 %v2714, %v2713
      %v2888 = vpack.c.b16 %v2716, %v2715
      %v2889 = vpack.c.b16 %v2718, %v2717
      %v2890 = vpack.c.b16 %v2720, %v2719
      %v2891 = vpack.c.b16 %v2722, %v2721
      %v2892 = vpack.c.b16 %v2724, %v2723
      %v2893 = vpack.c.b16 %v2726, %v2725
      %v2894 = vpack.c.b16 %v2728, %v2727
      %v2895 = vpack.c.b16 %v2730, %v2729
      %v2896 = vpack.c.b16 %v2732, %v2731
      %v2897 = vpack.c.b16 %v2734, %v2733
      %v2898 = vpack.c.b16 %v2736, %v2735
      %v2899 = vpack.c.b16 %v2738, %v2737
      %v2900 = vpack.c.b16 %v2740, %v2739
      %v2901 = vpack.c.b16 %v2742, %v2741
      %v2902 = vpack.c.b16 %v2744, %v2743
      %v2903 = vpack.c.b16 %v2746, %v2745
      %v2904 = vpack.c.b16 %v2748, %v2747
      %v2905 = vpack.c.b16 %v2750, %v2749
      %v2906 = vpack.c.b16 %v2752, %v2751
      %v2907 = vpack.c.b16 %v2754, %v2753
      %v2908 = vpack.c.b16 %v2756, %v2755
      %v2909 = vpack.c.b16 %v2758, %v2757
      %v2910 = vpack.c.b16 %v2760, %v2759
      %v2911 = vpack.c.b16 %v2762, %v2761
      %v2912 = vpack.c.b16 %v2764, %v2763
      %v2913 = vpack.c.b16 %v2766, %v2765
      %v2914 = vpack.c.b16 %v2768, %v2767
      %v2915 = vpack.c.b16 %v2770, %v2769
      %v2916 = vpack.c.b16 %v2772, %v2771
      %v2917 = vpack.c.b16 %v2774, %v2773
      %v2918 = vpack.c.b16 %v2776, %v2775
      %v2919 = vpack.c.b16 %v2778, %v2777
      %v2920 = vpack.c.b16 %v2780, %v2779
      %v2921 = vpack.c.b16 %v2782, %v2781
      %v2922 = vpack.c.b16 %v2784, %v2783
      %v2923 = vpack.c.b16 %v2786, %v2785
      %v2924 = vpack.c.b16 %v2788, %v2787
      %v2925 = vpack.c.b16 %v2790, %v2789
      %v2926 = vpack.c.b16 %v2792, %v2791
      %v2927 = vpack.c.b16 %v2794, %v2793
      %v2928 = vpack.c.b16 %v2796, %v2795
      %v2929 = vpack.c.b16 %v2798, %v2797
      %v2930 = vpack.c.b16 %v2800, %v2799
      %v2931 = vpack.c.b16 %v2802, %v2801
      %v2932 = vpack.c.b16 %v2804, %v2803
      %v2933 = vpack.c.b16 %v2806, %v2805
      %v2934 = vpack.c.b16 %v2808, %v2807
      %v2935 = vpack.c.b16 %v2810, %v2809
      %v2936 = vpack.c.b16 %v2812, %v2811
      %v2937 = vpack.c.b16 %v2814, %v2813
      %v2938 = vpack.c.b16 %v2816, %v2815
      %v2939 = vpack.c.b16 %v2818, %v2817
      %v2940 = vpack.c.b16 %v2820, %v2819
      %v2941 = vpack.c.b16 %v2822, %v2821
      %v2942 = vpack.c.b16 %v2824, %v2823
      %v2943 = vpack.c.b16 %v2826, %v2825
      %v2944 = vpack.c.b16 %v2828, %v2827
      %v2945 = vpack.c.b16 %v2830, %v2829
      %v2946 = vpack.c.b16 %v2832, %v2831
      %v2947 = vpack.c.b16 %v2834, %v2833
      %v2948 = vpack.c.b16 %v2836, %v2835
      %v2949 = vpack.c.b16 %v2838, %v2837
      %v2950 = vpack.c.b16 %v2840, %v2839
      %v2951 = vpack.c.b16 %v2842, %v2841
      %v2952 = vpack.c.b16 %v2844, %v2843
      %v2953 = vpack.c.b16 %v2846, %v2845
      %v2954 = vpack.c.b16 %v2848, %v2847
      %v2955 = vpack.c.b16 %v2850, %v2849
      %v2956 = vpack.c.b16 %v2852, %v2851
      %v2957 = vpack.c.b16 %v2854, %v2853
      %v2958 = vpack.c.b16 %v2856, %v2855
      %v2959 = vpack.c.b16 %v2858, %v2857
      %v2960 = vpack.c.b16 %v2860, %v2859
      %v2961 = vpack.c.b16 %v2862, %v2861
      %v2962 = vpack.c.b16 %v2864, %v2863
      %v2963 = vpack.c.b16 %v2866, %v2865
      %v2964 = vpack.c.b16 %v2868, %v2867
      %v2965 = vpack.c.b16 %v2870, %v2869
      %v2966 = vpack.c.b16 %v2872, %v2871
      %v2967 = vpack.c.b16 %v2874, %v2873
      %v2968 = vpack.c.b16 %v2876, %v2875
      %v2969 = vpack.c.b16 %v2878, %v2877
      %v2970 = vpack.c.b16 %v2880, %v2879
      %v2971 = vpack.c.b16 %v2882, %v2881
      %v2972 = vpack.c.b16 %v2884, %v2883
      %3061 = vmatpush.bf16.msra.mxu0 %v2892
      %3062 = vmatpush.bf16.msra.mxu0 %v2891
      %3063 = vmatpush.bf16.msra.mxu0 %v2890
      %3064 = vmatpush.bf16.msra.mxu0 %v2889
      %3065 = vmatpush.bf16.msra.mxu0 %v2888
      %3066 = vmatpush.bf16.msra.mxu0 %v2887
      %3067 = vmatpush.bf16.msra.mxu0 %v2886
      %3068 = vmatpush.bf16.msra.mxu0 %v2885
      %3069 = vmatmul.bf16.gmra.mxu0 %v1829
      %v3070 = vpop.f32.mrf.mxu0
      %v3071 = vadd.f32 %v739, %v3070
      %v3072 = vpop.f32.mrf.mxu0
      %v3073 = vadd.f32 %v739, %v3072
      %3074 = vmatmul.bf16.gmra.mxu0 %v1840
      %v3075 = vpop.f32.mrf.mxu0
      %v3076 = vadd.f32 %v739, %v3075
      %v3077 = vpop.f32.mrf.mxu0
      %v3078 = vadd.f32 %v739, %v3077
      %3079 = vmatmul.bf16.gmra.mxu0 %v1851
      %v3080 = vpop.f32.mrf.mxu0
      %v3081 = vadd.f32 %v739, %v3080
      %v3082 = vpop.f32.mrf.mxu0
      %v3083 = vadd.f32 %v739, %v3082
      %3084 = vmatmul.bf16.gmra.mxu0 %v1862
      %v3085 = vpop.f32.mrf.mxu0
      %v3086 = vadd.f32 %v739, %v3085
      %v3087 = vpop.f32.mrf.mxu0
      %v3088 = vadd.f32 %v739, %v3087
      %3089 = vmatmul.bf16.gmra.mxu0 %v1873
      %v3090 = vpop.f32.mrf.mxu0
      %v3091 = vadd.f32 %v739, %v3090
      %v3092 = vpop.f32.mrf.mxu0
      %v3093 = vadd.f32 %v739, %v3092
      %3094 = vmatmul.bf16.gmra.mxu0 %v1884
      %v3095 = vpop.f32.mrf.mxu0
      %v3096 = vadd.f32 %v739, %v3095
      %v3097 = vpop.f32.mrf.mxu0
      %v3098 = vadd.f32 %v739, %v3097
      %3099 = vmatmul.bf16.gmra.mxu0 %v1895
      %v3100 = vpop.f32.mrf.mxu0
      %v3101 = vadd.f32 %v739, %v3100
      %v3102 = vpop.f32.mrf.mxu0
      %v3103 = vadd.f32 %v739, %v3102
      %3104 = vmatmul.bf16.gmra.mxu0 %v1906
      %v3105 = vpop.f32.mrf.mxu0
      %v3106 = vadd.f32 %v739, %v3105
      %v3107 = vpop.f32.mrf.mxu0
      %v3108 = vadd.f32 %v739, %v3107
      %3109 = vmatmul.bf16.gmra.mxu0 %v1917
      %v3110 = vpop.f32.mrf.mxu0
      %v3111 = vadd.f32 %v739, %v3110
      %v3112 = vpop.f32.mrf.mxu0
      %v3113 = vadd.f32 %v739, %v3112
      %3114 = vmatmul.bf16.gmra.mxu0 %v1928
      %v3115 = vpop.f32.mrf.mxu0
      %v3116 = vadd.f32 %v739, %v3115
      %v3117 = vpop.f32.mrf.mxu0
      %v3118 = vadd.f32 %v739, %v3117
      %3119 = vmatmul.bf16.gmra.mxu0 %v1939
      %v3120 = vpop.f32.mrf.mxu0
      %v3121 = vadd.f32 %v739, %v3120
      %v3122 = vpop.f32.mrf.mxu0
      %v3123 = vadd.f32 %v739, %v3122
      %3124 = vmatmul.bf16.gmra.mxu0 %v1950
      %v3125 = vpop.f32.mrf.mxu0
      %v3126 = vadd.f32 %v739, %v3125
      %v3127 = vpop.f32.mrf.mxu0
      %v3128 = vadd.f32 %v739, %v3127
      %3129 = vmatmul.bf16.gmra.mxu0 %v1961
      %v3130 = vpop.f32.mrf.mxu0
      %v3131 = vadd.f32 %v739, %v3130
      %v3132 = vpop.f32.mrf.mxu0
      %v3133 = vadd.f32 %v739, %v3132
      %3134 = vmatmul.bf16.gmra.mxu0 %v1972
      %v3135 = vpop.f32.mrf.mxu0
      %v3136 = vadd.f32 %v739, %v3135
      %v3137 = vpop.f32.mrf.mxu0
      %v3138 = vadd.f32 %v739, %v3137
      %3139 = vmatmul.bf16.gmra.mxu0 %v1983
      %v3140 = vpop.f32.mrf.mxu0
      %v3141 = vadd.f32 %v739, %v3140
      %v3142 = vpop.f32.mrf.mxu0
      %v3143 = vadd.f32 %v739, %v3142
      %3144 = vmatmul.bf16.gmra.mxu0 %v1994
      %v3145 = vpop.f32.mrf.mxu0
      %v3146 = vadd.f32 %v739, %v3145
      %v3147 = vpop.f32.mrf.mxu0
      %v3148 = vadd.f32 %v739, %v3147
      %3149 = vmatmul.bf16.gmra.mxu0 %v2005
      %v3150 = vpop.f32.mrf.mxu0
      %v3151 = vadd.f32 %v739, %v3150
      %v3152 = vpop.f32.mrf.mxu0
      %v3153 = vadd.f32 %v739, %v3152
      %3154 = vmatmul.bf16.gmra.mxu0 %v2016
      %v3155 = vpop.f32.mrf.mxu0
      %v3156 = vadd.f32 %v739, %v3155
      %v3157 = vpop.f32.mrf.mxu0
      %v3158 = vadd.f32 %v739, %v3157
      %3159 = vmatmul.bf16.gmra.mxu0 %v2027
      %v3160 = vpop.f32.mrf.mxu0
      %v3161 = vadd.f32 %v739, %v3160
      %v3162 = vpop.f32.mrf.mxu0
      %v3163 = vadd.f32 %v739, %v3162
      %3164 = vmatmul.bf16.gmra.mxu0 %v2038
      %v3165 = vpop.f32.mrf.mxu0
      %v3166 = vadd.f32 %v739, %v3165
      %v3167 = vpop.f32.mrf.mxu0
      %v3168 = vadd.f32 %v739, %v3167
      %3169 = vmatmul.bf16.gmra.mxu0 %v2049
      %v3170 = vpop.f32.mrf.mxu0
      %v3171 = vadd.f32 %v739, %v3170
      %v3172 = vpop.f32.mrf.mxu0
      %v3173 = vadd.f32 %v739, %v3172
      %3174 = vmatmul.bf16.gmra.mxu0 %v2060
      %v3175 = vpop.f32.mrf.mxu0
      %v3176 = vadd.f32 %v739, %v3175
      %v3177 = vpop.f32.mrf.mxu0
      %v3178 = vadd.f32 %v739, %v3177
      %3179 = vmatmul.bf16.gmra.mxu0 %v2071
      %v3180 = vpop.f32.mrf.mxu0
      %v3181 = vadd.f32 %v739, %v3180
      %v3182 = vpop.f32.mrf.mxu0
      %v3183 = vadd.f32 %v739, %v3182
      %3184 = vmatmul.bf16.gmra.mxu0 %v2082
      %v3185 = vpop.f32.mrf.mxu0
      %v3186 = vadd.f32 %v739, %v3185
      %v3187 = vpop.f32.mrf.mxu0
      %v3188 = vadd.f32 %v739, %v3187
      %3189 = vmatmul.bf16.gmra.mxu0 %v2093
      %v3190 = vpop.f32.mrf.mxu0
      %v3191 = vadd.f32 %v739, %v3190
      %v3192 = vpop.f32.mrf.mxu0
      %v3193 = vadd.f32 %v739, %v3192
      %3194 = vmatmul.bf16.gmra.mxu0 %v2104
      %v3195 = vpop.f32.mrf.mxu0
      %v3196 = vadd.f32 %v739, %v3195
      %v3197 = vpop.f32.mrf.mxu0
      %v3198 = vadd.f32 %v739, %v3197
      %3199 = vmatmul.bf16.gmra.mxu0 %v2115
      %v3200 = vpop.f32.mrf.mxu0
      %v3201 = vadd.f32 %v739, %v3200
      %v3202 = vpop.f32.mrf.mxu0
      %v3203 = vadd.f32 %v739, %v3202
      %3204 = vmatmul.bf16.gmra.mxu0 %v2126
      %v3205 = vpop.f32.mrf.mxu0
      %v3206 = vadd.f32 %v739, %v3205
      %v3207 = vpop.f32.mrf.mxu0
      %v3208 = vadd.f32 %v739, %v3207
      %3209 = vmatmul.bf16.gmra.mxu0 %v2137
      %v3210 = vpop.f32.mrf.mxu0
      %v3211 = vadd.f32 %v739, %v3210
      %v3212 = vpop.f32.mrf.mxu0
      %v3213 = vadd.f32 %v739, %v3212
      %3214 = vmatmul.bf16.gmra.mxu0 %v2148
      %v3215 = vpop.f32.mrf.mxu0
      %v3216 = vadd.f32 %v739, %v3215
      %v3217 = vpop.f32.mrf.mxu0
      %v3218 = vadd.f32 %v739, %v3217
      %3219 = vmatmul.bf16.gmra.mxu0 %v2159
      %v3220 = vpop.f32.mrf.mxu0
      %v3221 = vadd.f32 %v739, %v3220
      %v3222 = vpop.f32.mrf.mxu0
      %v3223 = vadd.f32 %v739, %v3222
      %3224 = vmatmul.bf16.gmra.mxu0 %v2170
      %v3225 = vpop.f32.mrf.mxu0
      %v3226 = vadd.f32 %v739, %v3225
      %v3227 = vpop.f32.mrf.mxu0
      %v3228 = vadd.f32 %v739, %v3227
      %3229 = vdwg.mxu0
      %3230 = vmatpush.bf16.msra.mxu0 %v2900
      %3231 = vmatpush.bf16.msra.mxu0 %v2899
      %3232 = vmatpush.bf16.msra.mxu0 %v2898
      %3233 = vmatpush.bf16.msra.mxu0 %v2897
      %3234 = vmatpush.bf16.msra.mxu0 %v2896
      %3235 = vmatpush.bf16.msra.mxu0 %v2895
      %3236 = vmatpush.bf16.msra.mxu0 %v2894
      %3237 = vmatpush.bf16.msra.mxu0 %v2893
      %3238 = vmatmul.bf16.gmra.mxu0 %v1830
      %v3239 = vpop.f32.mrf.mxu0
      %v3240 = vadd.f32 %v3071, %v3239
      %v3241 = vpop.f32.mrf.mxu0
      %v3242 = vadd.f32 %v3073, %v3241
      %3243 = vmatmul.bf16.gmra.mxu0 %v1841
      %v3244 = vpop.f32.mrf.mxu0
      %v3245 = vadd.f32 %v3076, %v3244
      %v3246 = vpop.f32.mrf.mxu0
      %v3247 = vadd.f32 %v3078, %v3246
      %3248 = vmatmul.bf16.gmra.mxu0 %v1852
      %v3249 = vpop.f32.mrf.mxu0
      %v3250 = vadd.f32 %v3081, %v3249
      %v3251 = vpop.f32.mrf.mxu0
      %v3252 = vadd.f32 %v3083, %v3251
      %3253 = vmatmul.bf16.gmra.mxu0 %v1863
      %v3254 = vpop.f32.mrf.mxu0
      %v3255 = vadd.f32 %v3086, %v3254
      %v3256 = vpop.f32.mrf.mxu0
      %v3257 = vadd.f32 %v3088, %v3256
      %3258 = vmatmul.bf16.gmra.mxu0 %v1874
      %v3259 = vpop.f32.mrf.mxu0
      %v3260 = vadd.f32 %v3091, %v3259
      %v3261 = vpop.f32.mrf.mxu0
      %v3262 = vadd.f32 %v3093, %v3261
      %3263 = vmatmul.bf16.gmra.mxu0 %v1885
      %v3264 = vpop.f32.mrf.mxu0
      %v3265 = vadd.f32 %v3096, %v3264
      %v3266 = vpop.f32.mrf.mxu0
      %v3267 = vadd.f32 %v3098, %v3266
      %3268 = vmatmul.bf16.gmra.mxu0 %v1896
      %v3269 = vpop.f32.mrf.mxu0
      %v3270 = vadd.f32 %v3101, %v3269
      %v3271 = vpop.f32.mrf.mxu0
      %v3272 = vadd.f32 %v3103, %v3271
      %3273 = vmatmul.bf16.gmra.mxu0 %v1907
      %v3274 = vpop.f32.mrf.mxu0
      %v3275 = vadd.f32 %v3106, %v3274
      %v3276 = vpop.f32.mrf.mxu0
      %v3277 = vadd.f32 %v3108, %v3276
      %3278 = vmatmul.bf16.gmra.mxu0 %v1918
      %v3279 = vpop.f32.mrf.mxu0
      %v3280 = vadd.f32 %v3111, %v3279
      %v3281 = vpop.f32.mrf.mxu0
      %v3282 = vadd.f32 %v3113, %v3281
      %3283 = vmatmul.bf16.gmra.mxu0 %v1929
      %v3284 = vpop.f32.mrf.mxu0
      %v3285 = vadd.f32 %v3116, %v3284
      %v3286 = vpop.f32.mrf.mxu0
      %v3287 = vadd.f32 %v3118, %v3286
      %3288 = vmatmul.bf16.gmra.mxu0 %v1940
      %v3289 = vpop.f32.mrf.mxu0
      %v3290 = vadd.f32 %v3121, %v3289
      %v3291 = vpop.f32.mrf.mxu0
      %v3292 = vadd.f32 %v3123, %v3291
      %3293 = vmatmul.bf16.gmra.mxu0 %v1951
      %v3294 = vpop.f32.mrf.mxu0
      %v3295 = vadd.f32 %v3126, %v3294
      %v3296 = vpop.f32.mrf.mxu0
      %v3297 = vadd.f32 %v3128, %v3296
      %3298 = vmatmul.bf16.gmra.mxu0 %v1962
      %v3299 = vpop.f32.mrf.mxu0
      %v3300 = vadd.f32 %v3131, %v3299
      %v3301 = vpop.f32.mrf.mxu0
      %v3302 = vadd.f32 %v3133, %v3301
      %3303 = vmatmul.bf16.gmra.mxu0 %v1973
      %v3304 = vpop.f32.mrf.mxu0
      %v3305 = vadd.f32 %v3136, %v3304
      %v3306 = vpop.f32.mrf.mxu0
      %v3307 = vadd.f32 %v3138, %v3306
      %3308 = vmatmul.bf16.gmra.mxu0 %v1984
      %v3309 = vpop.f32.mrf.mxu0
      %v3310 = vadd.f32 %v3141, %v3309
      %v3311 = vpop.f32.mrf.mxu0
      %v3312 = vadd.f32 %v3143, %v3311
      %3313 = vmatmul.bf16.gmra.mxu0 %v1995
      %v3314 = vpop.f32.mrf.mxu0
      %v3315 = vadd.f32 %v3146, %v3314
      %v3316 = vpop.f32.mrf.mxu0
      %v3317 = vadd.f32 %v3148, %v3316
      %3318 = vmatmul.bf16.gmra.mxu0 %v2006
      %v3319 = vpop.f32.mrf.mxu0
      %v3320 = vadd.f32 %v3151, %v3319
      %v3321 = vpop.f32.mrf.mxu0
      %v3322 = vadd.f32 %v3153, %v3321
      %3323 = vmatmul.bf16.gmra.mxu0 %v2017
      %v3324 = vpop.f32.mrf.mxu0
      %v3325 = vadd.f32 %v3156, %v3324
      %v3326 = vpop.f32.mrf.mxu0
      %v3327 = vadd.f32 %v3158, %v3326
      %3328 = vmatmul.bf16.gmra.mxu0 %v2028
      %v3329 = vpop.f32.mrf.mxu0
      %v3330 = vadd.f32 %v3161, %v3329
      %v3331 = vpop.f32.mrf.mxu0
      %v3332 = vadd.f32 %v3163, %v3331
      %3333 = vmatmul.bf16.gmra.mxu0 %v2039
      %v3334 = vpop.f32.mrf.mxu0
      %v3335 = vadd.f32 %v3166, %v3334
      %v3336 = vpop.f32.mrf.mxu0
      %v3337 = vadd.f32 %v3168, %v3336
      %3338 = vmatmul.bf16.gmra.mxu0 %v2050
      %v3339 = vpop.f32.mrf.mxu0
      %v3340 = vadd.f32 %v3171, %v3339
      %v3341 = vpop.f32.mrf.mxu0
      %v3342 = vadd.f32 %v3173, %v3341
      %3343 = vmatmul.bf16.gmra.mxu0 %v2061
      %v3344 = vpop.f32.mrf.mxu0
      %v3345 = vadd.f32 %v3176, %v3344
      %v3346 = vpop.f32.mrf.mxu0
      %v3347 = vadd.f32 %v3178, %v3346
      %3348 = vmatmul.bf16.gmra.mxu0 %v2072
      %v3349 = vpop.f32.mrf.mxu0
      %v3350 = vadd.f32 %v3181, %v3349
      %v3351 = vpop.f32.mrf.mxu0
      %v3352 = vadd.f32 %v3183, %v3351
      %3353 = vmatmul.bf16.gmra.mxu0 %v2083
      %v3354 = vpop.f32.mrf.mxu0
      %v3355 = vadd.f32 %v3186, %v3354
      %v3356 = vpop.f32.mrf.mxu0
      %v3357 = vadd.f32 %v3188, %v3356
      %3358 = vmatmul.bf16.gmra.mxu0 %v2094
      %v3359 = vpop.f32.mrf.mxu0
      %v3360 = vadd.f32 %v3191, %v3359
      %v3361 = vpop.f32.mrf.mxu0
      %v3362 = vadd.f32 %v3193, %v3361
      %3363 = vmatmul.bf16.gmra.mxu0 %v2105
      %v3364 = vpop.f32.mrf.mxu0
      %v3365 = vadd.f32 %v3196, %v3364
      %v3366 = vpop.f32.mrf.mxu0
      %v3367 = vadd.f32 %v3198, %v3366
      %3368 = vmatmul.bf16.gmra.mxu0 %v2116
      %v3369 = vpop.f32.mrf.mxu0
      %v3370 = vadd.f32 %v3201, %v3369
      %v3371 = vpop.f32.mrf.mxu0
      %v3372 = vadd.f32 %v3203, %v3371
      %3373 = vmatmul.bf16.gmra.mxu0 %v2127
      %v3374 = vpop.f32.mrf.mxu0
      %v3375 = vadd.f32 %v3206, %v3374
      %v3376 = vpop.f32.mrf.mxu0
      %v3377 = vadd.f32 %v3208, %v3376
      %3378 = vmatmul.bf16.gmra.mxu0 %v2138
      %v3379 = vpop.f32.mrf.mxu0
      %v3380 = vadd.f32 %v3211, %v3379
      %v3381 = vpop.f32.mrf.mxu0
      %v3382 = vadd.f32 %v3213, %v3381
      %3383 = vmatmul.bf16.gmra.mxu0 %v2149
      %v3384 = vpop.f32.mrf.mxu0
      %v3385 = vadd.f32 %v3216, %v3384
      %v3386 = vpop.f32.mrf.mxu0
      %v3387 = vadd.f32 %v3218, %v3386
      %3388 = vmatmul.bf16.gmra.mxu0 %v2160
      %v3389 = vpop.f32.mrf.mxu0
      %v3390 = vadd.f32 %v3221, %v3389
      %v3391 = vpop.f32.mrf.mxu0
      %v3392 = vadd.f32 %v3223, %v3391
      %3393 = vmatmul.bf16.gmra.mxu0 %v2171
      %v3394 = vpop.f32.mrf.mxu0
      %v3395 = vadd.f32 %v3226, %v3394
      %v3396 = vpop.f32.mrf.mxu0
      %v3397 = vadd.f32 %v3228, %v3396
      %3398 = vdwg.mxu0
      %3399 = vmatpush.bf16.msra.mxu0 %v2908
      %3400 = vmatpush.bf16.msra.mxu0 %v2907
      %3401 = vmatpush.bf16.msra.mxu0 %v2906
      %3402 = vmatpush.bf16.msra.mxu0 %v2905
      %3403 = vmatpush.bf16.msra.mxu0 %v2904
      %3404 = vmatpush.bf16.msra.mxu0 %v2903
      %3405 = vmatpush.bf16.msra.mxu0 %v2902
      %3406 = vmatpush.bf16.msra.mxu0 %v2901
      %3407 = vmatmul.bf16.gmra.mxu0 %v1831
      %v3408 = vpop.f32.mrf.mxu0
      %v3409 = vadd.f32 %v3240, %v3408
      %v3410 = vpop.f32.mrf.mxu0
      %v3411 = vadd.f32 %v3242, %v3410
      %3412 = vmatmul.bf16.gmra.mxu0 %v1842
      %v3413 = vpop.f32.mrf.mxu0
      %v3414 = vadd.f32 %v3245, %v3413
      %v3415 = vpop.f32.mrf.mxu0
      %v3416 = vadd.f32 %v3247, %v3415
      %3417 = vmatmul.bf16.gmra.mxu0 %v1853
      %v3418 = vpop.f32.mrf.mxu0
      %v3419 = vadd.f32 %v3250, %v3418
      %v3420 = vpop.f32.mrf.mxu0
      %v3421 = vadd.f32 %v3252, %v3420
      %3422 = vmatmul.bf16.gmra.mxu0 %v1864
      %v3423 = vpop.f32.mrf.mxu0
      %v3424 = vadd.f32 %v3255, %v3423
      %v3425 = vpop.f32.mrf.mxu0
      %v3426 = vadd.f32 %v3257, %v3425
      %3427 = vmatmul.bf16.gmra.mxu0 %v1875
      %v3428 = vpop.f32.mrf.mxu0
      %v3429 = vadd.f32 %v3260, %v3428
      %v3430 = vpop.f32.mrf.mxu0
      %v3431 = vadd.f32 %v3262, %v3430
      %3432 = vmatmul.bf16.gmra.mxu0 %v1886
      %v3433 = vpop.f32.mrf.mxu0
      %v3434 = vadd.f32 %v3265, %v3433
      %v3435 = vpop.f32.mrf.mxu0
      %v3436 = vadd.f32 %v3267, %v3435
      %3437 = vmatmul.bf16.gmra.mxu0 %v1897
      %v3438 = vpop.f32.mrf.mxu0
      %v3439 = vadd.f32 %v3270, %v3438
      %v3440 = vpop.f32.mrf.mxu0
      %v3441 = vadd.f32 %v3272, %v3440
      %3442 = vmatmul.bf16.gmra.mxu0 %v1908
      %v3443 = vpop.f32.mrf.mxu0
      %v3444 = vadd.f32 %v3275, %v3443
      %v3445 = vpop.f32.mrf.mxu0
      %v3446 = vadd.f32 %v3277, %v3445
      %3447 = vmatmul.bf16.gmra.mxu0 %v1919
      %v3448 = vpop.f32.mrf.mxu0
      %v3449 = vadd.f32 %v3280, %v3448
      %v3450 = vpop.f32.mrf.mxu0
      %v3451 = vadd.f32 %v3282, %v3450
      %3452 = vmatmul.bf16.gmra.mxu0 %v1930
      %v3453 = vpop.f32.mrf.mxu0
      %v3454 = vadd.f32 %v3285, %v3453
      %v3455 = vpop.f32.mrf.mxu0
      %v3456 = vadd.f32 %v3287, %v3455
      %3457 = vmatmul.bf16.gmra.mxu0 %v1941
      %v3458 = vpop.f32.mrf.mxu0
      %v3459 = vadd.f32 %v3290, %v3458
      %v3460 = vpop.f32.mrf.mxu0
      %v3461 = vadd.f32 %v3292, %v3460
      %3462 = vmatmul.bf16.gmra.mxu0 %v1952
      %v3463 = vpop.f32.mrf.mxu0
      %v3464 = vadd.f32 %v3295, %v3463
      %v3465 = vpop.f32.mrf.mxu0
      %v3466 = vadd.f32 %v3297, %v3465
      %3467 = vmatmul.bf16.gmra.mxu0 %v1963
      %v3468 = vpop.f32.mrf.mxu0
      %v3469 = vadd.f32 %v3300, %v3468
      %v3470 = vpop.f32.mrf.mxu0
      %v3471 = vadd.f32 %v3302, %v3470
      %3472 = vmatmul.bf16.gmra.mxu0 %v1974
      %v3473 = vpop.f32.mrf.mxu0
      %v3474 = vadd.f32 %v3305, %v3473
      %v3475 = vpop.f32.mrf.mxu0
      %v3476 = vadd.f32 %v3307, %v3475
      %3477 = vmatmul.bf16.gmra.mxu0 %v1985
      %v3478 = vpop.f32.mrf.mxu0
      %v3479 = vadd.f32 %v3310, %v3478
      %v3480 = vpop.f32.mrf.mxu0
      %v3481 = vadd.f32 %v3312, %v3480
      %3482 = vmatmul.bf16.gmra.mxu0 %v1996
      %v3483 = vpop.f32.mrf.mxu0
      %v3484 = vadd.f32 %v3315, %v3483
      %v3485 = vpop.f32.mrf.mxu0
      %v3486 = vadd.f32 %v3317, %v3485
      %3487 = vmatmul.bf16.gmra.mxu0 %v2007
      %v3488 = vpop.f32.mrf.mxu0
      %v3489 = vadd.f32 %v3320, %v3488
      %v3490 = vpop.f32.mrf.mxu0
      %v3491 = vadd.f32 %v3322, %v3490
      %3492 = vmatmul.bf16.gmra.mxu0 %v2018
      %v3493 = vpop.f32.mrf.mxu0
      %v3494 = vadd.f32 %v3325, %v3493
      %v3495 = vpop.f32.mrf.mxu0
      %v3496 = vadd.f32 %v3327, %v3495
      %3497 = vmatmul.bf16.gmra.mxu0 %v2029
      %v3498 = vpop.f32.mrf.mxu0
      %v3499 = vadd.f32 %v3330, %v3498
      %v3500 = vpop.f32.mrf.mxu0
      %v3501 = vadd.f32 %v3332, %v3500
      %3502 = vmatmul.bf16.gmra.mxu0 %v2040
      %v3503 = vpop.f32.mrf.mxu0
      %v3504 = vadd.f32 %v3335, %v3503
      %v3505 = vpop.f32.mrf.mxu0
      %v3506 = vadd.f32 %v3337, %v3505
      %3507 = vmatmul.bf16.gmra.mxu0 %v2051
      %v3508 = vpop.f32.mrf.mxu0
      %v3509 = vadd.f32 %v3340, %v3508
      %v3510 = vpop.f32.mrf.mxu0
      %v3511 = vadd.f32 %v3342, %v3510
      %3512 = vmatmul.bf16.gmra.mxu0 %v2062
      %v3513 = vpop.f32.mrf.mxu0
      %v3514 = vadd.f32 %v3345, %v3513
      %v3515 = vpop.f32.mrf.mxu0
      %v3516 = vadd.f32 %v3347, %v3515
      %3517 = vmatmul.bf16.gmra.mxu0 %v2073
      %v3518 = vpop.f32.mrf.mxu0
      %v3519 = vadd.f32 %v3350, %v3518
      %v3520 = vpop.f32.mrf.mxu0
      %v3521 = vadd.f32 %v3352, %v3520
      %3522 = vmatmul.bf16.gmra.mxu0 %v2084
      %v3523 = vpop.f32.mrf.mxu0
      %v3524 = vadd.f32 %v3355, %v3523
      %v3525 = vpop.f32.mrf.mxu0
      %v3526 = vadd.f32 %v3357, %v3525
      %3527 = vmatmul.bf16.gmra.mxu0 %v2095
      %v3528 = vpop.f32.mrf.mxu0
      %v3529 = vadd.f32 %v3360, %v3528
      %v3530 = vpop.f32.mrf.mxu0
      %v3531 = vadd.f32 %v3362, %v3530
      %3532 = vmatmul.bf16.gmra.mxu0 %v2106
      %v3533 = vpop.f32.mrf.mxu0
      %v3534 = vadd.f32 %v3365, %v3533
      %v3535 = vpop.f32.mrf.mxu0
      %v3536 = vadd.f32 %v3367, %v3535
      %3537 = vmatmul.bf16.gmra.mxu0 %v2117
      %v3538 = vpop.f32.mrf.mxu0
      %v3539 = vadd.f32 %v3370, %v3538
      %v3540 = vpop.f32.mrf.mxu0
      %v3541 = vadd.f32 %v3372, %v3540
      %3542 = vmatmul.bf16.gmra.mxu0 %v2128
      %v3543 = vpop.f32.mrf.mxu0
      %v3544 = vadd.f32 %v3375, %v3543
      %v3545 = vpop.f32.mrf.mxu0
      %v3546 = vadd.f32 %v3377, %v3545
      %3547 = vmatmul.bf16.gmra.mxu0 %v2139
      %v3548 = vpop.f32.mrf.mxu0
      %v3549 = vadd.f32 %v3380, %v3548
      %v3550 = vpop.f32.mrf.mxu0
      %v3551 = vadd.f32 %v3382, %v3550
      %3552 = vmatmul.bf16.gmra.mxu0 %v2150
      %v3553 = vpop.f32.mrf.mxu0
      %v3554 = vadd.f32 %v3385, %v3553
      %v3555 = vpop.f32.mrf.mxu0
      %v3556 = vadd.f32 %v3387, %v3555
      %3557 = vmatmul.bf16.gmra.mxu0 %v2161
      %v3558 = vpop.f32.mrf.mxu0
      %v3559 = vadd.f32 %v3390, %v3558
      %v3560 = vpop.f32.mrf.mxu0
      %v3561 = vadd.f32 %v3392, %v3560
      %3562 = vmatmul.bf16.gmra.mxu0 %v2172
      %v3563 = vpop.f32.mrf.mxu0
      %v3564 = vadd.f32 %v3395, %v3563
      %v3565 = vpop.f32.mrf.mxu0
      %v3566 = vadd.f32 %v3397, %v3565
      %3567 = vdwg.mxu0
      %3568 = vmatpush.bf16.msra.mxu0 %v2916
      %3569 = vmatpush.bf16.msra.mxu0 %v2915
      %3570 = vmatpush.bf16.msra.mxu0 %v2914
      %3571 = vmatpush.bf16.msra.mxu0 %v2913
      %3572 = vmatpush.bf16.msra.mxu0 %v2912
      %3573 = vmatpush.bf16.msra.mxu0 %v2911
      %3574 = vmatpush.bf16.msra.mxu0 %v2910
      %3575 = vmatpush.bf16.msra.mxu0 %v2909
      %3576 = vmatmul.bf16.gmra.mxu0 %v1832
      %v3577 = vpop.f32.mrf.mxu0
      %v3578 = vadd.f32 %v3409, %v3577
      %v3579 = vpop.f32.mrf.mxu0
      %v3580 = vadd.f32 %v3411, %v3579
      %3581 = vmatmul.bf16.gmra.mxu0 %v1843
      %v3582 = vpop.f32.mrf.mxu0
      %v3583 = vadd.f32 %v3414, %v3582
      %v3584 = vpop.f32.mrf.mxu0
      %v3585 = vadd.f32 %v3416, %v3584
      %3586 = vmatmul.bf16.gmra.mxu0 %v1854
      %v3587 = vpop.f32.mrf.mxu0
      %v3588 = vadd.f32 %v3419, %v3587
      %v3589 = vpop.f32.mrf.mxu0
      %v3590 = vadd.f32 %v3421, %v3589
      %3591 = vmatmul.bf16.gmra.mxu0 %v1865
      %v3592 = vpop.f32.mrf.mxu0
      %v3593 = vadd.f32 %v3424, %v3592
      %v3594 = vpop.f32.mrf.mxu0
      %v3595 = vadd.f32 %v3426, %v3594
      %3596 = vmatmul.bf16.gmra.mxu0 %v1876
      %v3597 = vpop.f32.mrf.mxu0
      %v3598 = vadd.f32 %v3429, %v3597
      %v3599 = vpop.f32.mrf.mxu0
      %v3600 = vadd.f32 %v3431, %v3599
      %3601 = vmatmul.bf16.gmra.mxu0 %v1887
      %v3602 = vpop.f32.mrf.mxu0
      %v3603 = vadd.f32 %v3434, %v3602
      %v3604 = vpop.f32.mrf.mxu0
      %v3605 = vadd.f32 %v3436, %v3604
      %3606 = vmatmul.bf16.gmra.mxu0 %v1898
      %v3607 = vpop.f32.mrf.mxu0
      %v3608 = vadd.f32 %v3439, %v3607
      %v3609 = vpop.f32.mrf.mxu0
      %v3610 = vadd.f32 %v3441, %v3609
      %3611 = vmatmul.bf16.gmra.mxu0 %v1909
      %v3612 = vpop.f32.mrf.mxu0
      %v3613 = vadd.f32 %v3444, %v3612
      %v3614 = vpop.f32.mrf.mxu0
      %v3615 = vadd.f32 %v3446, %v3614
      %3616 = vmatmul.bf16.gmra.mxu0 %v1920
      %v3617 = vpop.f32.mrf.mxu0
      %v3618 = vadd.f32 %v3449, %v3617
      %v3619 = vpop.f32.mrf.mxu0
      %v3620 = vadd.f32 %v3451, %v3619
      %3621 = vmatmul.bf16.gmra.mxu0 %v1931
      %v3622 = vpop.f32.mrf.mxu0
      %v3623 = vadd.f32 %v3454, %v3622
      %v3624 = vpop.f32.mrf.mxu0
      %v3625 = vadd.f32 %v3456, %v3624
      %3626 = vmatmul.bf16.gmra.mxu0 %v1942
      %v3627 = vpop.f32.mrf.mxu0
      %v3628 = vadd.f32 %v3459, %v3627
      %v3629 = vpop.f32.mrf.mxu0
      %v3630 = vadd.f32 %v3461, %v3629
      %3631 = vmatmul.bf16.gmra.mxu0 %v1953
      %v3632 = vpop.f32.mrf.mxu0
      %v3633 = vadd.f32 %v3464, %v3632
      %v3634 = vpop.f32.mrf.mxu0
      %v3635 = vadd.f32 %v3466, %v3634
      %3636 = vmatmul.bf16.gmra.mxu0 %v1964
      %v3637 = vpop.f32.mrf.mxu0
      %v3638 = vadd.f32 %v3469, %v3637
      %v3639 = vpop.f32.mrf.mxu0
      %v3640 = vadd.f32 %v3471, %v3639
      %3641 = vmatmul.bf16.gmra.mxu0 %v1975
      %v3642 = vpop.f32.mrf.mxu0
      %v3643 = vadd.f32 %v3474, %v3642
      %v3644 = vpop.f32.mrf.mxu0
      %v3645 = vadd.f32 %v3476, %v3644
      %3646 = vmatmul.bf16.gmra.mxu0 %v1986
      %v3647 = vpop.f32.mrf.mxu0
      %v3648 = vadd.f32 %v3479, %v3647
      %v3649 = vpop.f32.mrf.mxu0
      %v3650 = vadd.f32 %v3481, %v3649
      %3651 = vmatmul.bf16.gmra.mxu0 %v1997
      %v3652 = vpop.f32.mrf.mxu0
      %v3653 = vadd.f32 %v3484, %v3652
      %v3654 = vpop.f32.mrf.mxu0
      %v3655 = vadd.f32 %v3486, %v3654
      %3656 = vmatmul.bf16.gmra.mxu0 %v2008
      %v3657 = vpop.f32.mrf.mxu0
      %v3658 = vadd.f32 %v3489, %v3657
      %v3659 = vpop.f32.mrf.mxu0
      %v3660 = vadd.f32 %v3491, %v3659
      %3661 = vmatmul.bf16.gmra.mxu0 %v2019
      %v3662 = vpop.f32.mrf.mxu0
      %v3663 = vadd.f32 %v3494, %v3662
      %v3664 = vpop.f32.mrf.mxu0
      %v3665 = vadd.f32 %v3496, %v3664
      %3666 = vmatmul.bf16.gmra.mxu0 %v2030
      %v3667 = vpop.f32.mrf.mxu0
      %v3668 = vadd.f32 %v3499, %v3667
      %v3669 = vpop.f32.mrf.mxu0
      %v3670 = vadd.f32 %v3501, %v3669
      %3671 = vmatmul.bf16.gmra.mxu0 %v2041
      %v3672 = vpop.f32.mrf.mxu0
      %v3673 = vadd.f32 %v3504, %v3672
      %v3674 = vpop.f32.mrf.mxu0
      %v3675 = vadd.f32 %v3506, %v3674
      %3676 = vmatmul.bf16.gmra.mxu0 %v2052
      %v3677 = vpop.f32.mrf.mxu0
      %v3678 = vadd.f32 %v3509, %v3677
      %v3679 = vpop.f32.mrf.mxu0
      %v3680 = vadd.f32 %v3511, %v3679
      %3681 = vmatmul.bf16.gmra.mxu0 %v2063
      %v3682 = vpop.f32.mrf.mxu0
      %v3683 = vadd.f32 %v3514, %v3682
      %v3684 = vpop.f32.mrf.mxu0
      %v3685 = vadd.f32 %v3516, %v3684
      %3686 = vmatmul.bf16.gmra.mxu0 %v2074
      %v3687 = vpop.f32.mrf.mxu0
      %v3688 = vadd.f32 %v3519, %v3687
      %v3689 = vpop.f32.mrf.mxu0
      %v3690 = vadd.f32 %v3521, %v3689
      %3691 = vmatmul.bf16.gmra.mxu0 %v2085
      %v3692 = vpop.f32.mrf.mxu0
      %v3693 = vadd.f32 %v3524, %v3692
      %v3694 = vpop.f32.mrf.mxu0
      %v3695 = vadd.f32 %v3526, %v3694
      %3696 = vmatmul.bf16.gmra.mxu0 %v2096
      %v3697 = vpop.f32.mrf.mxu0
      %v3698 = vadd.f32 %v3529, %v3697
      %v3699 = vpop.f32.mrf.mxu0
      %v3700 = vadd.f32 %v3531, %v3699
      %3701 = vmatmul.bf16.gmra.mxu0 %v2107
      %v3702 = vpop.f32.mrf.mxu0
      %v3703 = vadd.f32 %v3534, %v3702
      %v3704 = vpop.f32.mrf.mxu0
      %v3705 = vadd.f32 %v3536, %v3704
      %3706 = vmatmul.bf16.gmra.mxu0 %v2118
      %v3707 = vpop.f32.mrf.mxu0
      %v3708 = vadd.f32 %v3539, %v3707
      %v3709 = vpop.f32.mrf.mxu0
      %v3710 = vadd.f32 %v3541, %v3709
      %3711 = vmatmul.bf16.gmra.mxu0 %v2129
      %v3712 = vpop.f32.mrf.mxu0
      %v3713 = vadd.f32 %v3544, %v3712
      %v3714 = vpop.f32.mrf.mxu0
      %v3715 = vadd.f32 %v3546, %v3714
      %3716 = vmatmul.bf16.gmra.mxu0 %v2140
      %v3717 = vpop.f32.mrf.mxu0
      %v3718 = vadd.f32 %v3549, %v3717
      %v3719 = vpop.f32.mrf.mxu0
      %v3720 = vadd.f32 %v3551, %v3719
      %3721 = vmatmul.bf16.gmra.mxu0 %v2151
      %v3722 = vpop.f32.mrf.mxu0
      %v3723 = vadd.f32 %v3554, %v3722
      %v3724 = vpop.f32.mrf.mxu0
      %v3725 = vadd.f32 %v3556, %v3724
      %3726 = vmatmul.bf16.gmra.mxu0 %v2162
      %v3727 = vpop.f32.mrf.mxu0
      %v3728 = vadd.f32 %v3559, %v3727
      %v3729 = vpop.f32.mrf.mxu0
      %v3730 = vadd.f32 %v3561, %v3729
      %3731 = vmatmul.bf16.gmra.mxu0 %v2173
      %v3732 = vpop.f32.mrf.mxu0
      %v3733 = vadd.f32 %v3564, %v3732
      %v3734 = vpop.f32.mrf.mxu0
      %v3735 = vadd.f32 %v3566, %v3734
      %3736 = vdwg.mxu0
      %3737 = vmatpush.bf16.msra.mxu0 %v2924
      %3738 = vmatpush.bf16.msra.mxu0 %v2923
      %3739 = vmatpush.bf16.msra.mxu0 %v2922
      %3740 = vmatpush.bf16.msra.mxu0 %v2921
      %3741 = vmatpush.bf16.msra.mxu0 %v2920
      %3742 = vmatpush.bf16.msra.mxu0 %v2919
      %3743 = vmatpush.bf16.msra.mxu0 %v2918
      %3744 = vmatpush.bf16.msra.mxu0 %v2917
      %3745 = vmatmul.bf16.gmra.mxu0 %v1833
      %v3746 = vpop.f32.mrf.mxu0
      %v3747 = vadd.f32 %v3578, %v3746
      %v3748 = vpop.f32.mrf.mxu0
      %v3749 = vadd.f32 %v3580, %v3748
      %3750 = vmatmul.bf16.gmra.mxu0 %v1844
      %v3751 = vpop.f32.mrf.mxu0
      %v3752 = vadd.f32 %v3583, %v3751
      %v3753 = vpop.f32.mrf.mxu0
      %v3754 = vadd.f32 %v3585, %v3753
      %3755 = vmatmul.bf16.gmra.mxu0 %v1855
      %v3756 = vpop.f32.mrf.mxu0
      %v3757 = vadd.f32 %v3588, %v3756
      %v3758 = vpop.f32.mrf.mxu0
      %v3759 = vadd.f32 %v3590, %v3758
      %3760 = vmatmul.bf16.gmra.mxu0 %v1866
      %v3761 = vpop.f32.mrf.mxu0
      %v3762 = vadd.f32 %v3593, %v3761
      %v3763 = vpop.f32.mrf.mxu0
      %v3764 = vadd.f32 %v3595, %v3763
      %3765 = vmatmul.bf16.gmra.mxu0 %v1877
      %v3766 = vpop.f32.mrf.mxu0
      %v3767 = vadd.f32 %v3598, %v3766
      %v3768 = vpop.f32.mrf.mxu0
      %v3769 = vadd.f32 %v3600, %v3768
      %3770 = vmatmul.bf16.gmra.mxu0 %v1888
      %v3771 = vpop.f32.mrf.mxu0
      %v3772 = vadd.f32 %v3603, %v3771
      %v3773 = vpop.f32.mrf.mxu0
      %v3774 = vadd.f32 %v3605, %v3773
      %3775 = vmatmul.bf16.gmra.mxu0 %v1899
      %v3776 = vpop.f32.mrf.mxu0
      %v3777 = vadd.f32 %v3608, %v3776
      %v3778 = vpop.f32.mrf.mxu0
      %v3779 = vadd.f32 %v3610, %v3778
      %3780 = vmatmul.bf16.gmra.mxu0 %v1910
      %v3781 = vpop.f32.mrf.mxu0
      %v3782 = vadd.f32 %v3613, %v3781
      %v3783 = vpop.f32.mrf.mxu0
      %v3784 = vadd.f32 %v3615, %v3783
      %3785 = vmatmul.bf16.gmra.mxu0 %v1921
      %v3786 = vpop.f32.mrf.mxu0
      %v3787 = vadd.f32 %v3618, %v3786
      %v3788 = vpop.f32.mrf.mxu0
      %v3789 = vadd.f32 %v3620, %v3788
      %3790 = vmatmul.bf16.gmra.mxu0 %v1932
      %v3791 = vpop.f32.mrf.mxu0
      %v3792 = vadd.f32 %v3623, %v3791
      %v3793 = vpop.f32.mrf.mxu0
      %v3794 = vadd.f32 %v3625, %v3793
      %3795 = vmatmul.bf16.gmra.mxu0 %v1943
      %v3796 = vpop.f32.mrf.mxu0
      %v3797 = vadd.f32 %v3628, %v3796
      %v3798 = vpop.f32.mrf.mxu0
      %v3799 = vadd.f32 %v3630, %v3798
      %3800 = vmatmul.bf16.gmra.mxu0 %v1954
      %v3801 = vpop.f32.mrf.mxu0
      %v3802 = vadd.f32 %v3633, %v3801
      %v3803 = vpop.f32.mrf.mxu0
      %v3804 = vadd.f32 %v3635, %v3803
      %3805 = vmatmul.bf16.gmra.mxu0 %v1965
      %v3806 = vpop.f32.mrf.mxu0
      %v3807 = vadd.f32 %v3638, %v3806
      %v3808 = vpop.f32.mrf.mxu0
      %v3809 = vadd.f32 %v3640, %v3808
      %3810 = vmatmul.bf16.gmra.mxu0 %v1976
      %v3811 = vpop.f32.mrf.mxu0
      %v3812 = vadd.f32 %v3643, %v3811
      %v3813 = vpop.f32.mrf.mxu0
      %v3814 = vadd.f32 %v3645, %v3813
      %3815 = vmatmul.bf16.gmra.mxu0 %v1987
      %v3816 = vpop.f32.mrf.mxu0
      %v3817 = vadd.f32 %v3648, %v3816
      %v3818 = vpop.f32.mrf.mxu0
      %v3819 = vadd.f32 %v3650, %v3818
      %3820 = vmatmul.bf16.gmra.mxu0 %v1998
      %v3821 = vpop.f32.mrf.mxu0
      %v3822 = vadd.f32 %v3653, %v3821
      %v3823 = vpop.f32.mrf.mxu0
      %v3824 = vadd.f32 %v3655, %v3823
      %3825 = vmatmul.bf16.gmra.mxu0 %v2009
      %v3826 = vpop.f32.mrf.mxu0
      %v3827 = vadd.f32 %v3658, %v3826
      %v3828 = vpop.f32.mrf.mxu0
      %v3829 = vadd.f32 %v3660, %v3828
      %3830 = vmatmul.bf16.gmra.mxu0 %v2020
      %v3831 = vpop.f32.mrf.mxu0
      %v3832 = vadd.f32 %v3663, %v3831
      %v3833 = vpop.f32.mrf.mxu0
      %v3834 = vadd.f32 %v3665, %v3833
      %3835 = vmatmul.bf16.gmra.mxu0 %v2031
      %v3836 = vpop.f32.mrf.mxu0
      %v3837 = vadd.f32 %v3668, %v3836
      %v3838 = vpop.f32.mrf.mxu0
      %v3839 = vadd.f32 %v3670, %v3838
      %3840 = vmatmul.bf16.gmra.mxu0 %v2042
      %v3841 = vpop.f32.mrf.mxu0
      %v3842 = vadd.f32 %v3673, %v3841
      %v3843 = vpop.f32.mrf.mxu0
      %v3844 = vadd.f32 %v3675, %v3843
      %3845 = vmatmul.bf16.gmra.mxu0 %v2053
      %v3846 = vpop.f32.mrf.mxu0
      %v3847 = vadd.f32 %v3678, %v3846
      %v3848 = vpop.f32.mrf.mxu0
      %v3849 = vadd.f32 %v3680, %v3848
      %3850 = vmatmul.bf16.gmra.mxu0 %v2064
      %v3851 = vpop.f32.mrf.mxu0
      %v3852 = vadd.f32 %v3683, %v3851
      %v3853 = vpop.f32.mrf.mxu0
      %v3854 = vadd.f32 %v3685, %v3853
      %3855 = vmatmul.bf16.gmra.mxu0 %v2075
      %v3856 = vpop.f32.mrf.mxu0
      %v3857 = vadd.f32 %v3688, %v3856
      %v3858 = vpop.f32.mrf.mxu0
      %v3859 = vadd.f32 %v3690, %v3858
      %3860 = vmatmul.bf16.gmra.mxu0 %v2086
      %v3861 = vpop.f32.mrf.mxu0
      %v3862 = vadd.f32 %v3693, %v3861
      %v3863 = vpop.f32.mrf.mxu0
      %v3864 = vadd.f32 %v3695, %v3863
      %3865 = vmatmul.bf16.gmra.mxu0 %v2097
      %v3866 = vpop.f32.mrf.mxu0
      %v3867 = vadd.f32 %v3698, %v3866
      %v3868 = vpop.f32.mrf.mxu0
      %v3869 = vadd.f32 %v3700, %v3868
      %3870 = vmatmul.bf16.gmra.mxu0 %v2108
      %v3871 = vpop.f32.mrf.mxu0
      %v3872 = vadd.f32 %v3703, %v3871
      %v3873 = vpop.f32.mrf.mxu0
      %v3874 = vadd.f32 %v3705, %v3873
      %3875 = vmatmul.bf16.gmra.mxu0 %v2119
      %v3876 = vpop.f32.mrf.mxu0
      %v3877 = vadd.f32 %v3708, %v3876
      %v3878 = vpop.f32.mrf.mxu0
      %v3879 = vadd.f32 %v3710, %v3878
      %3880 = vmatmul.bf16.gmra.mxu0 %v2130
      %v3881 = vpop.f32.mrf.mxu0
      %v3882 = vadd.f32 %v3713, %v3881
      %v3883 = vpop.f32.mrf.mxu0
      %v3884 = vadd.f32 %v3715, %v3883
      %3885 = vmatmul.bf16.gmra.mxu0 %v2141
      %v3886 = vpop.f32.mrf.mxu0
      %v3887 = vadd.f32 %v3718, %v3886
      %v3888 = vpop.f32.mrf.mxu0
      %v3889 = vadd.f32 %v3720, %v3888
      %3890 = vmatmul.bf16.gmra.mxu0 %v2152
      %v3891 = vpop.f32.mrf.mxu0
      %v3892 = vadd.f32 %v3723, %v3891
      %v3893 = vpop.f32.mrf.mxu0
      %v3894 = vadd.f32 %v3725, %v3893
      %3895 = vmatmul.bf16.gmra.mxu0 %v2163
      %v3896 = vpop.f32.mrf.mxu0
      %v3897 = vadd.f32 %v3728, %v3896
      %v3898 = vpop.f32.mrf.mxu0
      %v3899 = vadd.f32 %v3730, %v3898
      %3900 = vmatmul.bf16.gmra.mxu0 %v2174
      %v3901 = vpop.f32.mrf.mxu0
      %v3902 = vadd.f32 %v3733, %v3901
      %v3903 = vpop.f32.mrf.mxu0
      %v3904 = vadd.f32 %v3735, %v3903
      %3905 = vdwg.mxu0
      %3906 = vmatpush.bf16.msra.mxu0 %v2932
      %3907 = vmatpush.bf16.msra.mxu0 %v2931
      %3908 = vmatpush.bf16.msra.mxu0 %v2930
      %3909 = vmatpush.bf16.msra.mxu0 %v2929
      %3910 = vmatpush.bf16.msra.mxu0 %v2928
      %3911 = vmatpush.bf16.msra.mxu0 %v2927
      %3912 = vmatpush.bf16.msra.mxu0 %v2926
      %3913 = vmatpush.bf16.msra.mxu0 %v2925
      %3914 = vmatmul.bf16.gmra.mxu0 %v1834
      %v3915 = vpop.f32.mrf.mxu0
      %v3916 = vadd.f32 %v3747, %v3915
      %v3917 = vpop.f32.mrf.mxu0
      %v3918 = vadd.f32 %v3749, %v3917
      %3919 = vmatmul.bf16.gmra.mxu0 %v1845
      %v3920 = vpop.f32.mrf.mxu0
      %v3921 = vadd.f32 %v3752, %v3920
      %v3922 = vpop.f32.mrf.mxu0
      %v3923 = vadd.f32 %v3754, %v3922
      %3924 = vmatmul.bf16.gmra.mxu0 %v1856
      %v3925 = vpop.f32.mrf.mxu0
      %v3926 = vadd.f32 %v3757, %v3925
      %v3927 = vpop.f32.mrf.mxu0
      %v3928 = vadd.f32 %v3759, %v3927
      %3929 = vmatmul.bf16.gmra.mxu0 %v1867
      %v3930 = vpop.f32.mrf.mxu0
      %v3931 = vadd.f32 %v3762, %v3930
      %v3932 = vpop.f32.mrf.mxu0
      %v3933 = vadd.f32 %v3764, %v3932
      %3934 = vmatmul.bf16.gmra.mxu0 %v1878
      %v3935 = vpop.f32.mrf.mxu0
      %v3936 = vadd.f32 %v3767, %v3935
      %v3937 = vpop.f32.mrf.mxu0
      %v3938 = vadd.f32 %v3769, %v3937
      %3939 = vmatmul.bf16.gmra.mxu0 %v1889
      %v3940 = vpop.f32.mrf.mxu0
      %v3941 = vadd.f32 %v3772, %v3940
      %v3942 = vpop.f32.mrf.mxu0
      %v3943 = vadd.f32 %v3774, %v3942
      %3944 = vmatmul.bf16.gmra.mxu0 %v1900
      %v3945 = vpop.f32.mrf.mxu0
      %v3946 = vadd.f32 %v3777, %v3945
      %v3947 = vpop.f32.mrf.mxu0
      %v3948 = vadd.f32 %v3779, %v3947
      %3949 = vmatmul.bf16.gmra.mxu0 %v1911
      %v3950 = vpop.f32.mrf.mxu0
      %v3951 = vadd.f32 %v3782, %v3950
      %v3952 = vpop.f32.mrf.mxu0
      %v3953 = vadd.f32 %v3784, %v3952
      %3954 = vmatmul.bf16.gmra.mxu0 %v1922
      %v3955 = vpop.f32.mrf.mxu0
      %v3956 = vadd.f32 %v3787, %v3955
      %v3957 = vpop.f32.mrf.mxu0
      %v3958 = vadd.f32 %v3789, %v3957
      %3959 = vmatmul.bf16.gmra.mxu0 %v1933
      %v3960 = vpop.f32.mrf.mxu0
      %v3961 = vadd.f32 %v3792, %v3960
      %v3962 = vpop.f32.mrf.mxu0
      %v3963 = vadd.f32 %v3794, %v3962
      %3964 = vmatmul.bf16.gmra.mxu0 %v1944
      %v3965 = vpop.f32.mrf.mxu0
      %v3966 = vadd.f32 %v3797, %v3965
      %v3967 = vpop.f32.mrf.mxu0
      %v3968 = vadd.f32 %v3799, %v3967
      %3969 = vmatmul.bf16.gmra.mxu0 %v1955
      %v3970 = vpop.f32.mrf.mxu0
      %v3971 = vadd.f32 %v3802, %v3970
      %v3972 = vpop.f32.mrf.mxu0
      %v3973 = vadd.f32 %v3804, %v3972
      %3974 = vmatmul.bf16.gmra.mxu0 %v1966
      %v3975 = vpop.f32.mrf.mxu0
      %v3976 = vadd.f32 %v3807, %v3975
      %v3977 = vpop.f32.mrf.mxu0
      %v3978 = vadd.f32 %v3809, %v3977
      %3979 = vmatmul.bf16.gmra.mxu0 %v1977
      %v3980 = vpop.f32.mrf.mxu0
      %v3981 = vadd.f32 %v3812, %v3980
      %v3982 = vpop.f32.mrf.mxu0
      %v3983 = vadd.f32 %v3814, %v3982
      %3984 = vmatmul.bf16.gmra.mxu0 %v1988
      %v3985 = vpop.f32.mrf.mxu0
      %v3986 = vadd.f32 %v3817, %v3985
      %v3987 = vpop.f32.mrf.mxu0
      %v3988 = vadd.f32 %v3819, %v3987
      %3989 = vmatmul.bf16.gmra.mxu0 %v1999
      %v3990 = vpop.f32.mrf.mxu0
      %v3991 = vadd.f32 %v3822, %v3990
      %v3992 = vpop.f32.mrf.mxu0
      %v3993 = vadd.f32 %v3824, %v3992
      %3994 = vmatmul.bf16.gmra.mxu0 %v2010
      %v3995 = vpop.f32.mrf.mxu0
      %v3996 = vadd.f32 %v3827, %v3995
      %v3997 = vpop.f32.mrf.mxu0
      %v3998 = vadd.f32 %v3829, %v3997
      %3999 = vmatmul.bf16.gmra.mxu0 %v2021
      %v4000 = vpop.f32.mrf.mxu0
      %v4001 = vadd.f32 %v3832, %v4000
      %v4002 = vpop.f32.mrf.mxu0
      %v4003 = vadd.f32 %v3834, %v4002
      %4004 = vmatmul.bf16.gmra.mxu0 %v2032
      %v4005 = vpop.f32.mrf.mxu0
      %v4006 = vadd.f32 %v3837, %v4005
      %v4007 = vpop.f32.mrf.mxu0
      %v4008 = vadd.f32 %v3839, %v4007
      %4009 = vmatmul.bf16.gmra.mxu0 %v2043
      %v4010 = vpop.f32.mrf.mxu0
      %v4011 = vadd.f32 %v3842, %v4010
      %v4012 = vpop.f32.mrf.mxu0
      %v4013 = vadd.f32 %v3844, %v4012
      %4014 = vmatmul.bf16.gmra.mxu0 %v2054
      %v4015 = vpop.f32.mrf.mxu0
      %v4016 = vadd.f32 %v3847, %v4015
      %v4017 = vpop.f32.mrf.mxu0
      %v4018 = vadd.f32 %v3849, %v4017
      %4019 = vmatmul.bf16.gmra.mxu0 %v2065
      %v4020 = vpop.f32.mrf.mxu0
      %v4021 = vadd.f32 %v3852, %v4020
      %v4022 = vpop.f32.mrf.mxu0
      %v4023 = vadd.f32 %v3854, %v4022
      %4024 = vmatmul.bf16.gmra.mxu0 %v2076
      %v4025 = vpop.f32.mrf.mxu0
      %v4026 = vadd.f32 %v3857, %v4025
      %v4027 = vpop.f32.mrf.mxu0
      %v4028 = vadd.f32 %v3859, %v4027
      %4029 = vmatmul.bf16.gmra.mxu0 %v2087
      %v4030 = vpop.f32.mrf.mxu0
      %v4031 = vadd.f32 %v3862, %v4030
      %v4032 = vpop.f32.mrf.mxu0
      %v4033 = vadd.f32 %v3864, %v4032
      %4034 = vmatmul.bf16.gmra.mxu0 %v2098
      %v4035 = vpop.f32.mrf.mxu0
      %v4036 = vadd.f32 %v3867, %v4035
      %v4037 = vpop.f32.mrf.mxu0
      %v4038 = vadd.f32 %v3869, %v4037
      %4039 = vmatmul.bf16.gmra.mxu0 %v2109
      %v4040 = vpop.f32.mrf.mxu0
      %v4041 = vadd.f32 %v3872, %v4040
      %v4042 = vpop.f32.mrf.mxu0
      %v4043 = vadd.f32 %v3874, %v4042
      %4044 = vmatmul.bf16.gmra.mxu0 %v2120
      %v4045 = vpop.f32.mrf.mxu0
      %v4046 = vadd.f32 %v3877, %v4045
      %v4047 = vpop.f32.mrf.mxu0
      %v4048 = vadd.f32 %v3879, %v4047
      %4049 = vmatmul.bf16.gmra.mxu0 %v2131
      %v4050 = vpop.f32.mrf.mxu0
      %v4051 = vadd.f32 %v3882, %v4050
      %v4052 = vpop.f32.mrf.mxu0
      %v4053 = vadd.f32 %v3884, %v4052
      %4054 = vmatmul.bf16.gmra.mxu0 %v2142
      %v4055 = vpop.f32.mrf.mxu0
      %v4056 = vadd.f32 %v3887, %v4055
      %v4057 = vpop.f32.mrf.mxu0
      %v4058 = vadd.f32 %v3889, %v4057
      %4059 = vmatmul.bf16.gmra.mxu0 %v2153
      %v4060 = vpop.f32.mrf.mxu0
      %v4061 = vadd.f32 %v3892, %v4060
      %v4062 = vpop.f32.mrf.mxu0
      %v4063 = vadd.f32 %v3894, %v4062
      %4064 = vmatmul.bf16.gmra.mxu0 %v2164
      %v4065 = vpop.f32.mrf.mxu0
      %v4066 = vadd.f32 %v3897, %v4065
      %v4067 = vpop.f32.mrf.mxu0
      %v4068 = vadd.f32 %v3899, %v4067
      %4069 = vmatmul.bf16.gmra.mxu0 %v2175
      %v4070 = vpop.f32.mrf.mxu0
      %v4071 = vadd.f32 %v3902, %v4070
      %v4072 = vpop.f32.mrf.mxu0
      %v4073 = vadd.f32 %v3904, %v4072
      %4074 = vdwg.mxu0
      %4075 = vmatpush.bf16.msra.mxu0 %v2940
      %4076 = vmatpush.bf16.msra.mxu0 %v2939
      %4077 = vmatpush.bf16.msra.mxu0 %v2938
      %4078 = vmatpush.bf16.msra.mxu0 %v2937
      %4079 = vmatpush.bf16.msra.mxu0 %v2936
      %4080 = vmatpush.bf16.msra.mxu0 %v2935
      %4081 = vmatpush.bf16.msra.mxu0 %v2934
      %4082 = vmatpush.bf16.msra.mxu0 %v2933
      %4083 = vmatmul.bf16.gmra.mxu0 %v1835
      %v4084 = vpop.f32.mrf.mxu0
      %v4085 = vadd.f32 %v3916, %v4084
      %v4086 = vpop.f32.mrf.mxu0
      %v4087 = vadd.f32 %v3918, %v4086
      %4088 = vmatmul.bf16.gmra.mxu0 %v1846
      %v4089 = vpop.f32.mrf.mxu0
      %v4090 = vadd.f32 %v3921, %v4089
      %v4091 = vpop.f32.mrf.mxu0
      %v4092 = vadd.f32 %v3923, %v4091
      %4093 = vmatmul.bf16.gmra.mxu0 %v1857
      %v4094 = vpop.f32.mrf.mxu0
      %v4095 = vadd.f32 %v3926, %v4094
      %v4096 = vpop.f32.mrf.mxu0
      %v4097 = vadd.f32 %v3928, %v4096
      %4098 = vmatmul.bf16.gmra.mxu0 %v1868
      %v4099 = vpop.f32.mrf.mxu0
      %v4100 = vadd.f32 %v3931, %v4099
      %v4101 = vpop.f32.mrf.mxu0
      %v4102 = vadd.f32 %v3933, %v4101
      %4103 = vmatmul.bf16.gmra.mxu0 %v1879
      %v4104 = vpop.f32.mrf.mxu0
      %v4105 = vadd.f32 %v3936, %v4104
      %v4106 = vpop.f32.mrf.mxu0
      %v4107 = vadd.f32 %v3938, %v4106
      %4108 = vmatmul.bf16.gmra.mxu0 %v1890
      %v4109 = vpop.f32.mrf.mxu0
      %v4110 = vadd.f32 %v3941, %v4109
      %v4111 = vpop.f32.mrf.mxu0
      %v4112 = vadd.f32 %v3943, %v4111
      %4113 = vmatmul.bf16.gmra.mxu0 %v1901
      %v4114 = vpop.f32.mrf.mxu0
      %v4115 = vadd.f32 %v3946, %v4114
      %v4116 = vpop.f32.mrf.mxu0
      %v4117 = vadd.f32 %v3948, %v4116
      %4118 = vmatmul.bf16.gmra.mxu0 %v1912
      %v4119 = vpop.f32.mrf.mxu0
      %v4120 = vadd.f32 %v3951, %v4119
      %v4121 = vpop.f32.mrf.mxu0
      %v4122 = vadd.f32 %v3953, %v4121
      %4123 = vmatmul.bf16.gmra.mxu0 %v1923
      %v4124 = vpop.f32.mrf.mxu0
      %v4125 = vadd.f32 %v3956, %v4124
      %v4126 = vpop.f32.mrf.mxu0
      %v4127 = vadd.f32 %v3958, %v4126
      %4128 = vmatmul.bf16.gmra.mxu0 %v1934
      %v4129 = vpop.f32.mrf.mxu0
      %v4130 = vadd.f32 %v3961, %v4129
      %v4131 = vpop.f32.mrf.mxu0
      %v4132 = vadd.f32 %v3963, %v4131
      %4133 = vmatmul.bf16.gmra.mxu0 %v1945
      %v4134 = vpop.f32.mrf.mxu0
      %v4135 = vadd.f32 %v3966, %v4134
      %v4136 = vpop.f32.mrf.mxu0
      %v4137 = vadd.f32 %v3968, %v4136
      %4138 = vmatmul.bf16.gmra.mxu0 %v1956
      %v4139 = vpop.f32.mrf.mxu0
      %v4140 = vadd.f32 %v3971, %v4139
      %v4141 = vpop.f32.mrf.mxu0
      %v4142 = vadd.f32 %v3973, %v4141
      %4143 = vmatmul.bf16.gmra.mxu0 %v1967
      %v4144 = vpop.f32.mrf.mxu0
      %v4145 = vadd.f32 %v3976, %v4144
      %v4146 = vpop.f32.mrf.mxu0
      %v4147 = vadd.f32 %v3978, %v4146
      %4148 = vmatmul.bf16.gmra.mxu0 %v1978
      %v4149 = vpop.f32.mrf.mxu0
      %v4150 = vadd.f32 %v3981, %v4149
      %v4151 = vpop.f32.mrf.mxu0
      %v4152 = vadd.f32 %v3983, %v4151
      %4153 = vmatmul.bf16.gmra.mxu0 %v1989
      %v4154 = vpop.f32.mrf.mxu0
      %v4155 = vadd.f32 %v3986, %v4154
      %v4156 = vpop.f32.mrf.mxu0
      %v4157 = vadd.f32 %v3988, %v4156
      %4158 = vmatmul.bf16.gmra.mxu0 %v2000
      %v4159 = vpop.f32.mrf.mxu0
      %v4160 = vadd.f32 %v3991, %v4159
      %v4161 = vpop.f32.mrf.mxu0
      %v4162 = vadd.f32 %v3993, %v4161
      %4163 = vmatmul.bf16.gmra.mxu0 %v2011
      %v4164 = vpop.f32.mrf.mxu0
      %v4165 = vadd.f32 %v3996, %v4164
      %v4166 = vpop.f32.mrf.mxu0
      %v4167 = vadd.f32 %v3998, %v4166
      %4168 = vmatmul.bf16.gmra.mxu0 %v2022
      %v4169 = vpop.f32.mrf.mxu0
      %v4170 = vadd.f32 %v4001, %v4169
      %v4171 = vpop.f32.mrf.mxu0
      %v4172 = vadd.f32 %v4003, %v4171
      %4173 = vmatmul.bf16.gmra.mxu0 %v2033
      %v4174 = vpop.f32.mrf.mxu0
      %v4175 = vadd.f32 %v4006, %v4174
      %v4176 = vpop.f32.mrf.mxu0
      %v4177 = vadd.f32 %v4008, %v4176
      %4178 = vmatmul.bf16.gmra.mxu0 %v2044
      %v4179 = vpop.f32.mrf.mxu0
      %v4180 = vadd.f32 %v4011, %v4179
      %v4181 = vpop.f32.mrf.mxu0
      %v4182 = vadd.f32 %v4013, %v4181
      %4183 = vmatmul.bf16.gmra.mxu0 %v2055
      %v4184 = vpop.f32.mrf.mxu0
      %v4185 = vadd.f32 %v4016, %v4184
      %v4186 = vpop.f32.mrf.mxu0
      %v4187 = vadd.f32 %v4018, %v4186
      %4188 = vmatmul.bf16.gmra.mxu0 %v2066
      %v4189 = vpop.f32.mrf.mxu0
      %v4190 = vadd.f32 %v4021, %v4189
      %v4191 = vpop.f32.mrf.mxu0
      %v4192 = vadd.f32 %v4023, %v4191
      %4193 = vmatmul.bf16.gmra.mxu0 %v2077
      %v4194 = vpop.f32.mrf.mxu0
      %v4195 = vadd.f32 %v4026, %v4194
      %v4196 = vpop.f32.mrf.mxu0
      %v4197 = vadd.f32 %v4028, %v4196
      %4198 = vmatmul.bf16.gmra.mxu0 %v2088
      %v4199 = vpop.f32.mrf.mxu0
      %v4200 = vadd.f32 %v4031, %v4199
      %v4201 = vpop.f32.mrf.mxu0
      %v4202 = vadd.f32 %v4033, %v4201
      %4203 = vmatmul.bf16.gmra.mxu0 %v2099
      %v4204 = vpop.f32.mrf.mxu0
      %v4205 = vadd.f32 %v4036, %v4204
      %v4206 = vpop.f32.mrf.mxu0
      %v4207 = vadd.f32 %v4038, %v4206
      %4208 = vmatmul.bf16.gmra.mxu0 %v2110
      %v4209 = vpop.f32.mrf.mxu0
      %v4210 = vadd.f32 %v4041, %v4209
      %v4211 = vpop.f32.mrf.mxu0
      %v4212 = vadd.f32 %v4043, %v4211
      %4213 = vmatmul.bf16.gmra.mxu0 %v2121
      %v4214 = vpop.f32.mrf.mxu0
      %v4215 = vadd.f32 %v4046, %v4214
      %v4216 = vpop.f32.mrf.mxu0
      %v4217 = vadd.f32 %v4048, %v4216
      %4218 = vmatmul.bf16.gmra.mxu0 %v2132
      %v4219 = vpop.f32.mrf.mxu0
      %v4220 = vadd.f32 %v4051, %v4219
      %v4221 = vpop.f32.mrf.mxu0
      %v4222 = vadd.f32 %v4053, %v4221
      %4223 = vmatmul.bf16.gmra.mxu0 %v2143
      %v4224 = vpop.f32.mrf.mxu0
      %v4225 = vadd.f32 %v4056, %v4224
      %v4226 = vpop.f32.mrf.mxu0
      %v4227 = vadd.f32 %v4058, %v4226
      %4228 = vmatmul.bf16.gmra.mxu0 %v2154
      %v4229 = vpop.f32.mrf.mxu0
      %v4230 = vadd.f32 %v4061, %v4229
      %v4231 = vpop.f32.mrf.mxu0
      %v4232 = vadd.f32 %v4063, %v4231
      %4233 = vmatmul.bf16.gmra.mxu0 %v2165
      %v4234 = vpop.f32.mrf.mxu0
      %v4235 = vadd.f32 %v4066, %v4234
      %v4236 = vpop.f32.mrf.mxu0
      %v4237 = vadd.f32 %v4068, %v4236
      %4238 = vmatmul.bf16.gmra.mxu0 %v2176
      %v4239 = vpop.f32.mrf.mxu0
      %v4240 = vadd.f32 %v4071, %v4239
      %v4241 = vpop.f32.mrf.mxu0
      %v4242 = vadd.f32 %v4073, %v4241
      %4243 = vdwg.mxu0
      %4244 = vmatpush.bf16.msra.mxu0 %v2948
      %4245 = vmatpush.bf16.msra.mxu0 %v2947
      %4246 = vmatpush.bf16.msra.mxu0 %v2946
      %4247 = vmatpush.bf16.msra.mxu0 %v2945
      %4248 = vmatpush.bf16.msra.mxu0 %v2944
      %4249 = vmatpush.bf16.msra.mxu0 %v2943
      %4250 = vmatpush.bf16.msra.mxu0 %v2942
      %4251 = vmatpush.bf16.msra.mxu0 %v2941
      %4252 = vmatmul.bf16.gmra.mxu0 %v1836
      %v4253 = vpop.f32.mrf.mxu0
      %v4254 = vadd.f32 %v4085, %v4253
      %v4255 = vpop.f32.mrf.mxu0
      %v4256 = vadd.f32 %v4087, %v4255
      %4257 = vmatmul.bf16.gmra.mxu0 %v1847
      %v4258 = vpop.f32.mrf.mxu0
      %v4259 = vadd.f32 %v4090, %v4258
      %v4260 = vpop.f32.mrf.mxu0
      %v4261 = vadd.f32 %v4092, %v4260
      %4262 = vmatmul.bf16.gmra.mxu0 %v1858
      %v4263 = vpop.f32.mrf.mxu0
      %v4264 = vadd.f32 %v4095, %v4263
      %v4265 = vpop.f32.mrf.mxu0
      %v4266 = vadd.f32 %v4097, %v4265
      %4267 = vmatmul.bf16.gmra.mxu0 %v1869
      %v4268 = vpop.f32.mrf.mxu0
      %v4269 = vadd.f32 %v4100, %v4268
      %v4270 = vpop.f32.mrf.mxu0
      %v4271 = vadd.f32 %v4102, %v4270
      %4272 = vmatmul.bf16.gmra.mxu0 %v1880
      %v4273 = vpop.f32.mrf.mxu0
      %v4274 = vadd.f32 %v4105, %v4273
      %v4275 = vpop.f32.mrf.mxu0
      %v4276 = vadd.f32 %v4107, %v4275
      %4277 = vmatmul.bf16.gmra.mxu0 %v1891
      %v4278 = vpop.f32.mrf.mxu0
      %v4279 = vadd.f32 %v4110, %v4278
      %v4280 = vpop.f32.mrf.mxu0
      %v4281 = vadd.f32 %v4112, %v4280
      %4282 = vmatmul.bf16.gmra.mxu0 %v1902
      %v4283 = vpop.f32.mrf.mxu0
      %v4284 = vadd.f32 %v4115, %v4283
      %v4285 = vpop.f32.mrf.mxu0
      %v4286 = vadd.f32 %v4117, %v4285
      %4287 = vmatmul.bf16.gmra.mxu0 %v1913
      %v4288 = vpop.f32.mrf.mxu0
      %v4289 = vadd.f32 %v4120, %v4288
      %v4290 = vpop.f32.mrf.mxu0
      %v4291 = vadd.f32 %v4122, %v4290
      %4292 = vmatmul.bf16.gmra.mxu0 %v1924
      %v4293 = vpop.f32.mrf.mxu0
      %v4294 = vadd.f32 %v4125, %v4293
      %v4295 = vpop.f32.mrf.mxu0
      %v4296 = vadd.f32 %v4127, %v4295
      %4297 = vmatmul.bf16.gmra.mxu0 %v1935
      %v4298 = vpop.f32.mrf.mxu0
      %v4299 = vadd.f32 %v4130, %v4298
      %v4300 = vpop.f32.mrf.mxu0
      %v4301 = vadd.f32 %v4132, %v4300
      %4302 = vmatmul.bf16.gmra.mxu0 %v1946
      %v4303 = vpop.f32.mrf.mxu0
      %v4304 = vadd.f32 %v4135, %v4303
      %v4305 = vpop.f32.mrf.mxu0
      %v4306 = vadd.f32 %v4137, %v4305
      %4307 = vmatmul.bf16.gmra.mxu0 %v1957
      %v4308 = vpop.f32.mrf.mxu0
      %v4309 = vadd.f32 %v4140, %v4308
      %v4310 = vpop.f32.mrf.mxu0
      %v4311 = vadd.f32 %v4142, %v4310
      %4312 = vmatmul.bf16.gmra.mxu0 %v1968
      %v4313 = vpop.f32.mrf.mxu0
      %v4314 = vadd.f32 %v4145, %v4313
      %v4315 = vpop.f32.mrf.mxu0
      %v4316 = vadd.f32 %v4147, %v4315
      %4317 = vmatmul.bf16.gmra.mxu0 %v1979
      %v4318 = vpop.f32.mrf.mxu0
      %v4319 = vadd.f32 %v4150, %v4318
      %v4320 = vpop.f32.mrf.mxu0
      %v4321 = vadd.f32 %v4152, %v4320
      %4322 = vmatmul.bf16.gmra.mxu0 %v1990
      %v4323 = vpop.f32.mrf.mxu0
      %v4324 = vadd.f32 %v4155, %v4323
      %v4325 = vpop.f32.mrf.mxu0
      %v4326 = vadd.f32 %v4157, %v4325
      %4327 = vmatmul.bf16.gmra.mxu0 %v2001
      %v4328 = vpop.f32.mrf.mxu0
      %v4329 = vadd.f32 %v4160, %v4328
      %v4330 = vpop.f32.mrf.mxu0
      %v4331 = vadd.f32 %v4162, %v4330
      %4332 = vmatmul.bf16.gmra.mxu0 %v2012
      %v4333 = vpop.f32.mrf.mxu0
      %v4334 = vadd.f32 %v4165, %v4333
      %v4335 = vpop.f32.mrf.mxu0
      %v4336 = vadd.f32 %v4167, %v4335
      %4337 = vmatmul.bf16.gmra.mxu0 %v2023
      %v4338 = vpop.f32.mrf.mxu0
      %v4339 = vadd.f32 %v4170, %v4338
      %v4340 = vpop.f32.mrf.mxu0
      %v4341 = vadd.f32 %v4172, %v4340
      %4342 = vmatmul.bf16.gmra.mxu0 %v2034
      %v4343 = vpop.f32.mrf.mxu0
      %v4344 = vadd.f32 %v4175, %v4343
      %v4345 = vpop.f32.mrf.mxu0
      %v4346 = vadd.f32 %v4177, %v4345
      %4347 = vmatmul.bf16.gmra.mxu0 %v2045
      %v4348 = vpop.f32.mrf.mxu0
      %v4349 = vadd.f32 %v4180, %v4348
      %v4350 = vpop.f32.mrf.mxu0
      %v4351 = vadd.f32 %v4182, %v4350
      %4352 = vmatmul.bf16.gmra.mxu0 %v2056
      %v4353 = vpop.f32.mrf.mxu0
      %v4354 = vadd.f32 %v4185, %v4353
      %v4355 = vpop.f32.mrf.mxu0
      %v4356 = vadd.f32 %v4187, %v4355
      %4357 = vmatmul.bf16.gmra.mxu0 %v2067
      %v4358 = vpop.f32.mrf.mxu0
      %v4359 = vadd.f32 %v4190, %v4358
      %v4360 = vpop.f32.mrf.mxu0
      %v4361 = vadd.f32 %v4192, %v4360
      %4362 = vmatmul.bf16.gmra.mxu0 %v2078
      %v4363 = vpop.f32.mrf.mxu0
      %v4364 = vadd.f32 %v4195, %v4363
      %v4365 = vpop.f32.mrf.mxu0
      %v4366 = vadd.f32 %v4197, %v4365
      %4367 = vmatmul.bf16.gmra.mxu0 %v2089
      %v4368 = vpop.f32.mrf.mxu0
      %v4369 = vadd.f32 %v4200, %v4368
      %v4370 = vpop.f32.mrf.mxu0
      %v4371 = vadd.f32 %v4202, %v4370
      %4372 = vmatmul.bf16.gmra.mxu0 %v2100
      %v4373 = vpop.f32.mrf.mxu0
      %v4374 = vadd.f32 %v4205, %v4373
      %v4375 = vpop.f32.mrf.mxu0
      %v4376 = vadd.f32 %v4207, %v4375
      %4377 = vmatmul.bf16.gmra.mxu0 %v2111
      %v4378 = vpop.f32.mrf.mxu0
      %v4379 = vadd.f32 %v4210, %v4378
      %v4380 = vpop.f32.mrf.mxu0
      %v4381 = vadd.f32 %v4212, %v4380
      %4382 = vmatmul.bf16.gmra.mxu0 %v2122
      %v4383 = vpop.f32.mrf.mxu0
      %v4384 = vadd.f32 %v4215, %v4383
      %v4385 = vpop.f32.mrf.mxu0
      %v4386 = vadd.f32 %v4217, %v4385
      %4387 = vmatmul.bf16.gmra.mxu0 %v2133
      %v4388 = vpop.f32.mrf.mxu0
      %v4389 = vadd.f32 %v4220, %v4388
      %v4390 = vpop.f32.mrf.mxu0
      %v4391 = vadd.f32 %v4222, %v4390
      %4392 = vmatmul.bf16.gmra.mxu0 %v2144
      %v4393 = vpop.f32.mrf.mxu0
      %v4394 = vadd.f32 %v4225, %v4393
      %v4395 = vpop.f32.mrf.mxu0
      %v4396 = vadd.f32 %v4227, %v4395
      %4397 = vmatmul.bf16.gmra.mxu0 %v2155
      %v4398 = vpop.f32.mrf.mxu0
      %v4399 = vadd.f32 %v4230, %v4398
      %v4400 = vpop.f32.mrf.mxu0
      %v4401 = vadd.f32 %v4232, %v4400
      %4402 = vmatmul.bf16.gmra.mxu0 %v2166
      %v4403 = vpop.f32.mrf.mxu0
      %v4404 = vadd.f32 %v4235, %v4403
      %v4405 = vpop.f32.mrf.mxu0
      %v4406 = vadd.f32 %v4237, %v4405
      %4407 = vmatmul.bf16.gmra.mxu0 %v2177
      %v4408 = vpop.f32.mrf.mxu0
      %v4409 = vadd.f32 %v4240, %v4408
      %v4410 = vpop.f32.mrf.mxu0
      %v4411 = vadd.f32 %v4242, %v4410
      %4412 = vdwg.mxu0
      %4413 = vmatpush.bf16.msra.mxu0 %v2956
      %4414 = vmatpush.bf16.msra.mxu0 %v2955
      %4415 = vmatpush.bf16.msra.mxu0 %v2954
      %4416 = vmatpush.bf16.msra.mxu0 %v2953
      %4417 = vmatpush.bf16.msra.mxu0 %v2952
      %4418 = vmatpush.bf16.msra.mxu0 %v2951
      %4419 = vmatpush.bf16.msra.mxu0 %v2950
      %4420 = vmatpush.bf16.msra.mxu0 %v2949
      %4421 = vmatmul.bf16.gmra.mxu0 %v1837
      %v4422 = vpop.f32.mrf.mxu0
      %v4423 = vadd.f32 %v4254, %v4422
      %v4424 = vpop.f32.mrf.mxu0
      %v4425 = vadd.f32 %v4256, %v4424
      %4426 = vmatmul.bf16.gmra.mxu0 %v1848
      %v4427 = vpop.f32.mrf.mxu0
      %v4428 = vadd.f32 %v4259, %v4427
      %v4429 = vpop.f32.mrf.mxu0
      %v4430 = vadd.f32 %v4261, %v4429
      %4431 = vmatmul.bf16.gmra.mxu0 %v1859
      %v4432 = vpop.f32.mrf.mxu0
      %v4433 = vadd.f32 %v4264, %v4432
      %v4434 = vpop.f32.mrf.mxu0
      %v4435 = vadd.f32 %v4266, %v4434
      %4436 = vmatmul.bf16.gmra.mxu0 %v1870
      %v4437 = vpop.f32.mrf.mxu0
      %v4438 = vadd.f32 %v4269, %v4437
      %v4439 = vpop.f32.mrf.mxu0
      %v4440 = vadd.f32 %v4271, %v4439
      %4441 = vmatmul.bf16.gmra.mxu0 %v1881
      %v4442 = vpop.f32.mrf.mxu0
      %v4443 = vadd.f32 %v4274, %v4442
      %v4444 = vpop.f32.mrf.mxu0
      %v4445 = vadd.f32 %v4276, %v4444
      %4446 = vmatmul.bf16.gmra.mxu0 %v1892
      %v4447 = vpop.f32.mrf.mxu0
      %v4448 = vadd.f32 %v4279, %v4447
      %v4449 = vpop.f32.mrf.mxu0
      %v4450 = vadd.f32 %v4281, %v4449
      %4451 = vmatmul.bf16.gmra.mxu0 %v1903
      %v4452 = vpop.f32.mrf.mxu0
      %v4453 = vadd.f32 %v4284, %v4452
      %v4454 = vpop.f32.mrf.mxu0
      %v4455 = vadd.f32 %v4286, %v4454
      %4456 = vmatmul.bf16.gmra.mxu0 %v1914
      %v4457 = vpop.f32.mrf.mxu0
      %v4458 = vadd.f32 %v4289, %v4457
      %v4459 = vpop.f32.mrf.mxu0
      %v4460 = vadd.f32 %v4291, %v4459
      %4461 = vmatmul.bf16.gmra.mxu0 %v1925
      %v4462 = vpop.f32.mrf.mxu0
      %v4463 = vadd.f32 %v4294, %v4462
      %v4464 = vpop.f32.mrf.mxu0
      %v4465 = vadd.f32 %v4296, %v4464
      %4466 = vmatmul.bf16.gmra.mxu0 %v1936
      %v4467 = vpop.f32.mrf.mxu0
      %v4468 = vadd.f32 %v4299, %v4467
      %v4469 = vpop.f32.mrf.mxu0
      %v4470 = vadd.f32 %v4301, %v4469
      %4471 = vmatmul.bf16.gmra.mxu0 %v1947
      %v4472 = vpop.f32.mrf.mxu0
      %v4473 = vadd.f32 %v4304, %v4472
      %v4474 = vpop.f32.mrf.mxu0
      %v4475 = vadd.f32 %v4306, %v4474
      %4476 = vmatmul.bf16.gmra.mxu0 %v1958
      %v4477 = vpop.f32.mrf.mxu0
      %v4478 = vadd.f32 %v4309, %v4477
      %v4479 = vpop.f32.mrf.mxu0
      %v4480 = vadd.f32 %v4311, %v4479
      %4481 = vmatmul.bf16.gmra.mxu0 %v1969
      %v4482 = vpop.f32.mrf.mxu0
      %v4483 = vadd.f32 %v4314, %v4482
      %v4484 = vpop.f32.mrf.mxu0
      %v4485 = vadd.f32 %v4316, %v4484
      %4486 = vmatmul.bf16.gmra.mxu0 %v1980
      %v4487 = vpop.f32.mrf.mxu0
      %v4488 = vadd.f32 %v4319, %v4487
      %v4489 = vpop.f32.mrf.mxu0
      %v4490 = vadd.f32 %v4321, %v4489
      %4491 = vmatmul.bf16.gmra.mxu0 %v1991
      %v4492 = vpop.f32.mrf.mxu0
      %v4493 = vadd.f32 %v4324, %v4492
      %v4494 = vpop.f32.mrf.mxu0
      %v4495 = vadd.f32 %v4326, %v4494
      %4496 = vmatmul.bf16.gmra.mxu0 %v2002
      %v4497 = vpop.f32.mrf.mxu0
      %v4498 = vadd.f32 %v4329, %v4497
      %v4499 = vpop.f32.mrf.mxu0
      %v4500 = vadd.f32 %v4331, %v4499
      %4501 = vmatmul.bf16.gmra.mxu0 %v2013
      %v4502 = vpop.f32.mrf.mxu0
      %v4503 = vadd.f32 %v4334, %v4502
      %v4504 = vpop.f32.mrf.mxu0
      %v4505 = vadd.f32 %v4336, %v4504
      %4506 = vmatmul.bf16.gmra.mxu0 %v2024
      %v4507 = vpop.f32.mrf.mxu0
      %v4508 = vadd.f32 %v4339, %v4507
      %v4509 = vpop.f32.mrf.mxu0
      %v4510 = vadd.f32 %v4341, %v4509
      %4511 = vmatmul.bf16.gmra.mxu0 %v2035
      %v4512 = vpop.f32.mrf.mxu0
      %v4513 = vadd.f32 %v4344, %v4512
      %v4514 = vpop.f32.mrf.mxu0
      %v4515 = vadd.f32 %v4346, %v4514
      %4516 = vmatmul.bf16.gmra.mxu0 %v2046
      %v4517 = vpop.f32.mrf.mxu0
      %v4518 = vadd.f32 %v4349, %v4517
      %v4519 = vpop.f32.mrf.mxu0
      %v4520 = vadd.f32 %v4351, %v4519
      %4521 = vmatmul.bf16.gmra.mxu0 %v2057
      %v4522 = vpop.f32.mrf.mxu0
      %v4523 = vadd.f32 %v4354, %v4522
      %v4524 = vpop.f32.mrf.mxu0
      %v4525 = vadd.f32 %v4356, %v4524
      %4526 = vmatmul.bf16.gmra.mxu0 %v2068
      %v4527 = vpop.f32.mrf.mxu0
      %v4528 = vadd.f32 %v4359, %v4527
      %v4529 = vpop.f32.mrf.mxu0
      %v4530 = vadd.f32 %v4361, %v4529
      %4531 = vmatmul.bf16.gmra.mxu0 %v2079
      %v4532 = vpop.f32.mrf.mxu0
      %v4533 = vadd.f32 %v4364, %v4532
      %v4534 = vpop.f32.mrf.mxu0
      %v4535 = vadd.f32 %v4366, %v4534
      %4536 = vmatmul.bf16.gmra.mxu0 %v2090
      %v4537 = vpop.f32.mrf.mxu0
      %v4538 = vadd.f32 %v4369, %v4537
      %v4539 = vpop.f32.mrf.mxu0
      %v4540 = vadd.f32 %v4371, %v4539
      %4541 = vmatmul.bf16.gmra.mxu0 %v2101
      %v4542 = vpop.f32.mrf.mxu0
      %v4543 = vadd.f32 %v4374, %v4542
      %v4544 = vpop.f32.mrf.mxu0
      %v4545 = vadd.f32 %v4376, %v4544
      %4546 = vmatmul.bf16.gmra.mxu0 %v2112
      %v4547 = vpop.f32.mrf.mxu0
      %v4548 = vadd.f32 %v4379, %v4547
      %v4549 = vpop.f32.mrf.mxu0
      %v4550 = vadd.f32 %v4381, %v4549
      %4551 = vmatmul.bf16.gmra.mxu0 %v2123
      %v4552 = vpop.f32.mrf.mxu0
      %v4553 = vadd.f32 %v4384, %v4552
      %v4554 = vpop.f32.mrf.mxu0
      %v4555 = vadd.f32 %v4386, %v4554
      %4556 = vmatmul.bf16.gmra.mxu0 %v2134
      %v4557 = vpop.f32.mrf.mxu0
      %v4558 = vadd.f32 %v4389, %v4557
      %v4559 = vpop.f32.mrf.mxu0
      %v4560 = vadd.f32 %v4391, %v4559
      %4561 = vmatmul.bf16.gmra.mxu0 %v2145
      %v4562 = vpop.f32.mrf.mxu0
      %v4563 = vadd.f32 %v4394, %v4562
      %v4564 = vpop.f32.mrf.mxu0
      %v4565 = vadd.f32 %v4396, %v4564
      %4566 = vmatmul.bf16.gmra.mxu0 %v2156
      %v4567 = vpop.f32.mrf.mxu0
      %v4568 = vadd.f32 %v4399, %v4567
      %v4569 = vpop.f32.mrf.mxu0
      %v4570 = vadd.f32 %v4401, %v4569
      %4571 = vmatmul.bf16.gmra.mxu0 %v2167
      %v4572 = vpop.f32.mrf.mxu0
      %v4573 = vadd.f32 %v4404, %v4572
      %v4574 = vpop.f32.mrf.mxu0
      %v4575 = vadd.f32 %v4406, %v4574
      %4576 = vmatmul.bf16.gmra.mxu0 %v2178
      %v4577 = vpop.f32.mrf.mxu0
      %v4578 = vadd.f32 %v4409, %v4577
      %v4579 = vpop.f32.mrf.mxu0
      %v4580 = vadd.f32 %v4411, %v4579
      %4581 = vdwg.mxu0
      %4582 = vmatpush.bf16.msra.mxu0 %v2964
      %4583 = vmatpush.bf16.msra.mxu0 %v2963
      %4584 = vmatpush.bf16.msra.mxu0 %v2962
      %4585 = vmatpush.bf16.msra.mxu0 %v2961
      %4586 = vmatpush.bf16.msra.mxu0 %v2960
      %4587 = vmatpush.bf16.msra.mxu0 %v2959
      %4588 = vmatpush.bf16.msra.mxu0 %v2958
      %4589 = vmatpush.bf16.msra.mxu0 %v2957
      %4590 = vmatmul.bf16.gmra.mxu0 %v1838
      %v4591 = vpop.f32.mrf.mxu0
      %v4592 = vadd.f32 %v4423, %v4591
      %v4593 = vpop.f32.mrf.mxu0
      %v4594 = vadd.f32 %v4425, %v4593
      %4595 = vmatmul.bf16.gmra.mxu0 %v1849
      %v4596 = vpop.f32.mrf.mxu0
      %v4597 = vadd.f32 %v4428, %v4596
      %v4598 = vpop.f32.mrf.mxu0
      %v4599 = vadd.f32 %v4430, %v4598
      %4600 = vmatmul.bf16.gmra.mxu0 %v1860
      %v4601 = vpop.f32.mrf.mxu0
      %v4602 = vadd.f32 %v4433, %v4601
      %v4603 = vpop.f32.mrf.mxu0
      %v4604 = vadd.f32 %v4435, %v4603
      %4605 = vmatmul.bf16.gmra.mxu0 %v1871
      %v4606 = vpop.f32.mrf.mxu0
      %v4607 = vadd.f32 %v4438, %v4606
      %v4608 = vpop.f32.mrf.mxu0
      %v4609 = vadd.f32 %v4440, %v4608
      %4610 = vmatmul.bf16.gmra.mxu0 %v1882
      %v4611 = vpop.f32.mrf.mxu0
      %v4612 = vadd.f32 %v4443, %v4611
      %v4613 = vpop.f32.mrf.mxu0
      %v4614 = vadd.f32 %v4445, %v4613
      %4615 = vmatmul.bf16.gmra.mxu0 %v1893
      %v4616 = vpop.f32.mrf.mxu0
      %v4617 = vadd.f32 %v4448, %v4616
      %v4618 = vpop.f32.mrf.mxu0
      %v4619 = vadd.f32 %v4450, %v4618
      %4620 = vmatmul.bf16.gmra.mxu0 %v1904
      %v4621 = vpop.f32.mrf.mxu0
      %v4622 = vadd.f32 %v4453, %v4621
      %v4623 = vpop.f32.mrf.mxu0
      %v4624 = vadd.f32 %v4455, %v4623
      %4625 = vmatmul.bf16.gmra.mxu0 %v1915
      %v4626 = vpop.f32.mrf.mxu0
      %v4627 = vadd.f32 %v4458, %v4626
      %v4628 = vpop.f32.mrf.mxu0
      %v4629 = vadd.f32 %v4460, %v4628
      %4630 = vmatmul.bf16.gmra.mxu0 %v1926
      %v4631 = vpop.f32.mrf.mxu0
      %v4632 = vadd.f32 %v4463, %v4631
      %v4633 = vpop.f32.mrf.mxu0
      %v4634 = vadd.f32 %v4465, %v4633
      %4635 = vmatmul.bf16.gmra.mxu0 %v1937
      %v4636 = vpop.f32.mrf.mxu0
      %v4637 = vadd.f32 %v4468, %v4636
      %v4638 = vpop.f32.mrf.mxu0
      %v4639 = vadd.f32 %v4470, %v4638
      %4640 = vmatmul.bf16.gmra.mxu0 %v1948
      %v4641 = vpop.f32.mrf.mxu0
      %v4642 = vadd.f32 %v4473, %v4641
      %v4643 = vpop.f32.mrf.mxu0
      %v4644 = vadd.f32 %v4475, %v4643
      %4645 = vmatmul.bf16.gmra.mxu0 %v1959
      %v4646 = vpop.f32.mrf.mxu0
      %v4647 = vadd.f32 %v4478, %v4646
      %v4648 = vpop.f32.mrf.mxu0
      %v4649 = vadd.f32 %v4480, %v4648
      %4650 = vmatmul.bf16.gmra.mxu0 %v1970
      %v4651 = vpop.f32.mrf.mxu0
      %v4652 = vadd.f32 %v4483, %v4651
      %v4653 = vpop.f32.mrf.mxu0
      %v4654 = vadd.f32 %v4485, %v4653
      %4655 = vmatmul.bf16.gmra.mxu0 %v1981
      %v4656 = vpop.f32.mrf.mxu0
      %v4657 = vadd.f32 %v4488, %v4656
      %v4658 = vpop.f32.mrf.mxu0
      %v4659 = vadd.f32 %v4490, %v4658
      %4660 = vmatmul.bf16.gmra.mxu0 %v1992
      %v4661 = vpop.f32.mrf.mxu0
      %v4662 = vadd.f32 %v4493, %v4661
      %v4663 = vpop.f32.mrf.mxu0
      %v4664 = vadd.f32 %v4495, %v4663
      %4665 = vmatmul.bf16.gmra.mxu0 %v2003
      %v4666 = vpop.f32.mrf.mxu0
      %v4667 = vadd.f32 %v4498, %v4666
      %v4668 = vpop.f32.mrf.mxu0
      %v4669 = vadd.f32 %v4500, %v4668
      %4670 = vmatmul.bf16.gmra.mxu0 %v2014
      %v4671 = vpop.f32.mrf.mxu0
      %v4672 = vadd.f32 %v4503, %v4671
      %v4673 = vpop.f32.mrf.mxu0
      %v4674 = vadd.f32 %v4505, %v4673
      %4675 = vmatmul.bf16.gmra.mxu0 %v2025
      %v4676 = vpop.f32.mrf.mxu0
      %v4677 = vadd.f32 %v4508, %v4676
      %v4678 = vpop.f32.mrf.mxu0
      %v4679 = vadd.f32 %v4510, %v4678
      %4680 = vmatmul.bf16.gmra.mxu0 %v2036
      %v4681 = vpop.f32.mrf.mxu0
      %v4682 = vadd.f32 %v4513, %v4681
      %v4683 = vpop.f32.mrf.mxu0
      %v4684 = vadd.f32 %v4515, %v4683
      %4685 = vmatmul.bf16.gmra.mxu0 %v2047
      %v4686 = vpop.f32.mrf.mxu0
      %v4687 = vadd.f32 %v4518, %v4686
      %v4688 = vpop.f32.mrf.mxu0
      %v4689 = vadd.f32 %v4520, %v4688
      %4690 = vmatmul.bf16.gmra.mxu0 %v2058
      %v4691 = vpop.f32.mrf.mxu0
      %v4692 = vadd.f32 %v4523, %v4691
      %v4693 = vpop.f32.mrf.mxu0
      %v4694 = vadd.f32 %v4525, %v4693
      %4695 = vmatmul.bf16.gmra.mxu0 %v2069
      %v4696 = vpop.f32.mrf.mxu0
      %v4697 = vadd.f32 %v4528, %v4696
      %v4698 = vpop.f32.mrf.mxu0
      %v4699 = vadd.f32 %v4530, %v4698
      %4700 = vmatmul.bf16.gmra.mxu0 %v2080
      %v4701 = vpop.f32.mrf.mxu0
      %v4702 = vadd.f32 %v4533, %v4701
      %v4703 = vpop.f32.mrf.mxu0
      %v4704 = vadd.f32 %v4535, %v4703
      %4705 = vmatmul.bf16.gmra.mxu0 %v2091
      %v4706 = vpop.f32.mrf.mxu0
      %v4707 = vadd.f32 %v4538, %v4706
      %v4708 = vpop.f32.mrf.mxu0
      %v4709 = vadd.f32 %v4540, %v4708
      %4710 = vmatmul.bf16.gmra.mxu0 %v2102
      %v4711 = vpop.f32.mrf.mxu0
      %v4712 = vadd.f32 %v4543, %v4711
      %v4713 = vpop.f32.mrf.mxu0
      %v4714 = vadd.f32 %v4545, %v4713
      %4715 = vmatmul.bf16.gmra.mxu0 %v2113
      %v4716 = vpop.f32.mrf.mxu0
      %v4717 = vadd.f32 %v4548, %v4716
      %v4718 = vpop.f32.mrf.mxu0
      %v4719 = vadd.f32 %v4550, %v4718
      %4720 = vmatmul.bf16.gmra.mxu0 %v2124
      %v4721 = vpop.f32.mrf.mxu0
      %v4722 = vadd.f32 %v4553, %v4721
      %v4723 = vpop.f32.mrf.mxu0
      %v4724 = vadd.f32 %v4555, %v4723
      %4725 = vmatmul.bf16.gmra.mxu0 %v2135
      %v4726 = vpop.f32.mrf.mxu0
      %v4727 = vadd.f32 %v4558, %v4726
      %v4728 = vpop.f32.mrf.mxu0
      %v4729 = vadd.f32 %v4560, %v4728
      %4730 = vmatmul.bf16.gmra.mxu0 %v2146
      %v4731 = vpop.f32.mrf.mxu0
      %v4732 = vadd.f32 %v4563, %v4731
      %v4733 = vpop.f32.mrf.mxu0
      %v4734 = vadd.f32 %v4565, %v4733
      %4735 = vmatmul.bf16.gmra.mxu0 %v2157
      %v4736 = vpop.f32.mrf.mxu0
      %v4737 = vadd.f32 %v4568, %v4736
      %v4738 = vpop.f32.mrf.mxu0
      %v4739 = vadd.f32 %v4570, %v4738
      %4740 = vmatmul.bf16.gmra.mxu0 %v2168
      %v4741 = vpop.f32.mrf.mxu0
      %v4742 = vadd.f32 %v4573, %v4741
      %v4743 = vpop.f32.mrf.mxu0
      %v4744 = vadd.f32 %v4575, %v4743
      %4745 = vmatmul.bf16.gmra.mxu0 %v2179
      %v4746 = vpop.f32.mrf.mxu0
      %v4747 = vadd.f32 %v4578, %v4746
      %v4748 = vpop.f32.mrf.mxu0
      %v4749 = vadd.f32 %v4580, %v4748
      %4750 = vdwg.mxu0
      %4751 = vmatpush.bf16.msra.mxu0 %v2972
      %4752 = vmatpush.bf16.msra.mxu0 %v2971
      %4753 = vmatpush.bf16.msra.mxu0 %v2970
      %4754 = vmatpush.bf16.msra.mxu0 %v2969
      %4755 = vmatpush.bf16.msra.mxu0 %v2968
      %4756 = vmatpush.bf16.msra.mxu0 %v2967
      %4757 = vmatpush.bf16.msra.mxu0 %v2966
      %4758 = vmatpush.bf16.msra.mxu0 %v2965
      %4759 = vmatmul.bf16.gmra.mxu0 %v1839
      %v4760 = vpop.f32.mrf.mxu0
      %v4761 = vadd.f32 %v4592, %v4760
      %v4762 = vpop.f32.mrf.mxu0
      %v4763 = vadd.f32 %v4594, %v4762
      %4764 = vmatmul.bf16.gmra.mxu0 %v1850
      %v4765 = vpop.f32.mrf.mxu0
      %v4766 = vadd.f32 %v4597, %v4765
      %v4767 = vpop.f32.mrf.mxu0
      %v4768 = vadd.f32 %v4599, %v4767
      %4769 = vmatmul.bf16.gmra.mxu0 %v1861
      %v4770 = vpop.f32.mrf.mxu0
      %v4771 = vadd.f32 %v4602, %v4770
      %v4772 = vpop.f32.mrf.mxu0
      %v4773 = vadd.f32 %v4604, %v4772
      %4774 = vmatmul.bf16.gmra.mxu0 %v1872
      %v4775 = vpop.f32.mrf.mxu0
      %v4776 = vadd.f32 %v4607, %v4775
      %v4777 = vpop.f32.mrf.mxu0
      %v4778 = vadd.f32 %v4609, %v4777
      %4779 = vmatmul.bf16.gmra.mxu0 %v1883
      %v4780 = vpop.f32.mrf.mxu0
      %v4781 = vadd.f32 %v4612, %v4780
      %v4782 = vpop.f32.mrf.mxu0
      %v4783 = vadd.f32 %v4614, %v4782
      %4784 = vmatmul.bf16.gmra.mxu0 %v1894
      %v4785 = vpop.f32.mrf.mxu0
      %v4786 = vadd.f32 %v4617, %v4785
      %v4787 = vpop.f32.mrf.mxu0
      %v4788 = vadd.f32 %v4619, %v4787
      %4789 = vmatmul.bf16.gmra.mxu0 %v1905
      %v4790 = vpop.f32.mrf.mxu0
      %v4791 = vadd.f32 %v4622, %v4790
      %v4792 = vpop.f32.mrf.mxu0
      %v4793 = vadd.f32 %v4624, %v4792
      %4794 = vmatmul.bf16.gmra.mxu0 %v1916
      %v4795 = vpop.f32.mrf.mxu0
      %v4796 = vadd.f32 %v4627, %v4795
      %v4797 = vpop.f32.mrf.mxu0
      %v4798 = vadd.f32 %v4629, %v4797
      %4799 = vmatmul.bf16.gmra.mxu0 %v1927
      %v4800 = vpop.f32.mrf.mxu0
      %v4801 = vadd.f32 %v4632, %v4800
      %v4802 = vpop.f32.mrf.mxu0
      %v4803 = vadd.f32 %v4634, %v4802
      %4804 = vmatmul.bf16.gmra.mxu0 %v1938
      %v4805 = vpop.f32.mrf.mxu0
      %v4806 = vadd.f32 %v4637, %v4805
      %v4807 = vpop.f32.mrf.mxu0
      %v4808 = vadd.f32 %v4639, %v4807
      %4809 = vmatmul.bf16.gmra.mxu0 %v1949
      %v4810 = vpop.f32.mrf.mxu0
      %v4811 = vadd.f32 %v4642, %v4810
      %v4812 = vpop.f32.mrf.mxu0
      %v4813 = vadd.f32 %v4644, %v4812
      %4814 = vmatmul.bf16.gmra.mxu0 %v1960
      %v4815 = vpop.f32.mrf.mxu0
      %v4816 = vadd.f32 %v4647, %v4815
      %v4817 = vpop.f32.mrf.mxu0
      %v4818 = vadd.f32 %v4649, %v4817
      %4819 = vmatmul.bf16.gmra.mxu0 %v1971
      %v4820 = vpop.f32.mrf.mxu0
      %v4821 = vadd.f32 %v4652, %v4820
      %v4822 = vpop.f32.mrf.mxu0
      %v4823 = vadd.f32 %v4654, %v4822
      %4824 = vmatmul.bf16.gmra.mxu0 %v1982
      %v4825 = vpop.f32.mrf.mxu0
      %v4826 = vadd.f32 %v4657, %v4825
      %v4827 = vpop.f32.mrf.mxu0
      %v4828 = vadd.f32 %v4659, %v4827
      %4829 = vmatmul.bf16.gmra.mxu0 %v1993
      %v4830 = vpop.f32.mrf.mxu0
      %v4831 = vadd.f32 %v4662, %v4830
      %v4832 = vpop.f32.mrf.mxu0
      %v4833 = vadd.f32 %v4664, %v4832
      %4834 = vmatmul.bf16.gmra.mxu0 %v2004
      %v4835 = vpop.f32.mrf.mxu0
      %v4836 = vadd.f32 %v4667, %v4835
      %v4837 = vpop.f32.mrf.mxu0
      %v4838 = vadd.f32 %v4669, %v4837
      %4839 = vmatmul.bf16.gmra.mxu0 %v2015
      %v4840 = vpop.f32.mrf.mxu0
      %v4841 = vadd.f32 %v4672, %v4840
      %v4842 = vpop.f32.mrf.mxu0
      %v4843 = vadd.f32 %v4674, %v4842
      %4844 = vmatmul.bf16.gmra.mxu0 %v2026
      %v4845 = vpop.f32.mrf.mxu0
      %v4846 = vadd.f32 %v4677, %v4845
      %v4847 = vpop.f32.mrf.mxu0
      %v4848 = vadd.f32 %v4679, %v4847
      %4849 = vmatmul.bf16.gmra.mxu0 %v2037
      %v4850 = vpop.f32.mrf.mxu0
      %v4851 = vadd.f32 %v4682, %v4850
      %v4852 = vpop.f32.mrf.mxu0
      %v4853 = vadd.f32 %v4684, %v4852
      %4854 = vmatmul.bf16.gmra.mxu0 %v2048
      %v4855 = vpop.f32.mrf.mxu0
      %v4856 = vadd.f32 %v4687, %v4855
      %v4857 = vpop.f32.mrf.mxu0
      %v4858 = vadd.f32 %v4689, %v4857
      %4859 = vmatmul.bf16.gmra.mxu0 %v2059
      %v4860 = vpop.f32.mrf.mxu0
      %v4861 = vadd.f32 %v4692, %v4860
      %v4862 = vpop.f32.mrf.mxu0
      %v4863 = vadd.f32 %v4694, %v4862
      %4864 = vmatmul.bf16.gmra.mxu0 %v2070
      %v4865 = vpop.f32.mrf.mxu0
      %v4866 = vadd.f32 %v4697, %v4865
      %v4867 = vpop.f32.mrf.mxu0
      %v4868 = vadd.f32 %v4699, %v4867
      %4869 = vmatmul.bf16.gmra.mxu0 %v2081
      %v4870 = vpop.f32.mrf.mxu0
      %v4871 = vadd.f32 %v4702, %v4870
      %v4872 = vpop.f32.mrf.mxu0
      %v4873 = vadd.f32 %v4704, %v4872
      %4874 = vmatmul.bf16.gmra.mxu0 %v2092
      %v4875 = vpop.f32.mrf.mxu0
      %v4876 = vadd.f32 %v4707, %v4875
      %v4877 = vpop.f32.mrf.mxu0
      %v4878 = vadd.f32 %v4709, %v4877
      %4879 = vmatmul.bf16.gmra.mxu0 %v2103
      %v4880 = vpop.f32.mrf.mxu0
      %v4881 = vadd.f32 %v4712, %v4880
      %v4882 = vpop.f32.mrf.mxu0
      %v4883 = vadd.f32 %v4714, %v4882
      %4884 = vmatmul.bf16.gmra.mxu0 %v2114
      %v4885 = vpop.f32.mrf.mxu0
      %v4886 = vadd.f32 %v4717, %v4885
      %v4887 = vpop.f32.mrf.mxu0
      %v4888 = vadd.f32 %v4719, %v4887
      %4889 = vmatmul.bf16.gmra.mxu0 %v2125
      %v4890 = vpop.f32.mrf.mxu0
      %v4891 = vadd.f32 %v4722, %v4890
      %v4892 = vpop.f32.mrf.mxu0
      %v4893 = vadd.f32 %v4724, %v4892
      %4894 = vmatmul.bf16.gmra.mxu0 %v2136
      %v4895 = vpop.f32.mrf.mxu0
      %v4896 = vadd.f32 %v4727, %v4895
      %v4897 = vpop.f32.mrf.mxu0
      %v4898 = vadd.f32 %v4729, %v4897
      %4899 = vmatmul.bf16.gmra.mxu0 %v2147
      %v4900 = vpop.f32.mrf.mxu0
      %v4901 = vadd.f32 %v4732, %v4900
      %v4902 = vpop.f32.mrf.mxu0
      %v4903 = vadd.f32 %v4734, %v4902
      %4904 = vmatmul.bf16.gmra.mxu0 %v2158
      %v4905 = vpop.f32.mrf.mxu0
      %v4906 = vadd.f32 %v4737, %v4905
      %v4907 = vpop.f32.mrf.mxu0
      %v4908 = vadd.f32 %v4739, %v4907
      %4909 = vmatmul.bf16.gmra.mxu0 %v2169
      %v4910 = vpop.f32.mrf.mxu0
      %v4911 = vadd.f32 %v4742, %v4910
      %v4912 = vpop.f32.mrf.mxu0
      %v4913 = vadd.f32 %v4744, %v4912
      %4914 = vmatmul.bf16.gmra.mxu0 %v2180
      %v4915 = vpop.f32.mrf.mxu0
      %v4916 = vadd.f32 %v4747, %v4915
      %v4917 = vpop.f32.mrf.mxu0
      %v4918 = vadd.f32 %v4749, %v4917
      %4919 = vdwg.mxu0
      %v4920 = vmul.f32 %v4761, 0.2
      %v4921 = vmul.f32 %v4763, 0.2
      %v4922 = vmul.f32 %v4766, 0.2
      %v4923 = vmul.f32 %v4768, 0.2
      %v4924 = vmul.f32 %v4771, 0.2
      %v4925 = vmul.f32 %v4773, 0.2
      %v4926 = vmul.f32 %v4776, 0.2
      %v4927 = vmul.f32 %v4778, 0.2
      %v4928 = vmul.f32 %v4781, 0.2
      %v4929 = vmul.f32 %v4783, 0.2
      %v4930 = vmul.f32 %v4786, 0.2
      %v4931 = vmul.f32 %v4788, 0.2
      %v4932 = vmul.f32 %v4791, 0.2
      %v4933 = vmul.f32 %v4793, 0.2
      %v4934 = vmul.f32 %v4796, 0.2
      %v4935 = vmul.f32 %v4798, 0.2
      %v4936 = vmul.f32 %v4801, 0.2
      %v4937 = vmul.f32 %v4803, 0.2
      %v4938 = vmul.f32 %v4806, 0.2
      %v4939 = vmul.f32 %v4808, 0.2
      %v4940 = vmul.f32 %v4811, 0.2
      %v4941 = vmul.f32 %v4813, 0.2
      %v4942 = vmul.f32 %v4816, 0.2
      %v4943 = vmul.f32 %v4818, 0.2
      %v4944 = vmul.f32 %v4821, 0.2
      %v4945 = vmul.f32 %v4823, 0.2
      %v4946 = vmul.f32 %v4826, 0.2
      %v4947 = vmul.f32 %v4828, 0.2
      %v4948 = vmul.f32 %v4831, 0.2
      %v4949 = vmul.f32 %v4833, 0.2
      %v4950 = vmul.f32 %v4836, 0.2
      %v4951 = vmul.f32 %v4838, 0.2
      %v4952 = vmul.f32 %v4841, 0.2
      %v4953 = vmul.f32 %v4843, 0.2
      %v4954 = vmul.f32 %v4846, 0.2
      %v4955 = vmul.f32 %v4848, 0.2
      %v4956 = vmul.f32 %v4851, 0.2
      %v4957 = vmul.f32 %v4853, 0.2
      %v4958 = vmul.f32 %v4856, 0.2
      %v4959 = vmul.f32 %v4858, 0.2
      %v4960 = vmul.f32 %v4861, 0.2
      %v4961 = vmul.f32 %v4863, 0.2
      %v4962 = vmul.f32 %v4866, 0.2
      %v4963 = vmul.f32 %v4868, 0.2
      %v4964 = vmul.f32 %v4871, 0.2
      %v4965 = vmul.f32 %v4873, 0.2
      %v4966 = vmul.f32 %v4876, 0.2
      %v4967 = vmul.f32 %v4878, 0.2
      %v4968 = vmul.f32 %v4881, 0.2
      %v4969 = vmul.f32 %v4883, 0.2
      %v4970 = vmul.f32 %v4886, 0.2
      %v4971 = vmul.f32 %v4888, 0.2
      %v4972 = vmul.f32 %v4891, 0.2
      %v4973 = vmul.f32 %v4893, 0.2
      %v4974 = vmul.f32 %v4896, 0.2
      %v4975 = vmul.f32 %v4898, 0.2
      %v4976 = vmul.f32 %v4901, 0.2
      %v4977 = vmul.f32 %v4903, 0.2
      %v4978 = vmul.f32 %v4906, 0.2
      %v4979 = vmul.f32 %v4908, 0.2
      %v4980 = vmul.f32 %v4911, 0.2
      %v4981 = vmul.f32 %v4913, 0.2
      %v4982 = vmul.f32 %v4916, 0.2
      %v4983 = vmul.f32 %v4918, 0.2
      %v4984 = vmax.f32 %v4761, %v4920
      %v4985 = vmax.f32 %v4763, %v4921
      %v4986 = vmax.f32 %v4766, %v4922
      %v4987 = vmax.f32 %v4768, %v4923
      %v4988 = vmax.f32 %v4771, %v4924
      %v4989 = vmax.f32 %v4773, %v4925
      %v4990 = vmax.f32 %v4776, %v4926
      %v4991 = vmax.f32 %v4778, %v4927
      %v4992 = vmax.f32 %v4781, %v4928
      %v4993 = vmax.f32 %v4783, %v4929
      %v4994 = vmax.f32 %v4786, %v4930
      %v4995 = vmax.f32 %v4788, %v4931
      %v4996 = vmax.f32 %v4791, %v4932
      %v4997 = vmax.f32 %v4793, %v4933
      %v4998 = vmax.f32 %v4796, %v4934
      %v4999 = vmax.f32 %v4798, %v4935
      %v5000 = vmax.f32 %v4801, %v4936
      %v5001 = vmax.f32 %v4803, %v4937
      %v5002 = vmax.f32 %v4806, %v4938
      %v5003 = vmax.f32 %v4808, %v4939
      %v5004 = vmax.f32 %v4811, %v4940
      %v5005 = vmax.f32 %v4813, %v4941
      %v5006 = vmax.f32 %v4816, %v4942
      %v5007 = vmax.f32 %v4818, %v4943
      %v5008 = vmax.f32 %v4821, %v4944
      %v5009 = vmax.f32 %v4823, %v4945
      %v5010 = vmax.f32 %v4826, %v4946
      %v5011 = vmax.f32 %v4828, %v4947
      %v5012 = vmax.f32 %v4831, %v4948
      %v5013 = vmax.f32 %v4833, %v4949
      %v5014 = vmax.f32 %v4836, %v4950
      %v5015 = vmax.f32 %v4838, %v4951
      %v5016 = vmax.f32 %v4841, %v4952
      %v5017 = vmax.f32 %v4843, %v4953
      %v5018 = vmax.f32 %v4846, %v4954
      %v5019 = vmax.f32 %v4848, %v4955
      %v5020 = vmax.f32 %v4851, %v4956
      %v5021 = vmax.f32 %v4853, %v4957
      %v5022 = vmax.f32 %v4856, %v4958
      %v5023 = vmax.f32 %v4858, %v4959
      %v5024 = vmax.f32 %v4861, %v4960
      %v5025 = vmax.f32 %v4863, %v4961
      %v5026 = vmax.f32 %v4866, %v4962
      %v5027 = vmax.f32 %v4868, %v4963
      %v5028 = vmax.f32 %v4871, %v4964
      %v5029 = vmax.f32 %v4873, %v4965
      %v5030 = vmax.f32 %v4876, %v4966
      %v5031 = vmax.f32 %v4878, %v4967
      %v5032 = vmax.f32 %v4881, %v4968
      %v5033 = vmax.f32 %v4883, %v4969
      %v5034 = vmax.f32 %v4886, %v4970
      %v5035 = vmax.f32 %v4888, %v4971
      %v5036 = vmax.f32 %v4891, %v4972
      %v5037 = vmax.f32 %v4893, %v4973
      %v5038 = vmax.f32 %v4896, %v4974
      %v5039 = vmax.f32 %v4898, %v4975
      %v5040 = vmax.f32 %v4901, %v4976
      %v5041 = vmax.f32 %v4903, %v4977
      %v5042 = vmax.f32 %v4906, %v4978
      %v5043 = vmax.f32 %v4908, %v4979
      %v5044 = vmax.f32 %v4911, %v4980
      %v5045 = vmax.f32 %v4913, %v4981
      %v5046 = vmax.f32 %v4916, %v4982
      %v5047 = vmax.f32 %v4918, %v4983
      %5048 = vst [vmem:[%s175] sm:$0xff] %v4984
      %5049 = vst [vmem:[%s175 + $0x8] sm:$0xff] %v4985
      %5050 = vst [vmem:[%s175 + $0x10] sm:$0xff] %v4986
      %5051 = vst [vmem:[%s175 + $0x18] sm:$0xff] %v4987
      %5052 = vst [vmem:[%s175 + $0x20] sm:$0xff] %v4988
      %5053 = vst [vmem:[%s175 + $0x28] sm:$0xff] %v4989
      %5054 = vst [vmem:[%s175 + $0x30] sm:$0xff] %v4990
      %5055 = vst [vmem:[%s175 + $0x38] sm:$0xff] %v4991
      %5056 = vst [vmem:[%s175 + $0x40] sm:$0xff] %v4992
      %5057 = vst [vmem:[%s175 + $0x48] sm:$0xff] %v4993
      %5058 = vst [vmem:[%s175 + $0x50] sm:$0xff] %v4994
      %5059 = vst [vmem:[%s175 + $0x58] sm:$0xff] %v4995
      %5060 = vst [vmem:[%s175 + $0x60] sm:$0xff] %v4996
      %5061 = vst [vmem:[%s175 + $0x68] sm:$0xff] %v4997
      %5062 = vst [vmem:[%s175 + $0x70] sm:$0xff] %v4998
      %5063 = vst [vmem:[%s175 + $0x78] sm:$0xff] %v4999
      %5064 = vst [vmem:[%s175 + $0x80] sm:$0xff] %v5000
      %5065 = vst [vmem:[%s175 + $0x88] sm:$0xff] %v5001
      %5066 = vst [vmem:[%s175 + $0x90] sm:$0xff] %v5002
      %5067 = vst [vmem:[%s175 + $0x98] sm:$0xff] %v5003
      %5068 = vst [vmem:[%s175 + $0xa0] sm:$0xff] %v5004
      %5069 = vst [vmem:[%s175 + $0xa8] sm:$0xff] %v5005
      %5070 = vst [vmem:[%s175 + $0xb0] sm:$0xff] %v5006
      %5071 = vst [vmem:[%s175 + $0xb8] sm:$0xff] %v5007
      %5072 = vst [vmem:[%s175 + $0xc0] sm:$0xff] %v5008
      %5073 = vst [vmem:[%s175 + $0xc8] sm:$0xff] %v5009
      %5074 = vst [vmem:[%s175 + $0xd0] sm:$0xff] %v5010
      %5075 = vst [vmem:[%s175 + $0xd8] sm:$0xff] %v5011
      %5076 = vst [vmem:[%s175 + $0xe0] sm:$0xff] %v5012
      %5077 = vst [vmem:[%s175 + $0xe8] sm:$0xff] %v5013
      %5078 = vst [vmem:[%s175 + $0xf0] sm:$0xff] %v5014
      %5079 = vst [vmem:[%s175 + $0xf8] sm:$0xff] %v5015
      %5080 = vst [vmem:[%s175 + $0x100] sm:$0xff] %v5016
      %5081 = vst [vmem:[%s175 + $0x108] sm:$0xff] %v5017
      %5082 = vst [vmem:[%s175 + $0x110] sm:$0xff] %v5018
      %5083 = vst [vmem:[%s175 + $0x118] sm:$0xff] %v5019
      %5084 = vst [vmem:[%s175 + $0x120] sm:$0xff] %v5020
      %5085 = vst [vmem:[%s175 + $0x128] sm:$0xff] %v5021
      %5086 = vst [vmem:[%s175 + $0x130] sm:$0xff] %v5022
      %5087 = vst [vmem:[%s175 + $0x138] sm:$0xff] %v5023
      %5088 = vst [vmem:[%s175 + $0x140] sm:$0xff] %v5024
      %5089 = vst [vmem:[%s175 + $0x148] sm:$0xff] %v5025
      %5090 = vst [vmem:[%s175 + $0x150] sm:$0xff] %v5026
      %5091 = vst [vmem:[%s175 + $0x158] sm:$0xff] %v5027
      %5092 = vst [vmem:[%s175 + $0x160] sm:$0xff] %v5028
      %5093 = vst [vmem:[%s175 + $0x168] sm:$0xff] %v5029
      %5094 = vst [vmem:[%s175 + $0x170] sm:$0xff] %v5030
      %5095 = vst [vmem:[%s175 + $0x178] sm:$0xff] %v5031
      %5096 = vst [vmem:[%s175 + $0x180] sm:$0xff] %v5032
      %5097 = vst [vmem:[%s175 + $0x188] sm:$0xff] %v5033
      %5098 = vst [vmem:[%s175 + $0x190] sm:$0xff] %v5034
      %5099 = vst [vmem:[%s175 + $0x198] sm:$0xff] %v5035
      %5100 = vst [vmem:[%s175 + $0x1a0] sm:$0xff] %v5036
      %5101 = vst [vmem:[%s175 + $0x1a8] sm:$0xff] %v5037
      %5102 = vst [vmem:[%s175 + $0x1b0] sm:$0xff] %v5038
      %5103 = vst [vmem:[%s175 + $0x1b8] sm:$0xff] %v5039
      %5104 = vst [vmem:[%s175 + $0x1c0] sm:$0xff] %v5040
      %5105 = vst [vmem:[%s175 + $0x1c8] sm:$0xff] %v5041
      %5106 = vst [vmem:[%s175 + $0x1d0] sm:$0xff] %v5042
      %5107 = vst [vmem:[%s175 + $0x1d8] sm:$0xff] %v5043
      %5108 = vst [vmem:[%s175 + $0x1e0] sm:$0xff] %v5044
      %5109 = vst [vmem:[%s175 + $0x1e8] sm:$0xff] %v5045
      %5110 = vst [vmem:[%s175 + $0x1f0] sm:$0xff] %v5046
      %5111 = vst [vmem:[%s175 + $0x1f8] sm:$0xff] %v5047
      %s5112 = smul.u32 64, %s14
      %p5113 = scmp.lt.s32.totalorder %s5112, 127
      %s5114 = scalar_select %p5113, %s5112, 127
      %s5115 = smul.addr %s5114, 8
      %s5116 = scalar_lea.vmem %s3, %s5115
      // Predicated region
      $region33: #{resblock1_forward.2} parent=31 // pred_check
        %p5117 = pneg %p100
      $region34: #{resblock1_forward.2} parent=31 // pred_check_branch
        %5119 = sbr.rel (%p5117) target = $region36
      $region35: #{resblock1_forward.2} parent=31 // pred_region
        %s5120 = smul.u32 64, %s14
      $region36: #{resblock1_forward.2} parent=31 // pred_fallthru
        _
    $region32: #{resblock1_forward.2} parent=5 // pred_fallthru
      _
    %p5121 = scmp.le.s32.totalorder 2, %s9
    // Predicated region
    $region37: #{resblock1_forward.2} parent=5 // pred_check
      %p5122 = pneg %p5121
    $region38: #{resblock1_forward.2} parent=5 // pred_check_branch
      %5124 = sbr.rel (%p5122) target = $region40
    $region39: #{resblock1_forward.2} parent=5 // pred_region
      %s5125 = ssub.s32 %s9, 2
      // Predicated region
      $region41: #{resblock1_forward.2} parent=39 // pred_check
        %p5126 = pneg %p106
      $region42: #{resblock1_forward.2} parent=39 // pred_check_branch
        %5128 = sbr.rel (%p5126) target = $region44
      $region43: #{resblock1_forward.2} parent=39 // pred_region
        %s5129 = smul.u32 64, %s15
        %p5130 = scmp.lt.s32.totalorder %s5129, 127
        %s5131 = scalar_select %p5130, %s5129, 127
        %s5132 = smul.addr %s5131, 8
        %s5133 = scalar_lea.vmem %s3, %s5132
      $region44: #{resblock1_forward.2} parent=39 // pred_fallthru
        _
    $region40: #{resblock1_forward.2} parent=5 // pred_fallthru
      _
  $region6: #{resblock1_forward.2} parent=0 // loop_footer
    %s13 = sadd.s32 1, %s9
  $region7: #{resblock1_forward.2} parent=0 // loop_footer_branch
    %8 = sbr.rel target = $region3
  $region8: #{resblock1_forward.2} parent=0 // loop_exit
    _

// kernel: resblock1_forward.3
$region0: #{resblock1_forward.3}
  #allocation0 [shape = 'u32[]', space=smem, size = 0x4, offset = 0x4, fixed_abs, tag = 'smem constant byte address 0x4 - core index']
  #allocation1 [shape = 'u32[72,128]{1,0:T(1,128)}', space=vmem, size = 0x9000, scoped, tag = 'internal scratch']
  %s0 = inlined_call_operand.vmem [shape: bf16[1024,1408], index: 0, kind: input, shape index: {}]
  %s1 = inlined_call_operand.vmem [shape: bf16[1408,128], index: 1, kind: input, shape index: {}]
  %s2 = inlined_call_operand.vmem [shape: f32[1,128], index: 2, kind: input, shape index: {}]
  %s3 = inlined_call_operand.vmem [shape: f32[1024,128], index: 3, kind: input, shape index: {}]
  %s4 = inlined_call_operand.hbm [shape: f32[1024,128], index: 4, kind: output, shape index: {}]
  %s5 = sld [smem:[#allocation0]]
  $region49: #{resblock1_forward.3} parent=0
    _
  %s7 = ssub.s32 1, %s5
  %s8 = scalar_select 0, %s7, %s5
  $region1: #{resblock1_forward.3} parent=0
    #allocation2 [shape = 'u8[524288]{0}', space=vmem, size = 0x80000, scoped, tag = 'output window, operand 0']
    #allocation3 [shape = 's32[2]{0}', space=sflag, size = 0x8, scoped, tag = 'scoped memory for resblock1_forward.3']
    %9 = vsyncpa [#allocation3], 0
    %s10 = scalar_lea.sflag [#allocation3], 1
    %11 = vsyncpa %s10, 0
    loop: start=0, step=1, limit=4
    $region2: #{resblock1_forward.3} parent=1 // loop_pre_header
      _
    $region3: #{resblock1_forward.3} parent=1 // loop_header
      %s13 = sphi 0, %s17
      %p14 = scmp.ge.s32.totalorder %s13, 4
      %s23 = sphi 0, %s25
      %s26 = sphi 0, %s23
      %s27 = sphi 0, %s26
      %s43 = sphi 0, %s27
      %s47 = sphi 0, %s47
      %s49 = sphi 0, %s47
      %s50 = sphi 0, %s49
      %s64 = sphi 0, %s50
      %s68 = sphi 0, %s68
      %s70 = sphi 0, %s68
      %s71 = sphi 0, %s70
      %s85 = sphi 0, %s71
      %s91 = sphi 0, %s93
      %s94 = sphi 0, %s91
      %s95 = sphi 0, %s94
      %s111 = sphi 0, %s95
      %s117 = sphi 0, %s119
      %s120 = sphi 0, %s117
      %s121 = sphi 0, %s120
      %s137 = sphi 0, %s121
    $region4: #{resblock1_forward.3} parent=1 // loop_header_branch
      %16 = sbr.rel (%p14) target = $region8
    $region5: #{resblock1_forward.3} parent=1 // loop_body
      %s18 = ssub.s32 %s13, 1
      %s19 = ssub.s32 %s13, 2
      %s20 = sadd.s32 %s13, 1
      %s21 = ssub.s32 %s13, %s20
      %p22 = scmp.eq.s32.totalorder %s21, 0
      %s24 = sadd.s32 %s23, 1
      %s25 = scalar_select %p22, %s23, %s24
      %p28 = pneg %p22
      %p29 = scmp.eq.s32.totalorder %s13, 1
      %p30 = por %p28, %p29
      %p31 = scmp.ne.s32.totalorder %s23, %s26
      %p32 = scmp.eq.s32.totalorder %s13, 0
      %p33 = por %p31, %p32
      %p34 = scmp.ne.s32.totalorder %s23, %s26
      %p35 = scmp.eq.s32.totalorder %s18, 1
      %p36 = por %p34, %p35
      %p37 = scmp.ne.s32.totalorder %s26, %s27
      %p38 = scmp.eq.s32.totalorder %s18, 0
      %p39 = por %p37, %p38
      %p40 = scmp.ne.s32.totalorder %s26, %s27
      %p41 = scmp.eq.s32.totalorder %s19, 1
      %p42 = por %p40, %p41
      %p44 = scmp.ne.s32.totalorder %s27, %s43
      %p45 = scmp.eq.s32.totalorder %s19, 0
      %p46 = por %p44, %p45
      %s48 = sadd.s32 %s47, 1
      %p51 = scmp.eq.s32.totalorder %s13, 1
      %p52 = scmp.ne.s32.totalorder %s47, %s49
      %p53 = scmp.eq.s32.totalorder %s13, 0
      %p54 = por %p52, %p53
      %p55 = scmp.ne.s32.totalorder %s47, %s49
      %p56 = scmp.eq.s32.totalorder %s18, 1
      %p57 = por %p55, %p56
      %p58 = scmp.ne.s32.totalorder %s49, %s50
      %p59 = scmp.eq.s32.totalorder %s18, 0
      %p60 = por %p58, %p59
      %p61 = scmp.ne.s32.totalorder %s49, %s50
      %p62 = scmp.eq.s32.totalorder %s19, 1
      %p63 = por %p61, %p62
      %p65 = scmp.ne.s32.totalorder %s50, %s64
      %p66 = scmp.eq.s32.totalorder %s19, 0
      %p67 = por %p65, %p66
      %s69 = sadd.s32 %s68, 1
      %p72 = scmp.eq.s32.totalorder %s13, 1
      %p73 = scmp.ne.s32.totalorder %s68, %s70
      %p74 = scmp.eq.s32.totalorder %s13, 0
      %p75 = por %p73, %p74
      %p76 = scmp.ne.s32.totalorder %s68, %s70
      %p77 = scmp.eq.s32.totalorder %s18, 1
      %p78 = por %p76, %p77
      %p79 = scmp.ne.s32.totalorder %s70, %s71
      %p80 = scmp.eq.s32.totalorder %s18, 0
      %p81 = por %p79, %p80
      %p82 = scmp.ne.s32.totalorder %s70, %s71
      %p83 = scmp.eq.s32.totalorder %s19, 1
      %p84 = por %p82, %p83
      %p86 = scmp.ne.s32.totalorder %s71, %s85
      %p87 = scmp.eq.s32.totalorder %s19, 0
      %p88 = por %p86, %p87
      %s89 = ssub.s32 %s13, %s20
      %p90 = scmp.eq.s32.totalorder %s89, 0
      %s92 = sadd.s32 %s91, 1
      %s93 = scalar_select %p90, %s91, %s92
      %p96 = pneg %p90
      %p97 = scmp.eq.s32.totalorder %s13, 1
      %p98 = por %p96, %p97
      %p99 = scmp.ne.s32.totalorder %s91, %s94
      %p100 = scmp.eq.s32.totalorder %s13, 0
      %p101 = por %p99, %p100
      %p102 = scmp.ne.s32.totalorder %s91, %s94
      %p103 = scmp.eq.s32.totalorder %s18, 1
      %p104 = por %p102, %p103
      %p105 = scmp.ne.s32.totalorder %s94, %s95
      %p106 = scmp.eq.s32.totalorder %s18, 0
      %p107 = por %p105, %p106
      %p108 = scmp.ne.s32.totalorder %s94, %s95
      %p109 = scmp.eq.s32.totalorder %s19, 1
      %p110 = por %p108, %p109
      %p112 = scmp.ne.s32.totalorder %s95, %s111
      %p113 = scmp.eq.s32.totalorder %s19, 0
      %p114 = por %p112, %p113
      %s115 = ssub.s32 %s13, %s20
      %p116 = scmp.eq.s32.totalorder %s115, 0
      %s118 = sadd.s32 %s117, 1
      %s119 = scalar_select %p116, %s117, %s118
      %p122 = pneg %p116
      %p123 = scmp.eq.s32.totalorder %s13, 1
      %p124 = por %p122, %p123
      %p125 = scmp.ne.s32.totalorder %s117, %s120
      %p126 = scmp.eq.s32.totalorder %s13, 0
      %p127 = por %p125, %p126
      %p128 = scmp.ne.s32.totalorder %s117, %s120
      %p129 = scmp.eq.s32.totalorder %s18, 1
      %p130 = por %p128, %p129
      %p131 = scmp.ne.s32.totalorder %s120, %s121
      %p132 = scmp.eq.s32.totalorder %s18, 0
      %p133 = por %p131, %p132
      %p134 = scmp.ne.s32.totalorder %s120, %s121
      %p135 = scmp.eq.s32.totalorder %s19, 1
      %p136 = por %p134, %p135
      %p138 = scmp.ne.s32.totalorder %s121, %s137
      %p139 = scmp.eq.s32.totalorder %s19, 0
      %p140 = por %p138, %p139
      %p141 = scmp.le.s32.totalorder 1, %s13
      %p142 = scmp.lt.s32.totalorder %s13, 3
      %p143 = pnand %p141, %p142
      %p144 = pneg %p143
      // Predicated region
      $region9: #{resblock1_forward.3} parent=5 // pred_check
        _
      $region10: #{resblock1_forward.3} parent=5 // pred_check_branch
        %146 = sbr.rel (%p143) target = $region12
      $region11: #{resblock1_forward.3} parent=5 // pred_region
        %s147 = ssub.s32 %s13, 1
        // Predicated region
        $region13: #{resblock1_forward.3} parent=11 // pred_check
          %p148 = pneg %p60
        $region14: #{resblock1_forward.3} parent=11 // pred_check_branch
          %150 = sbr.rel (%p148) target = $region16
        $region15: #{resblock1_forward.3} parent=11 // pred_region
          _
        $region16: #{resblock1_forward.3} parent=11 // pred_fallthru
          _
        // Predicated region
        $region17: #{resblock1_forward.3} parent=11 // pred_check
          %p151 = pneg %p81
        $region18: #{resblock1_forward.3} parent=11 // pred_check_branch
          %153 = sbr.rel (%p151) target = $region20
        $region19: #{resblock1_forward.3} parent=11 // pred_region
          _
        $region20: #{resblock1_forward.3} parent=11 // pred_fallthru
          _
      $region12: #{resblock1_forward.3} parent=5 // pred_fallthru
        _
      %p154 = scmp.lt.s32.totalorder %s13, 2
      // Predicated region
      $region21: #{resblock1_forward.3} parent=5 // pred_check
        %p155 = pneg %p154
      $region22: #{resblock1_forward.3} parent=5 // pred_check_branch
        %157 = sbr.rel (%p155) target = $region24
      $region23: #{resblock1_forward.3} parent=5 // pred_region
        // Predicated region
        $region25: #{resblock1_forward.3} parent=23 // pred_check
          %p158 = pneg %p33
        $region26: #{resblock1_forward.3} parent=23 // pred_check_branch
          %160 = sbr.rel (%p158) target = $region28
        $region27: #{resblock1_forward.3} parent=23 // pred_region
          %s161 = smul.u32 64, %s13
          %p162 = scmp.lt.s32.totalorder %s161, 127
          %s163 = scalar_select %p162, %s161, 127
          %s164 = smul.addr %s163, 11
          %s165 = smul.addr %s164, 4
          %s166 = scalar_lea.vmem %s0, %s165
          %s167 = smul.u32 64, %s13
        $region28: #{resblock1_forward.3} parent=23 // pred_fallthru
          _
        // Predicated region
        $region29: #{resblock1_forward.3} parent=23 // pred_check
          %p168 = pneg %p101
        $region30: #{resblock1_forward.3} parent=23 // pred_check_branch
          %170 = sbr.rel (%p168) target = $region32
        $region31: #{resblock1_forward.3} parent=23 // pred_region
          %s171 = smul.u32 64, %s13
          %p172 = scmp.lt.s32.totalorder %s171, 127
          %s173 = scalar_select %p172, %s171, 127
          %s174 = smul.addr %s173, 8
          %s175 = scalar_lea.vmem %s3, %s174
          %s176 = smul.u32 64, %s13
        $region32: #{resblock1_forward.3} parent=23 // pred_fallthru
          _
      $region24: #{resblock1_forward.3} parent=5 // pred_fallthru
        _
      %p177 = scmp.le.s32.totalorder 1, %s13
      %p178 = scmp.lt.s32.totalorder %s13, 3
      %p179 = pnand %p177, %p178
      %p180 = pneg %p179
      // Predicated region
      $region33: #{resblock1_forward.3} parent=5 // pred_check
        _
      $region34: #{resblock1_forward.3} parent=5 // pred_check_branch
        %182 = sbr.rel (%p179) target = $region36
      $region35: #{resblock1_forward.3} parent=5 // pred_region
        %s183 = ssub.s32 %s13, 1
        %s184 = smul.u32 64, %s18
        %p185 = scmp.lt.s32.totalorder %s184, 127
        %s186 = scalar_select %p185, %s184, 127
        %s187 = smul.addr %s186, 11
        %s188 = smul.addr %s187, 4
        %s189 = scalar_lea.vmem %s0, %s188
        %p190 = pneg %p39
        %p191 = pneg %p36
        %p192 = pneg %p60
        %p193 = pneg %p57
        %p194 = pneg %p81
        %p195 = pneg %p78
        %s196 = smul.u32 64, %s18
        %p197 = scmp.lt.s32.totalorder %s196, 127
        %s198 = scalar_select %p197, %s196, 127
        %s199 = smul.addr %s198, 8
        %s200 = scalar_lea.vmem %s3, %s199
        %p201 = pneg %p107
        %p202 = pneg %p104
        %p203 = pneg %p133
        %p204 = pneg %p130
        %s205 = sand.u32 %s120, 1
        %s206 = scalar_lea.sflag [#allocation3], %s205
        %s207 = sand.u32 %s120, 1
        %s208 = smul.addr %s207, 512
        %s209 = scalar_lea.vmem [#allocation2], %s208
        %s210 = smul.u32 64, %s18
        %p211 = scmp.lt.s32.totalorder %s210, 127
        %s212 = scalar_select %p211, %s210, 127
        %s213 = smul.addr %s212, 11
        %s214 = smul.addr %s213, 4
        %s215 = scalar_lea.vmem %s0, %s214
        %s216 = smul.u32 64, %s18
        %s217 = smul.u32 64, %s18
        %p218 = scmp.lt.s32.totalorder %s217, 127
        %s219 = scalar_select %p218, %s217, 127
        %s220 = smul.addr %s219, 8
        %s221 = scalar_lea.vmem %s3, %s220
        %s222 = smul.u32 64, %s18
        %s223 = smul.u32 64, %s18
        %v224 = vld [vmem:[%s215] sm:$0xff]
        %v225 = vld [vmem:[%s215 + $0x8] sm:$0xff]
        %v226 = vld [vmem:[%s215 + $0x10] sm:$0xff]
        %v227 = vld [vmem:[%s215 + $0x18] sm:$0xff]
        %v228 = vld [vmem:[%s215 + $0x20] sm:$0xff]
        %v229 = vld [vmem:[%s215 + $0x28] sm:$0xf]
        %v230 = vld [vmem:[%s215 + $0x2c] sm:$0xff]
        %v231 = vld [vmem:[%s215 + $0x34] sm:$0xff]
        %v232 = vld [vmem:[%s215 + $0x3c] sm:$0xff]
        %v233 = vld [vmem:[%s215 + $0x44] sm:$0xff]
        %v234 = vld [vmem:[%s215 + $0x4c] sm:$0xff]
        %v235 = vld [vmem:[%s215 + $0x54] sm:$0xf]
        %v236 = vld [vmem:[%s215 + $0x58] sm:$0xff]
        %v237 = vld [vmem:[%s215 + $0x60] sm:$0xff]
        %v238 = vld [vmem:[%s215 + $0x68] sm:$0xff]
        %v239 = vld [vmem:[%s215 + $0x70] sm:$0xff]
        %v240 = vld [vmem:[%s215 + $0x78] sm:$0xff]
        %v241 = vld [vmem:[%s215 + $0x80] sm:$0xf]
        %v242 = vld [vmem:[%s215 + $0x84] sm:$0xff]
        %v243 = vld [vmem:[%s215 + $0x8c] sm:$0xff]
        %v244 = vld [vmem:[%s215 + $0x94] sm:$0xff]
        %v245 = vld [vmem:[%s215 + $0x9c] sm:$0xff]
        %v246 = vld [vmem:[%s215 + $0xa4] sm:$0xff]
        %v247 = vld [vmem:[%s215 + $0xac] sm:$0xf]
        %v248 = vld [vmem:[%s215 + $0xb0] sm:$0xff]
        %v249 = vld [vmem:[%s215 + $0xb8] sm:$0xff]
        %v250 = vld [vmem:[%s215 + $0xc0] sm:$0xff]
        %v251 = vld [vmem:[%s215 + $0xc8] sm:$0xff]
        %v252 = vld [vmem:[%s215 + $0xd0] sm:$0xff]
        %v253 = vld [vmem:[%s215 + $0xd8] sm:$0xf]
        %v254 = vld [vmem:[%s215 + $0xdc] sm:$0xff]
        %v255 = vld [vmem:[%s215 + $0xe4] sm:$0xff]
        %v256 = vld [vmem:[%s215 + $0xec] sm:$0xff]
        %v257 = vld [vmem:[%s215 + $0xf4] sm:$0xff]
        %v258 = vld [vmem:[%s215 + $0xfc] sm:$0xff]
        %v259 = vld [vmem:[%s215 + $0x104] sm:$0xf]
        %v260 = vld [vmem:[%s215 + $0x108] sm:$0xff]
        %v261 = vld [vmem:[%s215 + $0x110] sm:$0xff]
        %v262 = vld [vmem:[%s215 + $0x118] sm:$0xff]
        %v263 = vld [vmem:[%s215 + $0x120] sm:$0xff]
        %v264 = vld [vmem:[%s215 + $0x128] sm:$0xff]
        %v265 = vld [vmem:[%s215 + $0x130] sm:$0xf]
        %v266 = vld [vmem:[%s215 + $0x134] sm:$0xff]
        %v267 = vld [vmem:[%s215 + $0x13c] sm:$0xff]
        %v268 = vld [vmem:[%s215 + $0x144] sm:$0xff]
        %v269 = vld [vmem:[%s215 + $0x14c] sm:$0xff]
        %v270 = vld [vmem:[%s215 + $0x154] sm:$0xff]
        %v271 = vld [vmem:[%s215 + $0x15c] sm:$0xf]
        %v272 = vld [vmem:[%s215 + $0x160] sm:$0xff]
        %v273 = vld [vmem:[%s215 + $0x168] sm:$0xff]
        %v274 = vld [vmem:[%s215 + $0x170] sm:$0xff]
        %v275 = vld [vmem:[%s215 + $0x178] sm:$0xff]
        %v276 = vld [vmem:[%s215 + $0x180] sm:$0xff]
        %v277 = vld [vmem:[%s215 + $0x188] sm:$0xf]
        %v278 = vld [vmem:[%s215 + $0x18c] sm:$0xff]
        %v279 = vld [vmem:[%s215 + $0x194] sm:$0xff]
        %v280 = vld [vmem:[%s215 + $0x19c] sm:$0xff]
        %v281 = vld [vmem:[%s215 + $0x1a4] sm:$0xff]
        %v282 = vld [vmem:[%s215 + $0x1ac] sm:$0xff]
        %v283 = vld [vmem:[%s215 + $0x1b4] sm:$0xf]
        %v284 = vld [vmem:[%s215 + $0x1b8] sm:$0xff]
        %v285 = vld [vmem:[%s215 + $0x1c0] sm:$0xff]
        %v286 = vld [vmem:[%s215 + $0x1c8] sm:$0xff]
        %v287 = vld [vmem:[%s215 + $0x1d0] sm:$0xff]
        %v288 = vld [vmem:[%s215 + $0x1d8] sm:$0xff]
        %v289 = vld [vmem:[%s215 + $0x1e0] sm:$0xf]
        %v290 = vld [vmem:[%s215 + $0x1e4] sm:$0xff]
        %v291 = vld [vmem:[%s215 + $0x1ec] sm:$0xff]
        %v292 = vld [vmem:[%s215 + $0x1f4] sm:$0xff]
        %v293 = vld [vmem:[%s215 + $0x1fc] sm:$0xff]
        %v294 = vld [vmem:[%s215 + $0x204] sm:$0xff]
        %v295 = vld [vmem:[%s215 + $0x20c] sm:$0xf]
        %v296 = vld [vmem:[%s215 + $0x210] sm:$0xff]
        %v297 = vld [vmem:[%s215 + $0x218] sm:$0xff]
        %v298 = vld [vmem:[%s215 + $0x220] sm:$0xff]
        %v299 = vld [vmem:[%s215 + $0x228] sm:$0xff]
        %v300 = vld [vmem:[%s215 + $0x230] sm:$0xff]
        %v301 = vld [vmem:[%s215 + $0x238] sm:$0xf]
        %v302 = vld [vmem:[%s215 + $0x23c] sm:$0xff]
        %v303 = vld [vmem:[%s215 + $0x244] sm:$0xff]
        %v304 = vld [vmem:[%s215 + $0x24c] sm:$0xff]
        %v305 = vld [vmem:[%s215 + $0x254] sm:$0xff]
        %v306 = vld [vmem:[%s215 + $0x25c] sm:$0xff]
        %v307 = vld [vmem:[%s215 + $0x264] sm:$0xf]
        %v308 = vld [vmem:[%s215 + $0x268] sm:$0xff]
        %v309 = vld [vmem:[%s215 + $0x270] sm:$0xff]
        %v310 = vld [vmem:[%s215 + $0x278] sm:$0xff]
        %v311 = vld [vmem:[%s215 + $0x280] sm:$0xff]
        %v312 = vld [vmem:[%s215 + $0x288] sm:$0xff]
        %v313 = vld [vmem:[%s215 + $0x290] sm:$0xf]
        %v314 = vld [vmem:[%s215 + $0x294] sm:$0xff]
        %v315 = vld [vmem:[%s215 + $0x29c] sm:$0xff]
        %v316 = vld [vmem:[%s215 + $0x2a4] sm:$0xff]
        %v317 = vld [vmem:[%s215 + $0x2ac] sm:$0xff]
        %v318 = vld [vmem:[%s215 + $0x2b4] sm:$0xff]
        %v319 = vld [vmem:[%s215 + $0x2bc] sm:$0xf]
        %v320 = vld [vmem:[%s215 + $0x2c0] sm:$0xff]
        %v321 = vld [vmem:[%s215 + $0x2c8] sm:$0xff]
        %v322 = vld [vmem:[%s215 + $0x2d0] sm:$0xff]
        %v323 = vld [vmem:[%s215 + $0x2d8] sm:$0xff]
        %v324 = vld [vmem:[%s215 + $0x2e0] sm:$0xff]
        %v325 = vld [vmem:[%s215 + $0x2e8] sm:$0xf]
        %v326 = vld [vmem:[%s215 + $0x2ec] sm:$0xff]
        %v327 = vld [vmem:[%s215 + $0x2f4] sm:$0xff]
        %v328 = vld [vmem:[%s215 + $0x2fc] sm:$0xff]
        %v329 = vld [vmem:[%s215 + $0x304] sm:$0xff]
        %v330 = vld [vmem:[%s215 + $0x30c] sm:$0xff]
        %v331 = vld [vmem:[%s215 + $0x314] sm:$0xf]
        %v332 = vld [vmem:[%s215 + $0x318] sm:$0xff]
        %v333 = vld [vmem:[%s215 + $0x320] sm:$0xff]
        %v334 = vld [vmem:[%s215 + $0x328] sm:$0xff]
        %v335 = vld [vmem:[%s215 + $0x330] sm:$0xff]
        %v336 = vld [vmem:[%s215 + $0x338] sm:$0xff]
        %v337 = vld [vmem:[%s215 + $0x340] sm:$0xf]
        %v338 = vld [vmem:[%s215 + $0x344] sm:$0xff]
        %v339 = vld [vmem:[%s215 + $0x34c] sm:$0xff]
        %v340 = vld [vmem:[%s215 + $0x354] sm:$0xff]
        %v341 = vld [vmem:[%s215 + $0x35c] sm:$0xff]
        %v342 = vld [vmem:[%s215 + $0x364] sm:$0xff]
        %v343 = vld [vmem:[%s215 + $0x36c] sm:$0xf]
        %v344 = vld [vmem:[%s215 + $0x370] sm:$0xff]
        %v345 = vld [vmem:[%s215 + $0x378] sm:$0xff]
        %v346 = vld [vmem:[%s215 + $0x380] sm:$0xff]
        %v347 = vld [vmem:[%s215 + $0x388] sm:$0xff]
        %v348 = vld [vmem:[%s215 + $0x390] sm:$0xff]
        %v349 = vld [vmem:[%s215 + $0x398] sm:$0xf]
        %v350 = vld [vmem:[%s215 + $0x39c] sm:$0xff]
        %v351 = vld [vmem:[%s215 + $0x3a4] sm:$0xff]
        %v352 = vld [vmem:[%s215 + $0x3ac] sm:$0xff]
        %v353 = vld [vmem:[%s215 + $0x3b4] sm:$0xff]
        %v354 = vld [vmem:[%s215 + $0x3bc] sm:$0xff]
        %v355 = vld [vmem:[%s215 + $0x3c4] sm:$0xf]
        %v356 = vld [vmem:[%s215 + $0x3c8] sm:$0xff]
        %v357 = vld [vmem:[%s215 + $0x3d0] sm:$0xff]
        %v358 = vld [vmem:[%s215 + $0x3d8] sm:$0xff]
        %v359 = vld [vmem:[%s215 + $0x3e0] sm:$0xff]
        %v360 = vld [vmem:[%s215 + $0x3e8] sm:$0xff]
        %v361 = vld [vmem:[%s215 + $0x3f0] sm:$0xf]
        %v362 = vld [vmem:[%s215 + $0x3f4] sm:$0xff]
        %v363 = vld [vmem:[%s215 + $0x3fc] sm:$0xff]
        %v364 = vld [vmem:[%s215 + $0x404] sm:$0xff]
        %v365 = vld [vmem:[%s215 + $0x40c] sm:$0xff]
        %v366 = vld [vmem:[%s215 + $0x414] sm:$0xff]
        %v367 = vld [vmem:[%s215 + $0x41c] sm:$0xf]
        %v368 = vld [vmem:[%s215 + $0x420] sm:$0xff]
        %v369 = vld [vmem:[%s215 + $0x428] sm:$0xff]
        %v370 = vld [vmem:[%s215 + $0x430] sm:$0xff]
        %v371 = vld [vmem:[%s215 + $0x438] sm:$0xff]
        %v372 = vld [vmem:[%s215 + $0x440] sm:$0xff]
        %v373 = vld [vmem:[%s215 + $0x448] sm:$0xf]
        %v374 = vld [vmem:[%s215 + $0x44c] sm:$0xff]
        %v375 = vld [vmem:[%s215 + $0x454] sm:$0xff]
        %v376 = vld [vmem:[%s215 + $0x45c] sm:$0xff]
        %v377 = vld [vmem:[%s215 + $0x464] sm:$0xff]
        %v378 = vld [vmem:[%s215 + $0x46c] sm:$0xff]
        %v379 = vld [vmem:[%s215 + $0x474] sm:$0xf]
        %v380 = vld [vmem:[%s215 + $0x478] sm:$0xff]
        %v381 = vld [vmem:[%s215 + $0x480] sm:$0xff]
        %v382 = vld [vmem:[%s215 + $0x488] sm:$0xff]
        %v383 = vld [vmem:[%s215 + $0x490] sm:$0xff]
        %v384 = vld [vmem:[%s215 + $0x498] sm:$0xff]
        %v385 = vld [vmem:[%s215 + $0x4a0] sm:$0xf]
        %v386 = vld [vmem:[%s215 + $0x4a4] sm:$0xff]
        %v387 = vld [vmem:[%s215 + $0x4ac] sm:$0xff]
        %v388 = vld [vmem:[%s215 + $0x4b4] sm:$0xff]
        %v389 = vld [vmem:[%s215 + $0x4bc] sm:$0xff]
        %v390 = vld [vmem:[%s215 + $0x4c4] sm:$0xff]
        %v391 = vld [vmem:[%s215 + $0x4cc] sm:$0xf]
        %v392 = vld [vmem:[%s215 + $0x4d0] sm:$0xff]
        %v393 = vld [vmem:[%s215 + $0x4d8] sm:$0xff]
        %v394 = vld [vmem:[%s215 + $0x4e0] sm:$0xff]
        %v395 = vld [vmem:[%s215 + $0x4e8] sm:$0xff]
        %v396 = vld [vmem:[%s215 + $0x4f0] sm:$0xff]
        %v397 = vld [vmem:[%s215 + $0x4f8] sm:$0xf]
        %v398 = vld [vmem:[%s215 + $0x4fc] sm:$0xff]
        %v399 = vld [vmem:[%s215 + $0x504] sm:$0xff]
        %v400 = vld [vmem:[%s215 + $0x50c] sm:$0xff]
        %v401 = vld [vmem:[%s215 + $0x514] sm:$0xff]
        %v402 = vld [vmem:[%s215 + $0x51c] sm:$0xff]
        %v403 = vld [vmem:[%s215 + $0x524] sm:$0xf]
        %v404 = vld [vmem:[%s215 + $0x528] sm:$0xff]
        %v405 = vld [vmem:[%s215 + $0x530] sm:$0xff]
        %v406 = vld [vmem:[%s215 + $0x538] sm:$0xff]
        %v407 = vld [vmem:[%s215 + $0x540] sm:$0xff]
        %v408 = vld [vmem:[%s215 + $0x548] sm:$0xff]
        %v409 = vld [vmem:[%s215 + $0x550] sm:$0xf]
        %v410 = vld [vmem:[%s215 + $0x554] sm:$0xff]
        %v411 = vld [vmem:[%s215 + $0x55c] sm:$0xff]
        %v412 = vld [vmem:[%s215 + $0x564] sm:$0xff]
        %v413 = vld [vmem:[%s215 + $0x56c] sm:$0xff]
        %v414 = vld [vmem:[%s215 + $0x574] sm:$0xff]
        %v415 = vld [vmem:[%s215 + $0x57c] sm:$0xf]
        %v416 = vld [vmem:[%s215 + $0x580] sm:$0xff]
        %v417 = vld [vmem:[%s215 + $0x588] sm:$0xff]
        %v418 = vld [vmem:[%s215 + $0x590] sm:$0xff]
        %v419 = vld [vmem:[%s215 + $0x598] sm:$0xff]
        %v420 = vld [vmem:[%s215 + $0x5a0] sm:$0xff]
        %v421 = vld [vmem:[%s215 + $0x5a8] sm:$0xf]
        %v422 = vld [vmem:[%s215 + $0x5ac] sm:$0xff]
        %v423 = vld [vmem:[%s215 + $0x5b4] sm:$0xff]
        %v424 = vld [vmem:[%s215 + $0x5bc] sm:$0xff]
        %v425 = vld [vmem:[%s215 + $0x5c4] sm:$0xff]
        %v426 = vld [vmem:[%s215 + $0x5cc] sm:$0xff]
        %v427 = vld [vmem:[%s215 + $0x5d4] sm:$0xf]
        %v428 = vld [vmem:[%s215 + $0x5d8] sm:$0xff]
        %v429 = vld [vmem:[%s215 + $0x5e0] sm:$0xff]
        %v430 = vld [vmem:[%s215 + $0x5e8] sm:$0xff]
        %v431 = vld [vmem:[%s215 + $0x5f0] sm:$0xff]
        %v432 = vld [vmem:[%s215 + $0x5f8] sm:$0xff]
        %v433 = vld [vmem:[%s215 + $0x600] sm:$0xf]
        %v434 = vld [vmem:[%s215 + $0x604] sm:$0xff]
        %v435 = vld [vmem:[%s215 + $0x60c] sm:$0xff]
        %v436 = vld [vmem:[%s215 + $0x614] sm:$0xff]
        %v437 = vld [vmem:[%s215 + $0x61c] sm:$0xff]
        %v438 = vld [vmem:[%s215 + $0x624] sm:$0xff]
        %v439 = vld [vmem:[%s215 + $0x62c] sm:$0xf]
        %v440 = vld [vmem:[%s215 + $0x630] sm:$0xff]
        %v441 = vld [vmem:[%s215 + $0x638] sm:$0xff]
        %v442 = vld [vmem:[%s215 + $0x640] sm:$0xff]
        %v443 = vld [vmem:[%s215 + $0x648] sm:$0xff]
        %v444 = vld [vmem:[%s215 + $0x650] sm:$0xff]
        %v445 = vld [vmem:[%s215 + $0x658] sm:$0xf]
        %v446 = vld [vmem:[%s215 + $0x65c] sm:$0xff]
        %v447 = vld [vmem:[%s215 + $0x664] sm:$0xff]
        %v448 = vld [vmem:[%s215 + $0x66c] sm:$0xff]
        %v449 = vld [vmem:[%s215 + $0x674] sm:$0xff]
        %v450 = vld [vmem:[%s215 + $0x67c] sm:$0xff]
        %v451 = vld [vmem:[%s215 + $0x684] sm:$0xf]
        %v452 = vld [vmem:[%s215 + $0x688] sm:$0xff]
        %v453 = vld [vmem:[%s215 + $0x690] sm:$0xff]
        %v454 = vld [vmem:[%s215 + $0x698] sm:$0xff]
        %v455 = vld [vmem:[%s215 + $0x6a0] sm:$0xff]
        %v456 = vld [vmem:[%s215 + $0x6a8] sm:$0xff]
        %v457 = vld [vmem:[%s215 + $0x6b0] sm:$0xf]
        %v458 = vld [vmem:[%s215 + $0x6b4] sm:$0xff]
        %v459 = vld [vmem:[%s215 + $0x6bc] sm:$0xff]
        %v460 = vld [vmem:[%s215 + $0x6c4] sm:$0xff]
        %v461 = vld [vmem:[%s215 + $0x6cc] sm:$0xff]
        %v462 = vld [vmem:[%s215 + $0x6d4] sm:$0xff]
        %v463 = vld [vmem:[%s215 + $0x6dc] sm:$0xf]
        %v464 = vld [vmem:[%s215 + $0x6e0] sm:$0xff]
        %v465 = vld [vmem:[%s215 + $0x6e8] sm:$0xff]
        %v466 = vld [vmem:[%s215 + $0x6f0] sm:$0xff]
        %v467 = vld [vmem:[%s215 + $0x6f8] sm:$0xff]
        %v468 = vld [vmem:[%s215 + $0x700] sm:$0xff]
        %v469 = vld [vmem:[%s215 + $0x708] sm:$0xf]
        %v470 = vld [vmem:[%s215 + $0x70c] sm:$0xff]
        %v471 = vld [vmem:[%s215 + $0x714] sm:$0xff]
        %v472 = vld [vmem:[%s215 + $0x71c] sm:$0xff]
        %v473 = vld [vmem:[%s215 + $0x724] sm:$0xff]
        %v474 = vld [vmem:[%s215 + $0x72c] sm:$0xff]
        %v475 = vld [vmem:[%s215 + $0x734] sm:$0xf]
        %v476 = vld [vmem:[%s215 + $0x738] sm:$0xff]
        %v477 = vld [vmem:[%s215 + $0x740] sm:$0xff]
        %v478 = vld [vmem:[%s215 + $0x748] sm:$0xff]
        %v479 = vld [vmem:[%s215 + $0x750] sm:$0xff]
        %v480 = vld [vmem:[%s215 + $0x758] sm:$0xff]
        %v481 = vld [vmem:[%s215 + $0x760] sm:$0xf]
        %v482 = vld [vmem:[%s215 + $0x764] sm:$0xff]
        %v483 = vld [vmem:[%s215 + $0x76c] sm:$0xff]
        %v484 = vld [vmem:[%s215 + $0x774] sm:$0xff]
        %v485 = vld [vmem:[%s215 + $0x77c] sm:$0xff]
        %v486 = vld [vmem:[%s215 + $0x784] sm:$0xff]
        %v487 = vld [vmem:[%s215 + $0x78c] sm:$0xf]
        %v488 = vld [vmem:[%s215 + $0x790] sm:$0xff]
        %v489 = vld [vmem:[%s215 + $0x798] sm:$0xff]
        %v490 = vld [vmem:[%s215 + $0x7a0] sm:$0xff]
        %v491 = vld [vmem:[%s215 + $0x7a8] sm:$0xff]
        %v492 = vld [vmem:[%s215 + $0x7b0] sm:$0xff]
        %v493 = vld [vmem:[%s215 + $0x7b8] sm:$0xf]
        %v494 = vld [vmem:[%s215 + $0x7bc] sm:$0xff]
        %v495 = vld [vmem:[%s215 + $0x7c4] sm:$0xff]
        %v496 = vld [vmem:[%s215 + $0x7cc] sm:$0xff]
        %v497 = vld [vmem:[%s215 + $0x7d4] sm:$0xff]
        %v498 = vld [vmem:[%s215 + $0x7dc] sm:$0xff]
        %v499 = vld [vmem:[%s215 + $0x7e4] sm:$0xf]
        %v500 = vld [vmem:[%s215 + $0x7e8] sm:$0xff]
        %v501 = vld [vmem:[%s215 + $0x7f0] sm:$0xff]
        %v502 = vld [vmem:[%s215 + $0x7f8] sm:$0xff]
        %v503 = vld [vmem:[%s215 + $0x800] sm:$0xff]
        %v504 = vld [vmem:[%s215 + $0x808] sm:$0xff]
        %v505 = vld [vmem:[%s215 + $0x810] sm:$0xf]
        %v506 = vld [vmem:[%s215 + $0x814] sm:$0xff]
        %v507 = vld [vmem:[%s215 + $0x81c] sm:$0xff]
        %v508 = vld [vmem:[%s215 + $0x824] sm:$0xff]
        %v509 = vld [vmem:[%s215 + $0x82c] sm:$0xff]
        %v510 = vld [vmem:[%s215 + $0x834] sm:$0xff]
        %v511 = vld [vmem:[%s215 + $0x83c] sm:$0xf]
        %v512 = vld [vmem:[%s215 + $0x840] sm:$0xff]
        %v513 = vld [vmem:[%s215 + $0x848] sm:$0xff]
        %v514 = vld [vmem:[%s215 + $0x850] sm:$0xff]
        %v515 = vld [vmem:[%s215 + $0x858] sm:$0xff]
        %v516 = vld [vmem:[%s215 + $0x860] sm:$0xff]
        %v517 = vld [vmem:[%s215 + $0x868] sm:$0xf]
        %v518 = vld [vmem:[%s215 + $0x86c] sm:$0xff]
        %v519 = vld [vmem:[%s215 + $0x874] sm:$0xff]
        %v520 = vld [vmem:[%s215 + $0x87c] sm:$0xff]
        %v521 = vld [vmem:[%s215 + $0x884] sm:$0xff]
        %v522 = vld [vmem:[%s215 + $0x88c] sm:$0xff]
        %v523 = vld [vmem:[%s215 + $0x894] sm:$0xf]
        %v524 = vld [vmem:[%s215 + $0x898] sm:$0xff]
        %v525 = vld [vmem:[%s215 + $0x8a0] sm:$0xff]
        %v526 = vld [vmem:[%s215 + $0x8a8] sm:$0xff]
        %v527 = vld [vmem:[%s215 + $0x8b0] sm:$0xff]
        %v528 = vld [vmem:[%s215 + $0x8b8] sm:$0xff]
        %v529 = vld [vmem:[%s215 + $0x8c0] sm:$0xf]
        %v530 = vld [vmem:[%s215 + $0x8c4] sm:$0xff]
        %v531 = vld [vmem:[%s215 + $0x8cc] sm:$0xff]
        %v532 = vld [vmem:[%s215 + $0x8d4] sm:$0xff]
        %v533 = vld [vmem:[%s215 + $0x8dc] sm:$0xff]
        %v534 = vld [vmem:[%s215 + $0x8e4] sm:$0xff]
        %v535 = vld [vmem:[%s215 + $0x8ec] sm:$0xf]
        %v536 = vld [vmem:[%s215 + $0x8f0] sm:$0xff]
        %v537 = vld [vmem:[%s215 + $0x8f8] sm:$0xff]
        %v538 = vld [vmem:[%s215 + $0x900] sm:$0xff]
        %v539 = vld [vmem:[%s215 + $0x908] sm:$0xff]
        %v540 = vld [vmem:[%s215 + $0x910] sm:$0xff]
        %v541 = vld [vmem:[%s215 + $0x918] sm:$0xf]
        %v542 = vld [vmem:[%s215 + $0x91c] sm:$0xff]
        %v543 = vld [vmem:[%s215 + $0x924] sm:$0xff]
        %v544 = vld [vmem:[%s215 + $0x92c] sm:$0xff]
        %v545 = vld [vmem:[%s215 + $0x934] sm:$0xff]
        %v546 = vld [vmem:[%s215 + $0x93c] sm:$0xff]
        %v547 = vld [vmem:[%s215 + $0x944] sm:$0xf]
        %v548 = vld [vmem:[%s215 + $0x948] sm:$0xff]
        %v549 = vld [vmem:[%s215 + $0x950] sm:$0xff]
        %v550 = vld [vmem:[%s215 + $0x958] sm:$0xff]
        %v551 = vld [vmem:[%s215 + $0x960] sm:$0xff]
        %v552 = vld [vmem:[%s215 + $0x968] sm:$0xff]
        %v553 = vld [vmem:[%s215 + $0x970] sm:$0xf]
        %v554 = vld [vmem:[%s215 + $0x974] sm:$0xff]
        %v555 = vld [vmem:[%s215 + $0x97c] sm:$0xff]
        %v556 = vld [vmem:[%s215 + $0x984] sm:$0xff]
        %v557 = vld [vmem:[%s215 + $0x98c] sm:$0xff]
        %v558 = vld [vmem:[%s215 + $0x994] sm:$0xff]
        %v559 = vld [vmem:[%s215 + $0x99c] sm:$0xf]
        %v560 = vld [vmem:[%s215 + $0x9a0] sm:$0xff]
        %v561 = vld [vmem:[%s215 + $0x9a8] sm:$0xff]
        %v562 = vld [vmem:[%s215 + $0x9b0] sm:$0xff]
        %v563 = vld [vmem:[%s215 + $0x9b8] sm:$0xff]
        %v564 = vld [vmem:[%s215 + $0x9c0] sm:$0xff]
        %v565 = vld [vmem:[%s215 + $0x9c8] sm:$0xf]
        %v566 = vld [vmem:[%s215 + $0x9cc] sm:$0xff]
        %v567 = vld [vmem:[%s215 + $0x9d4] sm:$0xff]
        %v568 = vld [vmem:[%s215 + $0x9dc] sm:$0xff]
        %v569 = vld [vmem:[%s215 + $0x9e4] sm:$0xff]
        %v570 = vld [vmem:[%s215 + $0x9ec] sm:$0xff]
        %v571 = vld [vmem:[%s215 + $0x9f4] sm:$0xf]
        %v572 = vld [vmem:[%s215 + $0x9f8] sm:$0xff]
        %v573 = vld [vmem:[%s215 + $0xa00] sm:$0xff]
        %v574 = vld [vmem:[%s215 + $0xa08] sm:$0xff]
        %v575 = vld [vmem:[%s215 + $0xa10] sm:$0xff]
        %v576 = vld [vmem:[%s215 + $0xa18] sm:$0xff]
        %v577 = vld [vmem:[%s215 + $0xa20] sm:$0xf]
        %v578 = vld [vmem:[%s215 + $0xa24] sm:$0xff]
        %v579 = vld [vmem:[%s215 + $0xa2c] sm:$0xff]
        %v580 = vld [vmem:[%s215 + $0xa34] sm:$0xff]
        %v581 = vld [vmem:[%s215 + $0xa3c] sm:$0xff]
        %v582 = vld [vmem:[%s215 + $0xa44] sm:$0xff]
        %v583 = vld [vmem:[%s215 + $0xa4c] sm:$0xf]
        %v584 = vld [vmem:[%s215 + $0xa50] sm:$0xff]
        %v585 = vld [vmem:[%s215 + $0xa58] sm:$0xff]
        %v586 = vld [vmem:[%s215 + $0xa60] sm:$0xff]
        %v587 = vld [vmem:[%s215 + $0xa68] sm:$0xff]
        %v588 = vld [vmem:[%s215 + $0xa70] sm:$0xff]
        %v589 = vld [vmem:[%s215 + $0xa78] sm:$0xf]
        %v590 = vld [vmem:[%s215 + $0xa7c] sm:$0xff]
        %v591 = vld [vmem:[%s215 + $0xa84] sm:$0xff]
        %v592 = vld [vmem:[%s215 + $0xa8c] sm:$0xff]
        %v593 = vld [vmem:[%s215 + $0xa94] sm:$0xff]
        %v594 = vld [vmem:[%s215 + $0xa9c] sm:$0xff]
        %v595 = vld [vmem:[%s215 + $0xaa4] sm:$0xf]
        %v596 = vld [vmem:[%s215 + $0xaa8] sm:$0xff]
        %v597 = vld [vmem:[%s215 + $0xab0] sm:$0xff]
        %v598 = vld [vmem:[%s215 + $0xab8] sm:$0xff]
        %v599 = vld [vmem:[%s215 + $0xac0] sm:$0xff]
        %v600 = vld [vmem:[%s215 + $0xac8] sm:$0xff]
        %v601 = vld [vmem:[%s215 + $0xad0] sm:$0xf]
        %v602 = vld [vmem:[%s215 + $0xad4] sm:$0xff]
        %v603 = vld [vmem:[%s215 + $0xadc] sm:$0xff]
        %v604 = vld [vmem:[%s215 + $0xae4] sm:$0xff]
        %v605 = vld [vmem:[%s215 + $0xaec] sm:$0xff]
        %v606 = vld [vmem:[%s215 + $0xaf4] sm:$0xff]
        %v607 = vld [vmem:[%s215 + $0xafc] sm:$0xf]
        %v608 = vld [vmem:[%s1] sm:$0xf]
        %v609 = vld [vmem:[%s1 + $0x4] sm:$0xf]
        %v610 = vld [vmem:[%s1 + $0x8] sm:$0xf]
        %v611 = vld [vmem:[%s1 + $0xc] sm:$0xf]
        %v612 = vld [vmem:[%s1 + $0x10] sm:$0xf]
        %v613 = vld [vmem:[%s1 + $0x14] sm:$0xf]
        %v614 = vld [vmem:[%s1 + $0x18] sm:$0xf]
        %v615 = vld [vmem:[%s1 + $0x1c] sm:$0xf]
        %v616 = vld [vmem:[%s1 + $0x20] sm:$0xf]
        %v617 = vld [vmem:[%s1 + $0x24] sm:$0xf]
        %v618 = vld [vmem:[%s1 + $0x28] sm:$0xf]
        %v619 = vld [vmem:[%s1 + $0x2c] sm:$0xf]
        %v620 = vld [vmem:[%s1 + $0x30] sm:$0xf]
        %v621 = vld [vmem:[%s1 + $0x34] sm:$0xf]
        %v622 = vld [vmem:[%s1 + $0x38] sm:$0xf]
        %v623 = vld [vmem:[%s1 + $0x3c] sm:$0xf]
        %v624 = vld [vmem:[%s1 + $0x40] sm:$0xf]
        %v625 = vld [vmem:[%s1 + $0x44] sm:$0xf]
        %v626 = vld [vmem:[%s1 + $0x48] sm:$0xf]
        %v627 = vld [vmem:[%s1 + $0x4c] sm:$0xf]
        %v628 = vld [vmem:[%s1 + $0x50] sm:$0xf]
        %v629 = vld [vmem:[%s1 + $0x54] sm:$0xf]
        %v630 = vld [vmem:[%s1 + $0x58] sm:$0xf]
        %v631 = vld [vmem:[%s1 + $0x5c] sm:$0xf]
        %v632 = vld [vmem:[%s1 + $0x60] sm:$0xf]
        %v633 = vld [vmem:[%s1 + $0x64] sm:$0xf]
        %v634 = vld [vmem:[%s1 + $0x68] sm:$0xf]
        %v635 = vld [vmem:[%s1 + $0x6c] sm:$0xf]
        %v636 = vld [vmem:[%s1 + $0x70] sm:$0xf]
        %v637 = vld [vmem:[%s1 + $0x74] sm:$0xf]
        %v638 = vld [vmem:[%s1 + $0x78] sm:$0xf]
        %v639 = vld [vmem:[%s1 + $0x7c] sm:$0xf]
        %v640 = vld [vmem:[%s1 + $0x80] sm:$0xf]
        %v641 = vld [vmem:[%s1 + $0x84] sm:$0xf]
        %v642 = vld [vmem:[%s1 + $0x88] sm:$0xf]
        %v643 = vld [vmem:[%s1 + $0x8c] sm:$0xf]
        %v644 = vld [vmem:[%s1 + $0x90] sm:$0xf]
        %v645 = vld [vmem:[%s1 + $0x94] sm:$0xf]
        %v646 = vld [vmem:[%s1 + $0x98] sm:$0xf]
        %v647 = vld [vmem:[%s1 + $0x9c] sm:$0xf]
        %v648 = vld [vmem:[%s1 + $0xa0] sm:$0xf]
        %v649 = vld [vmem:[%s1 + $0xa4] sm:$0xf]
        %v650 = vld [vmem:[%s1 + $0xa8] sm:$0xf]
        %v651 = vld [vmem:[%s1 + $0xac] sm:$0xf]
        %v652 = vld [vmem:[%s1 + $0xb0] sm:$0xf]
        %v653 = vld [vmem:[%s1 + $0xb4] sm:$0xf]
        %v654 = vld [vmem:[%s1 + $0xb8] sm:$0xf]
        %v655 = vld [vmem:[%s1 + $0xbc] sm:$0xf]
        %v656 = vld [vmem:[%s1 + $0xc0] sm:$0xf]
        %v657 = vld [vmem:[%s1 + $0xc4] sm:$0xf]
        %v658 = vld [vmem:[%s1 + $0xc8] sm:$0xf]
        %v659 = vld [vmem:[%s1 + $0xcc] sm:$0xf]
        %v660 = vld [vmem:[%s1 + $0xd0] sm:$0xf]
        %v661 = vld [vmem:[%s1 + $0xd4] sm:$0xf]
        %v662 = vld [vmem:[%s1 + $0xd8] sm:$0xf]
        %v663 = vld [vmem:[%s1 + $0xdc] sm:$0xf]
        %v664 = vld [vmem:[%s1 + $0xe0] sm:$0xf]
        %v665 = vld [vmem:[%s1 + $0xe4] sm:$0xf]
        %v666 = vld [vmem:[%s1 + $0xe8] sm:$0xf]
        %v667 = vld [vmem:[%s1 + $0xec] sm:$0xf]
        %v668 = vld [vmem:[%s1 + $0xf0] sm:$0xf]
        %v669 = vld [vmem:[%s1 + $0xf4] sm:$0xf]
        %v670 = vld [vmem:[%s1 + $0xf8] sm:$0xf]
        %v671 = vld [vmem:[%s1 + $0xfc] sm:$0xf]
        %v672 = vld [vmem:[%s1 + $0x100] sm:$0xf]
        %v673 = vld [vmem:[%s1 + $0x104] sm:$0xf]
        %v674 = vld [vmem:[%s1 + $0x108] sm:$0xf]
        %v675 = vld [vmem:[%s1 + $0x10c] sm:$0xf]
        %v676 = vld [vmem:[%s1 + $0x110] sm:$0xf]
        %v677 = vld [vmem:[%s1 + $0x114] sm:$0xf]
        %v678 = vld [vmem:[%s1 + $0x118] sm:$0xf]
        %v679 = vld [vmem:[%s1 + $0x11c] sm:$0xf]
        %v680 = vld [vmem:[%s1 + $0x120] sm:$0xf]
        %v681 = vld [vmem:[%s1 + $0x124] sm:$0xf]
        %v682 = vld [vmem:[%s1 + $0x128] sm:$0xf]
        %v683 = vld [vmem:[%s1 + $0x12c] sm:$0xf]
        %v684 = vld [vmem:[%s1 + $0x130] sm:$0xf]
        %v685 = vld [vmem:[%s1 + $0x134] sm:$0xf]
        %v686 = vld [vmem:[%s1 + $0x138] sm:$0xf]
        %v687 = vld [vmem:[%s1 + $0x13c] sm:$0xf]
        %v688 = vld [vmem:[%s1 + $0x140] sm:$0xf]
        %v689 = vld [vmem:[%s1 + $0x144] sm:$0xf]
        %v690 = vld [vmem:[%s1 + $0x148] sm:$0xf]
        %v691 = vld [vmem:[%s1 + $0x14c] sm:$0xf]
        %v692 = vld [vmem:[%s1 + $0x150] sm:$0xf]
        %v693 = vld [vmem:[%s1 + $0x154] sm:$0xf]
        %v694 = vld [vmem:[%s1 + $0x158] sm:$0xf]
        %v695 = vld [vmem:[%s1 + $0x15c] sm:$0xf]
        %v696 = vld [vmem:[%s1 + $0x160] sm:$0xf]
        %v697 = vld [vmem:[%s1 + $0x164] sm:$0xf]
        %v698 = vld [vmem:[%s1 + $0x168] sm:$0xf]
        %v699 = vld [vmem:[%s1 + $0x16c] sm:$0xf]
        %v700 = vld [vmem:[%s1 + $0x170] sm:$0xf]
        %v701 = vld [vmem:[%s1 + $0x174] sm:$0xf]
        %v702 = vld [vmem:[%s1 + $0x178] sm:$0xf]
        %v703 = vld [vmem:[%s1 + $0x17c] sm:$0xf]
        %v704 = vld [vmem:[%s1 + $0x180] sm:$0xf]
        %v705 = vld [vmem:[%s1 + $0x184] sm:$0xf]
        %v706 = vld [vmem:[%s1 + $0x188] sm:$0xf]
        %v707 = vld [vmem:[%s1 + $0x18c] sm:$0xf]
        %v708 = vld [vmem:[%s1 + $0x190] sm:$0xf]
        %v709 = vld [vmem:[%s1 + $0x194] sm:$0xf]
        %v710 = vld [vmem:[%s1 + $0x198] sm:$0xf]
        %v711 = vld [vmem:[%s1 + $0x19c] sm:$0xf]
        %v712 = vld [vmem:[%s1 + $0x1a0] sm:$0xf]
        %v713 = vld [vmem:[%s1 + $0x1a4] sm:$0xf]
        %v714 = vld [vmem:[%s1 + $0x1a8] sm:$0xf]
        %v715 = vld [vmem:[%s1 + $0x1ac] sm:$0xf]
        %v716 = vld [vmem:[%s1 + $0x1b0] sm:$0xf]
        %v717 = vld [vmem:[%s1 + $0x1b4] sm:$0xf]
        %v718 = vld [vmem:[%s1 + $0x1b8] sm:$0xf]
        %v719 = vld [vmem:[%s1 + $0x1bc] sm:$0xf]
        %v720 = vld [vmem:[%s1 + $0x1c0] sm:$0xf]
        %v721 = vld [vmem:[%s1 + $0x1c4] sm:$0xf]
        %v722 = vld [vmem:[%s1 + $0x1c8] sm:$0xf]
        %v723 = vld [vmem:[%s1 + $0x1cc] sm:$0xf]
        %v724 = vld [vmem:[%s1 + $0x1d0] sm:$0xf]
        %v725 = vld [vmem:[%s1 + $0x1d4] sm:$0xf]
        %v726 = vld [vmem:[%s1 + $0x1d8] sm:$0xf]
        %v727 = vld [vmem:[%s1 + $0x1dc] sm:$0xf]
        %v728 = vld [vmem:[%s1 + $0x1e0] sm:$0xf]
        %v729 = vld [vmem:[%s1 + $0x1e4] sm:$0xf]
        %v730 = vld [vmem:[%s1 + $0x1e8] sm:$0xf]
        %v731 = vld [vmem:[%s1 + $0x1ec] sm:$0xf]
        %v732 = vld [vmem:[%s1 + $0x1f0] sm:$0xf]
        %v733 = vld [vmem:[%s1 + $0x1f4] sm:$0xf]
        %v734 = vld [vmem:[%s1 + $0x1f8] sm:$0xf]
        %v735 = vld [vmem:[%s1 + $0x1fc] sm:$0xf]
        %v736 = vld [vmem:[%s1 + $0x200] sm:$0xf]
        %v737 = vld [vmem:[%s1 + $0x204] sm:$0xf]
        %v738 = vld [vmem:[%s1 + $0x208] sm:$0xf]
        %v739 = vld [vmem:[%s1 + $0x20c] sm:$0xf]
        %v740 = vld [vmem:[%s1 + $0x210] sm:$0xf]
        %v741 = vld [vmem:[%s1 + $0x214] sm:$0xf]
        %v742 = vld [vmem:[%s1 + $0x218] sm:$0xf]
        %v743 = vld [vmem:[%s1 + $0x21c] sm:$0xf]
        %v744 = vld [vmem:[%s1 + $0x220] sm:$0xf]
        %v745 = vld [vmem:[%s1 + $0x224] sm:$0xf]
        %v746 = vld [vmem:[%s1 + $0x228] sm:$0xf]
        %v747 = vld [vmem:[%s1 + $0x22c] sm:$0xf]
        %v748 = vld [vmem:[%s1 + $0x230] sm:$0xf]
        %v749 = vld [vmem:[%s1 + $0x234] sm:$0xf]
        %v750 = vld [vmem:[%s1 + $0x238] sm:$0xf]
        %v751 = vld [vmem:[%s1 + $0x23c] sm:$0xf]
        %v752 = vld [vmem:[%s1 + $0x240] sm:$0xf]
        %v753 = vld [vmem:[%s1 + $0x244] sm:$0xf]
        %v754 = vld [vmem:[%s1 + $0x248] sm:$0xf]
        %v755 = vld [vmem:[%s1 + $0x24c] sm:$0xf]
        %v756 = vld [vmem:[%s1 + $0x250] sm:$0xf]
        %v757 = vld [vmem:[%s1 + $0x254] sm:$0xf]
        %v758 = vld [vmem:[%s1 + $0x258] sm:$0xf]
        %v759 = vld [vmem:[%s1 + $0x25c] sm:$0xf]
        %v760 = vld [vmem:[%s1 + $0x260] sm:$0xf]
        %v761 = vld [vmem:[%s1 + $0x264] sm:$0xf]
        %v762 = vld [vmem:[%s1 + $0x268] sm:$0xf]
        %v763 = vld [vmem:[%s1 + $0x26c] sm:$0xf]
        %v764 = vld [vmem:[%s1 + $0x270] sm:$0xf]
        %v765 = vld [vmem:[%s1 + $0x274] sm:$0xf]
        %v766 = vld [vmem:[%s1 + $0x278] sm:$0xf]
        %v767 = vld [vmem:[%s1 + $0x27c] sm:$0xf]
        %v768 = vld [vmem:[%s1 + $0x280] sm:$0xf]
        %v769 = vld [vmem:[%s1 + $0x284] sm:$0xf]
        %v770 = vld [vmem:[%s1 + $0x288] sm:$0xf]
        %v771 = vld [vmem:[%s1 + $0x28c] sm:$0xf]
        %v772 = vld [vmem:[%s1 + $0x290] sm:$0xf]
        %v773 = vld [vmem:[%s1 + $0x294] sm:$0xf]
        %v774 = vld [vmem:[%s1 + $0x298] sm:$0xf]
        %v775 = vld [vmem:[%s1 + $0x29c] sm:$0xf]
        %v776 = vld [vmem:[%s1 + $0x2a0] sm:$0xf]
        %v777 = vld [vmem:[%s1 + $0x2a4] sm:$0xf]
        %v778 = vld [vmem:[%s1 + $0x2a8] sm:$0xf]
        %v779 = vld [vmem:[%s1 + $0x2ac] sm:$0xf]
        %v780 = vld [vmem:[%s1 + $0x2b0] sm:$0xf]
        %v781 = vld [vmem:[%s1 + $0x2b4] sm:$0xf]
        %v782 = vld [vmem:[%s1 + $0x2b8] sm:$0xf]
        %v783 = vld [vmem:[%s1 + $0x2bc] sm:$0xf]
        %v784 = vld [vmem:[%s2] sm:$0x1]
        %v786 = vperm.slane %v784, 0
        %v1172 = vunpack.c.l.b16 %v224
        %v1173 = vunpack.c.h.b16 %v224
        %v1174 = vunpack.c.l.b16 %v225
        %v1175 = vunpack.c.h.b16 %v225
        %v1176 = vunpack.c.l.b16 %v226
        %v1177 = vunpack.c.h.b16 %v226
        %v1178 = vunpack.c.l.b16 %v227
        %v1179 = vunpack.c.h.b16 %v227
        %v1180 = vunpack.c.l.b16 %v228
        %v1181 = vunpack.c.h.b16 %v228
        %v1182 = vunpack.c.l.b16 %v229
        %v1183 = vunpack.c.l.b16 %v230
        %v1184 = vunpack.c.h.b16 %v230
        %v1185 = vunpack.c.l.b16 %v231
        %v1186 = vunpack.c.h.b16 %v231
        %v1187 = vunpack.c.l.b16 %v232
        %v1188 = vunpack.c.h.b16 %v232
        %v1189 = vunpack.c.l.b16 %v233
        %v1190 = vunpack.c.h.b16 %v233
        %v1191 = vunpack.c.l.b16 %v234
        %v1192 = vunpack.c.h.b16 %v234
        %v1193 = vunpack.c.l.b16 %v235
        %v1194 = vunpack.c.l.b16 %v236
        %v1195 = vunpack.c.h.b16 %v236
        %v1196 = vunpack.c.l.b16 %v237
        %v1197 = vunpack.c.h.b16 %v237
        %v1198 = vunpack.c.l.b16 %v238
        %v1199 = vunpack.c.h.b16 %v238
        %v1200 = vunpack.c.l.b16 %v239
        %v1201 = vunpack.c.h.b16 %v239
        %v1202 = vunpack.c.l.b16 %v240
        %v1203 = vunpack.c.h.b16 %v240
        %v1204 = vunpack.c.l.b16 %v241
        %v1205 = vunpack.c.l.b16 %v242
        %v1206 = vunpack.c.h.b16 %v242
        %v1207 = vunpack.c.l.b16 %v243
        %v1208 = vunpack.c.h.b16 %v243
        %v1209 = vunpack.c.l.b16 %v244
        %v1210 = vunpack.c.h.b16 %v244
        %v1211 = vunpack.c.l.b16 %v245
        %v1212 = vunpack.c.h.b16 %v245
        %v1213 = vunpack.c.l.b16 %v246
        %v1214 = vunpack.c.h.b16 %v246
        %v1215 = vunpack.c.l.b16 %v247
        %v1216 = vunpack.c.l.b16 %v248
        %v1217 = vunpack.c.h.b16 %v248
        %v1218 = vunpack.c.l.b16 %v249
        %v1219 = vunpack.c.h.b16 %v249
        %v1220 = vunpack.c.l.b16 %v250
        %v1221 = vunpack.c.h.b16 %v250
        %v1222 = vunpack.c.l.b16 %v251
        %v1223 = vunpack.c.h.b16 %v251
        %v1224 = vunpack.c.l.b16 %v252
        %v1225 = vunpack.c.h.b16 %v252
        %v1226 = vunpack.c.l.b16 %v253
        %v1227 = vunpack.c.l.b16 %v254
        %v1228 = vunpack.c.h.b16 %v254
        %v1229 = vunpack.c.l.b16 %v255
        %v1230 = vunpack.c.h.b16 %v255
        %v1231 = vunpack.c.l.b16 %v256
        %v1232 = vunpack.c.h.b16 %v256
        %v1233 = vunpack.c.l.b16 %v257
        %v1234 = vunpack.c.h.b16 %v257
        %v1235 = vunpack.c.l.b16 %v258
        %v1236 = vunpack.c.h.b16 %v258
        %v1237 = vunpack.c.l.b16 %v259
        %v1238 = vunpack.c.l.b16 %v260
        %v1239 = vunpack.c.h.b16 %v260
        %v1240 = vunpack.c.l.b16 %v261
        %v1241 = vunpack.c.h.b16 %v261
        %v1242 = vunpack.c.l.b16 %v262
        %v1243 = vunpack.c.h.b16 %v262
        %v1244 = vunpack.c.l.b16 %v263
        %v1245 = vunpack.c.h.b16 %v263
        %v1246 = vunpack.c.l.b16 %v264
        %v1247 = vunpack.c.h.b16 %v264
        %v1248 = vunpack.c.l.b16 %v265
        %v1249 = vunpack.c.l.b16 %v266
        %v1250 = vunpack.c.h.b16 %v266
        %v1251 = vunpack.c.l.b16 %v267
        %v1252 = vunpack.c.h.b16 %v267
        %v1253 = vunpack.c.l.b16 %v268
        %v1254 = vunpack.c.h.b16 %v268
        %v1255 = vunpack.c.l.b16 %v269
        %v1256 = vunpack.c.h.b16 %v269
        %v1257 = vunpack.c.l.b16 %v270
        %v1258 = vunpack.c.h.b16 %v270
        %v1259 = vunpack.c.l.b16 %v271
        %v1260 = vunpack.c.l.b16 %v272
        %v1261 = vunpack.c.h.b16 %v272
        %v1262 = vunpack.c.l.b16 %v273
        %v1263 = vunpack.c.h.b16 %v273
        %v1264 = vunpack.c.l.b16 %v274
        %v1265 = vunpack.c.h.b16 %v274
        %v1266 = vunpack.c.l.b16 %v275
        %v1267 = vunpack.c.h.b16 %v275
        %v1268 = vunpack.c.l.b16 %v276
        %v1269 = vunpack.c.h.b16 %v276
        %v1270 = vunpack.c.l.b16 %v277
        %v1271 = vunpack.c.l.b16 %v278
        %v1272 = vunpack.c.h.b16 %v278
        %v1273 = vunpack.c.l.b16 %v279
        %v1274 = vunpack.c.h.b16 %v279
        %v1275 = vunpack.c.l.b16 %v280
        %v1276 = vunpack.c.h.b16 %v280
        %v1277 = vunpack.c.l.b16 %v281
        %v1278 = vunpack.c.h.b16 %v281
        %v1279 = vunpack.c.l.b16 %v282
        %v1280 = vunpack.c.h.b16 %v282
        %v1281 = vunpack.c.l.b16 %v283
        %v1282 = vunpack.c.l.b16 %v284
        %v1283 = vunpack.c.h.b16 %v284
        %v1284 = vunpack.c.l.b16 %v285
        %v1285 = vunpack.c.h.b16 %v285
        %v1286 = vunpack.c.l.b16 %v286
        %v1287 = vunpack.c.h.b16 %v286
        %v1288 = vunpack.c.l.b16 %v287
        %v1289 = vunpack.c.h.b16 %v287
        %v1290 = vunpack.c.l.b16 %v288
        %v1291 = vunpack.c.h.b16 %v288
        %v1292 = vunpack.c.l.b16 %v289
        %v1293 = vunpack.c.l.b16 %v290
        %v1294 = vunpack.c.h.b16 %v290
        %v1295 = vunpack.c.l.b16 %v291
        %v1296 = vunpack.c.h.b16 %v291
        %v1297 = vunpack.c.l.b16 %v292
        %v1298 = vunpack.c.h.b16 %v292
        %v1299 = vunpack.c.l.b16 %v293
        %v1300 = vunpack.c.h.b16 %v293
        %v1301 = vunpack.c.l.b16 %v294
        %v1302 = vunpack.c.h.b16 %v294
        %v1303 = vunpack.c.l.b16 %v295
        %v1304 = vunpack.c.l.b16 %v296
        %v1305 = vunpack.c.h.b16 %v296
        %v1306 = vunpack.c.l.b16 %v297
        %v1307 = vunpack.c.h.b16 %v297
        %v1308 = vunpack.c.l.b16 %v298
        %v1309 = vunpack.c.h.b16 %v298
        %v1310 = vunpack.c.l.b16 %v299
        %v1311 = vunpack.c.h.b16 %v299
        %v1312 = vunpack.c.l.b16 %v300
        %v1313 = vunpack.c.h.b16 %v300
        %v1314 = vunpack.c.l.b16 %v301
        %v1315 = vunpack.c.l.b16 %v302
        %v1316 = vunpack.c.h.b16 %v302
        %v1317 = vunpack.c.l.b16 %v303
        %v1318 = vunpack.c.h.b16 %v303
        %v1319 = vunpack.c.l.b16 %v304
        %v1320 = vunpack.c.h.b16 %v304
        %v1321 = vunpack.c.l.b16 %v305
        %v1322 = vunpack.c.h.b16 %v305
        %v1323 = vunpack.c.l.b16 %v306
        %v1324 = vunpack.c.h.b16 %v306
        %v1325 = vunpack.c.l.b16 %v307
        %v1326 = vunpack.c.l.b16 %v308
        %v1327 = vunpack.c.h.b16 %v308
        %v1328 = vunpack.c.l.b16 %v309
        %v1329 = vunpack.c.h.b16 %v309
        %v1330 = vunpack.c.l.b16 %v310
        %v1331 = vunpack.c.h.b16 %v310
        %v1332 = vunpack.c.l.b16 %v311
        %v1333 = vunpack.c.h.b16 %v311
        %v1334 = vunpack.c.l.b16 %v312
        %v1335 = vunpack.c.h.b16 %v312
        %v1336 = vunpack.c.l.b16 %v313
        %v1337 = vunpack.c.l.b16 %v314
        %v1338 = vunpack.c.h.b16 %v314
        %v1339 = vunpack.c.l.b16 %v315
        %v1340 = vunpack.c.h.b16 %v315
        %v1341 = vunpack.c.l.b16 %v316
        %v1342 = vunpack.c.h.b16 %v316
        %v1343 = vunpack.c.l.b16 %v317
        %v1344 = vunpack.c.h.b16 %v317
        %v1345 = vunpack.c.l.b16 %v318
        %v1346 = vunpack.c.h.b16 %v318
        %v1347 = vunpack.c.l.b16 %v319
        %v1348 = vunpack.c.l.b16 %v320
        %v1349 = vunpack.c.h.b16 %v320
        %v1350 = vunpack.c.l.b16 %v321
        %v1351 = vunpack.c.h.b16 %v321
        %v1352 = vunpack.c.l.b16 %v322
        %v1353 = vunpack.c.h.b16 %v322
        %v1354 = vunpack.c.l.b16 %v323
        %v1355 = vunpack.c.h.b16 %v323
        %v1356 = vunpack.c.l.b16 %v324
        %v1357 = vunpack.c.h.b16 %v324
        %v1358 = vunpack.c.l.b16 %v325
        %v1359 = vunpack.c.l.b16 %v326
        %v1360 = vunpack.c.h.b16 %v326
        %v1361 = vunpack.c.l.b16 %v327
        %v1362 = vunpack.c.h.b16 %v327
        %v1363 = vunpack.c.l.b16 %v328
        %v1364 = vunpack.c.h.b16 %v328
        %v1365 = vunpack.c.l.b16 %v329
        %v1366 = vunpack.c.h.b16 %v329
        %v1367 = vunpack.c.l.b16 %v330
        %v1368 = vunpack.c.h.b16 %v330
        %v1369 = vunpack.c.l.b16 %v331
        %v1370 = vunpack.c.l.b16 %v332
        %v1371 = vunpack.c.h.b16 %v332
        %v1372 = vunpack.c.l.b16 %v333
        %v1373 = vunpack.c.h.b16 %v333
        %v1374 = vunpack.c.l.b16 %v334
        %v1375 = vunpack.c.h.b16 %v334
        %v1376 = vunpack.c.l.b16 %v335
        %v1377 = vunpack.c.h.b16 %v335
        %v1378 = vunpack.c.l.b16 %v336
        %v1379 = vunpack.c.h.b16 %v336
        %v1380 = vunpack.c.l.b16 %v337
        %v1381 = vunpack.c.l.b16 %v338
        %v1382 = vunpack.c.h.b16 %v338
        %v1383 = vunpack.c.l.b16 %v339
        %v1384 = vunpack.c.h.b16 %v339
        %v1385 = vunpack.c.l.b16 %v340
        %v1386 = vunpack.c.h.b16 %v340
        %v1387 = vunpack.c.l.b16 %v341
        %v1388 = vunpack.c.h.b16 %v341
        %v1389 = vunpack.c.l.b16 %v342
        %v1390 = vunpack.c.h.b16 %v342
        %v1391 = vunpack.c.l.b16 %v343
        %v1392 = vunpack.c.l.b16 %v344
        %v1393 = vunpack.c.h.b16 %v344
        %v1394 = vunpack.c.l.b16 %v345
        %v1395 = vunpack.c.h.b16 %v345
        %v1396 = vunpack.c.l.b16 %v346
        %v1397 = vunpack.c.h.b16 %v346
        %v1398 = vunpack.c.l.b16 %v347
        %v1399 = vunpack.c.h.b16 %v347
        %v1400 = vunpack.c.l.b16 %v348
        %v1401 = vunpack.c.h.b16 %v348
        %v1402 = vunpack.c.l.b16 %v349
        %v1403 = vunpack.c.l.b16 %v350
        %v1404 = vunpack.c.h.b16 %v350
        %v1405 = vunpack.c.l.b16 %v351
        %v1406 = vunpack.c.h.b16 %v351
        %v1407 = vunpack.c.l.b16 %v352
        %v1408 = vunpack.c.h.b16 %v352
        %v1409 = vunpack.c.l.b16 %v353
        %v1410 = vunpack.c.h.b16 %v353
        %v1411 = vunpack.c.l.b16 %v354
        %v1412 = vunpack.c.h.b16 %v354
        %v1413 = vunpack.c.l.b16 %v355
        %v1414 = vunpack.c.l.b16 %v356
        %v1415 = vunpack.c.h.b16 %v356
        %v1416 = vunpack.c.l.b16 %v357
        %v1417 = vunpack.c.h.b16 %v357
        %v1418 = vunpack.c.l.b16 %v358
        %v1419 = vunpack.c.h.b16 %v358
        %v1420 = vunpack.c.l.b16 %v359
        %v1421 = vunpack.c.h.b16 %v359
        %v1422 = vunpack.c.l.b16 %v360
        %v1423 = vunpack.c.h.b16 %v360
        %v1424 = vunpack.c.l.b16 %v361
        %v1425 = vunpack.c.l.b16 %v362
        %v1426 = vunpack.c.h.b16 %v362
        %v1427 = vunpack.c.l.b16 %v363
        %v1428 = vunpack.c.h.b16 %v363
        %v1429 = vunpack.c.l.b16 %v364
        %v1430 = vunpack.c.h.b16 %v364
        %v1431 = vunpack.c.l.b16 %v365
        %v1432 = vunpack.c.h.b16 %v365
        %v1433 = vunpack.c.l.b16 %v366
        %v1434 = vunpack.c.h.b16 %v366
        %v1435 = vunpack.c.l.b16 %v367
        %v1436 = vunpack.c.l.b16 %v368
        %v1437 = vunpack.c.h.b16 %v368
        %v1438 = vunpack.c.l.b16 %v369
        %v1439 = vunpack.c.h.b16 %v369
        %v1440 = vunpack.c.l.b16 %v370
        %v1441 = vunpack.c.h.b16 %v370
        %v1442 = vunpack.c.l.b16 %v371
        %v1443 = vunpack.c.h.b16 %v371
        %v1444 = vunpack.c.l.b16 %v372
        %v1445 = vunpack.c.h.b16 %v372
        %v1446 = vunpack.c.l.b16 %v373
        %v1447 = vunpack.c.l.b16 %v374
        %v1448 = vunpack.c.h.b16 %v374
        %v1449 = vunpack.c.l.b16 %v375
        %v1450 = vunpack.c.h.b16 %v375
        %v1451 = vunpack.c.l.b16 %v376
        %v1452 = vunpack.c.h.b16 %v376
        %v1453 = vunpack.c.l.b16 %v377
        %v1454 = vunpack.c.h.b16 %v377
        %v1455 = vunpack.c.l.b16 %v378
        %v1456 = vunpack.c.h.b16 %v378
        %v1457 = vunpack.c.l.b16 %v379
        %v1458 = vunpack.c.l.b16 %v380
        %v1459 = vunpack.c.h.b16 %v380
        %v1460 = vunpack.c.l.b16 %v381
        %v1461 = vunpack.c.h.b16 %v381
        %v1462 = vunpack.c.l.b16 %v382
        %v1463 = vunpack.c.h.b16 %v382
        %v1464 = vunpack.c.l.b16 %v383
        %v1465 = vunpack.c.h.b16 %v383
        %v1466 = vunpack.c.l.b16 %v384
        %v1467 = vunpack.c.h.b16 %v384
        %v1468 = vunpack.c.l.b16 %v385
        %v1469 = vunpack.c.l.b16 %v386
        %v1470 = vunpack.c.h.b16 %v386
        %v1471 = vunpack.c.l.b16 %v387
        %v1472 = vunpack.c.h.b16 %v387
        %v1473 = vunpack.c.l.b16 %v388
        %v1474 = vunpack.c.h.b16 %v388
        %v1475 = vunpack.c.l.b16 %v389
        %v1476 = vunpack.c.h.b16 %v389
        %v1477 = vunpack.c.l.b16 %v390
        %v1478 = vunpack.c.h.b16 %v390
        %v1479 = vunpack.c.l.b16 %v391
        %v1480 = vunpack.c.l.b16 %v392
        %v1481 = vunpack.c.h.b16 %v392
        %v1482 = vunpack.c.l.b16 %v393
        %v1483 = vunpack.c.h.b16 %v393
        %v1484 = vunpack.c.l.b16 %v394
        %v1485 = vunpack.c.h.b16 %v394
        %v1486 = vunpack.c.l.b16 %v395
        %v1487 = vunpack.c.h.b16 %v395
        %v1488 = vunpack.c.l.b16 %v396
        %v1489 = vunpack.c.h.b16 %v396
        %v1490 = vunpack.c.l.b16 %v397
        %v1491 = vunpack.c.l.b16 %v398
        %v1492 = vunpack.c.h.b16 %v398
        %v1493 = vunpack.c.l.b16 %v399
        %v1494 = vunpack.c.h.b16 %v399
        %v1495 = vunpack.c.l.b16 %v400
        %v1496 = vunpack.c.h.b16 %v400
        %v1497 = vunpack.c.l.b16 %v401
        %v1498 = vunpack.c.h.b16 %v401
        %v1499 = vunpack.c.l.b16 %v402
        %v1500 = vunpack.c.h.b16 %v402
        %v1501 = vunpack.c.l.b16 %v403
        %v1502 = vunpack.c.l.b16 %v404
        %v1503 = vunpack.c.h.b16 %v404
        %v1504 = vunpack.c.l.b16 %v405
        %v1505 = vunpack.c.h.b16 %v405
        %v1506 = vunpack.c.l.b16 %v406
        %v1507 = vunpack.c.h.b16 %v406
        %v1508 = vunpack.c.l.b16 %v407
        %v1509 = vunpack.c.h.b16 %v407
        %v1510 = vunpack.c.l.b16 %v408
        %v1511 = vunpack.c.h.b16 %v408
        %v1512 = vunpack.c.l.b16 %v409
        %v1513 = vunpack.c.l.b16 %v410
        %v1514 = vunpack.c.h.b16 %v410
        %v1515 = vunpack.c.l.b16 %v411
        %v1516 = vunpack.c.h.b16 %v411
        %v1517 = vunpack.c.l.b16 %v412
        %v1518 = vunpack.c.h.b16 %v412
        %v1519 = vunpack.c.l.b16 %v413
        %v1520 = vunpack.c.h.b16 %v413
        %v1521 = vunpack.c.l.b16 %v414
        %v1522 = vunpack.c.h.b16 %v414
        %v1523 = vunpack.c.l.b16 %v415
        %v1524 = vunpack.c.l.b16 %v416
        %v1525 = vunpack.c.h.b16 %v416
        %v1526 = vunpack.c.l.b16 %v417
        %v1527 = vunpack.c.h.b16 %v417
        %v1528 = vunpack.c.l.b16 %v418
        %v1529 = vunpack.c.h.b16 %v418
        %v1530 = vunpack.c.l.b16 %v419
        %v1531 = vunpack.c.h.b16 %v419
        %v1532 = vunpack.c.l.b16 %v420
        %v1533 = vunpack.c.h.b16 %v420
        %v1534 = vunpack.c.l.b16 %v421
        %v1535 = vunpack.c.l.b16 %v422
        %v1536 = vunpack.c.h.b16 %v422
        %v1537 = vunpack.c.l.b16 %v423
        %v1538 = vunpack.c.h.b16 %v423
        %v1539 = vunpack.c.l.b16 %v424
        %v1540 = vunpack.c.h.b16 %v424
        %v1541 = vunpack.c.l.b16 %v425
        %v1542 = vunpack.c.h.b16 %v425
        %v1543 = vunpack.c.l.b16 %v426
        %v1544 = vunpack.c.h.b16 %v426
        %v1545 = vunpack.c.l.b16 %v427
        %v1546 = vunpack.c.l.b16 %v428
        %v1547 = vunpack.c.h.b16 %v428
        %v1548 = vunpack.c.l.b16 %v429
        %v1549 = vunpack.c.h.b16 %v429
        %v1550 = vunpack.c.l.b16 %v430
        %v1551 = vunpack.c.h.b16 %v430
        %v1552 = vunpack.c.l.b16 %v431
        %v1553 = vunpack.c.h.b16 %v431
        %v1554 = vunpack.c.l.b16 %v432
        %v1555 = vunpack.c.h.b16 %v432
        %v1556 = vunpack.c.l.b16 %v433
        %v1557 = vunpack.c.l.b16 %v434
        %v1558 = vunpack.c.h.b16 %v434
        %v1559 = vunpack.c.l.b16 %v435
        %v1560 = vunpack.c.h.b16 %v435
        %v1561 = vunpack.c.l.b16 %v436
        %v1562 = vunpack.c.h.b16 %v436
        %v1563 = vunpack.c.l.b16 %v437
        %v1564 = vunpack.c.h.b16 %v437
        %v1565 = vunpack.c.l.b16 %v438
        %v1566 = vunpack.c.h.b16 %v438
        %v1567 = vunpack.c.l.b16 %v439
        %v1568 = vunpack.c.l.b16 %v440
        %v1569 = vunpack.c.h.b16 %v440
        %v1570 = vunpack.c.l.b16 %v441
        %v1571 = vunpack.c.h.b16 %v441
        %v1572 = vunpack.c.l.b16 %v442
        %v1573 = vunpack.c.h.b16 %v442
        %v1574 = vunpack.c.l.b16 %v443
        %v1575 = vunpack.c.h.b16 %v443
        %v1576 = vunpack.c.l.b16 %v444
        %v1577 = vunpack.c.h.b16 %v444
        %v1578 = vunpack.c.l.b16 %v445
        %v1579 = vunpack.c.l.b16 %v446
        %v1580 = vunpack.c.h.b16 %v446
        %v1581 = vunpack.c.l.b16 %v447
        %v1582 = vunpack.c.h.b16 %v447
        %v1583 = vunpack.c.l.b16 %v448
        %v1584 = vunpack.c.h.b16 %v448
        %v1585 = vunpack.c.l.b16 %v449
        %v1586 = vunpack.c.h.b16 %v449
        %v1587 = vunpack.c.l.b16 %v450
        %v1588 = vunpack.c.h.b16 %v450
        %v1589 = vunpack.c.l.b16 %v451
        %v1590 = vunpack.c.l.b16 %v452
        %v1591 = vunpack.c.h.b16 %v452
        %v1592 = vunpack.c.l.b16 %v453
        %v1593 = vunpack.c.h.b16 %v453
        %v1594 = vunpack.c.l.b16 %v454
        %v1595 = vunpack.c.h.b16 %v454
        %v1596 = vunpack.c.l.b16 %v455
        %v1597 = vunpack.c.h.b16 %v455
        %v1598 = vunpack.c.l.b16 %v456
        %v1599 = vunpack.c.h.b16 %v456
        %v1600 = vunpack.c.l.b16 %v457
        %v1601 = vunpack.c.l.b16 %v458
        %v1602 = vunpack.c.h.b16 %v458
        %v1603 = vunpack.c.l.b16 %v459
        %v1604 = vunpack.c.h.b16 %v459
        %v1605 = vunpack.c.l.b16 %v460
        %v1606 = vunpack.c.h.b16 %v460
        %v1607 = vunpack.c.l.b16 %v461
        %v1608 = vunpack.c.h.b16 %v461
        %v1609 = vunpack.c.l.b16 %v462
        %v1610 = vunpack.c.h.b16 %v462
        %v1611 = vunpack.c.l.b16 %v463
        %v1612 = vunpack.c.l.b16 %v464
        %v1613 = vunpack.c.h.b16 %v464
        %v1614 = vunpack.c.l.b16 %v465
        %v1615 = vunpack.c.h.b16 %v465
        %v1616 = vunpack.c.l.b16 %v466
        %v1617 = vunpack.c.h.b16 %v466
        %v1618 = vunpack.c.l.b16 %v467
        %v1619 = vunpack.c.h.b16 %v467
        %v1620 = vunpack.c.l.b16 %v468
        %v1621 = vunpack.c.h.b16 %v468
        %v1622 = vunpack.c.l.b16 %v469
        %v1623 = vunpack.c.l.b16 %v470
        %v1624 = vunpack.c.h.b16 %v470
        %v1625 = vunpack.c.l.b16 %v471
        %v1626 = vunpack.c.h.b16 %v471
        %v1627 = vunpack.c.l.b16 %v472
        %v1628 = vunpack.c.h.b16 %v472
        %v1629 = vunpack.c.l.b16 %v473
        %v1630 = vunpack.c.h.b16 %v473
        %v1631 = vunpack.c.l.b16 %v474
        %v1632 = vunpack.c.h.b16 %v474
        %v1633 = vunpack.c.l.b16 %v475
        %v1634 = vunpack.c.l.b16 %v476
        %v1635 = vunpack.c.h.b16 %v476
        %v1636 = vunpack.c.l.b16 %v477
        %v1637 = vunpack.c.h.b16 %v477
        %v1638 = vunpack.c.l.b16 %v478
        %v1639 = vunpack.c.h.b16 %v478
        %v1640 = vunpack.c.l.b16 %v479
        %v1641 = vunpack.c.h.b16 %v479
        %v1642 = vunpack.c.l.b16 %v480
        %v1643 = vunpack.c.h.b16 %v480
        %v1644 = vunpack.c.l.b16 %v481
        %v1645 = vunpack.c.l.b16 %v482
        %v1646 = vunpack.c.h.b16 %v482
        %v1647 = vunpack.c.l.b16 %v483
        %v1648 = vunpack.c.h.b16 %v483
        %v1649 = vunpack.c.l.b16 %v484
        %v1650 = vunpack.c.h.b16 %v484
        %v1651 = vunpack.c.l.b16 %v485
        %v1652 = vunpack.c.h.b16 %v485
        %v1653 = vunpack.c.l.b16 %v486
        %v1654 = vunpack.c.h.b16 %v486
        %v1655 = vunpack.c.l.b16 %v487
        %v1656 = vunpack.c.l.b16 %v488
        %v1657 = vunpack.c.h.b16 %v488
        %v1658 = vunpack.c.l.b16 %v489
        %v1659 = vunpack.c.h.b16 %v489
        %v1660 = vunpack.c.l.b16 %v490
        %v1661 = vunpack.c.h.b16 %v490
        %v1662 = vunpack.c.l.b16 %v491
        %v1663 = vunpack.c.h.b16 %v491
        %v1664 = vunpack.c.l.b16 %v492
        %v1665 = vunpack.c.h.b16 %v492
        %v1666 = vunpack.c.l.b16 %v493
        %v1667 = vunpack.c.l.b16 %v494
        %v1668 = vunpack.c.h.b16 %v494
        %v1669 = vunpack.c.l.b16 %v495
        %v1670 = vunpack.c.h.b16 %v495
        %v1671 = vunpack.c.l.b16 %v496
        %v1672 = vunpack.c.h.b16 %v496
        %v1673 = vunpack.c.l.b16 %v497
        %v1674 = vunpack.c.h.b16 %v497
        %v1675 = vunpack.c.l.b16 %v498
        %v1676 = vunpack.c.h.b16 %v498
        %v1677 = vunpack.c.l.b16 %v499
        %v1678 = vunpack.c.l.b16 %v500
        %v1679 = vunpack.c.h.b16 %v500
        %v1680 = vunpack.c.l.b16 %v501
        %v1681 = vunpack.c.h.b16 %v501
        %v1682 = vunpack.c.l.b16 %v502
        %v1683 = vunpack.c.h.b16 %v502
        %v1684 = vunpack.c.l.b16 %v503
        %v1685 = vunpack.c.h.b16 %v503
        %v1686 = vunpack.c.l.b16 %v504
        %v1687 = vunpack.c.h.b16 %v504
        %v1688 = vunpack.c.l.b16 %v505
        %v1689 = vunpack.c.l.b16 %v506
        %v1690 = vunpack.c.h.b16 %v506
        %v1691 = vunpack.c.l.b16 %v507
        %v1692 = vunpack.c.h.b16 %v507
        %v1693 = vunpack.c.l.b16 %v508
        %v1694 = vunpack.c.h.b16 %v508
        %v1695 = vunpack.c.l.b16 %v509
        %v1696 = vunpack.c.h.b16 %v509
        %v1697 = vunpack.c.l.b16 %v510
        %v1698 = vunpack.c.h.b16 %v510
        %v1699 = vunpack.c.l.b16 %v511
        %v1700 = vunpack.c.l.b16 %v512
        %v1701 = vunpack.c.h.b16 %v512
        %v1702 = vunpack.c.l.b16 %v513
        %v1703 = vunpack.c.h.b16 %v513
        %v1704 = vunpack.c.l.b16 %v514
        %v1705 = vunpack.c.h.b16 %v514
        %v1706 = vunpack.c.l.b16 %v515
        %v1707 = vunpack.c.h.b16 %v515
        %v1708 = vunpack.c.l.b16 %v516
        %v1709 = vunpack.c.h.b16 %v516
        %v1710 = vunpack.c.l.b16 %v517
        %v1711 = vunpack.c.l.b16 %v518
        %v1712 = vunpack.c.h.b16 %v518
        %v1713 = vunpack.c.l.b16 %v519
        %v1714 = vunpack.c.h.b16 %v519
        %v1715 = vunpack.c.l.b16 %v520
        %v1716 = vunpack.c.h.b16 %v520
        %v1717 = vunpack.c.l.b16 %v521
        %v1718 = vunpack.c.h.b16 %v521
        %v1719 = vunpack.c.l.b16 %v522
        %v1720 = vunpack.c.h.b16 %v522
        %v1721 = vunpack.c.l.b16 %v523
        %v1722 = vunpack.c.l.b16 %v524
        %v1723 = vunpack.c.h.b16 %v524
        %v1724 = vunpack.c.l.b16 %v525
        %v1725 = vunpack.c.h.b16 %v525
        %v1726 = vunpack.c.l.b16 %v526
        %v1727 = vunpack.c.h.b16 %v526
        %v1728 = vunpack.c.l.b16 %v527
        %v1729 = vunpack.c.h.b16 %v527
        %v1730 = vunpack.c.l.b16 %v528
        %v1731 = vunpack.c.h.b16 %v528
        %v1732 = vunpack.c.l.b16 %v529
        %v1733 = vunpack.c.l.b16 %v530
        %v1734 = vunpack.c.h.b16 %v530
        %v1735 = vunpack.c.l.b16 %v531
        %v1736 = vunpack.c.h.b16 %v531
        %v1737 = vunpack.c.l.b16 %v532
        %v1738 = vunpack.c.h.b16 %v532
        %v1739 = vunpack.c.l.b16 %v533
        %v1740 = vunpack.c.h.b16 %v533
        %v1741 = vunpack.c.l.b16 %v534
        %v1742 = vunpack.c.h.b16 %v534
        %v1743 = vunpack.c.l.b16 %v535
        %v1744 = vunpack.c.l.b16 %v536
        %v1745 = vunpack.c.h.b16 %v536
        %v1746 = vunpack.c.l.b16 %v537
        %v1747 = vunpack.c.h.b16 %v537
        %v1748 = vunpack.c.l.b16 %v538
        %v1749 = vunpack.c.h.b16 %v538
        %v1750 = vunpack.c.l.b16 %v539
        %v1751 = vunpack.c.h.b16 %v539
        %v1752 = vunpack.c.l.b16 %v540
        %v1753 = vunpack.c.h.b16 %v540
        %v1754 = vunpack.c.l.b16 %v541
        %v1755 = vunpack.c.l.b16 %v542
        %v1756 = vunpack.c.h.b16 %v542
        %v1757 = vunpack.c.l.b16 %v543
        %v1758 = vunpack.c.h.b16 %v543
        %v1759 = vunpack.c.l.b16 %v544
        %v1760 = vunpack.c.h.b16 %v544
        %v1761 = vunpack.c.l.b16 %v545
        %v1762 = vunpack.c.h.b16 %v545
        %v1763 = vunpack.c.l.b16 %v546
        %v1764 = vunpack.c.h.b16 %v546
        %v1765 = vunpack.c.l.b16 %v547
        %v1766 = vunpack.c.l.b16 %v548
        %v1767 = vunpack.c.h.b16 %v548
        %v1768 = vunpack.c.l.b16 %v549
        %v1769 = vunpack.c.h.b16 %v549
        %v1770 = vunpack.c.l.b16 %v550
        %v1771 = vunpack.c.h.b16 %v550
        %v1772 = vunpack.c.l.b16 %v551
        %v1773 = vunpack.c.h.b16 %v551
        %v1774 = vunpack.c.l.b16 %v552
        %v1775 = vunpack.c.h.b16 %v552
        %v1776 = vunpack.c.l.b16 %v553
        %v1777 = vunpack.c.l.b16 %v554
        %v1778 = vunpack.c.h.b16 %v554
        %v1779 = vunpack.c.l.b16 %v555
        %v1780 = vunpack.c.h.b16 %v555
        %v1781 = vunpack.c.l.b16 %v556
        %v1782 = vunpack.c.h.b16 %v556
        %v1783 = vunpack.c.l.b16 %v557
        %v1784 = vunpack.c.h.b16 %v557
        %v1785 = vunpack.c.l.b16 %v558
        %v1786 = vunpack.c.h.b16 %v558
        %v1787 = vunpack.c.l.b16 %v559
        %v1788 = vunpack.c.l.b16 %v560
        %v1789 = vunpack.c.h.b16 %v560
        %v1790 = vunpack.c.l.b16 %v561
        %v1791 = vunpack.c.h.b16 %v561
        %v1792 = vunpack.c.l.b16 %v562
        %v1793 = vunpack.c.h.b16 %v562
        %v1794 = vunpack.c.l.b16 %v563
        %v1795 = vunpack.c.h.b16 %v563
        %v1796 = vunpack.c.l.b16 %v564
        %v1797 = vunpack.c.h.b16 %v564
        %v1798 = vunpack.c.l.b16 %v565
        %v1799 = vunpack.c.l.b16 %v566
        %v1800 = vunpack.c.h.b16 %v566
        %v1801 = vunpack.c.l.b16 %v567
        %v1802 = vunpack.c.h.b16 %v567
        %v1803 = vunpack.c.l.b16 %v568
        %v1804 = vunpack.c.h.b16 %v568
        %v1805 = vunpack.c.l.b16 %v569
        %v1806 = vunpack.c.h.b16 %v569
        %v1807 = vunpack.c.l.b16 %v570
        %v1808 = vunpack.c.h.b16 %v570
        %v1809 = vunpack.c.l.b16 %v571
        %v1810 = vunpack.c.l.b16 %v572
        %v1811 = vunpack.c.h.b16 %v572
        %v1812 = vunpack.c.l.b16 %v573
        %v1813 = vunpack.c.h.b16 %v573
        %v1814 = vunpack.c.l.b16 %v574
        %v1815 = vunpack.c.h.b16 %v574
        %v1816 = vunpack.c.l.b16 %v575
        %v1817 = vunpack.c.h.b16 %v575
        %v1818 = vunpack.c.l.b16 %v576
        %v1819 = vunpack.c.h.b16 %v576
        %v1820 = vunpack.c.l.b16 %v577
        %v1821 = vunpack.c.l.b16 %v578
        %v1822 = vunpack.c.h.b16 %v578
        %v1823 = vunpack.c.l.b16 %v579
        %v1824 = vunpack.c.h.b16 %v579
        %v1825 = vunpack.c.l.b16 %v580
        %v1826 = vunpack.c.h.b16 %v580
        %v1827 = vunpack.c.l.b16 %v581
        %v1828 = vunpack.c.h.b16 %v581
        %v1829 = vunpack.c.l.b16 %v582
        %v1830 = vunpack.c.h.b16 %v582
        %v1831 = vunpack.c.l.b16 %v583
        %v1832 = vunpack.c.l.b16 %v584
        %v1833 = vunpack.c.h.b16 %v584
        %v1834 = vunpack.c.l.b16 %v585
        %v1835 = vunpack.c.h.b16 %v585
        %v1836 = vunpack.c.l.b16 %v586
        %v1837 = vunpack.c.h.b16 %v586
        %v1838 = vunpack.c.l.b16 %v587
        %v1839 = vunpack.c.h.b16 %v587
        %v1840 = vunpack.c.l.b16 %v588
        %v1841 = vunpack.c.h.b16 %v588
        %v1842 = vunpack.c.l.b16 %v589
        %v1843 = vunpack.c.l.b16 %v590
        %v1844 = vunpack.c.h.b16 %v590
        %v1845 = vunpack.c.l.b16 %v591
        %v1846 = vunpack.c.h.b16 %v591
        %v1847 = vunpack.c.l.b16 %v592
        %v1848 = vunpack.c.h.b16 %v592
        %v1849 = vunpack.c.l.b16 %v593
        %v1850 = vunpack.c.h.b16 %v593
        %v1851 = vunpack.c.l.b16 %v594
        %v1852 = vunpack.c.h.b16 %v594
        %v1853 = vunpack.c.l.b16 %v595
        %v1854 = vunpack.c.l.b16 %v596
        %v1855 = vunpack.c.h.b16 %v596
        %v1856 = vunpack.c.l.b16 %v597
        %v1857 = vunpack.c.h.b16 %v597
        %v1858 = vunpack.c.l.b16 %v598
        %v1859 = vunpack.c.h.b16 %v598
        %v1860 = vunpack.c.l.b16 %v599
        %v1861 = vunpack.c.h.b16 %v599
        %v1862 = vunpack.c.l.b16 %v600
        %v1863 = vunpack.c.h.b16 %v600
        %v1864 = vunpack.c.l.b16 %v601
        %v1865 = vunpack.c.l.b16 %v602
        %v1866 = vunpack.c.h.b16 %v602
        %v1867 = vunpack.c.l.b16 %v603
        %v1868 = vunpack.c.h.b16 %v603
        %v1869 = vunpack.c.l.b16 %v604
        %v1870 = vunpack.c.h.b16 %v604
        %v1871 = vunpack.c.l.b16 %v605
        %v1872 = vunpack.c.h.b16 %v605
        %v1873 = vunpack.c.l.b16 %v606
        %v1874 = vunpack.c.h.b16 %v606
        %v1875 = vunpack.c.l.b16 %v607
        %v1876 = vpack.c.b16 %v1183, %v1172
        %v1877 = vpack.c.b16 %v1184, %v1173
        %v1878 = vpack.c.b16 %v1185, %v1174
        %v1879 = vpack.c.b16 %v1186, %v1175
        %v1880 = vpack.c.b16 %v1187, %v1176
        %v1881 = vpack.c.b16 %v1188, %v1177
        %v1882 = vpack.c.b16 %v1189, %v1178
        %v1883 = vpack.c.b16 %v1190, %v1179
        %v1884 = vpack.c.b16 %v1191, %v1180
        %v1885 = vpack.c.b16 %v1192, %v1181
        %v1886 = vpack.c.b16 %v1193, %v1182
        %v1887 = vpack.c.b16 %v1205, %v1194
        %v1888 = vpack.c.b16 %v1206, %v1195
        %v1889 = vpack.c.b16 %v1207, %v1196
        %v1890 = vpack.c.b16 %v1208, %v1197
        %v1891 = vpack.c.b16 %v1209, %v1198
        %v1892 = vpack.c.b16 %v1210, %v1199
        %v1893 = vpack.c.b16 %v1211, %v1200
        %v1894 = vpack.c.b16 %v1212, %v1201
        %v1895 = vpack.c.b16 %v1213, %v1202
        %v1896 = vpack.c.b16 %v1214, %v1203
        %v1897 = vpack.c.b16 %v1215, %v1204
        %v1898 = vpack.c.b16 %v1227, %v1216
        %v1899 = vpack.c.b16 %v1228, %v1217
        %v1900 = vpack.c.b16 %v1229, %v1218
        %v1901 = vpack.c.b16 %v1230, %v1219
        %v1902 = vpack.c.b16 %v1231, %v1220
        %v1903 = vpack.c.b16 %v1232, %v1221
        %v1904 = vpack.c.b16 %v1233, %v1222
        %v1905 = vpack.c.b16 %v1234, %v1223
        %v1906 = vpack.c.b16 %v1235, %v1224
        %v1907 = vpack.c.b16 %v1236, %v1225
        %v1908 = vpack.c.b16 %v1237, %v1226
        %v1909 = vpack.c.b16 %v1249, %v1238
        %v1910 = vpack.c.b16 %v1250, %v1239
        %v1911 = vpack.c.b16 %v1251, %v1240
        %v1912 = vpack.c.b16 %v1252, %v1241
        %v1913 = vpack.c.b16 %v1253, %v1242
        %v1914 = vpack.c.b16 %v1254, %v1243
        %v1915 = vpack.c.b16 %v1255, %v1244
        %v1916 = vpack.c.b16 %v1256, %v1245
        %v1917 = vpack.c.b16 %v1257, %v1246
        %v1918 = vpack.c.b16 %v1258, %v1247
        %v1919 = vpack.c.b16 %v1259, %v1248
        %v1920 = vpack.c.b16 %v1271, %v1260
        %v1921 = vpack.c.b16 %v1272, %v1261
        %v1922 = vpack.c.b16 %v1273, %v1262
        %v1923 = vpack.c.b16 %v1274, %v1263
        %v1924 = vpack.c.b16 %v1275, %v1264
        %v1925 = vpack.c.b16 %v1276, %v1265
        %v1926 = vpack.c.b16 %v1277, %v1266
        %v1927 = vpack.c.b16 %v1278, %v1267
        %v1928 = vpack.c.b16 %v1279, %v1268
        %v1929 = vpack.c.b16 %v1280, %v1269
        %v1930 = vpack.c.b16 %v1281, %v1270
        %v1931 = vpack.c.b16 %v1293, %v1282
        %v1932 = vpack.c.b16 %v1294, %v1283
        %v1933 = vpack.c.b16 %v1295, %v1284
        %v1934 = vpack.c.b16 %v1296, %v1285
        %v1935 = vpack.c.b16 %v1297, %v1286
        %v1936 = vpack.c.b16 %v1298, %v1287
        %v1937 = vpack.c.b16 %v1299, %v1288
        %v1938 = vpack.c.b16 %v1300, %v1289
        %v1939 = vpack.c.b16 %v1301, %v1290
        %v1940 = vpack.c.b16 %v1302, %v1291
        %v1941 = vpack.c.b16 %v1303, %v1292
        %v1942 = vpack.c.b16 %v1315, %v1304
        %v1943 = vpack.c.b16 %v1316, %v1305
        %v1944 = vpack.c.b16 %v1317, %v1306
        %v1945 = vpack.c.b16 %v1318, %v1307
        %v1946 = vpack.c.b16 %v1319, %v1308
        %v1947 = vpack.c.b16 %v1320, %v1309
        %v1948 = vpack.c.b16 %v1321, %v1310
        %v1949 = vpack.c.b16 %v1322, %v1311
        %v1950 = vpack.c.b16 %v1323, %v1312
        %v1951 = vpack.c.b16 %v1324, %v1313
        %v1952 = vpack.c.b16 %v1325, %v1314
        %v1953 = vpack.c.b16 %v1337, %v1326
        %v1954 = vpack.c.b16 %v1338, %v1327
        %v1955 = vpack.c.b16 %v1339, %v1328
        %v1956 = vpack.c.b16 %v1340, %v1329
        %v1957 = vpack.c.b16 %v1341, %v1330
        %v1958 = vpack.c.b16 %v1342, %v1331
        %v1959 = vpack.c.b16 %v1343, %v1332
        %v1960 = vpack.c.b16 %v1344, %v1333
        %v1961 = vpack.c.b16 %v1345, %v1334
        %v1962 = vpack.c.b16 %v1346, %v1335
        %v1963 = vpack.c.b16 %v1347, %v1336
        %v1964 = vpack.c.b16 %v1359, %v1348
        %v1965 = vpack.c.b16 %v1360, %v1349
        %v1966 = vpack.c.b16 %v1361, %v1350
        %v1967 = vpack.c.b16 %v1362, %v1351
        %v1968 = vpack.c.b16 %v1363, %v1352
        %v1969 = vpack.c.b16 %v1364, %v1353
        %v1970 = vpack.c.b16 %v1365, %v1354
        %v1971 = vpack.c.b16 %v1366, %v1355
        %v1972 = vpack.c.b16 %v1367, %v1356
        %v1973 = vpack.c.b16 %v1368, %v1357
        %v1974 = vpack.c.b16 %v1369, %v1358
        %v1975 = vpack.c.b16 %v1381, %v1370
        %v1976 = vpack.c.b16 %v1382, %v1371
        %v1977 = vpack.c.b16 %v1383, %v1372
        %v1978 = vpack.c.b16 %v1384, %v1373
        %v1979 = vpack.c.b16 %v1385, %v1374
        %v1980 = vpack.c.b16 %v1386, %v1375
        %v1981 = vpack.c.b16 %v1387, %v1376
        %v1982 = vpack.c.b16 %v1388, %v1377
        %v1983 = vpack.c.b16 %v1389, %v1378
        %v1984 = vpack.c.b16 %v1390, %v1379
        %v1985 = vpack.c.b16 %v1391, %v1380
        %v1986 = vpack.c.b16 %v1403, %v1392
        %v1987 = vpack.c.b16 %v1404, %v1393
        %v1988 = vpack.c.b16 %v1405, %v1394
        %v1989 = vpack.c.b16 %v1406, %v1395
        %v1990 = vpack.c.b16 %v1407, %v1396
        %v1991 = vpack.c.b16 %v1408, %v1397
        %v1992 = vpack.c.b16 %v1409, %v1398
        %v1993 = vpack.c.b16 %v1410, %v1399
        %v1994 = vpack.c.b16 %v1411, %v1400
        %v1995 = vpack.c.b16 %v1412, %v1401
        %v1996 = vpack.c.b16 %v1413, %v1402
        %v1997 = vpack.c.b16 %v1425, %v1414
        %v1998 = vpack.c.b16 %v1426, %v1415
        %v1999 = vpack.c.b16 %v1427, %v1416
        %v2000 = vpack.c.b16 %v1428, %v1417
        %v2001 = vpack.c.b16 %v1429, %v1418
        %v2002 = vpack.c.b16 %v1430, %v1419
        %v2003 = vpack.c.b16 %v1431, %v1420
        %v2004 = vpack.c.b16 %v1432, %v1421
        %v2005 = vpack.c.b16 %v1433, %v1422
        %v2006 = vpack.c.b16 %v1434, %v1423
        %v2007 = vpack.c.b16 %v1435, %v1424
        %v2008 = vpack.c.b16 %v1447, %v1436
        %v2009 = vpack.c.b16 %v1448, %v1437
        %v2010 = vpack.c.b16 %v1449, %v1438
        %v2011 = vpack.c.b16 %v1450, %v1439
        %v2012 = vpack.c.b16 %v1451, %v1440
        %v2013 = vpack.c.b16 %v1452, %v1441
        %v2014 = vpack.c.b16 %v1453, %v1442
        %v2015 = vpack.c.b16 %v1454, %v1443
        %v2016 = vpack.c.b16 %v1455, %v1444
        %v2017 = vpack.c.b16 %v1456, %v1445
        %v2018 = vpack.c.b16 %v1457, %v1446
        %v2019 = vpack.c.b16 %v1469, %v1458
        %v2020 = vpack.c.b16 %v1470, %v1459
        %v2021 = vpack.c.b16 %v1471, %v1460
        %v2022 = vpack.c.b16 %v1472, %v1461
        %v2023 = vpack.c.b16 %v1473, %v1462
        %v2024 = vpack.c.b16 %v1474, %v1463
        %v2025 = vpack.c.b16 %v1475, %v1464
        %v2026 = vpack.c.b16 %v1476, %v1465
        %v2027 = vpack.c.b16 %v1477, %v1466
        %v2028 = vpack.c.b16 %v1478, %v1467
        %v2029 = vpack.c.b16 %v1479, %v1468
        %v2030 = vpack.c.b16 %v1491, %v1480
        %v2031 = vpack.c.b16 %v1492, %v1481
        %v2032 = vpack.c.b16 %v1493, %v1482
        %v2033 = vpack.c.b16 %v1494, %v1483
        %v2034 = vpack.c.b16 %v1495, %v1484
        %v2035 = vpack.c.b16 %v1496, %v1485
        %v2036 = vpack.c.b16 %v1497, %v1486
        %v2037 = vpack.c.b16 %v1498, %v1487
        %v2038 = vpack.c.b16 %v1499, %v1488
        %v2039 = vpack.c.b16 %v1500, %v1489
        %v2040 = vpack.c.b16 %v1501, %v1490
        %v2041 = vpack.c.b16 %v1513, %v1502
        %v2042 = vpack.c.b16 %v1514, %v1503
        %v2043 = vpack.c.b16 %v1515, %v1504
        %v2044 = vpack.c.b16 %v1516, %v1505
        %v2045 = vpack.c.b16 %v1517, %v1506
        %v2046 = vpack.c.b16 %v1518, %v1507
        %v2047 = vpack.c.b16 %v1519, %v1508
        %v2048 = vpack.c.b16 %v1520, %v1509
        %v2049 = vpack.c.b16 %v1521, %v1510
        %v2050 = vpack.c.b16 %v1522, %v1511
        %v2051 = vpack.c.b16 %v1523, %v1512
        %v2052 = vpack.c.b16 %v1535, %v1524
        %v2053 = vpack.c.b16 %v1536, %v1525
        %v2054 = vpack.c.b16 %v1537, %v1526
        %v2055 = vpack.c.b16 %v1538, %v1527
        %v2056 = vpack.c.b16 %v1539, %v1528
        %v2057 = vpack.c.b16 %v1540, %v1529
        %v2058 = vpack.c.b16 %v1541, %v1530
        %v2059 = vpack.c.b16 %v1542, %v1531
        %v2060 = vpack.c.b16 %v1543, %v1532
        %v2061 = vpack.c.b16 %v1544, %v1533
        %v2062 = vpack.c.b16 %v1545, %v1534
        %v2063 = vpack.c.b16 %v1557, %v1546
        %v2064 = vpack.c.b16 %v1558, %v1547
        %v2065 = vpack.c.b16 %v1559, %v1548
        %v2066 = vpack.c.b16 %v1560, %v1549
        %v2067 = vpack.c.b16 %v1561, %v1550
        %v2068 = vpack.c.b16 %v1562, %v1551
        %v2069 = vpack.c.b16 %v1563, %v1552
        %v2070 = vpack.c.b16 %v1564, %v1553
        %v2071 = vpack.c.b16 %v1565, %v1554
        %v2072 = vpack.c.b16 %v1566, %v1555
        %v2073 = vpack.c.b16 %v1567, %v1556
        %v2074 = vpack.c.b16 %v1579, %v1568
        %v2075 = vpack.c.b16 %v1580, %v1569
        %v2076 = vpack.c.b16 %v1581, %v1570
        %v2077 = vpack.c.b16 %v1582, %v1571
        %v2078 = vpack.c.b16 %v1583, %v1572
        %v2079 = vpack.c.b16 %v1584, %v1573
        %v2080 = vpack.c.b16 %v1585, %v1574
        %v2081 = vpack.c.b16 %v1586, %v1575
        %v2082 = vpack.c.b16 %v1587, %v1576
        %v2083 = vpack.c.b16 %v1588, %v1577
        %v2084 = vpack.c.b16 %v1589, %v1578
        %v2085 = vpack.c.b16 %v1601, %v1590
        %v2086 = vpack.c.b16 %v1602, %v1591
        %v2087 = vpack.c.b16 %v1603, %v1592
        %v2088 = vpack.c.b16 %v1604, %v1593
        %v2089 = vpack.c.b16 %v1605, %v1594
        %v2090 = vpack.c.b16 %v1606, %v1595
        %v2091 = vpack.c.b16 %v1607, %v1596
        %v2092 = vpack.c.b16 %v1608, %v1597
        %v2093 = vpack.c.b16 %v1609, %v1598
        %v2094 = vpack.c.b16 %v1610, %v1599
        %v2095 = vpack.c.b16 %v1611, %v1600
        %v2096 = vpack.c.b16 %v1623, %v1612
        %v2097 = vpack.c.b16 %v1624, %v1613
        %v2098 = vpack.c.b16 %v1625, %v1614
        %v2099 = vpack.c.b16 %v1626, %v1615
        %v2100 = vpack.c.b16 %v1627, %v1616
        %v2101 = vpack.c.b16 %v1628, %v1617
        %v2102 = vpack.c.b16 %v1629, %v1618
        %v2103 = vpack.c.b16 %v1630, %v1619
        %v2104 = vpack.c.b16 %v1631, %v1620
        %v2105 = vpack.c.b16 %v1632, %v1621
        %v2106 = vpack.c.b16 %v1633, %v1622
        %v2107 = vpack.c.b16 %v1645, %v1634
        %v2108 = vpack.c.b16 %v1646, %v1635
        %v2109 = vpack.c.b16 %v1647, %v1636
        %v2110 = vpack.c.b16 %v1648, %v1637
        %v2111 = vpack.c.b16 %v1649, %v1638
        %v2112 = vpack.c.b16 %v1650, %v1639
        %v2113 = vpack.c.b16 %v1651, %v1640
        %v2114 = vpack.c.b16 %v1652, %v1641
        %v2115 = vpack.c.b16 %v1653, %v1642
        %v2116 = vpack.c.b16 %v1654, %v1643
        %v2117 = vpack.c.b16 %v1655, %v1644
        %v2118 = vpack.c.b16 %v1667, %v1656
        %v2119 = vpack.c.b16 %v1668, %v1657
        %v2120 = vpack.c.b16 %v1669, %v1658
        %v2121 = vpack.c.b16 %v1670, %v1659
        %v2122 = vpack.c.b16 %v1671, %v1660
        %v2123 = vpack.c.b16 %v1672, %v1661
        %v2124 = vpack.c.b16 %v1673, %v1662
        %v2125 = vpack.c.b16 %v1674, %v1663
        %v2126 = vpack.c.b16 %v1675, %v1664
        %v2127 = vpack.c.b16 %v1676, %v1665
        %v2128 = vpack.c.b16 %v1677, %v1666
        %v2129 = vpack.c.b16 %v1689, %v1678
        %v2130 = vpack.c.b16 %v1690, %v1679
        %v2131 = vpack.c.b16 %v1691, %v1680
        %v2132 = vpack.c.b16 %v1692, %v1681
        %v2133 = vpack.c.b16 %v1693, %v1682
        %v2134 = vpack.c.b16 %v1694, %v1683
        %v2135 = vpack.c.b16 %v1695, %v1684
        %v2136 = vpack.c.b16 %v1696, %v1685
        %v2137 = vpack.c.b16 %v1697, %v1686
        %v2138 = vpack.c.b16 %v1698, %v1687
        %v2139 = vpack.c.b16 %v1699, %v1688
        %v2140 = vpack.c.b16 %v1711, %v1700
        %v2141 = vpack.c.b16 %v1712, %v1701
        %v2142 = vpack.c.b16 %v1713, %v1702
        %v2143 = vpack.c.b16 %v1714, %v1703
        %v2144 = vpack.c.b16 %v1715, %v1704
        %v2145 = vpack.c.b16 %v1716, %v1705
        %v2146 = vpack.c.b16 %v1717, %v1706
        %v2147 = vpack.c.b16 %v1718, %v1707
        %v2148 = vpack.c.b16 %v1719, %v1708
        %v2149 = vpack.c.b16 %v1720, %v1709
        %v2150 = vpack.c.b16 %v1721, %v1710
        %v2151 = vpack.c.b16 %v1733, %v1722
        %v2152 = vpack.c.b16 %v1734, %v1723
        %v2153 = vpack.c.b16 %v1735, %v1724
        %v2154 = vpack.c.b16 %v1736, %v1725
        %v2155 = vpack.c.b16 %v1737, %v1726
        %v2156 = vpack.c.b16 %v1738, %v1727
        %v2157 = vpack.c.b16 %v1739, %v1728
        %v2158 = vpack.c.b16 %v1740, %v1729
        %v2159 = vpack.c.b16 %v1741, %v1730
        %v2160 = vpack.c.b16 %v1742, %v1731
        %v2161 = vpack.c.b16 %v1743, %v1732
        %v2162 = vpack.c.b16 %v1755, %v1744
        %v2163 = vpack.c.b16 %v1756, %v1745
        %v2164 = vpack.c.b16 %v1757, %v1746
        %v2165 = vpack.c.b16 %v1758, %v1747
        %v2166 = vpack.c.b16 %v1759, %v1748
        %v2167 = vpack.c.b16 %v1760, %v1749
        %v2168 = vpack.c.b16 %v1761, %v1750
        %v2169 = vpack.c.b16 %v1762, %v1751
        %v2170 = vpack.c.b16 %v1763, %v1752
        %v2171 = vpack.c.b16 %v1764, %v1753
        %v2172 = vpack.c.b16 %v1765, %v1754
        %v2173 = vpack.c.b16 %v1777, %v1766
        %v2174 = vpack.c.b16 %v1778, %v1767
        %v2175 = vpack.c.b16 %v1779, %v1768
        %v2176 = vpack.c.b16 %v1780, %v1769
        %v2177 = vpack.c.b16 %v1781, %v1770
        %v2178 = vpack.c.b16 %v1782, %v1771
        %v2179 = vpack.c.b16 %v1783, %v1772
        %v2180 = vpack.c.b16 %v1784, %v1773
        %v2181 = vpack.c.b16 %v1785, %v1774
        %v2182 = vpack.c.b16 %v1786, %v1775
        %v2183 = vpack.c.b16 %v1787, %v1776
        %v2184 = vpack.c.b16 %v1799, %v1788
        %v2185 = vpack.c.b16 %v1800, %v1789
        %v2186 = vpack.c.b16 %v1801, %v1790
        %v2187 = vpack.c.b16 %v1802, %v1791
        %v2188 = vpack.c.b16 %v1803, %v1792
        %v2189 = vpack.c.b16 %v1804, %v1793
        %v2190 = vpack.c.b16 %v1805, %v1794
        %v2191 = vpack.c.b16 %v1806, %v1795
        %v2192 = vpack.c.b16 %v1807, %v1796
        %v2193 = vpack.c.b16 %v1808, %v1797
        %v2194 = vpack.c.b16 %v1809, %v1798
        %v2195 = vpack.c.b16 %v1821, %v1810
        %v2196 = vpack.c.b16 %v1822, %v1811
        %v2197 = vpack.c.b16 %v1823, %v1812
        %v2198 = vpack.c.b16 %v1824, %v1813
        %v2199 = vpack.c.b16 %v1825, %v1814
        %v2200 = vpack.c.b16 %v1826, %v1815
        %v2201 = vpack.c.b16 %v1827, %v1816
        %v2202 = vpack.c.b16 %v1828, %v1817
        %v2203 = vpack.c.b16 %v1829, %v1818
        %v2204 = vpack.c.b16 %v1830, %v1819
        %v2205 = vpack.c.b16 %v1831, %v1820
        %v2206 = vpack.c.b16 %v1843, %v1832
        %v2207 = vpack.c.b16 %v1844, %v1833
        %v2208 = vpack.c.b16 %v1845, %v1834
        %v2209 = vpack.c.b16 %v1846, %v1835
        %v2210 = vpack.c.b16 %v1847, %v1836
        %v2211 = vpack.c.b16 %v1848, %v1837
        %v2212 = vpack.c.b16 %v1849, %v1838
        %v2213 = vpack.c.b16 %v1850, %v1839
        %v2214 = vpack.c.b16 %v1851, %v1840
        %v2215 = vpack.c.b16 %v1852, %v1841
        %v2216 = vpack.c.b16 %v1853, %v1842
        %v2217 = vpack.c.b16 %v1865, %v1854
        %v2218 = vpack.c.b16 %v1866, %v1855
        %v2219 = vpack.c.b16 %v1867, %v1856
        %v2220 = vpack.c.b16 %v1868, %v1857
        %v2221 = vpack.c.b16 %v1869, %v1858
        %v2222 = vpack.c.b16 %v1870, %v1859
        %v2223 = vpack.c.b16 %v1871, %v1860
        %v2224 = vpack.c.b16 %v1872, %v1861
        %v2225 = vpack.c.b16 %v1873, %v1862
        %v2226 = vpack.c.b16 %v1874, %v1863
        %v2227 = vpack.c.b16 %v1875, %v1864
        %v2756 = vunpack.c.l.b16 %v608
        %v2757 = vunpack.c.l.b16 %v609
        %v2758 = vunpack.c.l.b16 %v610
        %v2759 = vunpack.c.l.b16 %v611
        %v2760 = vunpack.c.l.b16 %v612
        %v2761 = vunpack.c.l.b16 %v613
        %v2762 = vunpack.c.l.b16 %v614
        %v2763 = vunpack.c.l.b16 %v615
        %v2764 = vunpack.c.l.b16 %v616
        %v2765 = vunpack.c.l.b16 %v617
        %v2766 = vunpack.c.l.b16 %v618
        %v2767 = vunpack.c.l.b16 %v619
        %v2768 = vunpack.c.l.b16 %v620
        %v2769 = vunpack.c.l.b16 %v621
        %v2770 = vunpack.c.l.b16 %v622
        %v2771 = vunpack.c.l.b16 %v623
        %v2772 = vunpack.c.l.b16 %v624
        %v2773 = vunpack.c.l.b16 %v625
        %v2774 = vunpack.c.l.b16 %v626
        %v2775 = vunpack.c.l.b16 %v627
        %v2776 = vunpack.c.l.b16 %v628
        %v2777 = vunpack.c.l.b16 %v629
        %v2778 = vunpack.c.l.b16 %v630
        %v2779 = vunpack.c.l.b16 %v631
        %v2780 = vunpack.c.l.b16 %v632
        %v2781 = vunpack.c.l.b16 %v633
        %v2782 = vunpack.c.l.b16 %v634
        %v2783 = vunpack.c.l.b16 %v635
        %v2784 = vunpack.c.l.b16 %v636
        %v2785 = vunpack.c.l.b16 %v637
        %v2786 = vunpack.c.l.b16 %v638
        %v2787 = vunpack.c.l.b16 %v639
        %v2788 = vunpack.c.l.b16 %v640
        %v2789 = vunpack.c.l.b16 %v641
        %v2790 = vunpack.c.l.b16 %v642
        %v2791 = vunpack.c.l.b16 %v643
        %v2792 = vunpack.c.l.b16 %v644
        %v2793 = vunpack.c.l.b16 %v645
        %v2794 = vunpack.c.l.b16 %v646
        %v2795 = vunpack.c.l.b16 %v647
        %v2796 = vunpack.c.l.b16 %v648
        %v2797 = vunpack.c.l.b16 %v649
        %v2798 = vunpack.c.l.b16 %v650
        %v2799 = vunpack.c.l.b16 %v651
        %v2800 = vunpack.c.l.b16 %v652
        %v2801 = vunpack.c.l.b16 %v653
        %v2802 = vunpack.c.l.b16 %v654
        %v2803 = vunpack.c.l.b16 %v655
        %v2804 = vunpack.c.l.b16 %v656
        %v2805 = vunpack.c.l.b16 %v657
        %v2806 = vunpack.c.l.b16 %v658
        %v2807 = vunpack.c.l.b16 %v659
        %v2808 = vunpack.c.l.b16 %v660
        %v2809 = vunpack.c.l.b16 %v661
        %v2810 = vunpack.c.l.b16 %v662
        %v2811 = vunpack.c.l.b16 %v663
        %v2812 = vunpack.c.l.b16 %v664
        %v2813 = vunpack.c.l.b16 %v665
        %v2814 = vunpack.c.l.b16 %v666
        %v2815 = vunpack.c.l.b16 %v667
        %v2816 = vunpack.c.l.b16 %v668
        %v2817 = vunpack.c.l.b16 %v669
        %v2818 = vunpack.c.l.b16 %v670
        %v2819 = vunpack.c.l.b16 %v671
        %v2820 = vunpack.c.l.b16 %v672
        %v2821 = vunpack.c.l.b16 %v673
        %v2822 = vunpack.c.l.b16 %v674
        %v2823 = vunpack.c.l.b16 %v675
        %v2824 = vunpack.c.l.b16 %v676
        %v2825 = vunpack.c.l.b16 %v677
        %v2826 = vunpack.c.l.b16 %v678
        %v2827 = vunpack.c.l.b16 %v679
        %v2828 = vunpack.c.l.b16 %v680
        %v2829 = vunpack.c.l.b16 %v681
        %v2830 = vunpack.c.l.b16 %v682
        %v2831 = vunpack.c.l.b16 %v683
        %v2832 = vunpack.c.l.b16 %v684
        %v2833 = vunpack.c.l.b16 %v685
        %v2834 = vunpack.c.l.b16 %v686
        %v2835 = vunpack.c.l.b16 %v687
        %v2836 = vunpack.c.l.b16 %v688
        %v2837 = vunpack.c.l.b16 %v689
        %v2838 = vunpack.c.l.b16 %v690
        %v2839 = vunpack.c.l.b16 %v691
        %v2840 = vunpack.c.l.b16 %v692
        %v2841 = vunpack.c.l.b16 %v693
        %v2842 = vunpack.c.l.b16 %v694
        %v2843 = vunpack.c.l.b16 %v695
        %v2844 = vunpack.c.l.b16 %v696
        %v2845 = vunpack.c.l.b16 %v697
        %v2846 = vunpack.c.l.b16 %v698
        %v2847 = vunpack.c.l.b16 %v699
        %v2848 = vunpack.c.l.b16 %v700
        %v2849 = vunpack.c.l.b16 %v701
        %v2850 = vunpack.c.l.b16 %v702
        %v2851 = vunpack.c.l.b16 %v703
        %v2852 = vunpack.c.l.b16 %v704
        %v2853 = vunpack.c.l.b16 %v705
        %v2854 = vunpack.c.l.b16 %v706
        %v2855 = vunpack.c.l.b16 %v707
        %v2856 = vunpack.c.l.b16 %v708
        %v2857 = vunpack.c.l.b16 %v709
        %v2858 = vunpack.c.l.b16 %v710
        %v2859 = vunpack.c.l.b16 %v711
        %v2860 = vunpack.c.l.b16 %v712
        %v2861 = vunpack.c.l.b16 %v713
        %v2862 = vunpack.c.l.b16 %v714
        %v2863 = vunpack.c.l.b16 %v715
        %v2864 = vunpack.c.l.b16 %v716
        %v2865 = vunpack.c.l.b16 %v717
        %v2866 = vunpack.c.l.b16 %v718
        %v2867 = vunpack.c.l.b16 %v719
        %v2868 = vunpack.c.l.b16 %v720
        %v2869 = vunpack.c.l.b16 %v721
        %v2870 = vunpack.c.l.b16 %v722
        %v2871 = vunpack.c.l.b16 %v723
        %v2872 = vunpack.c.l.b16 %v724
        %v2873 = vunpack.c.l.b16 %v725
        %v2874 = vunpack.c.l.b16 %v726
        %v2875 = vunpack.c.l.b16 %v727
        %v2876 = vunpack.c.l.b16 %v728
        %v2877 = vunpack.c.l.b16 %v729
        %v2878 = vunpack.c.l.b16 %v730
        %v2879 = vunpack.c.l.b16 %v731
        %v2880 = vunpack.c.l.b16 %v732
        %v2881 = vunpack.c.l.b16 %v733
        %v2882 = vunpack.c.l.b16 %v734
        %v2883 = vunpack.c.l.b16 %v735
        %v2884 = vunpack.c.l.b16 %v736
        %v2885 = vunpack.c.l.b16 %v737
        %v2886 = vunpack.c.l.b16 %v738
        %v2887 = vunpack.c.l.b16 %v739
        %v2888 = vunpack.c.l.b16 %v740
        %v2889 = vunpack.c.l.b16 %v741
        %v2890 = vunpack.c.l.b16 %v742
        %v2891 = vunpack.c.l.b16 %v743
        %v2892 = vunpack.c.l.b16 %v744
        %v2893 = vunpack.c.l.b16 %v745
        %v2894 = vunpack.c.l.b16 %v746
        %v2895 = vunpack.c.l.b16 %v747
        %v2896 = vunpack.c.l.b16 %v748
        %v2897 = vunpack.c.l.b16 %v749
        %v2898 = vunpack.c.l.b16 %v750
        %v2899 = vunpack.c.l.b16 %v751
        %v2900 = vunpack.c.l.b16 %v752
        %v2901 = vunpack.c.l.b16 %v753
        %v2902 = vunpack.c.l.b16 %v754
        %v2903 = vunpack.c.l.b16 %v755
        %v2904 = vunpack.c.l.b16 %v756
        %v2905 = vunpack.c.l.b16 %v757
        %v2906 = vunpack.c.l.b16 %v758
        %v2907 = vunpack.c.l.b16 %v759
        %v2908 = vunpack.c.l.b16 %v760
        %v2909 = vunpack.c.l.b16 %v761
        %v2910 = vunpack.c.l.b16 %v762
        %v2911 = vunpack.c.l.b16 %v763
        %v2912 = vunpack.c.l.b16 %v764
        %v2913 = vunpack.c.l.b16 %v765
        %v2914 = vunpack.c.l.b16 %v766
        %v2915 = vunpack.c.l.b16 %v767
        %v2916 = vunpack.c.l.b16 %v768
        %v2917 = vunpack.c.l.b16 %v769
        %v2918 = vunpack.c.l.b16 %v770
        %v2919 = vunpack.c.l.b16 %v771
        %v2920 = vunpack.c.l.b16 %v772
        %v2921 = vunpack.c.l.b16 %v773
        %v2922 = vunpack.c.l.b16 %v774
        %v2923 = vunpack.c.l.b16 %v775
        %v2924 = vunpack.c.l.b16 %v776
        %v2925 = vunpack.c.l.b16 %v777
        %v2926 = vunpack.c.l.b16 %v778
        %v2927 = vunpack.c.l.b16 %v779
        %v2928 = vunpack.c.l.b16 %v780
        %v2929 = vunpack.c.l.b16 %v781
        %v2930 = vunpack.c.l.b16 %v782
        %v2931 = vunpack.c.l.b16 %v783
        %v2932 = vpack.c.b16 %v2757, %v2756
        %v2933 = vpack.c.b16 %v2759, %v2758
        %v2934 = vpack.c.b16 %v2761, %v2760
        %v2935 = vpack.c.b16 %v2763, %v2762
        %v2936 = vpack.c.b16 %v2765, %v2764
        %v2937 = vpack.c.b16 %v2767, %v2766
        %v2938 = vpack.c.b16 %v2769, %v2768
        %v2939 = vpack.c.b16 %v2771, %v2770
        %v2940 = vpack.c.b16 %v2773, %v2772
        %v2941 = vpack.c.b16 %v2775, %v2774
        %v2942 = vpack.c.b16 %v2777, %v2776
        %v2943 = vpack.c.b16 %v2779, %v2778
        %v2944 = vpack.c.b16 %v2781, %v2780
        %v2945 = vpack.c.b16 %v2783, %v2782
        %v2946 = vpack.c.b16 %v2785, %v2784
        %v2947 = vpack.c.b16 %v2787, %v2786
        %v2948 = vpack.c.b16 %v2789, %v2788
        %v2949 = vpack.c.b16 %v2791, %v2790
        %v2950 = vpack.c.b16 %v2793, %v2792
        %v2951 = vpack.c.b16 %v2795, %v2794
        %v2952 = vpack.c.b16 %v2797, %v2796
        %v2953 = vpack.c.b16 %v2799, %v2798
        %v2954 = vpack.c.b16 %v2801, %v2800
        %v2955 = vpack.c.b16 %v2803, %v2802
        %v2956 = vpack.c.b16 %v2805, %v2804
        %v2957 = vpack.c.b16 %v2807, %v2806
        %v2958 = vpack.c.b16 %v2809, %v2808
        %v2959 = vpack.c.b16 %v2811, %v2810
        %v2960 = vpack.c.b16 %v2813, %v2812
        %v2961 = vpack.c.b16 %v2815, %v2814
        %v2962 = vpack.c.b16 %v2817, %v2816
        %v2963 = vpack.c.b16 %v2819, %v2818
        %v2964 = vpack.c.b16 %v2821, %v2820
        %v2965 = vpack.c.b16 %v2823, %v2822
        %v2966 = vpack.c.b16 %v2825, %v2824
        %v2967 = vpack.c.b16 %v2827, %v2826
        %v2968 = vpack.c.b16 %v2829, %v2828
        %v2969 = vpack.c.b16 %v2831, %v2830
        %v2970 = vpack.c.b16 %v2833, %v2832
        %v2971 = vpack.c.b16 %v2835, %v2834
        %v2972 = vpack.c.b16 %v2837, %v2836
        %v2973 = vpack.c.b16 %v2839, %v2838
        %v2974 = vpack.c.b16 %v2841, %v2840
        %v2975 = vpack.c.b16 %v2843, %v2842
        %v2976 = vpack.c.b16 %v2845, %v2844
        %v2977 = vpack.c.b16 %v2847, %v2846
        %v2978 = vpack.c.b16 %v2849, %v2848
        %v2979 = vpack.c.b16 %v2851, %v2850
        %v2980 = vpack.c.b16 %v2853, %v2852
        %v2981 = vpack.c.b16 %v2855, %v2854
        %v2982 = vpack.c.b16 %v2857, %v2856
        %v2983 = vpack.c.b16 %v2859, %v2858
        %v2984 = vpack.c.b16 %v2861, %v2860
        %v2985 = vpack.c.b16 %v2863, %v2862
        %v2986 = vpack.c.b16 %v2865, %v2864
        %v2987 = vpack.c.b16 %v2867, %v2866
        %v2988 = vpack.c.b16 %v2869, %v2868
        %v2989 = vpack.c.b16 %v2871, %v2870
        %v2990 = vpack.c.b16 %v2873, %v2872
        %v2991 = vpack.c.b16 %v2875, %v2874
        %v2992 = vpack.c.b16 %v2877, %v2876
        %v2993 = vpack.c.b16 %v2879, %v2878
        %v2994 = vpack.c.b16 %v2881, %v2880
        %v2995 = vpack.c.b16 %v2883, %v2882
        %v2996 = vpack.c.b16 %v2885, %v2884
        %v2997 = vpack.c.b16 %v2887, %v2886
        %v2998 = vpack.c.b16 %v2889, %v2888
        %v2999 = vpack.c.b16 %v2891, %v2890
        %v3000 = vpack.c.b16 %v2893, %v2892
        %v3001 = vpack.c.b16 %v2895, %v2894
        %v3002 = vpack.c.b16 %v2897, %v2896
        %v3003 = vpack.c.b16 %v2899, %v2898
        %v3004 = vpack.c.b16 %v2901, %v2900
        %v3005 = vpack.c.b16 %v2903, %v2902
        %v3006 = vpack.c.b16 %v2905, %v2904
        %v3007 = vpack.c.b16 %v2907, %v2906
        %v3008 = vpack.c.b16 %v2909, %v2908
        %v3009 = vpack.c.b16 %v2911, %v2910
        %v3010 = vpack.c.b16 %v2913, %v2912
        %v3011 = vpack.c.b16 %v2915, %v2914
        %v3012 = vpack.c.b16 %v2917, %v2916
        %v3013 = vpack.c.b16 %v2919, %v2918
        %v3014 = vpack.c.b16 %v2921, %v2920
        %v3015 = vpack.c.b16 %v2923, %v2922
        %v3016 = vpack.c.b16 %v2925, %v2924
        %v3017 = vpack.c.b16 %v2927, %v2926
        %v3018 = vpack.c.b16 %v2929, %v2928
        %v3019 = vpack.c.b16 %v2931, %v2930
        %3108 = vmatpush.bf16.msra.mxu0 %v2939
        %3109 = vmatpush.bf16.msra.mxu0 %v2938
        %3110 = vmatpush.bf16.msra.mxu0 %v2937
        %3111 = vmatpush.bf16.msra.mxu0 %v2936
        %3112 = vmatpush.bf16.msra.mxu0 %v2935
        %3113 = vmatpush.bf16.msra.mxu0 %v2934
        %3114 = vmatpush.bf16.msra.mxu0 %v2933
        %3115 = vmatpush.bf16.msra.mxu0 %v2932
        %3116 = vmatmul.bf16.gmra.mxu0 %v1876
        %v3117 = vpop.f32.mrf.mxu0
        %v3118 = vadd.f32 %v786, %v3117
        %v3119 = vpop.f32.mrf.mxu0
        %v3120 = vadd.f32 %v786, %v3119
        %3121 = vmatmul.bf16.gmra.mxu0 %v1887
        %v3122 = vpop.f32.mrf.mxu0
        %v3123 = vadd.f32 %v786, %v3122
        %v3124 = vpop.f32.mrf.mxu0
        %v3125 = vadd.f32 %v786, %v3124
        %3126 = vmatmul.bf16.gmra.mxu0 %v1898
        %v3127 = vpop.f32.mrf.mxu0
        %v3128 = vadd.f32 %v786, %v3127
        %v3129 = vpop.f32.mrf.mxu0
        %v3130 = vadd.f32 %v786, %v3129
        %3131 = vmatmul.bf16.gmra.mxu0 %v1909
        %v3132 = vpop.f32.mrf.mxu0
        %v3133 = vadd.f32 %v786, %v3132
        %v3134 = vpop.f32.mrf.mxu0
        %v3135 = vadd.f32 %v786, %v3134
        %3136 = vmatmul.bf16.gmra.mxu0 %v1920
        %v3137 = vpop.f32.mrf.mxu0
        %v3138 = vadd.f32 %v786, %v3137
        %v3139 = vpop.f32.mrf.mxu0
        %v3140 = vadd.f32 %v786, %v3139
        %3141 = vmatmul.bf16.gmra.mxu0 %v1931
        %v3142 = vpop.f32.mrf.mxu0
        %v3143 = vadd.f32 %v786, %v3142
        %v3144 = vpop.f32.mrf.mxu0
        %v3145 = vadd.f32 %v786, %v3144
        %3146 = vmatmul.bf16.gmra.mxu0 %v1942
        %v3147 = vpop.f32.mrf.mxu0
        %v3148 = vadd.f32 %v786, %v3147
        %v3149 = vpop.f32.mrf.mxu0
        %v3150 = vadd.f32 %v786, %v3149
        %3151 = vmatmul.bf16.gmra.mxu0 %v1953
        %v3152 = vpop.f32.mrf.mxu0
        %v3153 = vadd.f32 %v786, %v3152
        %v3154 = vpop.f32.mrf.mxu0
        %v3155 = vadd.f32 %v786, %v3154
        %3156 = vmatmul.bf16.gmra.mxu0 %v1964
        %v3157 = vpop.f32.mrf.mxu0
        %v3158 = vadd.f32 %v786, %v3157
        %v3159 = vpop.f32.mrf.mxu0
        %v3160 = vadd.f32 %v786, %v3159
        %3161 = vmatmul.bf16.gmra.mxu0 %v1975
        %v3162 = vpop.f32.mrf.mxu0
        %v3163 = vadd.f32 %v786, %v3162
        %v3164 = vpop.f32.mrf.mxu0
        %v3165 = vadd.f32 %v786, %v3164
        %3166 = vmatmul.bf16.gmra.mxu0 %v1986
        %v3167 = vpop.f32.mrf.mxu0
        %v3168 = vadd.f32 %v786, %v3167
        %v3169 = vpop.f32.mrf.mxu0
        %v3170 = vadd.f32 %v786, %v3169
        %3171 = vmatmul.bf16.gmra.mxu0 %v1997
        %v3172 = vpop.f32.mrf.mxu0
        %v3173 = vadd.f32 %v786, %v3172
        %v3174 = vpop.f32.mrf.mxu0
        %v3175 = vadd.f32 %v786, %v3174
        %3176 = vmatmul.bf16.gmra.mxu0 %v2008
        %v3177 = vpop.f32.mrf.mxu0
        %v3178 = vadd.f32 %v786, %v3177
        %v3179 = vpop.f32.mrf.mxu0
        %v3180 = vadd.f32 %v786, %v3179
        %3181 = vmatmul.bf16.gmra.mxu0 %v2019
        %v3182 = vpop.f32.mrf.mxu0
        %v3183 = vadd.f32 %v786, %v3182
        %v3184 = vpop.f32.mrf.mxu0
        %v3185 = vadd.f32 %v786, %v3184
        %3186 = vmatmul.bf16.gmra.mxu0 %v2030
        %v3187 = vpop.f32.mrf.mxu0
        %v3188 = vadd.f32 %v786, %v3187
        %v3189 = vpop.f32.mrf.mxu0
        %v3190 = vadd.f32 %v786, %v3189
        %3191 = vmatmul.bf16.gmra.mxu0 %v2041
        %v3192 = vpop.f32.mrf.mxu0
        %v3193 = vadd.f32 %v786, %v3192
        %v3194 = vpop.f32.mrf.mxu0
        %v3195 = vadd.f32 %v786, %v3194
        %3196 = vmatmul.bf16.gmra.mxu0 %v2052
        %v3197 = vpop.f32.mrf.mxu0
        %v3198 = vadd.f32 %v786, %v3197
        %v3199 = vpop.f32.mrf.mxu0
        %v3200 = vadd.f32 %v786, %v3199
        %3201 = vmatmul.bf16.gmra.mxu0 %v2063
        %v3202 = vpop.f32.mrf.mxu0
        %v3203 = vadd.f32 %v786, %v3202
        %v3204 = vpop.f32.mrf.mxu0
        %v3205 = vadd.f32 %v786, %v3204
        %3206 = vmatmul.bf16.gmra.mxu0 %v2074
        %v3207 = vpop.f32.mrf.mxu0
        %v3208 = vadd.f32 %v786, %v3207
        %v3209 = vpop.f32.mrf.mxu0
        %v3210 = vadd.f32 %v786, %v3209
        %3211 = vmatmul.bf16.gmra.mxu0 %v2085
        %v3212 = vpop.f32.mrf.mxu0
        %v3213 = vadd.f32 %v786, %v3212
        %v3214 = vpop.f32.mrf.mxu0
        %v3215 = vadd.f32 %v786, %v3214
        %3216 = vmatmul.bf16.gmra.mxu0 %v2096
        %v3217 = vpop.f32.mrf.mxu0
        %v3218 = vadd.f32 %v786, %v3217
        %v3219 = vpop.f32.mrf.mxu0
        %v3220 = vadd.f32 %v786, %v3219
        %3221 = vmatmul.bf16.gmra.mxu0 %v2107
        %v3222 = vpop.f32.mrf.mxu0
        %v3223 = vadd.f32 %v786, %v3222
        %v3224 = vpop.f32.mrf.mxu0
        %v3225 = vadd.f32 %v786, %v3224
        %3226 = vmatmul.bf16.gmra.mxu0 %v2118
        %v3227 = vpop.f32.mrf.mxu0
        %v3228 = vadd.f32 %v786, %v3227
        %v3229 = vpop.f32.mrf.mxu0
        %v3230 = vadd.f32 %v786, %v3229
        %3231 = vmatmul.bf16.gmra.mxu0 %v2129
        %v3232 = vpop.f32.mrf.mxu0
        %v3233 = vadd.f32 %v786, %v3232
        %v3234 = vpop.f32.mrf.mxu0
        %v3235 = vadd.f32 %v786, %v3234
        %3236 = vmatmul.bf16.gmra.mxu0 %v2140
        %v3237 = vpop.f32.mrf.mxu0
        %v3238 = vadd.f32 %v786, %v3237
        %v3239 = vpop.f32.mrf.mxu0
        %v3240 = vadd.f32 %v786, %v3239
        %3241 = vmatmul.bf16.gmra.mxu0 %v2151
        %v3242 = vpop.f32.mrf.mxu0
        %v3243 = vadd.f32 %v786, %v3242
        %v3244 = vpop.f32.mrf.mxu0
        %v3245 = vadd.f32 %v786, %v3244
        %3246 = vmatmul.bf16.gmra.mxu0 %v2162
        %v3247 = vpop.f32.mrf.mxu0
        %v3248 = vadd.f32 %v786, %v3247
        %v3249 = vpop.f32.mrf.mxu0
        %v3250 = vadd.f32 %v786, %v3249
        %3251 = vmatmul.bf16.gmra.mxu0 %v2173
        %v3252 = vpop.f32.mrf.mxu0
        %v3253 = vadd.f32 %v786, %v3252
        %v3254 = vpop.f32.mrf.mxu0
        %v3255 = vadd.f32 %v786, %v3254
        %3256 = vmatmul.bf16.gmra.mxu0 %v2184
        %v3257 = vpop.f32.mrf.mxu0
        %v3258 = vadd.f32 %v786, %v3257
        %v3259 = vpop.f32.mrf.mxu0
        %v3260 = vadd.f32 %v786, %v3259
        %3261 = vmatmul.bf16.gmra.mxu0 %v2195
        %v3262 = vpop.f32.mrf.mxu0
        %v3263 = vadd.f32 %v786, %v3262
        %v3264 = vpop.f32.mrf.mxu0
        %v3265 = vadd.f32 %v786, %v3264
        %3266 = vmatmul.bf16.gmra.mxu0 %v2206
        %v3267 = vpop.f32.mrf.mxu0
        %v3268 = vadd.f32 %v786, %v3267
        %v3269 = vpop.f32.mrf.mxu0
        %v3270 = vadd.f32 %v786, %v3269
        %3271 = vmatmul.bf16.gmra.mxu0 %v2217
        %v3272 = vpop.f32.mrf.mxu0
        %v3273 = vadd.f32 %v786, %v3272
        %v3274 = vpop.f32.mrf.mxu0
        %v3275 = vadd.f32 %v786, %v3274
        %3276 = vdwg.mxu0
        %3277 = vmatpush.bf16.msra.mxu0 %v2947
        %3278 = vmatpush.bf16.msra.mxu0 %v2946
        %3279 = vmatpush.bf16.msra.mxu0 %v2945
        %3280 = vmatpush.bf16.msra.mxu0 %v2944
        %3281 = vmatpush.bf16.msra.mxu0 %v2943
        %3282 = vmatpush.bf16.msra.mxu0 %v2942
        %3283 = vmatpush.bf16.msra.mxu0 %v2941
        %3284 = vmatpush.bf16.msra.mxu0 %v2940
        %3285 = vmatmul.bf16.gmra.mxu0 %v1877
        %v3286 = vpop.f32.mrf.mxu0
        %v3287 = vadd.f32 %v3118, %v3286
        %v3288 = vpop.f32.mrf.mxu0
        %v3289 = vadd.f32 %v3120, %v3288
        %3290 = vmatmul.bf16.gmra.mxu0 %v1888
        %v3291 = vpop.f32.mrf.mxu0
        %v3292 = vadd.f32 %v3123, %v3291
        %v3293 = vpop.f32.mrf.mxu0
        %v3294 = vadd.f32 %v3125, %v3293
        %3295 = vmatmul.bf16.gmra.mxu0 %v1899
        %v3296 = vpop.f32.mrf.mxu0
        %v3297 = vadd.f32 %v3128, %v3296
        %v3298 = vpop.f32.mrf.mxu0
        %v3299 = vadd.f32 %v3130, %v3298
        %3300 = vmatmul.bf16.gmra.mxu0 %v1910
        %v3301 = vpop.f32.mrf.mxu0
        %v3302 = vadd.f32 %v3133, %v3301
        %v3303 = vpop.f32.mrf.mxu0
        %v3304 = vadd.f32 %v3135, %v3303
        %3305 = vmatmul.bf16.gmra.mxu0 %v1921
        %v3306 = vpop.f32.mrf.mxu0
        %v3307 = vadd.f32 %v3138, %v3306
        %v3308 = vpop.f32.mrf.mxu0
        %v3309 = vadd.f32 %v3140, %v3308
        %3310 = vmatmul.bf16.gmra.mxu0 %v1932
        %v3311 = vpop.f32.mrf.mxu0
        %v3312 = vadd.f32 %v3143, %v3311
        %v3313 = vpop.f32.mrf.mxu0
        %v3314 = vadd.f32 %v3145, %v3313
        %3315 = vmatmul.bf16.gmra.mxu0 %v1943
        %v3316 = vpop.f32.mrf.mxu0
        %v3317 = vadd.f32 %v3148, %v3316
        %v3318 = vpop.f32.mrf.mxu0
        %v3319 = vadd.f32 %v3150, %v3318
        %3320 = vmatmul.bf16.gmra.mxu0 %v1954
        %v3321 = vpop.f32.mrf.mxu0
        %v3322 = vadd.f32 %v3153, %v3321
        %v3323 = vpop.f32.mrf.mxu0
        %v3324 = vadd.f32 %v3155, %v3323
        %3325 = vmatmul.bf16.gmra.mxu0 %v1965
        %v3326 = vpop.f32.mrf.mxu0
        %v3327 = vadd.f32 %v3158, %v3326
        %v3328 = vpop.f32.mrf.mxu0
        %v3329 = vadd.f32 %v3160, %v3328
        %3330 = vmatmul.bf16.gmra.mxu0 %v1976
        %v3331 = vpop.f32.mrf.mxu0
        %v3332 = vadd.f32 %v3163, %v3331
        %v3333 = vpop.f32.mrf.mxu0
        %v3334 = vadd.f32 %v3165, %v3333
        %3335 = vmatmul.bf16.gmra.mxu0 %v1987
        %v3336 = vpop.f32.mrf.mxu0
        %v3337 = vadd.f32 %v3168, %v3336
        %v3338 = vpop.f32.mrf.mxu0
        %v3339 = vadd.f32 %v3170, %v3338
        %3340 = vmatmul.bf16.gmra.mxu0 %v1998
        %v3341 = vpop.f32.mrf.mxu0
        %v3342 = vadd.f32 %v3173, %v3341
        %v3343 = vpop.f32.mrf.mxu0
        %v3344 = vadd.f32 %v3175, %v3343
        %3345 = vmatmul.bf16.gmra.mxu0 %v2009
        %v3346 = vpop.f32.mrf.mxu0
        %v3347 = vadd.f32 %v3178, %v3346
        %v3348 = vpop.f32.mrf.mxu0
        %v3349 = vadd.f32 %v3180, %v3348
        %3350 = vmatmul.bf16.gmra.mxu0 %v2020
        %v3351 = vpop.f32.mrf.mxu0
        %v3352 = vadd.f32 %v3183, %v3351
        %v3353 = vpop.f32.mrf.mxu0
        %v3354 = vadd.f32 %v3185, %v3353
        %3355 = vmatmul.bf16.gmra.mxu0 %v2031
        %v3356 = vpop.f32.mrf.mxu0
        %v3357 = vadd.f32 %v3188, %v3356
        %v3358 = vpop.f32.mrf.mxu0
        %v3359 = vadd.f32 %v3190, %v3358
        %3360 = vmatmul.bf16.gmra.mxu0 %v2042
        %v3361 = vpop.f32.mrf.mxu0
        %v3362 = vadd.f32 %v3193, %v3361
        %v3363 = vpop.f32.mrf.mxu0
        %v3364 = vadd.f32 %v3195, %v3363
        %3365 = vmatmul.bf16.gmra.mxu0 %v2053
        %v3366 = vpop.f32.mrf.mxu0
        %v3367 = vadd.f32 %v3198, %v3366
        %v3368 = vpop.f32.mrf.mxu0
        %v3369 = vadd.f32 %v3200, %v3368
        %3370 = vmatmul.bf16.gmra.mxu0 %v2064
        %v3371 = vpop.f32.mrf.mxu0
        %v3372 = vadd.f32 %v3203, %v3371
        %v3373 = vpop.f32.mrf.mxu0
        %v3374 = vadd.f32 %v3205, %v3373
        %3375 = vmatmul.bf16.gmra.mxu0 %v2075
        %v3376 = vpop.f32.mrf.mxu0
        %v3377 = vadd.f32 %v3208, %v3376
        %v3378 = vpop.f32.mrf.mxu0
        %v3379 = vadd.f32 %v3210, %v3378
        %3380 = vmatmul.bf16.gmra.mxu0 %v2086
        %v3381 = vpop.f32.mrf.mxu0
        %v3382 = vadd.f32 %v3213, %v3381
        %v3383 = vpop.f32.mrf.mxu0
        %v3384 = vadd.f32 %v3215, %v3383
        %3385 = vmatmul.bf16.gmra.mxu0 %v2097
        %v3386 = vpop.f32.mrf.mxu0
        %v3387 = vadd.f32 %v3218, %v3386
        %v3388 = vpop.f32.mrf.mxu0
        %v3389 = vadd.f32 %v3220, %v3388
        %3390 = vmatmul.bf16.gmra.mxu0 %v2108
        %v3391 = vpop.f32.mrf.mxu0
        %v3392 = vadd.f32 %v3223, %v3391
        %v3393 = vpop.f32.mrf.mxu0
        %v3394 = vadd.f32 %v3225, %v3393
        %3395 = vmatmul.bf16.gmra.mxu0 %v2119
        %v3396 = vpop.f32.mrf.mxu0
        %v3397 = vadd.f32 %v3228, %v3396
        %v3398 = vpop.f32.mrf.mxu0
        %v3399 = vadd.f32 %v3230, %v3398
        %3400 = vmatmul.bf16.gmra.mxu0 %v2130
        %v3401 = vpop.f32.mrf.mxu0
        %v3402 = vadd.f32 %v3233, %v3401
        %v3403 = vpop.f32.mrf.mxu0
        %v3404 = vadd.f32 %v3235, %v3403
        %3405 = vmatmul.bf16.gmra.mxu0 %v2141
        %v3406 = vpop.f32.mrf.mxu0
        %v3407 = vadd.f32 %v3238, %v3406
        %v3408 = vpop.f32.mrf.mxu0
        %v3409 = vadd.f32 %v3240, %v3408
        %3410 = vmatmul.bf16.gmra.mxu0 %v2152
        %v3411 = vpop.f32.mrf.mxu0
        %v3412 = vadd.f32 %v3243, %v3411
        %v3413 = vpop.f32.mrf.mxu0
        %v3414 = vadd.f32 %v3245, %v3413
        %3415 = vmatmul.bf16.gmra.mxu0 %v2163
        %v3416 = vpop.f32.mrf.mxu0
        %v3417 = vadd.f32 %v3248, %v3416
        %v3418 = vpop.f32.mrf.mxu0
        %v3419 = vadd.f32 %v3250, %v3418
        %3420 = vmatmul.bf16.gmra.mxu0 %v2174
        %v3421 = vpop.f32.mrf.mxu0
        %v3422 = vadd.f32 %v3253, %v3421
        %v3423 = vpop.f32.mrf.mxu0
        %v3424 = vadd.f32 %v3255, %v3423
        %3425 = vmatmul.bf16.gmra.mxu0 %v2185
        %v3426 = vpop.f32.mrf.mxu0
        %v3427 = vadd.f32 %v3258, %v3426
        %v3428 = vpop.f32.mrf.mxu0
        %v3429 = vadd.f32 %v3260, %v3428
        %3430 = vmatmul.bf16.gmra.mxu0 %v2196
        %v3431 = vpop.f32.mrf.mxu0
        %v3432 = vadd.f32 %v3263, %v3431
        %v3433 = vpop.f32.mrf.mxu0
        %v3434 = vadd.f32 %v3265, %v3433
        %3435 = vmatmul.bf16.gmra.mxu0 %v2207
        %v3436 = vpop.f32.mrf.mxu0
        %v3437 = vadd.f32 %v3268, %v3436
        %v3438 = vpop.f32.mrf.mxu0
        %v3439 = vadd.f32 %v3270, %v3438
        %3440 = vmatmul.bf16.gmra.mxu0 %v2218
        %v3441 = vpop.f32.mrf.mxu0
        %v3442 = vadd.f32 %v3273, %v3441
        %v3443 = vpop.f32.mrf.mxu0
        %v3444 = vadd.f32 %v3275, %v3443
        %3445 = vdwg.mxu0
        %3446 = vmatpush.bf16.msra.mxu0 %v2955
        %3447 = vmatpush.bf16.msra.mxu0 %v2954
        %3448 = vmatpush.bf16.msra.mxu0 %v2953
        %3449 = vmatpush.bf16.msra.mxu0 %v2952
        %3450 = vmatpush.bf16.msra.mxu0 %v2951
        %3451 = vmatpush.bf16.msra.mxu0 %v2950
        %3452 = vmatpush.bf16.msra.mxu0 %v2949
        %3453 = vmatpush.bf16.msra.mxu0 %v2948
        %3454 = vmatmul.bf16.gmra.mxu0 %v1878
        %v3455 = vpop.f32.mrf.mxu0
        %v3456 = vadd.f32 %v3287, %v3455
        %v3457 = vpop.f32.mrf.mxu0
        %v3458 = vadd.f32 %v3289, %v3457
        %3459 = vmatmul.bf16.gmra.mxu0 %v1889
        %v3460 = vpop.f32.mrf.mxu0
        %v3461 = vadd.f32 %v3292, %v3460
        %v3462 = vpop.f32.mrf.mxu0
        %v3463 = vadd.f32 %v3294, %v3462
        %3464 = vmatmul.bf16.gmra.mxu0 %v1900
        %v3465 = vpop.f32.mrf.mxu0
        %v3466 = vadd.f32 %v3297, %v3465
        %v3467 = vpop.f32.mrf.mxu0
        %v3468 = vadd.f32 %v3299, %v3467
        %3469 = vmatmul.bf16.gmra.mxu0 %v1911
        %v3470 = vpop.f32.mrf.mxu0
        %v3471 = vadd.f32 %v3302, %v3470
        %v3472 = vpop.f32.mrf.mxu0
        %v3473 = vadd.f32 %v3304, %v3472
        %3474 = vmatmul.bf16.gmra.mxu0 %v1922
        %v3475 = vpop.f32.mrf.mxu0
        %v3476 = vadd.f32 %v3307, %v3475
        %v3477 = vpop.f32.mrf.mxu0
        %v3478 = vadd.f32 %v3309, %v3477
        %3479 = vmatmul.bf16.gmra.mxu0 %v1933
        %v3480 = vpop.f32.mrf.mxu0
        %v3481 = vadd.f32 %v3312, %v3480
        %v3482 = vpop.f32.mrf.mxu0
        %v3483 = vadd.f32 %v3314, %v3482
        %3484 = vmatmul.bf16.gmra.mxu0 %v1944
        %v3485 = vpop.f32.mrf.mxu0
        %v3486 = vadd.f32 %v3317, %v3485
        %v3487 = vpop.f32.mrf.mxu0
        %v3488 = vadd.f32 %v3319, %v3487
        %3489 = vmatmul.bf16.gmra.mxu0 %v1955
        %v3490 = vpop.f32.mrf.mxu0
        %v3491 = vadd.f32 %v3322, %v3490
        %v3492 = vpop.f32.mrf.mxu0
        %v3493 = vadd.f32 %v3324, %v3492
        %3494 = vmatmul.bf16.gmra.mxu0 %v1966
        %v3495 = vpop.f32.mrf.mxu0
        %v3496 = vadd.f32 %v3327, %v3495
        %v3497 = vpop.f32.mrf.mxu0
        %v3498 = vadd.f32 %v3329, %v3497
        %3499 = vmatmul.bf16.gmra.mxu0 %v1977
        %v3500 = vpop.f32.mrf.mxu0
        %v3501 = vadd.f32 %v3332, %v3500
        %v3502 = vpop.f32.mrf.mxu0
        %v3503 = vadd.f32 %v3334, %v3502
        %3504 = vmatmul.bf16.gmra.mxu0 %v1988
        %v3505 = vpop.f32.mrf.mxu0
        %v3506 = vadd.f32 %v3337, %v3505
        %v3507 = vpop.f32.mrf.mxu0
        %v3508 = vadd.f32 %v3339, %v3507
        %3509 = vmatmul.bf16.gmra.mxu0 %v1999
        %v3510 = vpop.f32.mrf.mxu0
        %v3511 = vadd.f32 %v3342, %v3510
        %v3512 = vpop.f32.mrf.mxu0
        %v3513 = vadd.f32 %v3344, %v3512
        %3514 = vmatmul.bf16.gmra.mxu0 %v2010
        %v3515 = vpop.f32.mrf.mxu0
        %v3516 = vadd.f32 %v3347, %v3515
        %v3517 = vpop.f32.mrf.mxu0
        %v3518 = vadd.f32 %v3349, %v3517
        %3519 = vmatmul.bf16.gmra.mxu0 %v2021
        %v3520 = vpop.f32.mrf.mxu0
        %v3521 = vadd.f32 %v3352, %v3520
        %v3522 = vpop.f32.mrf.mxu0
        %v3523 = vadd.f32 %v3354, %v3522
        %3524 = vmatmul.bf16.gmra.mxu0 %v2032
        %v3525 = vpop.f32.mrf.mxu0
        %v3526 = vadd.f32 %v3357, %v3525
        %v3527 = vpop.f32.mrf.mxu0
        %v3528 = vadd.f32 %v3359, %v3527
        %3529 = vmatmul.bf16.gmra.mxu0 %v2043
        %v3530 = vpop.f32.mrf.mxu0
        %v3531 = vadd.f32 %v3362, %v3530
        %v3532 = vpop.f32.mrf.mxu0
        %v3533 = vadd.f32 %v3364, %v3532
        %3534 = vmatmul.bf16.gmra.mxu0 %v2054
        %v3535 = vpop.f32.mrf.mxu0
        %v3536 = vadd.f32 %v3367, %v3535
        %v3537 = vpop.f32.mrf.mxu0
        %v3538 = vadd.f32 %v3369, %v3537
        %3539 = vmatmul.bf16.gmra.mxu0 %v2065
        %v3540 = vpop.f32.mrf.mxu0
        %v3541 = vadd.f32 %v3372, %v3540
        %v3542 = vpop.f32.mrf.mxu0
        %v3543 = vadd.f32 %v3374, %v3542
        %3544 = vmatmul.bf16.gmra.mxu0 %v2076
        %v3545 = vpop.f32.mrf.mxu0
        %v3546 = vadd.f32 %v3377, %v3545
        %v3547 = vpop.f32.mrf.mxu0
        %v3548 = vadd.f32 %v3379, %v3547
        %3549 = vmatmul.bf16.gmra.mxu0 %v2087
        %v3550 = vpop.f32.mrf.mxu0
        %v3551 = vadd.f32 %v3382, %v3550
        %v3552 = vpop.f32.mrf.mxu0
        %v3553 = vadd.f32 %v3384, %v3552
        %3554 = vmatmul.bf16.gmra.mxu0 %v2098
        %v3555 = vpop.f32.mrf.mxu0
        %v3556 = vadd.f32 %v3387, %v3555
        %v3557 = vpop.f32.mrf.mxu0
        %v3558 = vadd.f32 %v3389, %v3557
        %3559 = vmatmul.bf16.gmra.mxu0 %v2109
        %v3560 = vpop.f32.mrf.mxu0
        %v3561 = vadd.f32 %v3392, %v3560
        %v3562 = vpop.f32.mrf.mxu0
        %v3563 = vadd.f32 %v3394, %v3562
        %3564 = vmatmul.bf16.gmra.mxu0 %v2120
        %v3565 = vpop.f32.mrf.mxu0
        %v3566 = vadd.f32 %v3397, %v3565
        %v3567 = vpop.f32.mrf.mxu0
        %v3568 = vadd.f32 %v3399, %v3567
        %3569 = vmatmul.bf16.gmra.mxu0 %v2131
        %v3570 = vpop.f32.mrf.mxu0
        %v3571 = vadd.f32 %v3402, %v3570
        %v3572 = vpop.f32.mrf.mxu0
        %v3573 = vadd.f32 %v3404, %v3572
        %3574 = vmatmul.bf16.gmra.mxu0 %v2142
        %v3575 = vpop.f32.mrf.mxu0
        %v3576 = vadd.f32 %v3407, %v3575
        %v3577 = vpop.f32.mrf.mxu0
        %v3578 = vadd.f32 %v3409, %v3577
        %3579 = vmatmul.bf16.gmra.mxu0 %v2153
        %v3580 = vpop.f32.mrf.mxu0
        %v3581 = vadd.f32 %v3412, %v3580
        %v3582 = vpop.f32.mrf.mxu0
        %v3583 = vadd.f32 %v3414, %v3582
        %3584 = vmatmul.bf16.gmra.mxu0 %v2164
        %v3585 = vpop.f32.mrf.mxu0
        %v3586 = vadd.f32 %v3417, %v3585
        %v3587 = vpop.f32.mrf.mxu0
        %v3588 = vadd.f32 %v3419, %v3587
        %3589 = vmatmul.bf16.gmra.mxu0 %v2175
        %v3590 = vpop.f32.mrf.mxu0
        %v3591 = vadd.f32 %v3422, %v3590
        %v3592 = vpop.f32.mrf.mxu0
        %v3593 = vadd.f32 %v3424, %v3592
        %3594 = vmatmul.bf16.gmra.mxu0 %v2186
        %v3595 = vpop.f32.mrf.mxu0
        %v3596 = vadd.f32 %v3427, %v3595
        %v3597 = vpop.f32.mrf.mxu0
        %v3598 = vadd.f32 %v3429, %v3597
        %3599 = vmatmul.bf16.gmra.mxu0 %v2197
        %v3600 = vpop.f32.mrf.mxu0
        %v3601 = vadd.f32 %v3432, %v3600
        %v3602 = vpop.f32.mrf.mxu0
        %v3603 = vadd.f32 %v3434, %v3602
        %3604 = vmatmul.bf16.gmra.mxu0 %v2208
        %v3605 = vpop.f32.mrf.mxu0
        %v3606 = vadd.f32 %v3437, %v3605
        %v3607 = vpop.f32.mrf.mxu0
        %v3608 = vadd.f32 %v3439, %v3607
        %3609 = vmatmul.bf16.gmra.mxu0 %v2219
        %v3610 = vpop.f32.mrf.mxu0
        %v3611 = vadd.f32 %v3442, %v3610
        %v3612 = vpop.f32.mrf.mxu0
        %v3613 = vadd.f32 %v3444, %v3612
        %3614 = vdwg.mxu0
        %3615 = vmatpush.bf16.msra.mxu0 %v2963
        %3616 = vmatpush.bf16.msra.mxu0 %v2962
        %3617 = vmatpush.bf16.msra.mxu0 %v2961
        %3618 = vmatpush.bf16.msra.mxu0 %v2960
        %3619 = vmatpush.bf16.msra.mxu0 %v2959
        %3620 = vmatpush.bf16.msra.mxu0 %v2958
        %3621 = vmatpush.bf16.msra.mxu0 %v2957
        %3622 = vmatpush.bf16.msra.mxu0 %v2956
        %3623 = vmatmul.bf16.gmra.mxu0 %v1879
        %v3624 = vpop.f32.mrf.mxu0
        %v3625 = vadd.f32 %v3456, %v3624
        %v3626 = vpop.f32.mrf.mxu0
        %v3627 = vadd.f32 %v3458, %v3626
        %3628 = vmatmul.bf16.gmra.mxu0 %v1890
        %v3629 = vpop.f32.mrf.mxu0
        %v3630 = vadd.f32 %v3461, %v3629
        %v3631 = vpop.f32.mrf.mxu0
        %v3632 = vadd.f32 %v3463, %v3631
        %3633 = vmatmul.bf16.gmra.mxu0 %v1901
        %v3634 = vpop.f32.mrf.mxu0
        %v3635 = vadd.f32 %v3466, %v3634
        %v3636 = vpop.f32.mrf.mxu0
        %v3637 = vadd.f32 %v3468, %v3636
        %3638 = vmatmul.bf16.gmra.mxu0 %v1912
        %v3639 = vpop.f32.mrf.mxu0
        %v3640 = vadd.f32 %v3471, %v3639
        %v3641 = vpop.f32.mrf.mxu0
        %v3642 = vadd.f32 %v3473, %v3641
        %3643 = vmatmul.bf16.gmra.mxu0 %v1923
        %v3644 = vpop.f32.mrf.mxu0
        %v3645 = vadd.f32 %v3476, %v3644
        %v3646 = vpop.f32.mrf.mxu0
        %v3647 = vadd.f32 %v3478, %v3646
        %3648 = vmatmul.bf16.gmra.mxu0 %v1934
        %v3649 = vpop.f32.mrf.mxu0
        %v3650 = vadd.f32 %v3481, %v3649
        %v3651 = vpop.f32.mrf.mxu0
        %v3652 = vadd.f32 %v3483, %v3651
        %3653 = vmatmul.bf16.gmra.mxu0 %v1945
        %v3654 = vpop.f32.mrf.mxu0
        %v3655 = vadd.f32 %v3486, %v3654
        %v3656 = vpop.f32.mrf.mxu0
        %v3657 = vadd.f32 %v3488, %v3656
        %3658 = vmatmul.bf16.gmra.mxu0 %v1956
        %v3659 = vpop.f32.mrf.mxu0
        %v3660 = vadd.f32 %v3491, %v3659
        %v3661 = vpop.f32.mrf.mxu0
        %v3662 = vadd.f32 %v3493, %v3661
        %3663 = vmatmul.bf16.gmra.mxu0 %v1967
        %v3664 = vpop.f32.mrf.mxu0
        %v3665 = vadd.f32 %v3496, %v3664
        %v3666 = vpop.f32.mrf.mxu0
        %v3667 = vadd.f32 %v3498, %v3666
        %3668 = vmatmul.bf16.gmra.mxu0 %v1978
        %v3669 = vpop.f32.mrf.mxu0
        %v3670 = vadd.f32 %v3501, %v3669
        %v3671 = vpop.f32.mrf.mxu0
        %v3672 = vadd.f32 %v3503, %v3671
        %3673 = vmatmul.bf16.gmra.mxu0 %v1989
        %v3674 = vpop.f32.mrf.mxu0
        %v3675 = vadd.f32 %v3506, %v3674
        %v3676 = vpop.f32.mrf.mxu0
        %v3677 = vadd.f32 %v3508, %v3676
        %3678 = vmatmul.bf16.gmra.mxu0 %v2000
        %v3679 = vpop.f32.mrf.mxu0
        %v3680 = vadd.f32 %v3511, %v3679
        %v3681 = vpop.f32.mrf.mxu0
        %v3682 = vadd.f32 %v3513, %v3681
        %3683 = vmatmul.bf16.gmra.mxu0 %v2011
        %v3684 = vpop.f32.mrf.mxu0
        %v3685 = vadd.f32 %v3516, %v3684
        %v3686 = vpop.f32.mrf.mxu0
        %v3687 = vadd.f32 %v3518, %v3686
        %3688 = vmatmul.bf16.gmra.mxu0 %v2022
        %v3689 = vpop.f32.mrf.mxu0
        %v3690 = vadd.f32 %v3521, %v3689
        %v3691 = vpop.f32.mrf.mxu0
        %v3692 = vadd.f32 %v3523, %v3691
        %3693 = vmatmul.bf16.gmra.mxu0 %v2033
        %v3694 = vpop.f32.mrf.mxu0
        %v3695 = vadd.f32 %v3526, %v3694
        %v3696 = vpop.f32.mrf.mxu0
        %v3697 = vadd.f32 %v3528, %v3696
        %3698 = vmatmul.bf16.gmra.mxu0 %v2044
        %v3699 = vpop.f32.mrf.mxu0
        %v3700 = vadd.f32 %v3531, %v3699
        %v3701 = vpop.f32.mrf.mxu0
        %v3702 = vadd.f32 %v3533, %v3701
        %3703 = vmatmul.bf16.gmra.mxu0 %v2055
        %v3704 = vpop.f32.mrf.mxu0
        %v3705 = vadd.f32 %v3536, %v3704
        %v3706 = vpop.f32.mrf.mxu0
        %v3707 = vadd.f32 %v3538, %v3706
        %3708 = vmatmul.bf16.gmra.mxu0 %v2066
        %v3709 = vpop.f32.mrf.mxu0
        %v3710 = vadd.f32 %v3541, %v3709
        %v3711 = vpop.f32.mrf.mxu0
        %v3712 = vadd.f32 %v3543, %v3711
        %3713 = vmatmul.bf16.gmra.mxu0 %v2077
        %v3714 = vpop.f32.mrf.mxu0
        %v3715 = vadd.f32 %v3546, %v3714
        %v3716 = vpop.f32.mrf.mxu0
        %v3717 = vadd.f32 %v3548, %v3716
        %3718 = vmatmul.bf16.gmra.mxu0 %v2088
        %v3719 = vpop.f32.mrf.mxu0
        %v3720 = vadd.f32 %v3551, %v3719
        %v3721 = vpop.f32.mrf.mxu0
        %v3722 = vadd.f32 %v3553, %v3721
        %3723 = vmatmul.bf16.gmra.mxu0 %v2099
        %v3724 = vpop.f32.mrf.mxu0
        %v3725 = vadd.f32 %v3556, %v3724
        %v3726 = vpop.f32.mrf.mxu0
        %v3727 = vadd.f32 %v3558, %v3726
        %3728 = vmatmul.bf16.gmra.mxu0 %v2110
        %v3729 = vpop.f32.mrf.mxu0
        %v3730 = vadd.f32 %v3561, %v3729
        %v3731 = vpop.f32.mrf.mxu0
        %v3732 = vadd.f32 %v3563, %v3731
        %3733 = vmatmul.bf16.gmra.mxu0 %v2121
        %v3734 = vpop.f32.mrf.mxu0
        %v3735 = vadd.f32 %v3566, %v3734
        %v3736 = vpop.f32.mrf.mxu0
        %v3737 = vadd.f32 %v3568, %v3736
        %3738 = vmatmul.bf16.gmra.mxu0 %v2132
        %v3739 = vpop.f32.mrf.mxu0
        %v3740 = vadd.f32 %v3571, %v3739
        %v3741 = vpop.f32.mrf.mxu0
        %v3742 = vadd.f32 %v3573, %v3741
        %3743 = vmatmul.bf16.gmra.mxu0 %v2143
        %v3744 = vpop.f32.mrf.mxu0
        %v3745 = vadd.f32 %v3576, %v3744
        %v3746 = vpop.f32.mrf.mxu0
        %v3747 = vadd.f32 %v3578, %v3746
        %3748 = vmatmul.bf16.gmra.mxu0 %v2154
        %v3749 = vpop.f32.mrf.mxu0
        %v3750 = vadd.f32 %v3581, %v3749
        %v3751 = vpop.f32.mrf.mxu0
        %v3752 = vadd.f32 %v3583, %v3751
        %3753 = vmatmul.bf16.gmra.mxu0 %v2165
        %v3754 = vpop.f32.mrf.mxu0
        %v3755 = vadd.f32 %v3586, %v3754
        %v3756 = vpop.f32.mrf.mxu0
        %v3757 = vadd.f32 %v3588, %v3756
        %3758 = vmatmul.bf16.gmra.mxu0 %v2176
        %v3759 = vpop.f32.mrf.mxu0
        %v3760 = vadd.f32 %v3591, %v3759
        %v3761 = vpop.f32.mrf.mxu0
        %v3762 = vadd.f32 %v3593, %v3761
        %3763 = vmatmul.bf16.gmra.mxu0 %v2187
        %v3764 = vpop.f32.mrf.mxu0
        %v3765 = vadd.f32 %v3596, %v3764
        %v3766 = vpop.f32.mrf.mxu0
        %v3767 = vadd.f32 %v3598, %v3766
        %3768 = vmatmul.bf16.gmra.mxu0 %v2198
        %v3769 = vpop.f32.mrf.mxu0
        %v3770 = vadd.f32 %v3601, %v3769
        %v3771 = vpop.f32.mrf.mxu0
        %v3772 = vadd.f32 %v3603, %v3771
        %3773 = vmatmul.bf16.gmra.mxu0 %v2209
        %v3774 = vpop.f32.mrf.mxu0
        %v3775 = vadd.f32 %v3606, %v3774
        %v3776 = vpop.f32.mrf.mxu0
        %v3777 = vadd.f32 %v3608, %v3776
        %3778 = vmatmul.bf16.gmra.mxu0 %v2220
        %v3779 = vpop.f32.mrf.mxu0
        %v3780 = vadd.f32 %v3611, %v3779
        %v3781 = vpop.f32.mrf.mxu0
        %v3782 = vadd.f32 %v3613, %v3781
        %3783 = vdwg.mxu0
        %3784 = vmatpush.bf16.msra.mxu0 %v2971
        %3785 = vmatpush.bf16.msra.mxu0 %v2970
        %3786 = vmatpush.bf16.msra.mxu0 %v2969
        %3787 = vmatpush.bf16.msra.mxu0 %v2968
        %3788 = vmatpush.bf16.msra.mxu0 %v2967
        %3789 = vmatpush.bf16.msra.mxu0 %v2966
        %3790 = vmatpush.bf16.msra.mxu0 %v2965
        %3791 = vmatpush.bf16.msra.mxu0 %v2964
        %3792 = vmatmul.bf16.gmra.mxu0 %v1880
        %v3793 = vpop.f32.mrf.mxu0
        %v3794 = vadd.f32 %v3625, %v3793
        %v3795 = vpop.f32.mrf.mxu0
        %v3796 = vadd.f32 %v3627, %v3795
        %3797 = vmatmul.bf16.gmra.mxu0 %v1891
        %v3798 = vpop.f32.mrf.mxu0
        %v3799 = vadd.f32 %v3630, %v3798
        %v3800 = vpop.f32.mrf.mxu0
        %v3801 = vadd.f32 %v3632, %v3800
        %3802 = vmatmul.bf16.gmra.mxu0 %v1902
        %v3803 = vpop.f32.mrf.mxu0
        %v3804 = vadd.f32 %v3635, %v3803
        %v3805 = vpop.f32.mrf.mxu0
        %v3806 = vadd.f32 %v3637, %v3805
        %3807 = vmatmul.bf16.gmra.mxu0 %v1913
        %v3808 = vpop.f32.mrf.mxu0
        %v3809 = vadd.f32 %v3640, %v3808
        %v3810 = vpop.f32.mrf.mxu0
        %v3811 = vadd.f32 %v3642, %v3810
        %3812 = vmatmul.bf16.gmra.mxu0 %v1924
        %v3813 = vpop.f32.mrf.mxu0
        %v3814 = vadd.f32 %v3645, %v3813
        %v3815 = vpop.f32.mrf.mxu0
        %v3816 = vadd.f32 %v3647, %v3815
        %3817 = vmatmul.bf16.gmra.mxu0 %v1935
        %v3818 = vpop.f32.mrf.mxu0
        %v3819 = vadd.f32 %v3650, %v3818
        %v3820 = vpop.f32.mrf.mxu0
        %v3821 = vadd.f32 %v3652, %v3820
        %3822 = vmatmul.bf16.gmra.mxu0 %v1946
        %v3823 = vpop.f32.mrf.mxu0
        %v3824 = vadd.f32 %v3655, %v3823
        %v3825 = vpop.f32.mrf.mxu0
        %v3826 = vadd.f32 %v3657, %v3825
        %3827 = vmatmul.bf16.gmra.mxu0 %v1957
        %v3828 = vpop.f32.mrf.mxu0
        %v3829 = vadd.f32 %v3660, %v3828
        %v3830 = vpop.f32.mrf.mxu0
        %v3831 = vadd.f32 %v3662, %v3830
        %3832 = vmatmul.bf16.gmra.mxu0 %v1968
        %v3833 = vpop.f32.mrf.mxu0
        %v3834 = vadd.f32 %v3665, %v3833
        %v3835 = vpop.f32.mrf.mxu0
        %v3836 = vadd.f32 %v3667, %v3835
        %3837 = vmatmul.bf16.gmra.mxu0 %v1979
        %v3838 = vpop.f32.mrf.mxu0
        %v3839 = vadd.f32 %v3670, %v3838
        %v3840 = vpop.f32.mrf.mxu0
        %v3841 = vadd.f32 %v3672, %v3840
        %3842 = vmatmul.bf16.gmra.mxu0 %v1990
        %v3843 = vpop.f32.mrf.mxu0
        %v3844 = vadd.f32 %v3675, %v3843
        %v3845 = vpop.f32.mrf.mxu0
        %v3846 = vadd.f32 %v3677, %v3845
        %3847 = vmatmul.bf16.gmra.mxu0 %v2001
        %v3848 = vpop.f32.mrf.mxu0
        %v3849 = vadd.f32 %v3680, %v3848
        %v3850 = vpop.f32.mrf.mxu0
        %v3851 = vadd.f32 %v3682, %v3850
        %3852 = vmatmul.bf16.gmra.mxu0 %v2012
        %v3853 = vpop.f32.mrf.mxu0
        %v3854 = vadd.f32 %v3685, %v3853
        %v3855 = vpop.f32.mrf.mxu0
        %v3856 = vadd.f32 %v3687, %v3855
        %3857 = vmatmul.bf16.gmra.mxu0 %v2023
        %v3858 = vpop.f32.mrf.mxu0
        %v3859 = vadd.f32 %v3690, %v3858
        %v3860 = vpop.f32.mrf.mxu0
        %v3861 = vadd.f32 %v3692, %v3860
        %3862 = vmatmul.bf16.gmra.mxu0 %v2034
        %v3863 = vpop.f32.mrf.mxu0
        %v3864 = vadd.f32 %v3695, %v3863
        %v3865 = vpop.f32.mrf.mxu0
        %v3866 = vadd.f32 %v3697, %v3865
        %3867 = vmatmul.bf16.gmra.mxu0 %v2045
        %v3868 = vpop.f32.mrf.mxu0
        %v3869 = vadd.f32 %v3700, %v3868
        %v3870 = vpop.f32.mrf.mxu0
        %v3871 = vadd.f32 %v3702, %v3870
        %3872 = vmatmul.bf16.gmra.mxu0 %v2056
        %v3873 = vpop.f32.mrf.mxu0
        %v3874 = vadd.f32 %v3705, %v3873
        %v3875 = vpop.f32.mrf.mxu0
        %v3876 = vadd.f32 %v3707, %v3875
        %3877 = vmatmul.bf16.gmra.mxu0 %v2067
        %v3878 = vpop.f32.mrf.mxu0
        %v3879 = vadd.f32 %v3710, %v3878
        %v3880 = vpop.f32.mrf.mxu0
        %v3881 = vadd.f32 %v3712, %v3880
        %3882 = vmatmul.bf16.gmra.mxu0 %v2078
        %v3883 = vpop.f32.mrf.mxu0
        %v3884 = vadd.f32 %v3715, %v3883
        %v3885 = vpop.f32.mrf.mxu0
        %v3886 = vadd.f32 %v3717, %v3885
        %3887 = vmatmul.bf16.gmra.mxu0 %v2089
        %v3888 = vpop.f32.mrf.mxu0
        %v3889 = vadd.f32 %v3720, %v3888
        %v3890 = vpop.f32.mrf.mxu0
        %v3891 = vadd.f32 %v3722, %v3890
        %3892 = vmatmul.bf16.gmra.mxu0 %v2100
        %v3893 = vpop.f32.mrf.mxu0
        %v3894 = vadd.f32 %v3725, %v3893
        %v3895 = vpop.f32.mrf.mxu0
        %v3896 = vadd.f32 %v3727, %v3895
        %3897 = vmatmul.bf16.gmra.mxu0 %v2111
        %v3898 = vpop.f32.mrf.mxu0
        %v3899 = vadd.f32 %v3730, %v3898
        %v3900 = vpop.f32.mrf.mxu0
        %v3901 = vadd.f32 %v3732, %v3900
        %3902 = vmatmul.bf16.gmra.mxu0 %v2122
        %v3903 = vpop.f32.mrf.mxu0
        %v3904 = vadd.f32 %v3735, %v3903
        %v3905 = vpop.f32.mrf.mxu0
        %v3906 = vadd.f32 %v3737, %v3905
        %3907 = vmatmul.bf16.gmra.mxu0 %v2133
        %v3908 = vpop.f32.mrf.mxu0
        %v3909 = vadd.f32 %v3740, %v3908
        %v3910 = vpop.f32.mrf.mxu0
        %v3911 = vadd.f32 %v3742, %v3910
        %3912 = vmatmul.bf16.gmra.mxu0 %v2144
        %v3913 = vpop.f32.mrf.mxu0
        %v3914 = vadd.f32 %v3745, %v3913
        %v3915 = vpop.f32.mrf.mxu0
        %v3916 = vadd.f32 %v3747, %v3915
        %3917 = vmatmul.bf16.gmra.mxu0 %v2155
        %v3918 = vpop.f32.mrf.mxu0
        %v3919 = vadd.f32 %v3750, %v3918
        %v3920 = vpop.f32.mrf.mxu0
        %v3921 = vadd.f32 %v3752, %v3920
        %3922 = vmatmul.bf16.gmra.mxu0 %v2166
        %v3923 = vpop.f32.mrf.mxu0
        %v3924 = vadd.f32 %v3755, %v3923
        %v3925 = vpop.f32.mrf.mxu0
        %v3926 = vadd.f32 %v3757, %v3925
        %3927 = vmatmul.bf16.gmra.mxu0 %v2177
        %v3928 = vpop.f32.mrf.mxu0
        %v3929 = vadd.f32 %v3760, %v3928
        %v3930 = vpop.f32.mrf.mxu0
        %v3931 = vadd.f32 %v3762, %v3930
        %3932 = vmatmul.bf16.gmra.mxu0 %v2188
        %v3933 = vpop.f32.mrf.mxu0
        %v3934 = vadd.f32 %v3765, %v3933
        %v3935 = vpop.f32.mrf.mxu0
        %v3936 = vadd.f32 %v3767, %v3935
        %3937 = vmatmul.bf16.gmra.mxu0 %v2199
        %v3938 = vpop.f32.mrf.mxu0
        %v3939 = vadd.f32 %v3770, %v3938
        %v3940 = vpop.f32.mrf.mxu0
        %v3941 = vadd.f32 %v3772, %v3940
        %3942 = vmatmul.bf16.gmra.mxu0 %v2210
        %v3943 = vpop.f32.mrf.mxu0
        %v3944 = vadd.f32 %v3775, %v3943
        %v3945 = vpop.f32.mrf.mxu0
        %v3946 = vadd.f32 %v3777, %v3945
        %3947 = vmatmul.bf16.gmra.mxu0 %v2221
        %v3948 = vpop.f32.mrf.mxu0
        %v3949 = vadd.f32 %v3780, %v3948
        %v3950 = vpop.f32.mrf.mxu0
        %v3951 = vadd.f32 %v3782, %v3950
        %3952 = vdwg.mxu0
        %3953 = vmatpush.bf16.msra.mxu0 %v2979
        %3954 = vmatpush.bf16.msra.mxu0 %v2978
        %3955 = vmatpush.bf16.msra.mxu0 %v2977
        %3956 = vmatpush.bf16.msra.mxu0 %v2976
        %3957 = vmatpush.bf16.msra.mxu0 %v2975
        %3958 = vmatpush.bf16.msra.mxu0 %v2974
        %3959 = vmatpush.bf16.msra.mxu0 %v2973
        %3960 = vmatpush.bf16.msra.mxu0 %v2972
        %3961 = vmatmul.bf16.gmra.mxu0 %v1881
        %v3962 = vpop.f32.mrf.mxu0
        %v3963 = vadd.f32 %v3794, %v3962
        %v3964 = vpop.f32.mrf.mxu0
        %v3965 = vadd.f32 %v3796, %v3964
        %3966 = vmatmul.bf16.gmra.mxu0 %v1892
        %v3967 = vpop.f32.mrf.mxu0
        %v3968 = vadd.f32 %v3799, %v3967
        %v3969 = vpop.f32.mrf.mxu0
        %v3970 = vadd.f32 %v3801, %v3969
        %3971 = vmatmul.bf16.gmra.mxu0 %v1903
        %v3972 = vpop.f32.mrf.mxu0
        %v3973 = vadd.f32 %v3804, %v3972
        %v3974 = vpop.f32.mrf.mxu0
        %v3975 = vadd.f32 %v3806, %v3974
        %3976 = vmatmul.bf16.gmra.mxu0 %v1914
        %v3977 = vpop.f32.mrf.mxu0
        %v3978 = vadd.f32 %v3809, %v3977
        %v3979 = vpop.f32.mrf.mxu0
        %v3980 = vadd.f32 %v3811, %v3979
        %3981 = vmatmul.bf16.gmra.mxu0 %v1925
        %v3982 = vpop.f32.mrf.mxu0
        %v3983 = vadd.f32 %v3814, %v3982
        %v3984 = vpop.f32.mrf.mxu0
        %v3985 = vadd.f32 %v3816, %v3984
        %3986 = vmatmul.bf16.gmra.mxu0 %v1936
        %v3987 = vpop.f32.mrf.mxu0
        %v3988 = vadd.f32 %v3819, %v3987
        %v3989 = vpop.f32.mrf.mxu0
        %v3990 = vadd.f32 %v3821, %v3989
        %3991 = vmatmul.bf16.gmra.mxu0 %v1947
        %v3992 = vpop.f32.mrf.mxu0
        %v3993 = vadd.f32 %v3824, %v3992
        %v3994 = vpop.f32.mrf.mxu0
        %v3995 = vadd.f32 %v3826, %v3994
        %3996 = vmatmul.bf16.gmra.mxu0 %v1958
        %v3997 = vpop.f32.mrf.mxu0
        %v3998 = vadd.f32 %v3829, %v3997
        %v3999 = vpop.f32.mrf.mxu0
        %v4000 = vadd.f32 %v3831, %v3999
        %4001 = vmatmul.bf16.gmra.mxu0 %v1969
        %v4002 = vpop.f32.mrf.mxu0
        %v4003 = vadd.f32 %v3834, %v4002
        %v4004 = vpop.f32.mrf.mxu0
        %v4005 = vadd.f32 %v3836, %v4004
        %4006 = vmatmul.bf16.gmra.mxu0 %v1980
        %v4007 = vpop.f32.mrf.mxu0
        %v4008 = vadd.f32 %v3839, %v4007
        %v4009 = vpop.f32.mrf.mxu0
        %v4010 = vadd.f32 %v3841, %v4009
        %4011 = vmatmul.bf16.gmra.mxu0 %v1991
        %v4012 = vpop.f32.mrf.mxu0
        %v4013 = vadd.f32 %v3844, %v4012
        %v4014 = vpop.f32.mrf.mxu0
        %v4015 = vadd.f32 %v3846, %v4014
        %4016 = vmatmul.bf16.gmra.mxu0 %v2002
        %v4017 = vpop.f32.mrf.mxu0
        %v4018 = vadd.f32 %v3849, %v4017
        %v4019 = vpop.f32.mrf.mxu0
        %v4020 = vadd.f32 %v3851, %v4019
        %4021 = vmatmul.bf16.gmra.mxu0 %v2013
        %v4022 = vpop.f32.mrf.mxu0
        %v4023 = vadd.f32 %v3854, %v4022
        %v4024 = vpop.f32.mrf.mxu0
        %v4025 = vadd.f32 %v3856, %v4024
        %4026 = vmatmul.bf16.gmra.mxu0 %v2024
        %v4027 = vpop.f32.mrf.mxu0
        %v4028 = vadd.f32 %v3859, %v4027
        %v4029 = vpop.f32.mrf.mxu0
        %v4030 = vadd.f32 %v3861, %v4029
        %4031 = vmatmul.bf16.gmra.mxu0 %v2035
        %v4032 = vpop.f32.mrf.mxu0
        %v4033 = vadd.f32 %v3864, %v4032
        %v4034 = vpop.f32.mrf.mxu0
        %v4035 = vadd.f32 %v3866, %v4034
        %4036 = vmatmul.bf16.gmra.mxu0 %v2046
        %v4037 = vpop.f32.mrf.mxu0
        %v4038 = vadd.f32 %v3869, %v4037
        %v4039 = vpop.f32.mrf.mxu0
        %v4040 = vadd.f32 %v3871, %v4039
        %4041 = vmatmul.bf16.gmra.mxu0 %v2057
        %v4042 = vpop.f32.mrf.mxu0
        %v4043 = vadd.f32 %v3874, %v4042
        %v4044 = vpop.f32.mrf.mxu0
        %v4045 = vadd.f32 %v3876, %v4044
        %4046 = vmatmul.bf16.gmra.mxu0 %v2068
        %v4047 = vpop.f32.mrf.mxu0
        %v4048 = vadd.f32 %v3879, %v4047
        %v4049 = vpop.f32.mrf.mxu0
        %v4050 = vadd.f32 %v3881, %v4049
        %4051 = vmatmul.bf16.gmra.mxu0 %v2079
        %v4052 = vpop.f32.mrf.mxu0
        %v4053 = vadd.f32 %v3884, %v4052
        %v4054 = vpop.f32.mrf.mxu0
        %v4055 = vadd.f32 %v3886, %v4054
        %4056 = vmatmul.bf16.gmra.mxu0 %v2090
        %v4057 = vpop.f32.mrf.mxu0
        %v4058 = vadd.f32 %v3889, %v4057
        %v4059 = vpop.f32.mrf.mxu0
        %v4060 = vadd.f32 %v3891, %v4059
        %4061 = vmatmul.bf16.gmra.mxu0 %v2101
        %v4062 = vpop.f32.mrf.mxu0
        %v4063 = vadd.f32 %v3894, %v4062
        %v4064 = vpop.f32.mrf.mxu0
        %v4065 = vadd.f32 %v3896, %v4064
        %4066 = vmatmul.bf16.gmra.mxu0 %v2112
        %v4067 = vpop.f32.mrf.mxu0
        %v4068 = vadd.f32 %v3899, %v4067
        %v4069 = vpop.f32.mrf.mxu0
        %v4070 = vadd.f32 %v3901, %v4069
        %4071 = vmatmul.bf16.gmra.mxu0 %v2123
        %v4072 = vpop.f32.mrf.mxu0
        %v4073 = vadd.f32 %v3904, %v4072
        %v4074 = vpop.f32.mrf.mxu0
        %v4075 = vadd.f32 %v3906, %v4074
        %4076 = vmatmul.bf16.gmra.mxu0 %v2134
        %v4077 = vpop.f32.mrf.mxu0
        %v4078 = vadd.f32 %v3909, %v4077
        %v4079 = vpop.f32.mrf.mxu0
        %v4080 = vadd.f32 %v3911, %v4079
        %4081 = vmatmul.bf16.gmra.mxu0 %v2145
        %v4082 = vpop.f32.mrf.mxu0
        %v4083 = vadd.f32 %v3914, %v4082
        %v4084 = vpop.f32.mrf.mxu0
        %v4085 = vadd.f32 %v3916, %v4084
        %4086 = vmatmul.bf16.gmra.mxu0 %v2156
        %v4087 = vpop.f32.mrf.mxu0
        %v4088 = vadd.f32 %v3919, %v4087
        %v4089 = vpop.f32.mrf.mxu0
        %v4090 = vadd.f32 %v3921, %v4089
        %4091 = vmatmul.bf16.gmra.mxu0 %v2167
        %v4092 = vpop.f32.mrf.mxu0
        %v4093 = vadd.f32 %v3924, %v4092
        %v4094 = vpop.f32.mrf.mxu0
        %v4095 = vadd.f32 %v3926, %v4094
        %4096 = vmatmul.bf16.gmra.mxu0 %v2178
        %v4097 = vpop.f32.mrf.mxu0
        %v4098 = vadd.f32 %v3929, %v4097
        %v4099 = vpop.f32.mrf.mxu0
        %v4100 = vadd.f32 %v3931, %v4099
        %4101 = vmatmul.bf16.gmra.mxu0 %v2189
        %v4102 = vpop.f32.mrf.mxu0
        %v4103 = vadd.f32 %v3934, %v4102
        %v4104 = vpop.f32.mrf.mxu0
        %v4105 = vadd.f32 %v3936, %v4104
        %4106 = vmatmul.bf16.gmra.mxu0 %v2200
        %v4107 = vpop.f32.mrf.mxu0
        %v4108 = vadd.f32 %v3939, %v4107
        %v4109 = vpop.f32.mrf.mxu0
        %v4110 = vadd.f32 %v3941, %v4109
        %4111 = vmatmul.bf16.gmra.mxu0 %v2211
        %v4112 = vpop.f32.mrf.mxu0
        %v4113 = vadd.f32 %v3944, %v4112
        %v4114 = vpop.f32.mrf.mxu0
        %v4115 = vadd.f32 %v3946, %v4114
        %4116 = vmatmul.bf16.gmra.mxu0 %v2222
        %v4117 = vpop.f32.mrf.mxu0
        %v4118 = vadd.f32 %v3949, %v4117
        %v4119 = vpop.f32.mrf.mxu0
        %v4120 = vadd.f32 %v3951, %v4119
        %4121 = vdwg.mxu0
        %4122 = vmatpush.bf16.msra.mxu0 %v2987
        %4123 = vmatpush.bf16.msra.mxu0 %v2986
        %4124 = vmatpush.bf16.msra.mxu0 %v2985
        %4125 = vmatpush.bf16.msra.mxu0 %v2984
        %4126 = vmatpush.bf16.msra.mxu0 %v2983
        %4127 = vmatpush.bf16.msra.mxu0 %v2982
        %4128 = vmatpush.bf16.msra.mxu0 %v2981
        %4129 = vmatpush.bf16.msra.mxu0 %v2980
        %4130 = vmatmul.bf16.gmra.mxu0 %v1882
        %v4131 = vpop.f32.mrf.mxu0
        %v4132 = vadd.f32 %v3963, %v4131
        %v4133 = vpop.f32.mrf.mxu0
        %v4134 = vadd.f32 %v3965, %v4133
        %4135 = vmatmul.bf16.gmra.mxu0 %v1893
        %v4136 = vpop.f32.mrf.mxu0
        %v4137 = vadd.f32 %v3968, %v4136
        %v4138 = vpop.f32.mrf.mxu0
        %v4139 = vadd.f32 %v3970, %v4138
        %4140 = vmatmul.bf16.gmra.mxu0 %v1904
        %v4141 = vpop.f32.mrf.mxu0
        %v4142 = vadd.f32 %v3973, %v4141
        %v4143 = vpop.f32.mrf.mxu0
        %v4144 = vadd.f32 %v3975, %v4143
        %4145 = vmatmul.bf16.gmra.mxu0 %v1915
        %v4146 = vpop.f32.mrf.mxu0
        %v4147 = vadd.f32 %v3978, %v4146
        %v4148 = vpop.f32.mrf.mxu0
        %v4149 = vadd.f32 %v3980, %v4148
        %4150 = vmatmul.bf16.gmra.mxu0 %v1926
        %v4151 = vpop.f32.mrf.mxu0
        %v4152 = vadd.f32 %v3983, %v4151
        %v4153 = vpop.f32.mrf.mxu0
        %v4154 = vadd.f32 %v3985, %v4153
        %4155 = vmatmul.bf16.gmra.mxu0 %v1937
        %v4156 = vpop.f32.mrf.mxu0
        %v4157 = vadd.f32 %v3988, %v4156
        %v4158 = vpop.f32.mrf.mxu0
        %v4159 = vadd.f32 %v3990, %v4158
        %4160 = vmatmul.bf16.gmra.mxu0 %v1948
        %v4161 = vpop.f32.mrf.mxu0
        %v4162 = vadd.f32 %v3993, %v4161
        %v4163 = vpop.f32.mrf.mxu0
        %v4164 = vadd.f32 %v3995, %v4163
        %4165 = vmatmul.bf16.gmra.mxu0 %v1959
        %v4166 = vpop.f32.mrf.mxu0
        %v4167 = vadd.f32 %v3998, %v4166
        %v4168 = vpop.f32.mrf.mxu0
        %v4169 = vadd.f32 %v4000, %v4168
        %4170 = vmatmul.bf16.gmra.mxu0 %v1970
        %v4171 = vpop.f32.mrf.mxu0
        %v4172 = vadd.f32 %v4003, %v4171
        %v4173 = vpop.f32.mrf.mxu0
        %v4174 = vadd.f32 %v4005, %v4173
        %4175 = vmatmul.bf16.gmra.mxu0 %v1981
        %v4176 = vpop.f32.mrf.mxu0
        %v4177 = vadd.f32 %v4008, %v4176
        %v4178 = vpop.f32.mrf.mxu0
        %v4179 = vadd.f32 %v4010, %v4178
        %4180 = vmatmul.bf16.gmra.mxu0 %v1992
        %v4181 = vpop.f32.mrf.mxu0
        %v4182 = vadd.f32 %v4013, %v4181
        %v4183 = vpop.f32.mrf.mxu0
        %v4184 = vadd.f32 %v4015, %v4183
        %4185 = vmatmul.bf16.gmra.mxu0 %v2003
        %v4186 = vpop.f32.mrf.mxu0
        %v4187 = vadd.f32 %v4018, %v4186
        %v4188 = vpop.f32.mrf.mxu0
        %v4189 = vadd.f32 %v4020, %v4188
        %4190 = vmatmul.bf16.gmra.mxu0 %v2014
        %v4191 = vpop.f32.mrf.mxu0
        %v4192 = vadd.f32 %v4023, %v4191
        %v4193 = vpop.f32.mrf.mxu0
        %v4194 = vadd.f32 %v4025, %v4193
        %4195 = vmatmul.bf16.gmra.mxu0 %v2025
        %v4196 = vpop.f32.mrf.mxu0
        %v4197 = vadd.f32 %v4028, %v4196
        %v4198 = vpop.f32.mrf.mxu0
        %v4199 = vadd.f32 %v4030, %v4198
        %4200 = vmatmul.bf16.gmra.mxu0 %v2036
        %v4201 = vpop.f32.mrf.mxu0
        %v4202 = vadd.f32 %v4033, %v4201
        %v4203 = vpop.f32.mrf.mxu0
        %v4204 = vadd.f32 %v4035, %v4203
        %4205 = vmatmul.bf16.gmra.mxu0 %v2047
        %v4206 = vpop.f32.mrf.mxu0
        %v4207 = vadd.f32 %v4038, %v4206
        %v4208 = vpop.f32.mrf.mxu0
        %v4209 = vadd.f32 %v4040, %v4208
        %4210 = vmatmul.bf16.gmra.mxu0 %v2058
        %v4211 = vpop.f32.mrf.mxu0
        %v4212 = vadd.f32 %v4043, %v4211
        %v4213 = vpop.f32.mrf.mxu0
        %v4214 = vadd.f32 %v4045, %v4213
        %4215 = vmatmul.bf16.gmra.mxu0 %v2069
        %v4216 = vpop.f32.mrf.mxu0
        %v4217 = vadd.f32 %v4048, %v4216
        %v4218 = vpop.f32.mrf.mxu0
        %v4219 = vadd.f32 %v4050, %v4218
        %4220 = vmatmul.bf16.gmra.mxu0 %v2080
        %v4221 = vpop.f32.mrf.mxu0
        %v4222 = vadd.f32 %v4053, %v4221
        %v4223 = vpop.f32.mrf.mxu0
        %v4224 = vadd.f32 %v4055, %v4223
        %4225 = vmatmul.bf16.gmra.mxu0 %v2091
        %v4226 = vpop.f32.mrf.mxu0
        %v4227 = vadd.f32 %v4058, %v4226
        %v4228 = vpop.f32.mrf.mxu0
        %v4229 = vadd.f32 %v4060, %v4228
        %4230 = vmatmul.bf16.gmra.mxu0 %v2102
        %v4231 = vpop.f32.mrf.mxu0
        %v4232 = vadd.f32 %v4063, %v4231
        %v4233 = vpop.f32.mrf.mxu0
        %v4234 = vadd.f32 %v4065, %v4233
        %4235 = vmatmul.bf16.gmra.mxu0 %v2113
        %v4236 = vpop.f32.mrf.mxu0
        %v4237 = vadd.f32 %v4068, %v4236
        %v4238 = vpop.f32.mrf.mxu0
        %v4239 = vadd.f32 %v4070, %v4238
        %4240 = vmatmul.bf16.gmra.mxu0 %v2124
        %v4241 = vpop.f32.mrf.mxu0
        %v4242 = vadd.f32 %v4073, %v4241
        %v4243 = vpop.f32.mrf.mxu0
        %v4244 = vadd.f32 %v4075, %v4243
        %4245 = vmatmul.bf16.gmra.mxu0 %v2135
        %v4246 = vpop.f32.mrf.mxu0
        %v4247 = vadd.f32 %v4078, %v4246
        %v4248 = vpop.f32.mrf.mxu0
        %v4249 = vadd.f32 %v4080, %v4248
        %4250 = vmatmul.bf16.gmra.mxu0 %v2146
        %v4251 = vpop.f32.mrf.mxu0
        %v4252 = vadd.f32 %v4083, %v4251
        %v4253 = vpop.f32.mrf.mxu0
        %v4254 = vadd.f32 %v4085, %v4253
        %4255 = vmatmul.bf16.gmra.mxu0 %v2157
        %v4256 = vpop.f32.mrf.mxu0
        %v4257 = vadd.f32 %v4088, %v4256
        %v4258 = vpop.f32.mrf.mxu0
        %v4259 = vadd.f32 %v4090, %v4258
        %4260 = vmatmul.bf16.gmra.mxu0 %v2168
        %v4261 = vpop.f32.mrf.mxu0
        %v4262 = vadd.f32 %v4093, %v4261
        %v4263 = vpop.f32.mrf.mxu0
        %v4264 = vadd.f32 %v4095, %v4263
        %4265 = vmatmul.bf16.gmra.mxu0 %v2179
        %v4266 = vpop.f32.mrf.mxu0
        %v4267 = vadd.f32 %v4098, %v4266
        %v4268 = vpop.f32.mrf.mxu0
        %v4269 = vadd.f32 %v4100, %v4268
        %4270 = vmatmul.bf16.gmra.mxu0 %v2190
        %v4271 = vpop.f32.mrf.mxu0
        %v4272 = vadd.f32 %v4103, %v4271
        %v4273 = vpop.f32.mrf.mxu0
        %v4274 = vadd.f32 %v4105, %v4273
        %4275 = vmatmul.bf16.gmra.mxu0 %v2201
        %v4276 = vpop.f32.mrf.mxu0
        %v4277 = vadd.f32 %v4108, %v4276
        %v4278 = vpop.f32.mrf.mxu0
        %v4279 = vadd.f32 %v4110, %v4278
        %4280 = vmatmul.bf16.gmra.mxu0 %v2212
        %v4281 = vpop.f32.mrf.mxu0
        %v4282 = vadd.f32 %v4113, %v4281
        %v4283 = vpop.f32.mrf.mxu0
        %v4284 = vadd.f32 %v4115, %v4283
        %4285 = vmatmul.bf16.gmra.mxu0 %v2223
        %v4286 = vpop.f32.mrf.mxu0
        %v4287 = vadd.f32 %v4118, %v4286
        %v4288 = vpop.f32.mrf.mxu0
        %v4289 = vadd.f32 %v4120, %v4288
        %4290 = vdwg.mxu0
        %4291 = vmatpush.bf16.msra.mxu0 %v2995
        %4292 = vmatpush.bf16.msra.mxu0 %v2994
        %4293 = vmatpush.bf16.msra.mxu0 %v2993
        %4294 = vmatpush.bf16.msra.mxu0 %v2992
        %4295 = vmatpush.bf16.msra.mxu0 %v2991
        %4296 = vmatpush.bf16.msra.mxu0 %v2990
        %4297 = vmatpush.bf16.msra.mxu0 %v2989
        %4298 = vmatpush.bf16.msra.mxu0 %v2988
        %4299 = vmatmul.bf16.gmra.mxu0 %v1883
        %v4300 = vpop.f32.mrf.mxu0
        %v4301 = vadd.f32 %v4132, %v4300
        %v4302 = vpop.f32.mrf.mxu0
        %v4303 = vadd.f32 %v4134, %v4302
        %4304 = vmatmul.bf16.gmra.mxu0 %v1894
        %v4305 = vpop.f32.mrf.mxu0
        %v4306 = vadd.f32 %v4137, %v4305
        %v4307 = vpop.f32.mrf.mxu0
        %v4308 = vadd.f32 %v4139, %v4307
        %4309 = vmatmul.bf16.gmra.mxu0 %v1905
        %v4310 = vpop.f32.mrf.mxu0
        %v4311 = vadd.f32 %v4142, %v4310
        %v4312 = vpop.f32.mrf.mxu0
        %v4313 = vadd.f32 %v4144, %v4312
        %4314 = vmatmul.bf16.gmra.mxu0 %v1916
        %v4315 = vpop.f32.mrf.mxu0
        %v4316 = vadd.f32 %v4147, %v4315
        %v4317 = vpop.f32.mrf.mxu0
        %v4318 = vadd.f32 %v4149, %v4317
        %4319 = vmatmul.bf16.gmra.mxu0 %v1927
        %v4320 = vpop.f32.mrf.mxu0
        %v4321 = vadd.f32 %v4152, %v4320
        %v4322 = vpop.f32.mrf.mxu0
        %v4323 = vadd.f32 %v4154, %v4322
        %4324 = vmatmul.bf16.gmra.mxu0 %v1938
        %v4325 = vpop.f32.mrf.mxu0
        %v4326 = vadd.f32 %v4157, %v4325
        %v4327 = vpop.f32.mrf.mxu0
        %v4328 = vadd.f32 %v4159, %v4327
        %4329 = vmatmul.bf16.gmra.mxu0 %v1949
        %v4330 = vpop.f32.mrf.mxu0
        %v4331 = vadd.f32 %v4162, %v4330
        %v4332 = vpop.f32.mrf.mxu0
        %v4333 = vadd.f32 %v4164, %v4332
        %4334 = vmatmul.bf16.gmra.mxu0 %v1960
        %v4335 = vpop.f32.mrf.mxu0
        %v4336 = vadd.f32 %v4167, %v4335
        %v4337 = vpop.f32.mrf.mxu0
        %v4338 = vadd.f32 %v4169, %v4337
        %4339 = vmatmul.bf16.gmra.mxu0 %v1971
        %v4340 = vpop.f32.mrf.mxu0
        %v4341 = vadd.f32 %v4172, %v4340
        %v4342 = vpop.f32.mrf.mxu0
        %v4343 = vadd.f32 %v4174, %v4342
        %4344 = vmatmul.bf16.gmra.mxu0 %v1982
        %v4345 = vpop.f32.mrf.mxu0
        %v4346 = vadd.f32 %v4177, %v4345
        %v4347 = vpop.f32.mrf.mxu0
        %v4348 = vadd.f32 %v4179, %v4347
        %4349 = vmatmul.bf16.gmra.mxu0 %v1993
        %v4350 = vpop.f32.mrf.mxu0
        %v4351 = vadd.f32 %v4182, %v4350
        %v4352 = vpop.f32.mrf.mxu0
        %v4353 = vadd.f32 %v4184, %v4352
        %4354 = vmatmul.bf16.gmra.mxu0 %v2004
        %v4355 = vpop.f32.mrf.mxu0
        %v4356 = vadd.f32 %v4187, %v4355
        %v4357 = vpop.f32.mrf.mxu0
        %v4358 = vadd.f32 %v4189, %v4357
        %4359 = vmatmul.bf16.gmra.mxu0 %v2015
        %v4360 = vpop.f32.mrf.mxu0
        %v4361 = vadd.f32 %v4192, %v4360
        %v4362 = vpop.f32.mrf.mxu0
        %v4363 = vadd.f32 %v4194, %v4362
        %4364 = vmatmul.bf16.gmra.mxu0 %v2026
        %v4365 = vpop.f32.mrf.mxu0
        %v4366 = vadd.f32 %v4197, %v4365
        %v4367 = vpop.f32.mrf.mxu0
        %v4368 = vadd.f32 %v4199, %v4367
        %4369 = vmatmul.bf16.gmra.mxu0 %v2037
        %v4370 = vpop.f32.mrf.mxu0
        %v4371 = vadd.f32 %v4202, %v4370
        %v4372 = vpop.f32.mrf.mxu0
        %v4373 = vadd.f32 %v4204, %v4372
        %4374 = vmatmul.bf16.gmra.mxu0 %v2048
        %v4375 = vpop.f32.mrf.mxu0
        %v4376 = vadd.f32 %v4207, %v4375
        %v4377 = vpop.f32.mrf.mxu0
        %v4378 = vadd.f32 %v4209, %v4377
        %4379 = vmatmul.bf16.gmra.mxu0 %v2059
        %v4380 = vpop.f32.mrf.mxu0
        %v4381 = vadd.f32 %v4212, %v4380
        %v4382 = vpop.f32.mrf.mxu0
        %v4383 = vadd.f32 %v4214, %v4382
        %4384 = vmatmul.bf16.gmra.mxu0 %v2070
        %v4385 = vpop.f32.mrf.mxu0
        %v4386 = vadd.f32 %v4217, %v4385
        %v4387 = vpop.f32.mrf.mxu0
        %v4388 = vadd.f32 %v4219, %v4387
        %4389 = vmatmul.bf16.gmra.mxu0 %v2081
        %v4390 = vpop.f32.mrf.mxu0
        %v4391 = vadd.f32 %v4222, %v4390
        %v4392 = vpop.f32.mrf.mxu0
        %v4393 = vadd.f32 %v4224, %v4392
        %4394 = vmatmul.bf16.gmra.mxu0 %v2092
        %v4395 = vpop.f32.mrf.mxu0
        %v4396 = vadd.f32 %v4227, %v4395
        %v4397 = vpop.f32.mrf.mxu0
        %v4398 = vadd.f32 %v4229, %v4397
        %4399 = vmatmul.bf16.gmra.mxu0 %v2103
        %v4400 = vpop.f32.mrf.mxu0
        %v4401 = vadd.f32 %v4232, %v4400
        %v4402 = vpop.f32.mrf.mxu0
        %v4403 = vadd.f32 %v4234, %v4402
        %4404 = vmatmul.bf16.gmra.mxu0 %v2114
        %v4405 = vpop.f32.mrf.mxu0
        %v4406 = vadd.f32 %v4237, %v4405
        %v4407 = vpop.f32.mrf.mxu0
        %v4408 = vadd.f32 %v4239, %v4407
        %4409 = vmatmul.bf16.gmra.mxu0 %v2125
        %v4410 = vpop.f32.mrf.mxu0
        %v4411 = vadd.f32 %v4242, %v4410
        %v4412 = vpop.f32.mrf.mxu0
        %v4413 = vadd.f32 %v4244, %v4412
        %4414 = vmatmul.bf16.gmra.mxu0 %v2136
        %v4415 = vpop.f32.mrf.mxu0
        %v4416 = vadd.f32 %v4247, %v4415
        %v4417 = vpop.f32.mrf.mxu0
        %v4418 = vadd.f32 %v4249, %v4417
        %4419 = vmatmul.bf16.gmra.mxu0 %v2147
        %v4420 = vpop.f32.mrf.mxu0
        %v4421 = vadd.f32 %v4252, %v4420
        %v4422 = vpop.f32.mrf.mxu0
        %v4423 = vadd.f32 %v4254, %v4422
        %4424 = vmatmul.bf16.gmra.mxu0 %v2158
        %v4425 = vpop.f32.mrf.mxu0
        %v4426 = vadd.f32 %v4257, %v4425
        %v4427 = vpop.f32.mrf.mxu0
        %v4428 = vadd.f32 %v4259, %v4427
        %4429 = vmatmul.bf16.gmra.mxu0 %v2169
        %v4430 = vpop.f32.mrf.mxu0
        %v4431 = vadd.f32 %v4262, %v4430
        %v4432 = vpop.f32.mrf.mxu0
        %v4433 = vadd.f32 %v4264, %v4432
        %4434 = vmatmul.bf16.gmra.mxu0 %v2180
        %v4435 = vpop.f32.mrf.mxu0
        %v4436 = vadd.f32 %v4267, %v4435
        %v4437 = vpop.f32.mrf.mxu0
        %v4438 = vadd.f32 %v4269, %v4437
        %4439 = vmatmul.bf16.gmra.mxu0 %v2191
        %v4440 = vpop.f32.mrf.mxu0
        %v4441 = vadd.f32 %v4272, %v4440
        %v4442 = vpop.f32.mrf.mxu0
        %v4443 = vadd.f32 %v4274, %v4442
        %4444 = vmatmul.bf16.gmra.mxu0 %v2202
        %v4445 = vpop.f32.mrf.mxu0
        %v4446 = vadd.f32 %v4277, %v4445
        %v4447 = vpop.f32.mrf.mxu0
        %v4448 = vadd.f32 %v4279, %v4447
        %4449 = vmatmul.bf16.gmra.mxu0 %v2213
        %v4450 = vpop.f32.mrf.mxu0
        %v4451 = vadd.f32 %v4282, %v4450
        %v4452 = vpop.f32.mrf.mxu0
        %v4453 = vadd.f32 %v4284, %v4452
        %4454 = vmatmul.bf16.gmra.mxu0 %v2224
        %v4455 = vpop.f32.mrf.mxu0
        %v4456 = vadd.f32 %v4287, %v4455
        %v4457 = vpop.f32.mrf.mxu0
        %v4458 = vadd.f32 %v4289, %v4457
        %4459 = vdwg.mxu0
        %4460 = vmatpush.bf16.msra.mxu0 %v3003
        %4461 = vmatpush.bf16.msra.mxu0 %v3002
        %4462 = vmatpush.bf16.msra.mxu0 %v3001
        %4463 = vmatpush.bf16.msra.mxu0 %v3000
        %4464 = vmatpush.bf16.msra.mxu0 %v2999
        %4465 = vmatpush.bf16.msra.mxu0 %v2998
        %4466 = vmatpush.bf16.msra.mxu0 %v2997
        %4467 = vmatpush.bf16.msra.mxu0 %v2996
        %4468 = vmatmul.bf16.gmra.mxu0 %v1884
        %v4469 = vpop.f32.mrf.mxu0
        %v4470 = vadd.f32 %v4301, %v4469
        %v4471 = vpop.f32.mrf.mxu0
        %v4472 = vadd.f32 %v4303, %v4471
        %4473 = vmatmul.bf16.gmra.mxu0 %v1895
        %v4474 = vpop.f32.mrf.mxu0
        %v4475 = vadd.f32 %v4306, %v4474
        %v4476 = vpop.f32.mrf.mxu0
        %v4477 = vadd.f32 %v4308, %v4476
        %4478 = vmatmul.bf16.gmra.mxu0 %v1906
        %v4479 = vpop.f32.mrf.mxu0
        %v4480 = vadd.f32 %v4311, %v4479
        %v4481 = vpop.f32.mrf.mxu0
        %v4482 = vadd.f32 %v4313, %v4481
        %4483 = vmatmul.bf16.gmra.mxu0 %v1917
        %v4484 = vpop.f32.mrf.mxu0
        %v4485 = vadd.f32 %v4316, %v4484
        %v4486 = vpop.f32.mrf.mxu0
        %v4487 = vadd.f32 %v4318, %v4486
        %4488 = vmatmul.bf16.gmra.mxu0 %v1928
        %v4489 = vpop.f32.mrf.mxu0
        %v4490 = vadd.f32 %v4321, %v4489
        %v4491 = vpop.f32.mrf.mxu0
        %v4492 = vadd.f32 %v4323, %v4491
        %4493 = vmatmul.bf16.gmra.mxu0 %v1939
        %v4494 = vpop.f32.mrf.mxu0
        %v4495 = vadd.f32 %v4326, %v4494
        %v4496 = vpop.f32.mrf.mxu0
        %v4497 = vadd.f32 %v4328, %v4496
        %4498 = vmatmul.bf16.gmra.mxu0 %v1950
        %v4499 = vpop.f32.mrf.mxu0
        %v4500 = vadd.f32 %v4331, %v4499
        %v4501 = vpop.f32.mrf.mxu0
        %v4502 = vadd.f32 %v4333, %v4501
        %4503 = vmatmul.bf16.gmra.mxu0 %v1961
        %v4504 = vpop.f32.mrf.mxu0
        %v4505 = vadd.f32 %v4336, %v4504
        %v4506 = vpop.f32.mrf.mxu0
        %v4507 = vadd.f32 %v4338, %v4506
        %4508 = vmatmul.bf16.gmra.mxu0 %v1972
        %v4509 = vpop.f32.mrf.mxu0
        %v4510 = vadd.f32 %v4341, %v4509
        %v4511 = vpop.f32.mrf.mxu0
        %v4512 = vadd.f32 %v4343, %v4511
        %4513 = vmatmul.bf16.gmra.mxu0 %v1983
        %v4514 = vpop.f32.mrf.mxu0
        %v4515 = vadd.f32 %v4346, %v4514
        %v4516 = vpop.f32.mrf.mxu0
        %v4517 = vadd.f32 %v4348, %v4516
        %4518 = vmatmul.bf16.gmra.mxu0 %v1994
        %v4519 = vpop.f32.mrf.mxu0
        %v4520 = vadd.f32 %v4351, %v4519
        %v4521 = vpop.f32.mrf.mxu0
        %v4522 = vadd.f32 %v4353, %v4521
        %4523 = vmatmul.bf16.gmra.mxu0 %v2005
        %v4524 = vpop.f32.mrf.mxu0
        %v4525 = vadd.f32 %v4356, %v4524
        %v4526 = vpop.f32.mrf.mxu0
        %v4527 = vadd.f32 %v4358, %v4526
        %4528 = vmatmul.bf16.gmra.mxu0 %v2016
        %v4529 = vpop.f32.mrf.mxu0
        %v4530 = vadd.f32 %v4361, %v4529
        %v4531 = vpop.f32.mrf.mxu0
        %v4532 = vadd.f32 %v4363, %v4531
        %4533 = vmatmul.bf16.gmra.mxu0 %v2027
        %v4534 = vpop.f32.mrf.mxu0
        %v4535 = vadd.f32 %v4366, %v4534
        %v4536 = vpop.f32.mrf.mxu0
        %v4537 = vadd.f32 %v4368, %v4536
        %4538 = vmatmul.bf16.gmra.mxu0 %v2038
        %v4539 = vpop.f32.mrf.mxu0
        %v4540 = vadd.f32 %v4371, %v4539
        %v4541 = vpop.f32.mrf.mxu0
        %v4542 = vadd.f32 %v4373, %v4541
        %4543 = vmatmul.bf16.gmra.mxu0 %v2049
        %v4544 = vpop.f32.mrf.mxu0
        %v4545 = vadd.f32 %v4376, %v4544
        %v4546 = vpop.f32.mrf.mxu0
        %v4547 = vadd.f32 %v4378, %v4546
        %4548 = vmatmul.bf16.gmra.mxu0 %v2060
        %v4549 = vpop.f32.mrf.mxu0
        %v4550 = vadd.f32 %v4381, %v4549
        %v4551 = vpop.f32.mrf.mxu0
        %v4552 = vadd.f32 %v4383, %v4551
        %4553 = vmatmul.bf16.gmra.mxu0 %v2071
        %v4554 = vpop.f32.mrf.mxu0
        %v4555 = vadd.f32 %v4386, %v4554
        %v4556 = vpop.f32.mrf.mxu0
        %v4557 = vadd.f32 %v4388, %v4556
        %4558 = vmatmul.bf16.gmra.mxu0 %v2082
        %v4559 = vpop.f32.mrf.mxu0
        %v4560 = vadd.f32 %v4391, %v4559
        %v4561 = vpop.f32.mrf.mxu0
        %v4562 = vadd.f32 %v4393, %v4561
        %4563 = vmatmul.bf16.gmra.mxu0 %v2093
        %v4564 = vpop.f32.mrf.mxu0
        %v4565 = vadd.f32 %v4396, %v4564
        %v4566 = vpop.f32.mrf.mxu0
        %v4567 = vadd.f32 %v4398, %v4566
        %4568 = vmatmul.bf16.gmra.mxu0 %v2104
        %v4569 = vpop.f32.mrf.mxu0
        %v4570 = vadd.f32 %v4401, %v4569
        %v4571 = vpop.f32.mrf.mxu0
        %v4572 = vadd.f32 %v4403, %v4571
        %4573 = vmatmul.bf16.gmra.mxu0 %v2115
        %v4574 = vpop.f32.mrf.mxu0
        %v4575 = vadd.f32 %v4406, %v4574
        %v4576 = vpop.f32.mrf.mxu0
        %v4577 = vadd.f32 %v4408, %v4576
        %4578 = vmatmul.bf16.gmra.mxu0 %v2126
        %v4579 = vpop.f32.mrf.mxu0
        %v4580 = vadd.f32 %v4411, %v4579
        %v4581 = vpop.f32.mrf.mxu0
        %v4582 = vadd.f32 %v4413, %v4581
        %4583 = vmatmul.bf16.gmra.mxu0 %v2137
        %v4584 = vpop.f32.mrf.mxu0
        %v4585 = vadd.f32 %v4416, %v4584
        %v4586 = vpop.f32.mrf.mxu0
        %v4587 = vadd.f32 %v4418, %v4586
        %4588 = vmatmul.bf16.gmra.mxu0 %v2148
        %v4589 = vpop.f32.mrf.mxu0
        %v4590 = vadd.f32 %v4421, %v4589
        %v4591 = vpop.f32.mrf.mxu0
        %v4592 = vadd.f32 %v4423, %v4591
        %4593 = vmatmul.bf16.gmra.mxu0 %v2159
        %v4594 = vpop.f32.mrf.mxu0
        %v4595 = vadd.f32 %v4426, %v4594
        %v4596 = vpop.f32.mrf.mxu0
        %v4597 = vadd.f32 %v4428, %v4596
        %4598 = vmatmul.bf16.gmra.mxu0 %v2170
        %v4599 = vpop.f32.mrf.mxu0
        %v4600 = vadd.f32 %v4431, %v4599
        %v4601 = vpop.f32.mrf.mxu0
        %v4602 = vadd.f32 %v4433, %v4601
        %4603 = vmatmul.bf16.gmra.mxu0 %v2181
        %v4604 = vpop.f32.mrf.mxu0
        %v4605 = vadd.f32 %v4436, %v4604
        %v4606 = vpop.f32.mrf.mxu0
        %v4607 = vadd.f32 %v4438, %v4606
        %4608 = vmatmul.bf16.gmra.mxu0 %v2192
        %v4609 = vpop.f32.mrf.mxu0
        %v4610 = vadd.f32 %v4441, %v4609
        %v4611 = vpop.f32.mrf.mxu0
        %v4612 = vadd.f32 %v4443, %v4611
        %4613 = vmatmul.bf16.gmra.mxu0 %v2203
        %v4614 = vpop.f32.mrf.mxu0
        %v4615 = vadd.f32 %v4446, %v4614
        %v4616 = vpop.f32.mrf.mxu0
        %v4617 = vadd.f32 %v4448, %v4616
        %4618 = vmatmul.bf16.gmra.mxu0 %v2214
        %v4619 = vpop.f32.mrf.mxu0
        %v4620 = vadd.f32 %v4451, %v4619
        %v4621 = vpop.f32.mrf.mxu0
        %v4622 = vadd.f32 %v4453, %v4621
        %4623 = vmatmul.bf16.gmra.mxu0 %v2225
        %v4624 = vpop.f32.mrf.mxu0
        %v4625 = vadd.f32 %v4456, %v4624
        %v4626 = vpop.f32.mrf.mxu0
        %v4627 = vadd.f32 %v4458, %v4626
        %4628 = vdwg.mxu0
        %4629 = vmatpush.bf16.msra.mxu0 %v3011
        %4630 = vmatpush.bf16.msra.mxu0 %v3010
        %4631 = vmatpush.bf16.msra.mxu0 %v3009
        %4632 = vmatpush.bf16.msra.mxu0 %v3008
        %4633 = vmatpush.bf16.msra.mxu0 %v3007
        %4634 = vmatpush.bf16.msra.mxu0 %v3006
        %4635 = vmatpush.bf16.msra.mxu0 %v3005
        %4636 = vmatpush.bf16.msra.mxu0 %v3004
        %4637 = vmatmul.bf16.gmra.mxu0 %v1885
        %v4638 = vpop.f32.mrf.mxu0
        %v4639 = vadd.f32 %v4470, %v4638
        %v4640 = vpop.f32.mrf.mxu0
        %v4641 = vadd.f32 %v4472, %v4640
        %4642 = vmatmul.bf16.gmra.mxu0 %v1896
        %v4643 = vpop.f32.mrf.mxu0
        %v4644 = vadd.f32 %v4475, %v4643
        %v4645 = vpop.f32.mrf.mxu0
        %v4646 = vadd.f32 %v4477, %v4645
        %4647 = vmatmul.bf16.gmra.mxu0 %v1907
        %v4648 = vpop.f32.mrf.mxu0
        %v4649 = vadd.f32 %v4480, %v4648
        %v4650 = vpop.f32.mrf.mxu0
        %v4651 = vadd.f32 %v4482, %v4650
        %4652 = vmatmul.bf16.gmra.mxu0 %v1918
        %v4653 = vpop.f32.mrf.mxu0
        %v4654 = vadd.f32 %v4485, %v4653
        %v4655 = vpop.f32.mrf.mxu0
        %v4656 = vadd.f32 %v4487, %v4655
        %4657 = vmatmul.bf16.gmra.mxu0 %v1929
        %v4658 = vpop.f32.mrf.mxu0
        %v4659 = vadd.f32 %v4490, %v4658
        %v4660 = vpop.f32.mrf.mxu0
        %v4661 = vadd.f32 %v4492, %v4660
        %4662 = vmatmul.bf16.gmra.mxu0 %v1940
        %v4663 = vpop.f32.mrf.mxu0
        %v4664 = vadd.f32 %v4495, %v4663
        %v4665 = vpop.f32.mrf.mxu0
        %v4666 = vadd.f32 %v4497, %v4665
        %4667 = vmatmul.bf16.gmra.mxu0 %v1951
        %v4668 = vpop.f32.mrf.mxu0
        %v4669 = vadd.f32 %v4500, %v4668
        %v4670 = vpop.f32.mrf.mxu0
        %v4671 = vadd.f32 %v4502, %v4670
        %4672 = vmatmul.bf16.gmra.mxu0 %v1962
        %v4673 = vpop.f32.mrf.mxu0
        %v4674 = vadd.f32 %v4505, %v4673
        %v4675 = vpop.f32.mrf.mxu0
        %v4676 = vadd.f32 %v4507, %v4675
        %4677 = vmatmul.bf16.gmra.mxu0 %v1973
        %v4678 = vpop.f32.mrf.mxu0
        %v4679 = vadd.f32 %v4510, %v4678
        %v4680 = vpop.f32.mrf.mxu0
        %v4681 = vadd.f32 %v4512, %v4680
        %4682 = vmatmul.bf16.gmra.mxu0 %v1984
        %v4683 = vpop.f32.mrf.mxu0
        %v4684 = vadd.f32 %v4515, %v4683
        %v4685 = vpop.f32.mrf.mxu0
        %v4686 = vadd.f32 %v4517, %v4685
        %4687 = vmatmul.bf16.gmra.mxu0 %v1995
        %v4688 = vpop.f32.mrf.mxu0
        %v4689 = vadd.f32 %v4520, %v4688
        %v4690 = vpop.f32.mrf.mxu0
        %v4691 = vadd.f32 %v4522, %v4690
        %4692 = vmatmul.bf16.gmra.mxu0 %v2006
        %v4693 = vpop.f32.mrf.mxu0
        %v4694 = vadd.f32 %v4525, %v4693
        %v4695 = vpop.f32.mrf.mxu0
        %v4696 = vadd.f32 %v4527, %v4695
        %4697 = vmatmul.bf16.gmra.mxu0 %v2017
        %v4698 = vpop.f32.mrf.mxu0
        %v4699 = vadd.f32 %v4530, %v4698
        %v4700 = vpop.f32.mrf.mxu0
        %v4701 = vadd.f32 %v4532, %v4700
        %4702 = vmatmul.bf16.gmra.mxu0 %v2028
        %v4703 = vpop.f32.mrf.mxu0
        %v4704 = vadd.f32 %v4535, %v4703
        %v4705 = vpop.f32.mrf.mxu0
        %v4706 = vadd.f32 %v4537, %v4705
        %4707 = vmatmul.bf16.gmra.mxu0 %v2039
        %v4708 = vpop.f32.mrf.mxu0
        %v4709 = vadd.f32 %v4540, %v4708
        %v4710 = vpop.f32.mrf.mxu0
        %v4711 = vadd.f32 %v4542, %v4710
        %4712 = vmatmul.bf16.gmra.mxu0 %v2050
        %v4713 = vpop.f32.mrf.mxu0
        %v4714 = vadd.f32 %v4545, %v4713
        %v4715 = vpop.f32.mrf.mxu0
        %v4716 = vadd.f32 %v4547, %v4715
        %4717 = vmatmul.bf16.gmra.mxu0 %v2061
        %v4718 = vpop.f32.mrf.mxu0
        %v4719 = vadd.f32 %v4550, %v4718
        %v4720 = vpop.f32.mrf.mxu0
        %v4721 = vadd.f32 %v4552, %v4720
        %4722 = vmatmul.bf16.gmra.mxu0 %v2072
        %v4723 = vpop.f32.mrf.mxu0
        %v4724 = vadd.f32 %v4555, %v4723
        %v4725 = vpop.f32.mrf.mxu0
        %v4726 = vadd.f32 %v4557, %v4725
        %4727 = vmatmul.bf16.gmra.mxu0 %v2083
        %v4728 = vpop.f32.mrf.mxu0
        %v4729 = vadd.f32 %v4560, %v4728
        %v4730 = vpop.f32.mrf.mxu0
        %v4731 = vadd.f32 %v4562, %v4730
        %4732 = vmatmul.bf16.gmra.mxu0 %v2094
        %v4733 = vpop.f32.mrf.mxu0
        %v4734 = vadd.f32 %v4565, %v4733
        %v4735 = vpop.f32.mrf.mxu0
        %v4736 = vadd.f32 %v4567, %v4735
        %4737 = vmatmul.bf16.gmra.mxu0 %v2105
        %v4738 = vpop.f32.mrf.mxu0
        %v4739 = vadd.f32 %v4570, %v4738
        %v4740 = vpop.f32.mrf.mxu0
        %v4741 = vadd.f32 %v4572, %v4740
        %4742 = vmatmul.bf16.gmra.mxu0 %v2116
        %v4743 = vpop.f32.mrf.mxu0
        %v4744 = vadd.f32 %v4575, %v4743
        %v4745 = vpop.f32.mrf.mxu0
        %v4746 = vadd.f32 %v4577, %v4745
        %4747 = vmatmul.bf16.gmra.mxu0 %v2127
        %v4748 = vpop.f32.mrf.mxu0
        %v4749 = vadd.f32 %v4580, %v4748
        %v4750 = vpop.f32.mrf.mxu0
        %v4751 = vadd.f32 %v4582, %v4750
        %4752 = vmatmul.bf16.gmra.mxu0 %v2138
        %v4753 = vpop.f32.mrf.mxu0
        %v4754 = vadd.f32 %v4585, %v4753
        %v4755 = vpop.f32.mrf.mxu0
        %v4756 = vadd.f32 %v4587, %v4755
        %4757 = vmatmul.bf16.gmra.mxu0 %v2149
        %v4758 = vpop.f32.mrf.mxu0
        %v4759 = vadd.f32 %v4590, %v4758
        %v4760 = vpop.f32.mrf.mxu0
        %v4761 = vadd.f32 %v4592, %v4760
        %4762 = vmatmul.bf16.gmra.mxu0 %v2160
        %v4763 = vpop.f32.mrf.mxu0
        %v4764 = vadd.f32 %v4595, %v4763
        %v4765 = vpop.f32.mrf.mxu0
        %v4766 = vadd.f32 %v4597, %v4765
        %4767 = vmatmul.bf16.gmra.mxu0 %v2171
        %v4768 = vpop.f32.mrf.mxu0
        %v4769 = vadd.f32 %v4600, %v4768
        %v4770 = vpop.f32.mrf.mxu0
        %v4771 = vadd.f32 %v4602, %v4770
        %4772 = vmatmul.bf16.gmra.mxu0 %v2182
        %v4773 = vpop.f32.mrf.mxu0
        %v4774 = vadd.f32 %v4605, %v4773
        %v4775 = vpop.f32.mrf.mxu0
        %v4776 = vadd.f32 %v4607, %v4775
        %4777 = vmatmul.bf16.gmra.mxu0 %v2193
        %v4778 = vpop.f32.mrf.mxu0
        %v4779 = vadd.f32 %v4610, %v4778
        %v4780 = vpop.f32.mrf.mxu0
        %v4781 = vadd.f32 %v4612, %v4780
        %4782 = vmatmul.bf16.gmra.mxu0 %v2204
        %v4783 = vpop.f32.mrf.mxu0
        %v4784 = vadd.f32 %v4615, %v4783
        %v4785 = vpop.f32.mrf.mxu0
        %v4786 = vadd.f32 %v4617, %v4785
        %4787 = vmatmul.bf16.gmra.mxu0 %v2215
        %v4788 = vpop.f32.mrf.mxu0
        %v4789 = vadd.f32 %v4620, %v4788
        %v4790 = vpop.f32.mrf.mxu0
        %v4791 = vadd.f32 %v4622, %v4790
        %4792 = vmatmul.bf16.gmra.mxu0 %v2226
        %v4793 = vpop.f32.mrf.mxu0
        %v4794 = vadd.f32 %v4625, %v4793
        %v4795 = vpop.f32.mrf.mxu0
        %v4796 = vadd.f32 %v4627, %v4795
        %4797 = vdwg.mxu0
        %4798 = vmatpush.bf16.msra.mxu0 %v3019
        %4799 = vmatpush.bf16.msra.mxu0 %v3018
        %4800 = vmatpush.bf16.msra.mxu0 %v3017
        %4801 = vmatpush.bf16.msra.mxu0 %v3016
        %4802 = vmatpush.bf16.msra.mxu0 %v3015
        %4803 = vmatpush.bf16.msra.mxu0 %v3014
        %4804 = vmatpush.bf16.msra.mxu0 %v3013
        %4805 = vmatpush.bf16.msra.mxu0 %v3012
        %4806 = vmatmul.bf16.gmra.mxu0 %v1886
        %v4807 = vpop.f32.mrf.mxu0
        %v4808 = vadd.f32 %v4639, %v4807
        %v4809 = vpop.f32.mrf.mxu0
        %v4810 = vadd.f32 %v4641, %v4809
        %4811 = vmatmul.bf16.gmra.mxu0 %v1897
        %v4812 = vpop.f32.mrf.mxu0
        %v4813 = vadd.f32 %v4644, %v4812
        %v4814 = vpop.f32.mrf.mxu0
        %v4815 = vadd.f32 %v4646, %v4814
        %4816 = vmatmul.bf16.gmra.mxu0 %v1908
        %v4817 = vpop.f32.mrf.mxu0
        %v4818 = vadd.f32 %v4649, %v4817
        %v4819 = vpop.f32.mrf.mxu0
        %v4820 = vadd.f32 %v4651, %v4819
        %4821 = vmatmul.bf16.gmra.mxu0 %v1919
        %v4822 = vpop.f32.mrf.mxu0
        %v4823 = vadd.f32 %v4654, %v4822
        %v4824 = vpop.f32.mrf.mxu0
        %v4825 = vadd.f32 %v4656, %v4824
        %4826 = vmatmul.bf16.gmra.mxu0 %v1930
        %v4827 = vpop.f32.mrf.mxu0
        %v4828 = vadd.f32 %v4659, %v4827
        %v4829 = vpop.f32.mrf.mxu0
        %v4830 = vadd.f32 %v4661, %v4829
        %4831 = vmatmul.bf16.gmra.mxu0 %v1941
        %v4832 = vpop.f32.mrf.mxu0
        %v4833 = vadd.f32 %v4664, %v4832
        %v4834 = vpop.f32.mrf.mxu0
        %v4835 = vadd.f32 %v4666, %v4834
        %4836 = vmatmul.bf16.gmra.mxu0 %v1952
        %v4837 = vpop.f32.mrf.mxu0
        %v4838 = vadd.f32 %v4669, %v4837
        %v4839 = vpop.f32.mrf.mxu0
        %v4840 = vadd.f32 %v4671, %v4839
        %4841 = vmatmul.bf16.gmra.mxu0 %v1963
        %v4842 = vpop.f32.mrf.mxu0
        %v4843 = vadd.f32 %v4674, %v4842
        %v4844 = vpop.f32.mrf.mxu0
        %v4845 = vadd.f32 %v4676, %v4844
        %4846 = vmatmul.bf16.gmra.mxu0 %v1974
        %v4847 = vpop.f32.mrf.mxu0
        %v4848 = vadd.f32 %v4679, %v4847
        %v4849 = vpop.f32.mrf.mxu0
        %v4850 = vadd.f32 %v4681, %v4849
        %4851 = vmatmul.bf16.gmra.mxu0 %v1985
        %v4852 = vpop.f32.mrf.mxu0
        %v4853 = vadd.f32 %v4684, %v4852
        %v4854 = vpop.f32.mrf.mxu0
        %v4855 = vadd.f32 %v4686, %v4854
        %4856 = vmatmul.bf16.gmra.mxu0 %v1996
        %v4857 = vpop.f32.mrf.mxu0
        %v4858 = vadd.f32 %v4689, %v4857
        %v4859 = vpop.f32.mrf.mxu0
        %v4860 = vadd.f32 %v4691, %v4859
        %4861 = vmatmul.bf16.gmra.mxu0 %v2007
        %v4862 = vpop.f32.mrf.mxu0
        %v4863 = vadd.f32 %v4694, %v4862
        %v4864 = vpop.f32.mrf.mxu0
        %v4865 = vadd.f32 %v4696, %v4864
        %4866 = vmatmul.bf16.gmra.mxu0 %v2018
        %v4867 = vpop.f32.mrf.mxu0
        %v4868 = vadd.f32 %v4699, %v4867
        %v4869 = vpop.f32.mrf.mxu0
        %v4870 = vadd.f32 %v4701, %v4869
        %4871 = vmatmul.bf16.gmra.mxu0 %v2029
        %v4872 = vpop.f32.mrf.mxu0
        %v4873 = vadd.f32 %v4704, %v4872
        %v4874 = vpop.f32.mrf.mxu0
        %v4875 = vadd.f32 %v4706, %v4874
        %4876 = vmatmul.bf16.gmra.mxu0 %v2040
        %v4877 = vpop.f32.mrf.mxu0
        %v4878 = vadd.f32 %v4709, %v4877
        %v4879 = vpop.f32.mrf.mxu0
        %v4880 = vadd.f32 %v4711, %v4879
        %4881 = vmatmul.bf16.gmra.mxu0 %v2051
        %v4882 = vpop.f32.mrf.mxu0
        %v4883 = vadd.f32 %v4714, %v4882
        %v4884 = vpop.f32.mrf.mxu0
        %v4885 = vadd.f32 %v4716, %v4884
        %4886 = vmatmul.bf16.gmra.mxu0 %v2062
        %v4887 = vpop.f32.mrf.mxu0
        %v4888 = vadd.f32 %v4719, %v4887
        %v4889 = vpop.f32.mrf.mxu0
        %v4890 = vadd.f32 %v4721, %v4889
        %4891 = vmatmul.bf16.gmra.mxu0 %v2073
        %v4892 = vpop.f32.mrf.mxu0
        %v4893 = vadd.f32 %v4724, %v4892
        %v4894 = vpop.f32.mrf.mxu0
        %v4895 = vadd.f32 %v4726, %v4894
        %4896 = vmatmul.bf16.gmra.mxu0 %v2084
        %v4897 = vpop.f32.mrf.mxu0
        %v4898 = vadd.f32 %v4729, %v4897
        %v4899 = vpop.f32.mrf.mxu0
        %v4900 = vadd.f32 %v4731, %v4899
        %4901 = vmatmul.bf16.gmra.mxu0 %v2095
        %v4902 = vpop.f32.mrf.mxu0
        %v4903 = vadd.f32 %v4734, %v4902
        %v4904 = vpop.f32.mrf.mxu0
        %v4905 = vadd.f32 %v4736, %v4904
        %4906 = vmatmul.bf16.gmra.mxu0 %v2106
        %v4907 = vpop.f32.mrf.mxu0
        %v4908 = vadd.f32 %v4739, %v4907
        %v4909 = vpop.f32.mrf.mxu0
        %v4910 = vadd.f32 %v4741, %v4909
        %4911 = vmatmul.bf16.gmra.mxu0 %v2117
        %v4912 = vpop.f32.mrf.mxu0
        %v4913 = vadd.f32 %v4744, %v4912
        %v4914 = vpop.f32.mrf.mxu0
        %v4915 = vadd.f32 %v4746, %v4914
        %4916 = vmatmul.bf16.gmra.mxu0 %v2128
        %v4917 = vpop.f32.mrf.mxu0
        %v4918 = vadd.f32 %v4749, %v4917
        %v4919 = vpop.f32.mrf.mxu0
        %v4920 = vadd.f32 %v4751, %v4919
        %4921 = vmatmul.bf16.gmra.mxu0 %v2139
        %v4922 = vpop.f32.mrf.mxu0
        %v4923 = vadd.f32 %v4754, %v4922
        %v4924 = vpop.f32.mrf.mxu0
        %v4925 = vadd.f32 %v4756, %v4924
        %4926 = vmatmul.bf16.gmra.mxu0 %v2150
        %v4927 = vpop.f32.mrf.mxu0
        %v4928 = vadd.f32 %v4759, %v4927
        %v4929 = vpop.f32.mrf.mxu0
        %v4930 = vadd.f32 %v4761, %v4929
        %4931 = vmatmul.bf16.gmra.mxu0 %v2161
        %v4932 = vpop.f32.mrf.mxu0
        %v4933 = vadd.f32 %v4764, %v4932
        %v4934 = vpop.f32.mrf.mxu0
        %v4935 = vadd.f32 %v4766, %v4934
        %4936 = vmatmul.bf16.gmra.mxu0 %v2172
        %v4937 = vpop.f32.mrf.mxu0
        %v4938 = vadd.f32 %v4769, %v4937
        %v4939 = vpop.f32.mrf.mxu0
        %v4940 = vadd.f32 %v4771, %v4939
        %4941 = vmatmul.bf16.gmra.mxu0 %v2183
        %v4942 = vpop.f32.mrf.mxu0
        %v4943 = vadd.f32 %v4774, %v4942
        %v4944 = vpop.f32.mrf.mxu0
        %v4945 = vadd.f32 %v4776, %v4944
        %4946 = vmatmul.bf16.gmra.mxu0 %v2194
        %v4947 = vpop.f32.mrf.mxu0
        %v4948 = vadd.f32 %v4779, %v4947
        %v4949 = vpop.f32.mrf.mxu0
        %v4950 = vadd.f32 %v4781, %v4949
        %4951 = vmatmul.bf16.gmra.mxu0 %v2205
        %v4952 = vpop.f32.mrf.mxu0
        %v4953 = vadd.f32 %v4784, %v4952
        %v4954 = vpop.f32.mrf.mxu0
        %v4955 = vadd.f32 %v4786, %v4954
        %4956 = vmatmul.bf16.gmra.mxu0 %v2216
        %v4957 = vpop.f32.mrf.mxu0
        %v4958 = vadd.f32 %v4789, %v4957
        %v4959 = vpop.f32.mrf.mxu0
        %v4960 = vadd.f32 %v4791, %v4959
        %4961 = vmatmul.bf16.gmra.mxu0 %v2227
        %v4962 = vpop.f32.mrf.mxu0
        %v4963 = vadd.f32 %v4794, %v4962
        %v4964 = vpop.f32.mrf.mxu0
        %v4965 = vadd.f32 %v4796, %v4964
        %4966 = vdwg.mxu0
        %v4967 = vld [vmem:[%s221] sm:$0xff]
        %v4968 = vld [vmem:[%s221 + $0x8] sm:$0xff]
        %v4969 = vld [vmem:[%s221 + $0x10] sm:$0xff]
        %v4970 = vld [vmem:[%s221 + $0x18] sm:$0xff]
        %v4971 = vld [vmem:[%s221 + $0x20] sm:$0xff]
        %v4972 = vld [vmem:[%s221 + $0x28] sm:$0xff]
        %v4973 = vld [vmem:[%s221 + $0x30] sm:$0xff]
        %v4974 = vld [vmem:[%s221 + $0x38] sm:$0xff]
        %v4975 = vld [vmem:[%s221 + $0x40] sm:$0xff]
        %v4976 = vld [vmem:[%s221 + $0x48] sm:$0xff]
        %v4977 = vld [vmem:[%s221 + $0x50] sm:$0xff]
        %v4978 = vld [vmem:[%s221 + $0x58] sm:$0xff]
        %v4979 = vld [vmem:[%s221 + $0x60] sm:$0xff]
        %v4980 = vld [vmem:[%s221 + $0x68] sm:$0xff]
        %v4981 = vld [vmem:[%s221 + $0x70] sm:$0xff]
        %v4982 = vld [vmem:[%s221 + $0x78] sm:$0xff]
        %v4983 = vld [vmem:[%s221 + $0x80] sm:$0xff]
        %v4984 = vld [vmem:[%s221 + $0x88] sm:$0xff]
        %v4985 = vld [vmem:[%s221 + $0x90] sm:$0xff]
        %v4986 = vld [vmem:[%s221 + $0x98] sm:$0xff]
        %v4987 = vld [vmem:[%s221 + $0xa0] sm:$0xff]
        %v4988 = vld [vmem:[%s221 + $0xa8] sm:$0xff]
        %v4989 = vld [vmem:[%s221 + $0xb0] sm:$0xff]
        %v4990 = vld [vmem:[%s221 + $0xb8] sm:$0xff]
        %v4991 = vld [vmem:[%s221 + $0xc0] sm:$0xff]
        %v4992 = vld [vmem:[%s221 + $0xc8] sm:$0xff]
        %v4993 = vld [vmem:[%s221 + $0xd0] sm:$0xff]
        %v4994 = vld [vmem:[%s221 + $0xd8] sm:$0xff]
        %v4995 = vld [vmem:[%s221 + $0xe0] sm:$0xff]
        %v4996 = vld [vmem:[%s221 + $0xe8] sm:$0xff]
        %v4997 = vld [vmem:[%s221 + $0xf0] sm:$0xff]
        %v4998 = vld [vmem:[%s221 + $0xf8] sm:$0xff]
        %v4999 = vld [vmem:[%s221 + $0x100] sm:$0xff]
        %v5000 = vld [vmem:[%s221 + $0x108] sm:$0xff]
        %v5001 = vld [vmem:[%s221 + $0x110] sm:$0xff]
        %v5002 = vld [vmem:[%s221 + $0x118] sm:$0xff]
        %v5003 = vld [vmem:[%s221 + $0x120] sm:$0xff]
        %v5004 = vld [vmem:[%s221 + $0x128] sm:$0xff]
        %v5005 = vld [vmem:[%s221 + $0x130] sm:$0xff]
        %v5006 = vld [vmem:[%s221 + $0x138] sm:$0xff]
        %v5007 = vld [vmem:[%s221 + $0x140] sm:$0xff]
        %v5008 = vld [vmem:[%s221 + $0x148] sm:$0xff]
        %v5009 = vld [vmem:[%s221 + $0x150] sm:$0xff]
        %v5010 = vld [vmem:[%s221 + $0x158] sm:$0xff]
        %v5011 = vld [vmem:[%s221 + $0x160] sm:$0xff]
        %v5012 = vld [vmem:[%s221 + $0x168] sm:$0xff]
        %v5013 = vld [vmem:[%s221 + $0x170] sm:$0xff]
        %v5014 = vld [vmem:[%s221 + $0x178] sm:$0xff]
        %v5015 = vld [vmem:[%s221 + $0x180] sm:$0xff]
        %v5016 = vld [vmem:[%s221 + $0x188] sm:$0xff]
        %v5017 = vld [vmem:[%s221 + $0x190] sm:$0xff]
        %v5018 = vld [vmem:[%s221 + $0x198] sm:$0xff]
        %v5019 = vld [vmem:[%s221 + $0x1a0] sm:$0xff]
        %v5020 = vld [vmem:[%s221 + $0x1a8] sm:$0xff]
        %v5021 = vld [vmem:[%s221 + $0x1b0] sm:$0xff]
        %v5022 = vld [vmem:[%s221 + $0x1b8] sm:$0xff]
        %v5023 = vld [vmem:[%s221 + $0x1c0] sm:$0xff]
        %v5024 = vld [vmem:[%s221 + $0x1c8] sm:$0xff]
        %v5025 = vld [vmem:[%s221 + $0x1d0] sm:$0xff]
        %v5026 = vld [vmem:[%s221 + $0x1d8] sm:$0xff]
        %v5027 = vld [vmem:[%s221 + $0x1e0] sm:$0xff]
        %v5028 = vld [vmem:[%s221 + $0x1e8] sm:$0xff]
        %v5029 = vld [vmem:[%s221 + $0x1f0] sm:$0xff]
        %v5030 = vld [vmem:[%s221 + $0x1f8] sm:$0xff]
        %v5031 = vadd.f32 %v4808, %v4967
        %v5032 = vadd.f32 %v4810, %v4968
        %v5033 = vadd.f32 %v4813, %v4969
        %v5034 = vadd.f32 %v4815, %v4970
        %v5035 = vadd.f32 %v4818, %v4971
        %v5036 = vadd.f32 %v4820, %v4972
        %v5037 = vadd.f32 %v4823, %v4973
        %v5038 = vadd.f32 %v4825, %v4974
        %v5039 = vadd.f32 %v4828, %v4975
        %v5040 = vadd.f32 %v4830, %v4976
        %v5041 = vadd.f32 %v4833, %v4977
        %v5042 = vadd.f32 %v4835, %v4978
        %v5043 = vadd.f32 %v4838, %v4979
        %v5044 = vadd.f32 %v4840, %v4980
        %v5045 = vadd.f32 %v4843, %v4981
        %v5046 = vadd.f32 %v4845, %v4982
        %v5047 = vadd.f32 %v4848, %v4983
        %v5048 = vadd.f32 %v4850, %v4984
        %v5049 = vadd.f32 %v4853, %v4985
        %v5050 = vadd.f32 %v4855, %v4986
        %v5051 = vadd.f32 %v4858, %v4987
        %v5052 = vadd.f32 %v4860, %v4988
        %v5053 = vadd.f32 %v4863, %v4989
        %v5054 = vadd.f32 %v4865, %v4990
        %v5055 = vadd.f32 %v4868, %v4991
        %v5056 = vadd.f32 %v4870, %v4992
        %v5057 = vadd.f32 %v4873, %v4993
        %v5058 = vadd.f32 %v4875, %v4994
        %v5059 = vadd.f32 %v4878, %v4995
        %v5060 = vadd.f32 %v4880, %v4996
        %v5061 = vadd.f32 %v4883, %v4997
        %v5062 = vadd.f32 %v4885, %v4998
        %v5063 = vadd.f32 %v4888, %v4999
        %v5064 = vadd.f32 %v4890, %v5000
        %v5065 = vadd.f32 %v4893, %v5001
        %v5066 = vadd.f32 %v4895, %v5002
        %v5067 = vadd.f32 %v4898, %v5003
        %v5068 = vadd.f32 %v4900, %v5004
        %v5069 = vadd.f32 %v4903, %v5005
        %v5070 = vadd.f32 %v4905, %v5006
        %v5071 = vadd.f32 %v4908, %v5007
        %v5072 = vadd.f32 %v4910, %v5008
        %v5073 = vadd.f32 %v4913, %v5009
        %v5074 = vadd.f32 %v4915, %v5010
        %v5075 = vadd.f32 %v4918, %v5011
        %v5076 = vadd.f32 %v4920, %v5012
        %v5077 = vadd.f32 %v4923, %v5013
        %v5078 = vadd.f32 %v4925, %v5014
        %v5079 = vadd.f32 %v4928, %v5015
        %v5080 = vadd.f32 %v4930, %v5016
        %v5081 = vadd.f32 %v4933, %v5017
        %v5082 = vadd.f32 %v4935, %v5018
        %v5083 = vadd.f32 %v4938, %v5019
        %v5084 = vadd.f32 %v4940, %v5020
        %v5085 = vadd.f32 %v4943, %v5021
        %v5086 = vadd.f32 %v4945, %v5022
        %v5087 = vadd.f32 %v4948, %v5023
        %v5088 = vadd.f32 %v4950, %v5024
        %v5089 = vadd.f32 %v4953, %v5025
        %v5090 = vadd.f32 %v4955, %v5026
        %v5091 = vadd.f32 %v4958, %v5027
        %v5092 = vadd.f32 %v4960, %v5028
        %v5093 = vadd.f32 %v4963, %v5029
        %v5094 = vadd.f32 %v4965, %v5030
        %5095 = vst [vmem:[%s209] sm:$0xff] %v5031
        %5096 = vst [vmem:[%s209 + $0x8] sm:$0xff] %v5032
        %5097 = vst [vmem:[%s209 + $0x10] sm:$0xff] %v5033
        %5098 = vst [vmem:[%s209 + $0x18] sm:$0xff] %v5034
        %5099 = vst [vmem:[%s209 + $0x20] sm:$0xff] %v5035
        %5100 = vst [vmem:[%s209 + $0x28] sm:$0xff] %v5036
        %5101 = vst [vmem:[%s209 + $0x30] sm:$0xff] %v5037
        %5102 = vst [vmem:[%s209 + $0x38] sm:$0xff] %v5038
        %5103 = vst [vmem:[%s209 + $0x40] sm:$0xff] %v5039
        %5104 = vst [vmem:[%s209 + $0x48] sm:$0xff] %v5040
        %5105 = vst [vmem:[%s209 + $0x50] sm:$0xff] %v5041
        %5106 = vst [vmem:[%s209 + $0x58] sm:$0xff] %v5042
        %5107 = vst [vmem:[%s209 + $0x60] sm:$0xff] %v5043
        %5108 = vst [vmem:[%s209 + $0x68] sm:$0xff] %v5044
        %5109 = vst [vmem:[%s209 + $0x70] sm:$0xff] %v5045
        %5110 = vst [vmem:[%s209 + $0x78] sm:$0xff] %v5046
        %5111 = vst [vmem:[%s209 + $0x80] sm:$0xff] %v5047
        %5112 = vst [vmem:[%s209 + $0x88] sm:$0xff] %v5048
        %5113 = vst [vmem:[%s209 + $0x90] sm:$0xff] %v5049
        %5114 = vst [vmem:[%s209 + $0x98] sm:$0xff] %v5050
        %5115 = vst [vmem:[%s209 + $0xa0] sm:$0xff] %v5051
        %5116 = vst [vmem:[%s209 + $0xa8] sm:$0xff] %v5052
        %5117 = vst [vmem:[%s209 + $0xb0] sm:$0xff] %v5053
        %5118 = vst [vmem:[%s209 + $0xb8] sm:$0xff] %v5054
        %5119 = vst [vmem:[%s209 + $0xc0] sm:$0xff] %v5055
        %5120 = vst [vmem:[%s209 + $0xc8] sm:$0xff] %v5056
        %5121 = vst [vmem:[%s209 + $0xd0] sm:$0xff] %v5057
        %5122 = vst [vmem:[%s209 + $0xd8] sm:$0xff] %v5058
        %5123 = vst [vmem:[%s209 + $0xe0] sm:$0xff] %v5059
        %5124 = vst [vmem:[%s209 + $0xe8] sm:$0xff] %v5060
        %5125 = vst [vmem:[%s209 + $0xf0] sm:$0xff] %v5061
        %5126 = vst [vmem:[%s209 + $0xf8] sm:$0xff] %v5062
        %5127 = vst [vmem:[%s209 + $0x100] sm:$0xff] %v5063
        %5128 = vst [vmem:[%s209 + $0x108] sm:$0xff] %v5064
        %5129 = vst [vmem:[%s209 + $0x110] sm:$0xff] %v5065
        %5130 = vst [vmem:[%s209 + $0x118] sm:$0xff] %v5066
        %5131 = vst [vmem:[%s209 + $0x120] sm:$0xff] %v5067
        %5132 = vst [vmem:[%s209 + $0x128] sm:$0xff] %v5068
        %5133 = vst [vmem:[%s209 + $0x130] sm:$0xff] %v5069
        %5134 = vst [vmem:[%s209 + $0x138] sm:$0xff] %v5070
        %5135 = vst [vmem:[%s209 + $0x140] sm:$0xff] %v5071
        %5136 = vst [vmem:[%s209 + $0x148] sm:$0xff] %v5072
        %5137 = vst [vmem:[%s209 + $0x150] sm:$0xff] %v5073
        %5138 = vst [vmem:[%s209 + $0x158] sm:$0xff] %v5074
        %5139 = vst [vmem:[%s209 + $0x160] sm:$0xff] %v5075
        %5140 = vst [vmem:[%s209 + $0x168] sm:$0xff] %v5076
        %5141 = vst [vmem:[%s209 + $0x170] sm:$0xff] %v5077
        %5142 = vst [vmem:[%s209 + $0x178] sm:$0xff] %v5078
        %5143 = vst [vmem:[%s209 + $0x180] sm:$0xff] %v5079
        %5144 = vst [vmem:[%s209 + $0x188] sm:$0xff] %v5080
        %5145 = vst [vmem:[%s209 + $0x190] sm:$0xff] %v5081
        %5146 = vst [vmem:[%s209 + $0x198] sm:$0xff] %v5082
        %5147 = vst [vmem:[%s209 + $0x1a0] sm:$0xff] %v5083
        %5148 = vst [vmem:[%s209 + $0x1a8] sm:$0xff] %v5084
        %5149 = vst [vmem:[%s209 + $0x1b0] sm:$0xff] %v5085
        %5150 = vst [vmem:[%s209 + $0x1b8] sm:$0xff] %v5086
        %5151 = vst [vmem:[%s209 + $0x1c0] sm:$0xff] %v5087
        %5152 = vst [vmem:[%s209 + $0x1c8] sm:$0xff] %v5088
        %5153 = vst [vmem:[%s209 + $0x1d0] sm:$0xff] %v5089
        %5154 = vst [vmem:[%s209 + $0x1d8] sm:$0xff] %v5090
        %5155 = vst [vmem:[%s209 + $0x1e0] sm:$0xff] %v5091
        %5156 = vst [vmem:[%s209 + $0x1e8] sm:$0xff] %v5092
        %5157 = vst [vmem:[%s209 + $0x1f0] sm:$0xff] %v5093
        %5158 = vst [vmem:[%s209 + $0x1f8] sm:$0xff] %v5094
        %s5159 = sand.u32 %s120, 1
        %s5160 = scalar_lea.sflag [#allocation3], %s5159
        %s5161 = sand.u32 %s120, 1
        %s5162 = smul.addr %s5161, 512
        %s5163 = scalar_lea.vmem [#allocation2], %s5162
        // Predicated region
        $region37: #{resblock1_forward.3} parent=35 // pred_check
          %p5164 = pneg %p130
        $region38: #{resblock1_forward.3} parent=35 // pred_check_branch
          %5166 = sbr.rel (%p5164) target = $region40
        $region39: #{resblock1_forward.3} parent=35 // pred_region
          %s5167 = smul.u32 64, %s18
          %5169 = vsyncadd %s5160, 0
          %s5170 = smul.addr %s5167, 8
          %s5171 = scalar_lea.hbm %s4, %s5170
          %s5172 = sshll.u32 %s5163, 4
          %s5173 = int_to_ptr.vmem [resolvable:$true] %s5172
          %s5174 = sshll.u32 %s5171, 4
          %s5175 = int_to_ptr.hbm [resolvable:$true] %s5174
          %5180 = dma.vmem_to_hbm [thread:$0]  %s5173, 8192, %s5175, %s5160, 128, 128, 8
        $region40: #{resblock1_forward.3} parent=35 // pred_fallthru
          _
      $region36: #{resblock1_forward.3} parent=5 // pred_fallthru
        _
      %p5181 = scmp.le.s32.totalorder 2, %s13
      // Predicated region
      $region41: #{resblock1_forward.3} parent=5 // pred_check
        %p5182 = pneg %p5181
      $region42: #{resblock1_forward.3} parent=5 // pred_check_branch
        %5184 = sbr.rel (%p5182) target = $region44
      $region43: #{resblock1_forward.3} parent=5 // pred_region
        %s5185 = ssub.s32 %s13, 2
        // Predicated region
        $region45: #{resblock1_forward.3} parent=43 // pred_check
          %p5186 = pneg %p136
        $region46: #{resblock1_forward.3} parent=43 // pred_check_branch
          %5188 = sbr.rel (%p5186) target = $region48
        $region47: #{resblock1_forward.3} parent=43 // pred_region
          %s5189 = sand.u32 %s121, 1
          %s5190 = scalar_lea.sflag [#allocation3], %s5189
          %s5191 = sand.u32 %s121, 1
          %s5192 = smul.addr %s5191, 512
          %s5193 = scalar_lea.vmem [#allocation2], %s5192
          %5195 = dma.done %s5190, 8192
        $region48: #{resblock1_forward.3} parent=43 // pred_fallthru
          _
      $region44: #{resblock1_forward.3} parent=5 // pred_fallthru
        _
    $region6: #{resblock1_forward.3} parent=1 // loop_footer
      %s17 = sadd.s32 1, %s13
    $region7: #{resblock1_forward.3} parent=1 // loop_footer_branch
      %12 = sbr.rel target = $region3
    $region8: #{resblock1_forward.3} parent=1 // loop_exit
      _
    %5196 = vsyncpa [#allocation3], 1
    %s5197 = scalar_lea.sflag [#allocation3], 1
    %5198 = vsyncpa %s5197, 1

</llo_original>
